<compile_context>
chip_gen: v6e
topology: v6e:2x2x1
jax: 0.10.0
libtpu: 0.0.40
codegen_flags: <defaults>
</compile_context>

<pallas_src>
import functools

import jax
import jax.numpy as jnp
from jax.experimental import pallas as pl
from jax.experimental.pallas import tpu as pltpu

NEG_SLOPE = 0.2      # GATv2Conv default negative_slope
GN_EPS = 1e-5        # GraphNorm eps
MASK_NEG = -1e30     # additive mask for non-edges
PARAMS_PER_LAYER = 13


# ----------------------------------------------------------------------------
# Pallas kernel (whole GAT stack fused)
# ----------------------------------------------------------------------------
def _approx_recip(d):
    # EUP approximate reciprocal + one Newton step (error ~1e-6 rel).
    r = pl.reciprocal(d, approx=True)
    return r * (2.0 - d * r)


def _pair_logits(col_mat, row_mat, att_ref, h, cout):
    """Attention logits for one head built from 2-D tiles only.

    col_mat: [R, H*Cout]   (node index on the sublane axis)
    row_mat: [H*Cout, C]   (node index on the lane axis)
    returns  [R, C]:  sum_c a[h,c] * LeakyReLU(col_mat[:, k] + row_mat[k, :])
    """
    rows = col_mat.shape[0]
    cols = row_mat.shape[1]
    e = jnp.zeros((rows, cols), jnp.float32)
    for c in range(cout):
        k = h * cout + c
        z = col_mat[:, k:k + 1] + row_mat[k:k + 1, :]      # [R,1]+[1,C] -> [R,C]
        z = jnp.where(z >= 0.0, z, NEG_SLOPE * z)          # LeakyReLU(0.2)
        e = e + att_ref[h, c] * z                          # scalar (SMEM) * tile
    return e


def gat_stack_kernel(*refs, dims, heads):
    """Full GAT stack: for each layer, GATv2Conv(concat=False) + GraphNorm + ReLU.

    refs = (x, xT, adj_bias, adj_biasT,
            per layer: [w, b, wT, bT, att(SMEM), cb, cbT, gw, gb, gms, gwT, gbT, gmsT],
            out)
    """
    x_ref, xt_ref, adjb_ref, adjbt_ref = refs[:4]
    o_ref = refs[-1]
    layer_refs = refs[4:-1]

    x = x_ref[...]            # [N, C]      nodes on sublanes
    xt = xt_ref[...]          # [C, N]      nodes on lanes
    adjb = adjb_ref[...]      # [N_dst, N_src] additive mask (0 / -1e30)
    adjbt = adjbt_ref[...]    # [N_src, N_dst]

    n = x.shape[0]
    n_layers = len(dims)
    for li in range(n_layers):
        (w_ref, b_ref, wt_ref, bt_ref, att_ref, cb_ref, cbt_ref,
         gw_ref, gb_ref, gm_ref, gwt_ref, gbt_ref, gmt_ref) = layer_refs[
            li * PARAMS_PER_LAYER:(li + 1) * PARAMS_PER_LAYER]
        cout = dims[li]
        hc = heads * cout
        need_t = li < n_layers - 1     # transposed activation only feeds the next layer

        # Fused projection for lin_l | lin_r (one MXU dot), in both node layouts.
        xlr = jnp.dot(x, w_ref[...], preferred_element_type=jnp.float32) + b_ref[...]
        xl, xr = xlr[:, :hc], xlr[:, hc:]                     # [N, H*Cout] each
        xlrt = jnp.dot(wt_ref[...], xt, preferred_element_type=jnp.float32) + bt_ref[...]
        xlt, xrt = xlrt[:hc, :], xlrt[hc:, :]                 # [H*Cout, N] each

        acc = jnp.zeros((n, cout), jnp.float32)
        acct = jnp.zeros((cout, n), jnp.float32) if need_t else None
        for h in range(heads):
            # --- logits e[dst, src]; masked softmax over src (lane axis) -----
            e = _pair_logits(xr, xlt, att_ref, h, cout) + adjb
            m = jnp.max(e, axis=-1, keepdims=True)
            p = jnp.exp(e - m)
            d = jnp.maximum(jnp.sum(p, axis=-1, keepdims=True), 1e-20)
            alpha = p * _approx_recip(d)                      # [N_dst, N_src]
            xl_h = xl[:, h * cout:(h + 1) * cout]
            acc = acc + jnp.dot(alpha, xl_h, preferred_element_type=jnp.float32)

            if need_t:
                # Mirrored pass (dst on lanes) -> produces the layer output
                # transposed without any in-kernel vector transpose.
                et = _pair_logits(xl, xrt, att_ref, h, cout) + adjbt
                mt = jnp.max(et, axis=0, keepdims=True)
                pt = jnp.exp(et - mt)
                dt = jnp.maximum(jnp.sum(pt, axis=0, keepdims=True), 1e-20)
                alphat = pt * _approx_recip(dt)               # [N_src, N_dst]
                xlt_h = xlt[h * cout:(h + 1) * cout, :]
                acct = acct + jnp.dot(xlt_h, alphat, preferred_element_type=jnp.float32)

        inv_h = 1.0 / heads
        # concat=False -> mean over heads, + bias; then GraphNorm + ReLU (fused).
        out = acc * inv_h + cb_ref[...]                       # [N, Cout]
        mean = jnp.mean(out, axis=0, keepdims=True)
        cen = out - mean * gm_ref[...]
        var = jnp.mean(cen * cen, axis=0, keepdims=True)
        x = jnp.maximum(gw_ref[...] * cen * jax.lax.rsqrt(var + GN_EPS)
                        + gb_ref[...], 0.0)

        if need_t:
            outt = acct * inv_h + cbt_ref[...]                # [Cout, N]
            meant = jnp.mean(outt, axis=1, keepdims=True)
            cent = outt - meant * gmt_ref[...]
            vart = jnp.mean(cent * cent, axis=1, keepdims=True)
            xt = jnp.maximum(gwt_ref[...] * cent * jax.lax.rsqrt(vart + GN_EPS)
                             + gbt_ref[...], 0.0)

    o_ref[...] = x


# ----------------------------------------------------------------------------
# Wrapper: one pallas_call for the whole forward pass
# ----------------------------------------------------------------------------
def build_gat_forward(layers):
    """Host-side prep (weight fusion + pre-transposes) + single fused pallas_call."""
    heads = layers[0]["heads"]
    dims = tuple(layer["out_ch"] for layer in layers)

    params = []
    for layer in layers:
        c, g = layer["conv"], layer["norm"]
        w = jnp.concatenate([c["wl"], c["wr"]], axis=1)       # [Cin, 2*H*Cout]
        b = jnp.concatenate([c["bl"], c["br"]], axis=1)       # [1,   2*H*Cout]
        params += [
            w, b, w.T, b.T,                                   # fused projection, both layouts
            c["att"],                                         # [H, Cout] -> SMEM scalars
            c["bias"], c["bias"].T,                           # conv bias, both layouts
            g["weight"], g["bias"], g["mean_scale"],          # GraphNorm (row layout)
            g["weight"].T, g["bias"].T, g["mean_scale"].T,    # GraphNorm (column layout)
        ]

    vmem = pl.BlockSpec(memory_space=pltpu.MemorySpace.VMEM)
    smem = pl.BlockSpec(memory_space=pltpu.MemorySpace.SMEM)
    per_layer_specs = [vmem] * 4 + [smem] + [vmem] * 8        # matches PARAMS_PER_LAYER
    in_specs = [vmem] * 4 + per_layer_specs * len(layers)

    kernel = functools.partial(gat_stack_kernel, dims=dims, heads=heads)

    # TODO(synk): for graphs with N >> a few hundred nodes, add a dst/src-tiled grid
    # with an online softmax (flash-attention style) instead of whole-array VMEM blocks.
    @jax.jit
    def forward(x, adj):
        n = x.shape[0]
        # additive edge mask: 0 where an edge exists (incl. self loops), -1e30 otherwise
        adjb = jnp.where(adj > 0.5, 0.0, MASK_NEG).astype(jnp.float32)
        return pl.pallas_call(
            kernel,
            out_shape=jax.ShapeDtypeStruct((n, dims[-1]), jnp.float32),
            in_specs=in_specs,
            out_specs=vmem,
        )(x, x.T, adjb, adjb.T, *params)

    return forward


# ----------------------------------------------------------------------------
# Pure-JAX reference (same math, no Pallas) for a sanity check
# ----------------------------------------------------------------------------
def gatv2_ref(x, adj, p, heads, out_ch):
    xl = x @ p["wl"] + p["bl"]
    xr = x @ p["wr"] + p["br"]
    mask = adj > 0.5
    acc = 0.0
    for h in range(heads):
        xlh = xl[:, h * out_ch:(h + 1) * out_ch]
        xrh = xr[:, h * out_ch:(h + 1) * out_ch]
        s = xrh[:, None, :] + xlh[None, :, :]
        s = jnp.where(s >= 0, s, NEG_SLOPE * s)
        e = jnp.einsum("ijc,c->ij", s, p["att"][h])
        e = jnp.where(mask, e, MASK_NEG)
        pmat = jnp.exp(e - e.max(-1, keepdims=True)) * mask
        alpha = pmat / pmat.sum(-1, keepdims=True)
        acc = acc + alpha @ xlh
    return acc / heads + p["bias"]


def graphnorm_relu_ref(x, p):
    mean = x.mean(0, keepdims=True)
    c = x - mean * p["mean_scale"]
    var = (c * c).mean(0, keepdims=True)
    return jnp.maximum(p["weight"] * c / jnp.sqrt(var + GN_EPS) + p["bias"], 0.0)


def gat_forward_ref(x, adj, layers):
    for layer in layers:
        x = gatv2_ref(x, adj, layer["conv"], layer["heads"], layer["out_ch"])
        x = graphnorm_relu_ref(x, layer["norm"])
    return x


# ----------------------------------------------------------------------------
# Deterministic parameter init (mirrors shapes of PyG GATv2Conv / GraphNorm)
# ----------------------------------------------------------------------------
def glorot(key, shape):
    fan_in, fan_out = shape[0], shape[-1]
    lim = (6.0 / (fan_in + fan_out)) ** 0.5
    return jax.random.uniform(key, shape, jnp.float32, -lim, lim)


def make_gat_params(key, hidden_channels, input_channel, heads):
    all_ch = [input_channel] + list(hidden_channels)
    layers = []
    for i in range(len(all_ch) - 1):
        cin, cout = all_ch[i], all_ch[i + 1]
        key, k1, k2, k3, k4 = jax.random.split(key, 5)
        conv = {
            "wl":  glorot(k1, (cin, heads * cout)),           # lin_l weight
            "wr":  glorot(k2, (cin, heads * cout)),           # lin_r weight
            "bl":  0.01 * jax.random.normal(k3, (1, heads * cout), jnp.float32),
            "br":  jnp.zeros((1, heads * cout), jnp.float32),
            "att": glorot(k4, (heads, cout)),                 # attention vector a
            "bias": jnp.zeros((1, cout), jnp.float32),        # concat=False -> [cout]
        }
        norm = {
            "weight":     jnp.ones((1, cout), jnp.float32),
            "bias":       jnp.zeros((1, cout), jnp.float32),
            "mean_scale": jnp.ones((1, cout), jnp.float32),
        }
        layers.append({"conv": conv, "norm": norm, "heads": heads, "out_ch": cout})
    return layers


# ----------------------------------------------------------------------------
if __name__ == "__main__":
    key = jax.random.PRNGKey(0)

    # GAT(hidden_channels=[32, 16], heads=2, input_channel=4, out=False)
    N = 16
    input_channel = 4
    hidden_channels = [32, 16]
    heads = 2

    key, kx, kp = jax.random.split(key, 3)
    x = jax.random.normal(kx, (N, input_channel), jnp.float32)

    # deterministic small graph: bidirectional ring -> edge_index [2, 2N]
    src = jnp.arange(N, dtype=jnp.int32)
    dst = (src + 1) % N
    edge_index = jnp.concatenate(
        [jnp.stack([src, dst]), jnp.stack([dst, src])], axis=1)   # [2, 32]

    # dense adjacency mask adj[dst, src] (+ self loops, as GATv2Conv adds them)
    adj = jnp.zeros((N, N), jnp.float32).at[edge_index[1], edge_index[0]].set(1.0)
    adj = jnp.maximum(adj, jnp.eye(N, dtype=jnp.float32))

    layers = make_gat_params(kp, hidden_channels, input_channel, heads)

    gat_forward = build_gat_forward(layers)
    out = gat_forward(x, adj)
    out = jax.block_until_ready(out)

    ref = gat_forward_ref(x, adj, layers)
    assert out.shape == (N, hidden_channels[-1])
    assert jnp.allclose(out, ref, atol=2e-4, rtol=2e-4), "mismatch vs JAX reference"

    print("KERNEL_OK")
</pallas_src>

<mosaic_0001>
module attributes {stable_mosaic.version = 11 : i64} {
  func.func @gat_stack_kernel(%arg0: memref<16x4xf32, #tpu.memory_space<vmem>>, %arg1: memref<4x16xf32, #tpu.memory_space<vmem>>, %arg2: memref<16x16xf32, #tpu.memory_space<vmem>>, %arg3: memref<16x16xf32, #tpu.memory_space<vmem>>, %arg4: memref<4x128xf32, #tpu.memory_space<vmem>>, %arg5: memref<1x128xf32, #tpu.memory_space<vmem>>, %arg6: memref<128x4xf32, #tpu.memory_space<vmem>>, %arg7: memref<128x1xf32, #tpu.memory_space<vmem>>, %arg8: memref<2x32xf32, #tpu.memory_space<smem>>, %arg9: memref<1x32xf32, #tpu.memory_space<vmem>>, %arg10: memref<32x1xf32, #tpu.memory_space<vmem>>, %arg11: memref<1x32xf32, #tpu.memory_space<vmem>>, %arg12: memref<1x32xf32, #tpu.memory_space<vmem>>, %arg13: memref<1x32xf32, #tpu.memory_space<vmem>>, %arg14: memref<32x1xf32, #tpu.memory_space<vmem>>, %arg15: memref<32x1xf32, #tpu.memory_space<vmem>>, %arg16: memref<32x1xf32, #tpu.memory_space<vmem>>, %arg17: memref<32x64xf32, #tpu.memory_space<vmem>>, %arg18: memref<1x64xf32, #tpu.memory_space<vmem>>, %arg19: memref<64x32xf32, #tpu.memory_space<vmem>>, %arg20: memref<64x1xf32, #tpu.memory_space<vmem>>, %arg21: memref<2x16xf32, #tpu.memory_space<smem>>, %arg22: memref<1x16xf32, #tpu.memory_space<vmem>>, %arg23: memref<16x1xf32, #tpu.memory_space<vmem>>, %arg24: memref<1x16xf32, #tpu.memory_space<vmem>>, %arg25: memref<1x16xf32, #tpu.memory_space<vmem>>, %arg26: memref<1x16xf32, #tpu.memory_space<vmem>>, %arg27: memref<16x1xf32, #tpu.memory_space<vmem>>, %arg28: memref<16x1xf32, #tpu.memory_space<vmem>>, %arg29: memref<16x1xf32, #tpu.memory_space<vmem>>, %arg30: memref<16x16xf32, #tpu.memory_space<vmem>>) attributes {dimension_semantics = [], scalar_prefetch = 0 : i64, scratch_operands = 0 : i64, tpu.core_type = #tpu.core_type<tc>} {
    %c0 = arith.constant 0 : index
    %c0_0 = arith.constant 0 : index
    %0 = vector.load %arg0[%c0, %c0_0] : memref<16x4xf32, #tpu.memory_space<vmem>>, vector<16x4xf32>
    %c0_1 = arith.constant 0 : index
    %c0_2 = arith.constant 0 : index
    %1 = vector.load %arg1[%c0_1, %c0_2] : memref<4x16xf32, #tpu.memory_space<vmem>>, vector<4x16xf32>
    %c0_3 = arith.constant 0 : index
    %c0_4 = arith.constant 0 : index
    %2 = vector.load %arg2[%c0_3, %c0_4] : memref<16x16xf32, #tpu.memory_space<vmem>>, vector<16x16xf32>
    %c0_5 = arith.constant 0 : index
    %c0_6 = arith.constant 0 : index
    %3 = vector.load %arg3[%c0_5, %c0_6] : memref<16x16xf32, #tpu.memory_space<vmem>>, vector<16x16xf32>
    %c0_7 = arith.constant 0 : index
    %c0_8 = arith.constant 0 : index
    %4 = vector.load %arg4[%c0_7, %c0_8] : memref<4x128xf32, #tpu.memory_space<vmem>>, vector<4x128xf32>
    %cst = arith.constant dense<0.000000e+00> : vector<16x128xf32>
    %5 = tpu.matmul %0, %4, %cst {dimension_numbers = #tpu.dot_dimension_numbers<[1], [0], [0], [1], [0, 0, 1, 1], [], []>} : vector<16x4xf32>, vector<4x128xf32>, vector<16x128xf32> -> vector<16x128xf32>
    %c0_9 = arith.constant 0 : index
    %c0_10 = arith.constant 0 : index
    %6 = vector.load %arg5[%c0_9, %c0_10] : memref<1x128xf32, #tpu.memory_space<vmem>>, vector<1x128xf32>
    %7 = vector.broadcast %6 : vector<1x128xf32> to vector<16x128xf32>
    %8 = arith.addf %5, %7 : vector<16x128xf32>
    %9 = vector.extract_strided_slice %8 {offsets = [0, 0], sizes = [16, 64], strides = [1, 1]} : vector<16x128xf32> to vector<16x64xf32>
    %10 = vector.extract_strided_slice %8 {offsets = [0, 64], sizes = [16, 64], strides = [1, 1]} : vector<16x128xf32> to vector<16x64xf32>
    %c0_11 = arith.constant 0 : index
    %c0_12 = arith.constant 0 : index
    %11 = vector.load %arg6[%c0_11, %c0_12] : memref<128x4xf32, #tpu.memory_space<vmem>>, vector<128x4xf32>
    %cst_13 = arith.constant dense<0.000000e+00> : vector<128x16xf32>
    %12 = tpu.matmul %11, %1, %cst_13 {dimension_numbers = #tpu.dot_dimension_numbers<[1], [0], [0], [1], [0, 0, 1, 1], [], []>} : vector<128x4xf32>, vector<4x16xf32>, vector<128x16xf32> -> vector<128x16xf32>
    %c0_14 = arith.constant 0 : index
    %c0_15 = arith.constant 0 : index
    %13 = vector.load %arg7[%c0_14, %c0_15] : memref<128x1xf32, #tpu.memory_space<vmem>>, vector<128x1xf32>
    %14 = vector.broadcast %13 : vector<128x1xf32> to vector<128x16xf32>
    %15 = arith.addf %12, %14 : vector<128x16xf32>
    %16 = vector.extract_strided_slice %15 {offsets = [0, 0], sizes = [64, 16], strides = [1, 1]} : vector<128x16xf32> to vector<64x16xf32>
    %17 = vector.extract_strided_slice %15 {offsets = [64, 0], sizes = [64, 16], strides = [1, 1]} : vector<128x16xf32> to vector<64x16xf32>
    %cst_16 = arith.constant 0.000000e+00 : f32
    %18 = vector.broadcast %cst_16 : f32 to vector<16x32xf32>
    %cst_17 = arith.constant 0.000000e+00 : f32
    %19 = vector.broadcast %cst_17 : f32 to vector<32x16xf32>
    %cst_18 = arith.constant 0.000000e+00 : f32
    %20 = vector.broadcast %cst_18 : f32 to vector<16x16xf32>
    %21 = vector.extract_strided_slice %10 {offsets = [0, 0], sizes = [16, 1], strides = [1, 1]} : vector<16x64xf32> to vector<16x1xf32>
    %22 = vector.extract_strided_slice %16 {offsets = [0, 0], sizes = [1, 16], strides = [1, 1]} : vector<64x16xf32> to vector<1x16xf32>
    %23 = vector.broadcast %21 : vector<16x1xf32> to vector<16x16xf32>
    %24 = vector.broadcast %22 : vector<1x16xf32> to vector<16x16xf32>
    %25 = arith.addf %23, %24 : vector<16x16xf32>
    %cst_19 = arith.constant 0.000000e+00 : f32
    %26 = vector.broadcast %cst_19 : f32 to vector<16x16xf32>
    %27 = arith.cmpf oge, %25, %26 : vector<16x16xf32>
    %cst_20 = arith.constant 2.000000e-01 : f32
    %28 = vector.broadcast %cst_20 : f32 to vector<16x16xf32>
    %29 = arith.mulf %28, %25 : vector<16x16xf32>
    %30 = arith.select %27, %25, %29 : vector<16x16xi1>, vector<16x16xf32>
    %c0_21 = arith.constant 0 : index
    %c0_22 = arith.constant 0 : index
    %31 = memref.load %arg8[%c0_21, %c0_22] : memref<2x32xf32, #tpu.memory_space<smem>>
    %32 = vector.broadcast %31 : f32 to vector<16x16xf32>
    %33 = arith.mulf %32, %30 : vector<16x16xf32>
    %34 = arith.addf %20, %33 : vector<16x16xf32>
    %35 = vector.extract_strided_slice %10 {offsets = [0, 1], sizes = [16, 1], strides = [1, 1]} : vector<16x64xf32> to vector<16x1xf32>
    %36 = vector.extract_strided_slice %16 {offsets = [1, 0], sizes = [1, 16], strides = [1, 1]} : vector<64x16xf32> to vector<1x16xf32>
    %37 = vector.broadcast %35 : vector<16x1xf32> to vector<16x16xf32>
    %38 = vector.broadcast %36 : vector<1x16xf32> to vector<16x16xf32>
    %39 = arith.addf %37, %38 : vector<16x16xf32>
    %cst_23 = arith.constant 0.000000e+00 : f32
    %40 = vector.broadcast %cst_23 : f32 to vector<16x16xf32>
    %41 = arith.cmpf oge, %39, %40 : vector<16x16xf32>
    %cst_24 = arith.constant 2.000000e-01 : f32
    %42 = vector.broadcast %cst_24 : f32 to vector<16x16xf32>
    %43 = arith.mulf %42, %39 : vector<16x16xf32>
    %44 = arith.select %41, %39, %43 : vector<16x16xi1>, vector<16x16xf32>
    %c0_25 = arith.constant 0 : index
    %c1 = arith.constant 1 : index
    %45 = memref.load %arg8[%c0_25, %c1] : memref<2x32xf32, #tpu.memory_space<smem>>
    %46 = vector.broadcast %45 : f32 to vector<16x16xf32>
    %47 = arith.mulf %46, %44 : vector<16x16xf32>
    %48 = arith.addf %34, %47 : vector<16x16xf32>
    %49 = vector.extract_strided_slice %10 {offsets = [0, 2], sizes = [16, 1], strides = [1, 1]} : vector<16x64xf32> to vector<16x1xf32>
    %50 = vector.extract_strided_slice %16 {offsets = [2, 0], sizes = [1, 16], strides = [1, 1]} : vector<64x16xf32> to vector<1x16xf32>
    %51 = vector.broadcast %49 : vector<16x1xf32> to vector<16x16xf32>
    %52 = vector.broadcast %50 : vector<1x16xf32> to vector<16x16xf32>
    %53 = arith.addf %51, %52 : vector<16x16xf32>
    %cst_26 = arith.constant 0.000000e+00 : f32
    %54 = vector.broadcast %cst_26 : f32 to vector<16x16xf32>
    %55 = arith.cmpf oge, %53, %54 : vector<16x16xf32>
    %cst_27 = arith.constant 2.000000e-01 : f32
    %56 = vector.broadcast %cst_27 : f32 to vector<16x16xf32>
    %57 = arith.mulf %56, %53 : vector<16x16xf32>
    %58 = arith.select %55, %53, %57 : vector<16x16xi1>, vector<16x16xf32>
    %c0_28 = arith.constant 0 : index
    %c2 = arith.constant 2 : index
    %59 = memref.load %arg8[%c0_28, %c2] : memref<2x32xf32, #tpu.memory_space<smem>>
    %60 = vector.broadcast %59 : f32 to vector<16x16xf32>
    %61 = arith.mulf %60, %58 : vector<16x16xf32>
    %62 = arith.addf %48, %61 : vector<16x16xf32>
    %63 = vector.extract_strided_slice %10 {offsets = [0, 3], sizes = [16, 1], strides = [1, 1]} : vector<16x64xf32> to vector<16x1xf32>
    %64 = vector.extract_strided_slice %16 {offsets = [3, 0], sizes = [1, 16], strides = [1, 1]} : vector<64x16xf32> to vector<1x16xf32>
    %65 = vector.broadcast %63 : vector<16x1xf32> to vector<16x16xf32>
    %66 = vector.broadcast %64 : vector<1x16xf32> to vector<16x16xf32>
    %67 = arith.addf %65, %66 : vector<16x16xf32>
    %cst_29 = arith.constant 0.000000e+00 : f32
    %68 = vector.broadcast %cst_29 : f32 to vector<16x16xf32>
    %69 = arith.cmpf oge, %67, %68 : vector<16x16xf32>
    %cst_30 = arith.constant 2.000000e-01 : f32
    %70 = vector.broadcast %cst_30 : f32 to vector<16x16xf32>
    %71 = arith.mulf %70, %67 : vector<16x16xf32>
    %72 = arith.select %69, %67, %71 : vector<16x16xi1>, vector<16x16xf32>
    %c0_31 = arith.constant 0 : index
    %c3 = arith.constant 3 : index
    %73 = memref.load %arg8[%c0_31, %c3] : memref<2x32xf32, #tpu.memory_space<smem>>
    %74 = vector.broadcast %73 : f32 to vector<16x16xf32>
    %75 = arith.mulf %74, %72 : vector<16x16xf32>
    %76 = arith.addf %62, %75 : vector<16x16xf32>
    %77 = vector.extract_strided_slice %10 {offsets = [0, 4], sizes = [16, 1], strides = [1, 1]} : vector<16x64xf32> to vector<16x1xf32>
    %78 = vector.extract_strided_slice %16 {offsets = [4, 0], sizes = [1, 16], strides = [1, 1]} : vector<64x16xf32> to vector<1x16xf32>
    %79 = vector.broadcast %77 : vector<16x1xf32> to vector<16x16xf32>
    %80 = vector.broadcast %78 : vector<1x16xf32> to vector<16x16xf32>
    %81 = arith.addf %79, %80 : vector<16x16xf32>
    %cst_32 = arith.constant 0.000000e+00 : f32
    %82 = vector.broadcast %cst_32 : f32 to vector<16x16xf32>
    %83 = arith.cmpf oge, %81, %82 : vector<16x16xf32>
    %cst_33 = arith.constant 2.000000e-01 : f32
    %84 = vector.broadcast %cst_33 : f32 to vector<16x16xf32>
    %85 = arith.mulf %84, %81 : vector<16x16xf32>
    %86 = arith.select %83, %81, %85 : vector<16x16xi1>, vector<16x16xf32>
    %c0_34 = arith.constant 0 : index
    %c4 = arith.constant 4 : index
    %87 = memref.load %arg8[%c0_34, %c4] : memref<2x32xf32, #tpu.memory_space<smem>>
    %88 = vector.broadcast %87 : f32 to vector<16x16xf32>
    %89 = arith.mulf %88, %86 : vector<16x16xf32>
    %90 = arith.addf %76, %89 : vector<16x16xf32>
    %91 = vector.extract_strided_slice %10 {offsets = [0, 5], sizes = [16, 1], strides = [1, 1]} : vector<16x64xf32> to vector<16x1xf32>
    %92 = vector.extract_strided_slice %16 {offsets = [5, 0], sizes = [1, 16], strides = [1, 1]} : vector<64x16xf32> to vector<1x16xf32>
    %93 = vector.broadcast %91 : vector<16x1xf32> to vector<16x16xf32>
    %94 = vector.broadcast %92 : vector<1x16xf32> to vector<16x16xf32>
    %95 = arith.addf %93, %94 : vector<16x16xf32>
    %cst_35 = arith.constant 0.000000e+00 : f32
    %96 = vector.broadcast %cst_35 : f32 to vector<16x16xf32>
    %97 = arith.cmpf oge, %95, %96 : vector<16x16xf32>
    %cst_36 = arith.constant 2.000000e-01 : f32
    %98 = vector.broadcast %cst_36 : f32 to vector<16x16xf32>
    %99 = arith.mulf %98, %95 : vector<16x16xf32>
    %100 = arith.select %97, %95, %99 : vector<16x16xi1>, vector<16x16xf32>
    %c0_37 = arith.constant 0 : index
    %c5 = arith.constant 5 : index
    %101 = memref.load %arg8[%c0_37, %c5] : memref<2x32xf32, #tpu.memory_space<smem>>
    %102 = vector.broadcast %101 : f32 to vector<16x16xf32>
    %103 = arith.mulf %102, %100 : vector<16x16xf32>
    %104 = arith.addf %90, %103 : vector<16x16xf32>
    %105 = vector.extract_strided_slice %10 {offsets = [0, 6], sizes = [16, 1], strides = [1, 1]} : vector<16x64xf32> to vector<16x1xf32>
    %106 = vector.extract_strided_slice %16 {offsets = [6, 0], sizes = [1, 16], strides = [1, 1]} : vector<64x16xf32> to vector<1x16xf32>
    %107 = vector.broadcast %105 : vector<16x1xf32> to vector<16x16xf32>
    %108 = vector.broadcast %106 : vector<1x16xf32> to vector<16x16xf32>
    %109 = arith.addf %107, %108 : vector<16x16xf32>
    %cst_38 = arith.constant 0.000000e+00 : f32
    %110 = vector.broadcast %cst_38 : f32 to vector<16x16xf32>
    %111 = arith.cmpf oge, %109, %110 : vector<16x16xf32>
    %cst_39 = arith.constant 2.000000e-01 : f32
    %112 = vector.broadcast %cst_39 : f32 to vector<16x16xf32>
    %113 = arith.mulf %112, %109 : vector<16x16xf32>
    %114 = arith.select %111, %109, %113 : vector<16x16xi1>, vector<16x16xf32>
    %c0_40 = arith.constant 0 : index
    %c6 = arith.constant 6 : index
    %115 = memref.load %arg8[%c0_40, %c6] : memref<2x32xf32, #tpu.memory_space<smem>>
    %116 = vector.broadcast %115 : f32 to vector<16x16xf32>
    %117 = arith.mulf %116, %114 : vector<16x16xf32>
    %118 = arith.addf %104, %117 : vector<16x16xf32>
    %119 = vector.extract_strided_slice %10 {offsets = [0, 7], sizes = [16, 1], strides = [1, 1]} : vector<16x64xf32> to vector<16x1xf32>
    %120 = vector.extract_strided_slice %16 {offsets = [7, 0], sizes = [1, 16], strides = [1, 1]} : vector<64x16xf32> to vector<1x16xf32>
    %121 = vector.broadcast %119 : vector<16x1xf32> to vector<16x16xf32>
    %122 = vector.broadcast %120 : vector<1x16xf32> to vector<16x16xf32>
    %123 = arith.addf %121, %122 : vector<16x16xf32>
    %cst_41 = arith.constant 0.000000e+00 : f32
    %124 = vector.broadcast %cst_41 : f32 to vector<16x16xf32>
    %125 = arith.cmpf oge, %123, %124 : vector<16x16xf32>
    %cst_42 = arith.constant 2.000000e-01 : f32
    %126 = vector.broadcast %cst_42 : f32 to vector<16x16xf32>
    %127 = arith.mulf %126, %123 : vector<16x16xf32>
    %128 = arith.select %125, %123, %127 : vector<16x16xi1>, vector<16x16xf32>
    %c0_43 = arith.constant 0 : index
    %c7 = arith.constant 7 : index
    %129 = memref.load %arg8[%c0_43, %c7] : memref<2x32xf32, #tpu.memory_space<smem>>
    %130 = vector.broadcast %129 : f32 to vector<16x16xf32>
    %131 = arith.mulf %130, %128 : vector<16x16xf32>
    %132 = arith.addf %118, %131 : vector<16x16xf32>
    %133 = vector.extract_strided_slice %10 {offsets = [0, 8], sizes = [16, 1], strides = [1, 1]} : vector<16x64xf32> to vector<16x1xf32>
    %134 = vector.extract_strided_slice %16 {offsets = [8, 0], sizes = [1, 16], strides = [1, 1]} : vector<64x16xf32> to vector<1x16xf32>
    %135 = vector.broadcast %133 : vector<16x1xf32> to vector<16x16xf32>
    %136 = vector.broadcast %134 : vector<1x16xf32> to vector<16x16xf32>
    %137 = arith.addf %135, %136 : vector<16x16xf32>
    %cst_44 = arith.constant 0.000000e+00 : f32
    %138 = vector.broadcast %cst_44 : f32 to vector<16x16xf32>
    %139 = arith.cmpf oge, %137, %138 : vector<16x16xf32>
    %cst_45 = arith.constant 2.000000e-01 : f32
    %140 = vector.broadcast %cst_45 : f32 to vector<16x16xf32>
    %141 = arith.mulf %140, %137 : vector<16x16xf32>
    %142 = arith.select %139, %137, %141 : vector<16x16xi1>, vector<16x16xf32>
    %c0_46 = arith.constant 0 : index
    %c8 = arith.constant 8 : index
    %143 = memref.load %arg8[%c0_46, %c8] : memref<2x32xf32, #tpu.memory_space<smem>>
    %144 = vector.broadcast %143 : f32 to vector<16x16xf32>
    %145 = arith.mulf %144, %142 : vector<16x16xf32>
    %146 = arith.addf %132, %145 : vector<16x16xf32>
    %147 = vector.extract_strided_slice %10 {offsets = [0, 9], sizes = [16, 1], strides = [1, 1]} : vector<16x64xf32> to vector<16x1xf32>
    %148 = vector.extract_strided_slice %16 {offsets = [9, 0], sizes = [1, 16], strides = [1, 1]} : vector<64x16xf32> to vector<1x16xf32>
    %149 = vector.broadcast %147 : vector<16x1xf32> to vector<16x16xf32>
    %150 = vector.broadcast %148 : vector<1x16xf32> to vector<16x16xf32>
    %151 = arith.addf %149, %150 : vector<16x16xf32>
    %cst_47 = arith.constant 0.000000e+00 : f32
    %152 = vector.broadcast %cst_47 : f32 to vector<16x16xf32>
    %153 = arith.cmpf oge, %151, %152 : vector<16x16xf32>
    %cst_48 = arith.constant 2.000000e-01 : f32
    %154 = vector.broadcast %cst_48 : f32 to vector<16x16xf32>
    %155 = arith.mulf %154, %151 : vector<16x16xf32>
    %156 = arith.select %153, %151, %155 : vector<16x16xi1>, vector<16x16xf32>
    %c0_49 = arith.constant 0 : index
    %c9 = arith.constant 9 : index
    %157 = memref.load %arg8[%c0_49, %c9] : memref<2x32xf32, #tpu.memory_space<smem>>
    %158 = vector.broadcast %157 : f32 to vector<16x16xf32>
    %159 = arith.mulf %158, %156 : vector<16x16xf32>
    %160 = arith.addf %146, %159 : vector<16x16xf32>
    %161 = vector.extract_strided_slice %10 {offsets = [0, 10], sizes = [16, 1], strides = [1, 1]} : vector<16x64xf32> to vector<16x1xf32>
    %162 = vector.extract_strided_slice %16 {offsets = [10, 0], sizes = [1, 16], strides = [1, 1]} : vector<64x16xf32> to vector<1x16xf32>
    %163 = vector.broadcast %161 : vector<16x1xf32> to vector<16x16xf32>
    %164 = vector.broadcast %162 : vector<1x16xf32> to vector<16x16xf32>
    %165 = arith.addf %163, %164 : vector<16x16xf32>
    %cst_50 = arith.constant 0.000000e+00 : f32
    %166 = vector.broadcast %cst_50 : f32 to vector<16x16xf32>
    %167 = arith.cmpf oge, %165, %166 : vector<16x16xf32>
    %cst_51 = arith.constant 2.000000e-01 : f32
    %168 = vector.broadcast %cst_51 : f32 to vector<16x16xf32>
    %169 = arith.mulf %168, %165 : vector<16x16xf32>
    %170 = arith.select %167, %165, %169 : vector<16x16xi1>, vector<16x16xf32>
    %c0_52 = arith.constant 0 : index
    %c10 = arith.constant 10 : index
    %171 = memref.load %arg8[%c0_52, %c10] : memref<2x32xf32, #tpu.memory_space<smem>>
    %172 = vector.broadcast %171 : f32 to vector<16x16xf32>
    %173 = arith.mulf %172, %170 : vector<16x16xf32>
    %174 = arith.addf %160, %173 : vector<16x16xf32>
    %175 = vector.extract_strided_slice %10 {offsets = [0, 11], sizes = [16, 1], strides = [1, 1]} : vector<16x64xf32> to vector<16x1xf32>
    %176 = vector.extract_strided_slice %16 {offsets = [11, 0], sizes = [1, 16], strides = [1, 1]} : vector<64x16xf32> to vector<1x16xf32>
    %177 = vector.broadcast %175 : vector<16x1xf32> to vector<16x16xf32>
    %178 = vector.broadcast %176 : vector<1x16xf32> to vector<16x16xf32>
    %179 = arith.addf %177, %178 : vector<16x16xf32>
    %cst_53 = arith.constant 0.000000e+00 : f32
    %180 = vector.broadcast %cst_53 : f32 to vector<16x16xf32>
    %181 = arith.cmpf oge, %179, %180 : vector<16x16xf32>
    %cst_54 = arith.constant 2.000000e-01 : f32
    %182 = vector.broadcast %cst_54 : f32 to vector<16x16xf32>
    %183 = arith.mulf %182, %179 : vector<16x16xf32>
    %184 = arith.select %181, %179, %183 : vector<16x16xi1>, vector<16x16xf32>
    %c0_55 = arith.constant 0 : index
    %c11 = arith.constant 11 : index
    %185 = memref.load %arg8[%c0_55, %c11] : memref<2x32xf32, #tpu.memory_space<smem>>
    %186 = vector.broadcast %185 : f32 to vector<16x16xf32>
    %187 = arith.mulf %186, %184 : vector<16x16xf32>
    %188 = arith.addf %174, %187 : vector<16x16xf32>
    %189 = vector.extract_strided_slice %10 {offsets = [0, 12], sizes = [16, 1], strides = [1, 1]} : vector<16x64xf32> to vector<16x1xf32>
    %190 = vector.extract_strided_slice %16 {offsets = [12, 0], sizes = [1, 16], strides = [1, 1]} : vector<64x16xf32> to vector<1x16xf32>
    %191 = vector.broadcast %189 : vector<16x1xf32> to vector<16x16xf32>
    %192 = vector.broadcast %190 : vector<1x16xf32> to vector<16x16xf32>
    %193 = arith.addf %191, %192 : vector<16x16xf32>
    %cst_56 = arith.constant 0.000000e+00 : f32
    %194 = vector.broadcast %cst_56 : f32 to vector<16x16xf32>
    %195 = arith.cmpf oge, %193, %194 : vector<16x16xf32>
    %cst_57 = arith.constant 2.000000e-01 : f32
    %196 = vector.broadcast %cst_57 : f32 to vector<16x16xf32>
    %197 = arith.mulf %196, %193 : vector<16x16xf32>
    %198 = arith.select %195, %193, %197 : vector<16x16xi1>, vector<16x16xf32>
    %c0_58 = arith.constant 0 : index
    %c12 = arith.constant 12 : index
    %199 = memref.load %arg8[%c0_58, %c12] : memref<2x32xf32, #tpu.memory_space<smem>>
    %200 = vector.broadcast %199 : f32 to vector<16x16xf32>
    %201 = arith.mulf %200, %198 : vector<16x16xf32>
    %202 = arith.addf %188, %201 : vector<16x16xf32>
    %203 = vector.extract_strided_slice %10 {offsets = [0, 13], sizes = [16, 1], strides = [1, 1]} : vector<16x64xf32> to vector<16x1xf32>
    %204 = vector.extract_strided_slice %16 {offsets = [13, 0], sizes = [1, 16], strides = [1, 1]} : vector<64x16xf32> to vector<1x16xf32>
    %205 = vector.broadcast %203 : vector<16x1xf32> to vector<16x16xf32>
    %206 = vector.broadcast %204 : vector<1x16xf32> to vector<16x16xf32>
    %207 = arith.addf %205, %206 : vector<16x16xf32>
    %cst_59 = arith.constant 0.000000e+00 : f32
    %208 = vector.broadcast %cst_59 : f32 to vector<16x16xf32>
    %209 = arith.cmpf oge, %207, %208 : vector<16x16xf32>
    %cst_60 = arith.constant 2.000000e-01 : f32
    %210 = vector.broadcast %cst_60 : f32 to vector<16x16xf32>
    %211 = arith.mulf %210, %207 : vector<16x16xf32>
    %212 = arith.select %209, %207, %211 : vector<16x16xi1>, vector<16x16xf32>
    %c0_61 = arith.constant 0 : index
    %c13 = arith.constant 13 : index
    %213 = memref.load %arg8[%c0_61, %c13] : memref<2x32xf32, #tpu.memory_space<smem>>
    %214 = vector.broadcast %213 : f32 to vector<16x16xf32>
    %215 = arith.mulf %214, %212 : vector<16x16xf32>
    %216 = arith.addf %202, %215 : vector<16x16xf32>
    %217 = vector.extract_strided_slice %10 {offsets = [0, 14], sizes = [16, 1], strides = [1, 1]} : vector<16x64xf32> to vector<16x1xf32>
    %218 = vector.extract_strided_slice %16 {offsets = [14, 0], sizes = [1, 16], strides = [1, 1]} : vector<64x16xf32> to vector<1x16xf32>
    %219 = vector.broadcast %217 : vector<16x1xf32> to vector<16x16xf32>
    %220 = vector.broadcast %218 : vector<1x16xf32> to vector<16x16xf32>
    %221 = arith.addf %219, %220 : vector<16x16xf32>
    %cst_62 = arith.constant 0.000000e+00 : f32
    %222 = vector.broadcast %cst_62 : f32 to vector<16x16xf32>
    %223 = arith.cmpf oge, %221, %222 : vector<16x16xf32>
    %cst_63 = arith.constant 2.000000e-01 : f32
    %224 = vector.broadcast %cst_63 : f32 to vector<16x16xf32>
    %225 = arith.mulf %224, %221 : vector<16x16xf32>
    %226 = arith.select %223, %221, %225 : vector<16x16xi1>, vector<16x16xf32>
    %c0_64 = arith.constant 0 : index
    %c14 = arith.constant 14 : index
    %227 = memref.load %arg8[%c0_64, %c14] : memref<2x32xf32, #tpu.memory_space<smem>>
    %228 = vector.broadcast %227 : f32 to vector<16x16xf32>
    %229 = arith.mulf %228, %226 : vector<16x16xf32>
    %230 = arith.addf %216, %229 : vector<16x16xf32>
    %231 = vector.extract_strided_slice %10 {offsets = [0, 15], sizes = [16, 1], strides = [1, 1]} : vector<16x64xf32> to vector<16x1xf32>
    %232 = vector.extract_strided_slice %16 {offsets = [15, 0], sizes = [1, 16], strides = [1, 1]} : vector<64x16xf32> to vector<1x16xf32>
    %233 = vector.broadcast %231 : vector<16x1xf32> to vector<16x16xf32>
    %234 = vector.broadcast %232 : vector<1x16xf32> to vector<16x16xf32>
    %235 = arith.addf %233, %234 : vector<16x16xf32>
    %cst_65 = arith.constant 0.000000e+00 : f32
    %236 = vector.broadcast %cst_65 : f32 to vector<16x16xf32>
    %237 = arith.cmpf oge, %235, %236 : vector<16x16xf32>
    %cst_66 = arith.constant 2.000000e-01 : f32
    %238 = vector.broadcast %cst_66 : f32 to vector<16x16xf32>
    %239 = arith.mulf %238, %235 : vector<16x16xf32>
    %240 = arith.select %237, %235, %239 : vector<16x16xi1>, vector<16x16xf32>
    %c0_67 = arith.constant 0 : index
    %c15 = arith.constant 15 : index
    %241 = memref.load %arg8[%c0_67, %c15] : memref<2x32xf32, #tpu.memory_space<smem>>
    %242 = vector.broadcast %241 : f32 to vector<16x16xf32>
    %243 = arith.mulf %242, %240 : vector<16x16xf32>
    %244 = arith.addf %230, %243 : vector<16x16xf32>
    %245 = vector.extract_strided_slice %10 {offsets = [0, 16], sizes = [16, 1], strides = [1, 1]} : vector<16x64xf32> to vector<16x1xf32>
    %246 = vector.extract_strided_slice %16 {offsets = [16, 0], sizes = [1, 16], strides = [1, 1]} : vector<64x16xf32> to vector<1x16xf32>
    %247 = vector.broadcast %245 : vector<16x1xf32> to vector<16x16xf32>
    %248 = vector.broadcast %246 : vector<1x16xf32> to vector<16x16xf32>
    %249 = arith.addf %247, %248 : vector<16x16xf32>
    %cst_68 = arith.constant 0.000000e+00 : f32
    %250 = vector.broadcast %cst_68 : f32 to vector<16x16xf32>
    %251 = arith.cmpf oge, %249, %250 : vector<16x16xf32>
    %cst_69 = arith.constant 2.000000e-01 : f32
    %252 = vector.broadcast %cst_69 : f32 to vector<16x16xf32>
    %253 = arith.mulf %252, %249 : vector<16x16xf32>
    %254 = arith.select %251, %249, %253 : vector<16x16xi1>, vector<16x16xf32>
    %c0_70 = arith.constant 0 : index
    %c16 = arith.constant 16 : index
    %255 = memref.load %arg8[%c0_70, %c16] : memref<2x32xf32, #tpu.memory_space<smem>>
    %256 = vector.broadcast %255 : f32 to vector<16x16xf32>
    %257 = arith.mulf %256, %254 : vector<16x16xf32>
    %258 = arith.addf %244, %257 : vector<16x16xf32>
    %259 = vector.extract_strided_slice %10 {offsets = [0, 17], sizes = [16, 1], strides = [1, 1]} : vector<16x64xf32> to vector<16x1xf32>
    %260 = vector.extract_strided_slice %16 {offsets = [17, 0], sizes = [1, 16], strides = [1, 1]} : vector<64x16xf32> to vector<1x16xf32>
    %261 = vector.broadcast %259 : vector<16x1xf32> to vector<16x16xf32>
    %262 = vector.broadcast %260 : vector<1x16xf32> to vector<16x16xf32>
    %263 = arith.addf %261, %262 : vector<16x16xf32>
    %cst_71 = arith.constant 0.000000e+00 : f32
    %264 = vector.broadcast %cst_71 : f32 to vector<16x16xf32>
    %265 = arith.cmpf oge, %263, %264 : vector<16x16xf32>
    %cst_72 = arith.constant 2.000000e-01 : f32
    %266 = vector.broadcast %cst_72 : f32 to vector<16x16xf32>
    %267 = arith.mulf %266, %263 : vector<16x16xf32>
    %268 = arith.select %265, %263, %267 : vector<16x16xi1>, vector<16x16xf32>
    %c0_73 = arith.constant 0 : index
    %c17 = arith.constant 17 : index
    %269 = memref.load %arg8[%c0_73, %c17] : memref<2x32xf32, #tpu.memory_space<smem>>
    %270 = vector.broadcast %269 : f32 to vector<16x16xf32>
    %271 = arith.mulf %270, %268 : vector<16x16xf32>
    %272 = arith.addf %258, %271 : vector<16x16xf32>
    %273 = vector.extract_strided_slice %10 {offsets = [0, 18], sizes = [16, 1], strides = [1, 1]} : vector<16x64xf32> to vector<16x1xf32>
    %274 = vector.extract_strided_slice %16 {offsets = [18, 0], sizes = [1, 16], strides = [1, 1]} : vector<64x16xf32> to vector<1x16xf32>
    %275 = vector.broadcast %273 : vector<16x1xf32> to vector<16x16xf32>
    %276 = vector.broadcast %274 : vector<1x16xf32> to vector<16x16xf32>
    %277 = arith.addf %275, %276 : vector<16x16xf32>
    %cst_74 = arith.constant 0.000000e+00 : f32
    %278 = vector.broadcast %cst_74 : f32 to vector<16x16xf32>
    %279 = arith.cmpf oge, %277, %278 : vector<16x16xf32>
    %cst_75 = arith.constant 2.000000e-01 : f32
    %280 = vector.broadcast %cst_75 : f32 to vector<16x16xf32>
    %281 = arith.mulf %280, %277 : vector<16x16xf32>
    %282 = arith.select %279, %277, %281 : vector<16x16xi1>, vector<16x16xf32>
    %c0_76 = arith.constant 0 : index
    %c18 = arith.constant 18 : index
    %283 = memref.load %arg8[%c0_76, %c18] : memref<2x32xf32, #tpu.memory_space<smem>>
    %284 = vector.broadcast %283 : f32 to vector<16x16xf32>
    %285 = arith.mulf %284, %282 : vector<16x16xf32>
    %286 = arith.addf %272, %285 : vector<16x16xf32>
    %287 = vector.extract_strided_slice %10 {offsets = [0, 19], sizes = [16, 1], strides = [1, 1]} : vector<16x64xf32> to vector<16x1xf32>
    %288 = vector.extract_strided_slice %16 {offsets = [19, 0], sizes = [1, 16], strides = [1, 1]} : vector<64x16xf32> to vector<1x16xf32>
    %289 = vector.broadcast %287 : vector<16x1xf32> to vector<16x16xf32>
    %290 = vector.broadcast %288 : vector<1x16xf32> to vector<16x16xf32>
    %291 = arith.addf %289, %290 : vector<16x16xf32>
    %cst_77 = arith.constant 0.000000e+00 : f32
    %292 = vector.broadcast %cst_77 : f32 to vector<16x16xf32>
    %293 = arith.cmpf oge, %291, %292 : vector<16x16xf32>
    %cst_78 = arith.constant 2.000000e-01 : f32
    %294 = vector.broadcast %cst_78 : f32 to vector<16x16xf32>
    %295 = arith.mulf %294, %291 : vector<16x16xf32>
    %296 = arith.select %293, %291, %295 : vector<16x16xi1>, vector<16x16xf32>
    %c0_79 = arith.constant 0 : index
    %c19 = arith.constant 19 : index
    %297 = memref.load %arg8[%c0_79, %c19] : memref<2x32xf32, #tpu.memory_space<smem>>
    %298 = vector.broadcast %297 : f32 to vector<16x16xf32>
    %299 = arith.mulf %298, %296 : vector<16x16xf32>
    %300 = arith.addf %286, %299 : vector<16x16xf32>
    %301 = vector.extract_strided_slice %10 {offsets = [0, 20], sizes = [16, 1], strides = [1, 1]} : vector<16x64xf32> to vector<16x1xf32>
    %302 = vector.extract_strided_slice %16 {offsets = [20, 0], sizes = [1, 16], strides = [1, 1]} : vector<64x16xf32> to vector<1x16xf32>
    %303 = vector.broadcast %301 : vector<16x1xf32> to vector<16x16xf32>
    %304 = vector.broadcast %302 : vector<1x16xf32> to vector<16x16xf32>
    %305 = arith.addf %303, %304 : vector<16x16xf32>
    %cst_80 = arith.constant 0.000000e+00 : f32
    %306 = vector.broadcast %cst_80 : f32 to vector<16x16xf32>
    %307 = arith.cmpf oge, %305, %306 : vector<16x16xf32>
    %cst_81 = arith.constant 2.000000e-01 : f32
    %308 = vector.broadcast %cst_81 : f32 to vector<16x16xf32>
    %309 = arith.mulf %308, %305 : vector<16x16xf32>
    %310 = arith.select %307, %305, %309 : vector<16x16xi1>, vector<16x16xf32>
    %c0_82 = arith.constant 0 : index
    %c20 = arith.constant 20 : index
    %311 = memref.load %arg8[%c0_82, %c20] : memref<2x32xf32, #tpu.memory_space<smem>>
    %312 = vector.broadcast %311 : f32 to vector<16x16xf32>
    %313 = arith.mulf %312, %310 : vector<16x16xf32>
    %314 = arith.addf %300, %313 : vector<16x16xf32>
    %315 = vector.extract_strided_slice %10 {offsets = [0, 21], sizes = [16, 1], strides = [1, 1]} : vector<16x64xf32> to vector<16x1xf32>
    %316 = vector.extract_strided_slice %16 {offsets = [21, 0], sizes = [1, 16], strides = [1, 1]} : vector<64x16xf32> to vector<1x16xf32>
    %317 = vector.broadcast %315 : vector<16x1xf32> to vector<16x16xf32>
    %318 = vector.broadcast %316 : vector<1x16xf32> to vector<16x16xf32>
    %319 = arith.addf %317, %318 : vector<16x16xf32>
    %cst_83 = arith.constant 0.000000e+00 : f32
    %320 = vector.broadcast %cst_83 : f32 to vector<16x16xf32>
    %321 = arith.cmpf oge, %319, %320 : vector<16x16xf32>
    %cst_84 = arith.constant 2.000000e-01 : f32
    %322 = vector.broadcast %cst_84 : f32 to vector<16x16xf32>
    %323 = arith.mulf %322, %319 : vector<16x16xf32>
    %324 = arith.select %321, %319, %323 : vector<16x16xi1>, vector<16x16xf32>
    %c0_85 = arith.constant 0 : index
    %c21 = arith.constant 21 : index
    %325 = memref.load %arg8[%c0_85, %c21] : memref<2x32xf32, #tpu.memory_space<smem>>
    %326 = vector.broadcast %325 : f32 to vector<16x16xf32>
    %327 = arith.mulf %326, %324 : vector<16x16xf32>
    %328 = arith.addf %314, %327 : vector<16x16xf32>
    %329 = vector.extract_strided_slice %10 {offsets = [0, 22], sizes = [16, 1], strides = [1, 1]} : vector<16x64xf32> to vector<16x1xf32>
    %330 = vector.extract_strided_slice %16 {offsets = [22, 0], sizes = [1, 16], strides = [1, 1]} : vector<64x16xf32> to vector<1x16xf32>
    %331 = vector.broadcast %329 : vector<16x1xf32> to vector<16x16xf32>
    %332 = vector.broadcast %330 : vector<1x16xf32> to vector<16x16xf32>
    %333 = arith.addf %331, %332 : vector<16x16xf32>
    %cst_86 = arith.constant 0.000000e+00 : f32
    %334 = vector.broadcast %cst_86 : f32 to vector<16x16xf32>
    %335 = arith.cmpf oge, %333, %334 : vector<16x16xf32>
    %cst_87 = arith.constant 2.000000e-01 : f32
    %336 = vector.broadcast %cst_87 : f32 to vector<16x16xf32>
    %337 = arith.mulf %336, %333 : vector<16x16xf32>
    %338 = arith.select %335, %333, %337 : vector<16x16xi1>, vector<16x16xf32>
    %c0_88 = arith.constant 0 : index
    %c22 = arith.constant 22 : index
    %339 = memref.load %arg8[%c0_88, %c22] : memref<2x32xf32, #tpu.memory_space<smem>>
    %340 = vector.broadcast %339 : f32 to vector<16x16xf32>
    %341 = arith.mulf %340, %338 : vector<16x16xf32>
    %342 = arith.addf %328, %341 : vector<16x16xf32>
    %343 = vector.extract_strided_slice %10 {offsets = [0, 23], sizes = [16, 1], strides = [1, 1]} : vector<16x64xf32> to vector<16x1xf32>
    %344 = vector.extract_strided_slice %16 {offsets = [23, 0], sizes = [1, 16], strides = [1, 1]} : vector<64x16xf32> to vector<1x16xf32>
    %345 = vector.broadcast %343 : vector<16x1xf32> to vector<16x16xf32>
    %346 = vector.broadcast %344 : vector<1x16xf32> to vector<16x16xf32>
    %347 = arith.addf %345, %346 : vector<16x16xf32>
    %cst_89 = arith.constant 0.000000e+00 : f32
    %348 = vector.broadcast %cst_89 : f32 to vector<16x16xf32>
    %349 = arith.cmpf oge, %347, %348 : vector<16x16xf32>
    %cst_90 = arith.constant 2.000000e-01 : f32
    %350 = vector.broadcast %cst_90 : f32 to vector<16x16xf32>
    %351 = arith.mulf %350, %347 : vector<16x16xf32>
    %352 = arith.select %349, %347, %351 : vector<16x16xi1>, vector<16x16xf32>
    %c0_91 = arith.constant 0 : index
    %c23 = arith.constant 23 : index
    %353 = memref.load %arg8[%c0_91, %c23] : memref<2x32xf32, #tpu.memory_space<smem>>
    %354 = vector.broadcast %353 : f32 to vector<16x16xf32>
    %355 = arith.mulf %354, %352 : vector<16x16xf32>
    %356 = arith.addf %342, %355 : vector<16x16xf32>
    %357 = vector.extract_strided_slice %10 {offsets = [0, 24], sizes = [16, 1], strides = [1, 1]} : vector<16x64xf32> to vector<16x1xf32>
    %358 = vector.extract_strided_slice %16 {offsets = [24, 0], sizes = [1, 16], strides = [1, 1]} : vector<64x16xf32> to vector<1x16xf32>
    %359 = vector.broadcast %357 : vector<16x1xf32> to vector<16x16xf32>
    %360 = vector.broadcast %358 : vector<1x16xf32> to vector<16x16xf32>
    %361 = arith.addf %359, %360 : vector<16x16xf32>
    %cst_92 = arith.constant 0.000000e+00 : f32
    %362 = vector.broadcast %cst_92 : f32 to vector<16x16xf32>
    %363 = arith.cmpf oge, %361, %362 : vector<16x16xf32>
    %cst_93 = arith.constant 2.000000e-01 : f32
    %364 = vector.broadcast %cst_93 : f32 to vector<16x16xf32>
    %365 = arith.mulf %364, %361 : vector<16x16xf32>
    %366 = arith.select %363, %361, %365 : vector<16x16xi1>, vector<16x16xf32>
    %c0_94 = arith.constant 0 : index
    %c24 = arith.constant 24 : index
    %367 = memref.load %arg8[%c0_94, %c24] : memref<2x32xf32, #tpu.memory_space<smem>>
    %368 = vector.broadcast %367 : f32 to vector<16x16xf32>
    %369 = arith.mulf %368, %366 : vector<16x16xf32>
    %370 = arith.addf %356, %369 : vector<16x16xf32>
    %371 = vector.extract_strided_slice %10 {offsets = [0, 25], sizes = [16, 1], strides = [1, 1]} : vector<16x64xf32> to vector<16x1xf32>
    %372 = vector.extract_strided_slice %16 {offsets = [25, 0], sizes = [1, 16], strides = [1, 1]} : vector<64x16xf32> to vector<1x16xf32>
    %373 = vector.broadcast %371 : vector<16x1xf32> to vector<16x16xf32>
    %374 = vector.broadcast %372 : vector<1x16xf32> to vector<16x16xf32>
    %375 = arith.addf %373, %374 : vector<16x16xf32>
    %cst_95 = arith.constant 0.000000e+00 : f32
    %376 = vector.broadcast %cst_95 : f32 to vector<16x16xf32>
    %377 = arith.cmpf oge, %375, %376 : vector<16x16xf32>
    %cst_96 = arith.constant 2.000000e-01 : f32
    %378 = vector.broadcast %cst_96 : f32 to vector<16x16xf32>
    %379 = arith.mulf %378, %375 : vector<16x16xf32>
    %380 = arith.select %377, %375, %379 : vector<16x16xi1>, vector<16x16xf32>
    %c0_97 = arith.constant 0 : index
    %c25 = arith.constant 25 : index
    %381 = memref.load %arg8[%c0_97, %c25] : memref<2x32xf32, #tpu.memory_space<smem>>
    %382 = vector.broadcast %381 : f32 to vector<16x16xf32>
    %383 = arith.mulf %382, %380 : vector<16x16xf32>
    %384 = arith.addf %370, %383 : vector<16x16xf32>
    %385 = vector.extract_strided_slice %10 {offsets = [0, 26], sizes = [16, 1], strides = [1, 1]} : vector<16x64xf32> to vector<16x1xf32>
    %386 = vector.extract_strided_slice %16 {offsets = [26, 0], sizes = [1, 16], strides = [1, 1]} : vector<64x16xf32> to vector<1x16xf32>
    %387 = vector.broadcast %385 : vector<16x1xf32> to vector<16x16xf32>
    %388 = vector.broadcast %386 : vector<1x16xf32> to vector<16x16xf32>
    %389 = arith.addf %387, %388 : vector<16x16xf32>
    %cst_98 = arith.constant 0.000000e+00 : f32
    %390 = vector.broadcast %cst_98 : f32 to vector<16x16xf32>
    %391 = arith.cmpf oge, %389, %390 : vector<16x16xf32>
    %cst_99 = arith.constant 2.000000e-01 : f32
    %392 = vector.broadcast %cst_99 : f32 to vector<16x16xf32>
    %393 = arith.mulf %392, %389 : vector<16x16xf32>
    %394 = arith.select %391, %389, %393 : vector<16x16xi1>, vector<16x16xf32>
    %c0_100 = arith.constant 0 : index
    %c26 = arith.constant 26 : index
    %395 = memref.load %arg8[%c0_100, %c26] : memref<2x32xf32, #tpu.memory_space<smem>>
    %396 = vector.broadcast %395 : f32 to vector<16x16xf32>
    %397 = arith.mulf %396, %394 : vector<16x16xf32>
    %398 = arith.addf %384, %397 : vector<16x16xf32>
    %399 = vector.extract_strided_slice %10 {offsets = [0, 27], sizes = [16, 1], strides = [1, 1]} : vector<16x64xf32> to vector<16x1xf32>
    %400 = vector.extract_strided_slice %16 {offsets = [27, 0], sizes = [1, 16], strides = [1, 1]} : vector<64x16xf32> to vector<1x16xf32>
    %401 = vector.broadcast %399 : vector<16x1xf32> to vector<16x16xf32>
    %402 = vector.broadcast %400 : vector<1x16xf32> to vector<16x16xf32>
    %403 = arith.addf %401, %402 : vector<16x16xf32>
    %cst_101 = arith.constant 0.000000e+00 : f32
    %404 = vector.broadcast %cst_101 : f32 to vector<16x16xf32>
    %405 = arith.cmpf oge, %403, %404 : vector<16x16xf32>
    %cst_102 = arith.constant 2.000000e-01 : f32
    %406 = vector.broadcast %cst_102 : f32 to vector<16x16xf32>
    %407 = arith.mulf %406, %403 : vector<16x16xf32>
    %408 = arith.select %405, %403, %407 : vector<16x16xi1>, vector<16x16xf32>
    %c0_103 = arith.constant 0 : index
    %c27 = arith.constant 27 : index
    %409 = memref.load %arg8[%c0_103, %c27] : memref<2x32xf32, #tpu.memory_space<smem>>
    %410 = vector.broadcast %409 : f32 to vector<16x16xf32>
    %411 = arith.mulf %410, %408 : vector<16x16xf32>
    %412 = arith.addf %398, %411 : vector<16x16xf32>
    %413 = vector.extract_strided_slice %10 {offsets = [0, 28], sizes = [16, 1], strides = [1, 1]} : vector<16x64xf32> to vector<16x1xf32>
    %414 = vector.extract_strided_slice %16 {offsets = [28, 0], sizes = [1, 16], strides = [1, 1]} : vector<64x16xf32> to vector<1x16xf32>
    %415 = vector.broadcast %413 : vector<16x1xf32> to vector<16x16xf32>
    %416 = vector.broadcast %414 : vector<1x16xf32> to vector<16x16xf32>
    %417 = arith.addf %415, %416 : vector<16x16xf32>
    %cst_104 = arith.constant 0.000000e+00 : f32
    %418 = vector.broadcast %cst_104 : f32 to vector<16x16xf32>
    %419 = arith.cmpf oge, %417, %418 : vector<16x16xf32>
    %cst_105 = arith.constant 2.000000e-01 : f32
    %420 = vector.broadcast %cst_105 : f32 to vector<16x16xf32>
    %421 = arith.mulf %420, %417 : vector<16x16xf32>
    %422 = arith.select %419, %417, %421 : vector<16x16xi1>, vector<16x16xf32>
    %c0_106 = arith.constant 0 : index
    %c28 = arith.constant 28 : index
    %423 = memref.load %arg8[%c0_106, %c28] : memref<2x32xf32, #tpu.memory_space<smem>>
    %424 = vector.broadcast %423 : f32 to vector<16x16xf32>
    %425 = arith.mulf %424, %422 : vector<16x16xf32>
    %426 = arith.addf %412, %425 : vector<16x16xf32>
    %427 = vector.extract_strided_slice %10 {offsets = [0, 29], sizes = [16, 1], strides = [1, 1]} : vector<16x64xf32> to vector<16x1xf32>
    %428 = vector.extract_strided_slice %16 {offsets = [29, 0], sizes = [1, 16], strides = [1, 1]} : vector<64x16xf32> to vector<1x16xf32>
    %429 = vector.broadcast %427 : vector<16x1xf32> to vector<16x16xf32>
    %430 = vector.broadcast %428 : vector<1x16xf32> to vector<16x16xf32>
    %431 = arith.addf %429, %430 : vector<16x16xf32>
    %cst_107 = arith.constant 0.000000e+00 : f32
    %432 = vector.broadcast %cst_107 : f32 to vector<16x16xf32>
    %433 = arith.cmpf oge, %431, %432 : vector<16x16xf32>
    %cst_108 = arith.constant 2.000000e-01 : f32
    %434 = vector.broadcast %cst_108 : f32 to vector<16x16xf32>
    %435 = arith.mulf %434, %431 : vector<16x16xf32>
    %436 = arith.select %433, %431, %435 : vector<16x16xi1>, vector<16x16xf32>
    %c0_109 = arith.constant 0 : index
    %c29 = arith.constant 29 : index
    %437 = memref.load %arg8[%c0_109, %c29] : memref<2x32xf32, #tpu.memory_space<smem>>
    %438 = vector.broadcast %437 : f32 to vector<16x16xf32>
    %439 = arith.mulf %438, %436 : vector<16x16xf32>
    %440 = arith.addf %426, %439 : vector<16x16xf32>
    %441 = vector.extract_strided_slice %10 {offsets = [0, 30], sizes = [16, 1], strides = [1, 1]} : vector<16x64xf32> to vector<16x1xf32>
    %442 = vector.extract_strided_slice %16 {offsets = [30, 0], sizes = [1, 16], strides = [1, 1]} : vector<64x16xf32> to vector<1x16xf32>
    %443 = vector.broadcast %441 : vector<16x1xf32> to vector<16x16xf32>
    %444 = vector.broadcast %442 : vector<1x16xf32> to vector<16x16xf32>
    %445 = arith.addf %443, %444 : vector<16x16xf32>
    %cst_110 = arith.constant 0.000000e+00 : f32
    %446 = vector.broadcast %cst_110 : f32 to vector<16x16xf32>
    %447 = arith.cmpf oge, %445, %446 : vector<16x16xf32>
    %cst_111 = arith.constant 2.000000e-01 : f32
    %448 = vector.broadcast %cst_111 : f32 to vector<16x16xf32>
    %449 = arith.mulf %448, %445 : vector<16x16xf32>
    %450 = arith.select %447, %445, %449 : vector<16x16xi1>, vector<16x16xf32>
    %c0_112 = arith.constant 0 : index
    %c30 = arith.constant 30 : index
    %451 = memref.load %arg8[%c0_112, %c30] : memref<2x32xf32, #tpu.memory_space<smem>>
    %452 = vector.broadcast %451 : f32 to vector<16x16xf32>
    %453 = arith.mulf %452, %450 : vector<16x16xf32>
    %454 = arith.addf %440, %453 : vector<16x16xf32>
    %455 = vector.extract_strided_slice %10 {offsets = [0, 31], sizes = [16, 1], strides = [1, 1]} : vector<16x64xf32> to vector<16x1xf32>
    %456 = vector.extract_strided_slice %16 {offsets = [31, 0], sizes = [1, 16], strides = [1, 1]} : vector<64x16xf32> to vector<1x16xf32>
    %457 = vector.broadcast %455 : vector<16x1xf32> to vector<16x16xf32>
    %458 = vector.broadcast %456 : vector<1x16xf32> to vector<16x16xf32>
    %459 = arith.addf %457, %458 : vector<16x16xf32>
    %cst_113 = arith.constant 0.000000e+00 : f32
    %460 = vector.broadcast %cst_113 : f32 to vector<16x16xf32>
    %461 = arith.cmpf oge, %459, %460 : vector<16x16xf32>
    %cst_114 = arith.constant 2.000000e-01 : f32
    %462 = vector.broadcast %cst_114 : f32 to vector<16x16xf32>
    %463 = arith.mulf %462, %459 : vector<16x16xf32>
    %464 = arith.select %461, %459, %463 : vector<16x16xi1>, vector<16x16xf32>
    %c0_115 = arith.constant 0 : index
    %c31 = arith.constant 31 : index
    %465 = memref.load %arg8[%c0_115, %c31] : memref<2x32xf32, #tpu.memory_space<smem>>
    %466 = vector.broadcast %465 : f32 to vector<16x16xf32>
    %467 = arith.mulf %466, %464 : vector<16x16xf32>
    %468 = arith.addf %454, %467 : vector<16x16xf32>
    %469 = arith.addf %468, %2 : vector<16x16xf32>
    %cst_116 = arith.constant dense<0xFF800000> : vector<16xf32>
    %470 = vector.multi_reduction <maximumf>, %469, %cst_116 [1] : vector<16x16xf32> to vector<16xf32>
    %471 = vector.shape_cast %470 : vector<16xf32> to vector<16x1xf32>
    %472 = vector.broadcast %471 : vector<16x1xf32> to vector<16x16xf32>
    %473 = arith.subf %469, %472 : vector<16x16xf32>
    %474 = math.exp %473 : vector<16x16xf32>
    %cst_117 = arith.constant dense<0.000000e+00> : vector<16xf32>
    %475 = vector.multi_reduction <add>, %474, %cst_117 [1] : vector<16x16xf32> to vector<16xf32>
    %476 = vector.shape_cast %475 : vector<16xf32> to vector<16x1xf32>
    %cst_118 = arith.constant 9.99999968E-21 : f32
    %477 = vector.broadcast %cst_118 : f32 to vector<16x1xf32>
    %478 = arith.maximumf %476, %477 : vector<16x1xf32>
    %479 = tpu.reciprocal %478 {approx = true} : vector<16x1xf32> -> vector<16x1xf32>
    %480 = arith.mulf %478, %479 : vector<16x1xf32>
    %cst_119 = arith.constant 2.000000e+00 : f32
    %481 = vector.broadcast %cst_119 : f32 to vector<16x1xf32>
    %482 = arith.subf %481, %480 : vector<16x1xf32>
    %483 = arith.mulf %479, %482 : vector<16x1xf32>
    %484 = vector.broadcast %483 : vector<16x1xf32> to vector<16x16xf32>
    %485 = arith.mulf %474, %484 : vector<16x16xf32>
    %486 = vector.extract_strided_slice %9 {offsets = [0, 0], sizes = [16, 32], strides = [1, 1]} : vector<16x64xf32> to vector<16x32xf32>
    %cst_120 = arith.constant dense<0.000000e+00> : vector<16x32xf32>
    %487 = tpu.matmul %485, %486, %cst_120 {dimension_numbers = #tpu.dot_dimension_numbers<[1], [0], [0], [1], [0, 0, 1, 1], [], []>} : vector<16x16xf32>, vector<16x32xf32>, vector<16x32xf32> -> vector<16x32xf32>
    %488 = arith.addf %18, %487 : vector<16x32xf32>
    %cst_121 = arith.constant 0.000000e+00 : f32
    %489 = vector.broadcast %cst_121 : f32 to vector<16x16xf32>
    %490 = vector.extract_strided_slice %9 {offsets = [0, 0], sizes = [16, 1], strides = [1, 1]} : vector<16x64xf32> to vector<16x1xf32>
    %491 = vector.extract_strided_slice %17 {offsets = [0, 0], sizes = [1, 16], strides = [1, 1]} : vector<64x16xf32> to vector<1x16xf32>
    %492 = vector.broadcast %490 : vector<16x1xf32> to vector<16x16xf32>
    %493 = vector.broadcast %491 : vector<1x16xf32> to vector<16x16xf32>
    %494 = arith.addf %492, %493 : vector<16x16xf32>
    %cst_122 = arith.constant 0.000000e+00 : f32
    %495 = vector.broadcast %cst_122 : f32 to vector<16x16xf32>
    %496 = arith.cmpf oge, %494, %495 : vector<16x16xf32>
    %cst_123 = arith.constant 2.000000e-01 : f32
    %497 = vector.broadcast %cst_123 : f32 to vector<16x16xf32>
    %498 = arith.mulf %497, %494 : vector<16x16xf32>
    %499 = arith.select %496, %494, %498 : vector<16x16xi1>, vector<16x16xf32>
    %c0_124 = arith.constant 0 : index
    %c0_125 = arith.constant 0 : index
    %500 = memref.load %arg8[%c0_124, %c0_125] : memref<2x32xf32, #tpu.memory_space<smem>>
    %501 = vector.broadcast %500 : f32 to vector<16x16xf32>
    %502 = arith.mulf %501, %499 : vector<16x16xf32>
    %503 = arith.addf %489, %502 : vector<16x16xf32>
    %504 = vector.extract_strided_slice %9 {offsets = [0, 1], sizes = [16, 1], strides = [1, 1]} : vector<16x64xf32> to vector<16x1xf32>
    %505 = vector.extract_strided_slice %17 {offsets = [1, 0], sizes = [1, 16], strides = [1, 1]} : vector<64x16xf32> to vector<1x16xf32>
    %506 = vector.broadcast %504 : vector<16x1xf32> to vector<16x16xf32>
    %507 = vector.broadcast %505 : vector<1x16xf32> to vector<16x16xf32>
    %508 = arith.addf %506, %507 : vector<16x16xf32>
    %cst_126 = arith.constant 0.000000e+00 : f32
    %509 = vector.broadcast %cst_126 : f32 to vector<16x16xf32>
    %510 = arith.cmpf oge, %508, %509 : vector<16x16xf32>
    %cst_127 = arith.constant 2.000000e-01 : f32
    %511 = vector.broadcast %cst_127 : f32 to vector<16x16xf32>
    %512 = arith.mulf %511, %508 : vector<16x16xf32>
    %513 = arith.select %510, %508, %512 : vector<16x16xi1>, vector<16x16xf32>
    %c0_128 = arith.constant 0 : index
    %c1_129 = arith.constant 1 : index
    %514 = memref.load %arg8[%c0_128, %c1_129] : memref<2x32xf32, #tpu.memory_space<smem>>
    %515 = vector.broadcast %514 : f32 to vector<16x16xf32>
    %516 = arith.mulf %515, %513 : vector<16x16xf32>
    %517 = arith.addf %503, %516 : vector<16x16xf32>
    %518 = vector.extract_strided_slice %9 {offsets = [0, 2], sizes = [16, 1], strides = [1, 1]} : vector<16x64xf32> to vector<16x1xf32>
    %519 = vector.extract_strided_slice %17 {offsets = [2, 0], sizes = [1, 16], strides = [1, 1]} : vector<64x16xf32> to vector<1x16xf32>
    %520 = vector.broadcast %518 : vector<16x1xf32> to vector<16x16xf32>
    %521 = vector.broadcast %519 : vector<1x16xf32> to vector<16x16xf32>
    %522 = arith.addf %520, %521 : vector<16x16xf32>
    %cst_130 = arith.constant 0.000000e+00 : f32
    %523 = vector.broadcast %cst_130 : f32 to vector<16x16xf32>
    %524 = arith.cmpf oge, %522, %523 : vector<16x16xf32>
    %cst_131 = arith.constant 2.000000e-01 : f32
    %525 = vector.broadcast %cst_131 : f32 to vector<16x16xf32>
    %526 = arith.mulf %525, %522 : vector<16x16xf32>
    %527 = arith.select %524, %522, %526 : vector<16x16xi1>, vector<16x16xf32>
    %c0_132 = arith.constant 0 : index
    %c2_133 = arith.constant 2 : index
    %528 = memref.load %arg8[%c0_132, %c2_133] : memref<2x32xf32, #tpu.memory_space<smem>>
    %529 = vector.broadcast %528 : f32 to vector<16x16xf32>
    %530 = arith.mulf %529, %527 : vector<16x16xf32>
    %531 = arith.addf %517, %530 : vector<16x16xf32>
    %532 = vector.extract_strided_slice %9 {offsets = [0, 3], sizes = [16, 1], strides = [1, 1]} : vector<16x64xf32> to vector<16x1xf32>
    %533 = vector.extract_strided_slice %17 {offsets = [3, 0], sizes = [1, 16], strides = [1, 1]} : vector<64x16xf32> to vector<1x16xf32>
    %534 = vector.broadcast %532 : vector<16x1xf32> to vector<16x16xf32>
    %535 = vector.broadcast %533 : vector<1x16xf32> to vector<16x16xf32>
    %536 = arith.addf %534, %535 : vector<16x16xf32>
    %cst_134 = arith.constant 0.000000e+00 : f32
    %537 = vector.broadcast %cst_134 : f32 to vector<16x16xf32>
    %538 = arith.cmpf oge, %536, %537 : vector<16x16xf32>
    %cst_135 = arith.constant 2.000000e-01 : f32
    %539 = vector.broadcast %cst_135 : f32 to vector<16x16xf32>
    %540 = arith.mulf %539, %536 : vector<16x16xf32>
    %541 = arith.select %538, %536, %540 : vector<16x16xi1>, vector<16x16xf32>
    %c0_136 = arith.constant 0 : index
    %c3_137 = arith.constant 3 : index
    %542 = memref.load %arg8[%c0_136, %c3_137] : memref<2x32xf32, #tpu.memory_space<smem>>
    %543 = vector.broadcast %542 : f32 to vector<16x16xf32>
    %544 = arith.mulf %543, %541 : vector<16x16xf32>
    %545 = arith.addf %531, %544 : vector<16x16xf32>
    %546 = vector.extract_strided_slice %9 {offsets = [0, 4], sizes = [16, 1], strides = [1, 1]} : vector<16x64xf32> to vector<16x1xf32>
    %547 = vector.extract_strided_slice %17 {offsets = [4, 0], sizes = [1, 16], strides = [1, 1]} : vector<64x16xf32> to vector<1x16xf32>
    %548 = vector.broadcast %546 : vector<16x1xf32> to vector<16x16xf32>
    %549 = vector.broadcast %547 : vector<1x16xf32> to vector<16x16xf32>
    %550 = arith.addf %548, %549 : vector<16x16xf32>
    %cst_138 = arith.constant 0.000000e+00 : f32
    %551 = vector.broadcast %cst_138 : f32 to vector<16x16xf32>
    %552 = arith.cmpf oge, %550, %551 : vector<16x16xf32>
    %cst_139 = arith.constant 2.000000e-01 : f32
    %553 = vector.broadcast %cst_139 : f32 to vector<16x16xf32>
    %554 = arith.mulf %553, %550 : vector<16x16xf32>
    %555 = arith.select %552, %550, %554 : vector<16x16xi1>, vector<16x16xf32>
    %c0_140 = arith.constant 0 : index
    %c4_141 = arith.constant 4 : index
    %556 = memref.load %arg8[%c0_140, %c4_141] : memref<2x32xf32, #tpu.memory_space<smem>>
    %557 = vector.broadcast %556 : f32 to vector<16x16xf32>
    %558 = arith.mulf %557, %555 : vector<16x16xf32>
    %559 = arith.addf %545, %558 : vector<16x16xf32>
    %560 = vector.extract_strided_slice %9 {offsets = [0, 5], sizes = [16, 1], strides = [1, 1]} : vector<16x64xf32> to vector<16x1xf32>
    %561 = vector.extract_strided_slice %17 {offsets = [5, 0], sizes = [1, 16], strides = [1, 1]} : vector<64x16xf32> to vector<1x16xf32>
    %562 = vector.broadcast %560 : vector<16x1xf32> to vector<16x16xf32>
    %563 = vector.broadcast %561 : vector<1x16xf32> to vector<16x16xf32>
    %564 = arith.addf %562, %563 : vector<16x16xf32>
    %cst_142 = arith.constant 0.000000e+00 : f32
    %565 = vector.broadcast %cst_142 : f32 to vector<16x16xf32>
    %566 = arith.cmpf oge, %564, %565 : vector<16x16xf32>
    %cst_143 = arith.constant 2.000000e-01 : f32
    %567 = vector.broadcast %cst_143 : f32 to vector<16x16xf32>
    %568 = arith.mulf %567, %564 : vector<16x16xf32>
    %569 = arith.select %566, %564, %568 : vector<16x16xi1>, vector<16x16xf32>
    %c0_144 = arith.constant 0 : index
    %c5_145 = arith.constant 5 : index
    %570 = memref.load %arg8[%c0_144, %c5_145] : memref<2x32xf32, #tpu.memory_space<smem>>
    %571 = vector.broadcast %570 : f32 to vector<16x16xf32>
    %572 = arith.mulf %571, %569 : vector<16x16xf32>
    %573 = arith.addf %559, %572 : vector<16x16xf32>
    %574 = vector.extract_strided_slice %9 {offsets = [0, 6], sizes = [16, 1], strides = [1, 1]} : vector<16x64xf32> to vector<16x1xf32>
    %575 = vector.extract_strided_slice %17 {offsets = [6, 0], sizes = [1, 16], strides = [1, 1]} : vector<64x16xf32> to vector<1x16xf32>
    %576 = vector.broadcast %574 : vector<16x1xf32> to vector<16x16xf32>
    %577 = vector.broadcast %575 : vector<1x16xf32> to vector<16x16xf32>
    %578 = arith.addf %576, %577 : vector<16x16xf32>
    %cst_146 = arith.constant 0.000000e+00 : f32
    %579 = vector.broadcast %cst_146 : f32 to vector<16x16xf32>
    %580 = arith.cmpf oge, %578, %579 : vector<16x16xf32>
    %cst_147 = arith.constant 2.000000e-01 : f32
    %581 = vector.broadcast %cst_147 : f32 to vector<16x16xf32>
    %582 = arith.mulf %581, %578 : vector<16x16xf32>
    %583 = arith.select %580, %578, %582 : vector<16x16xi1>, vector<16x16xf32>
    %c0_148 = arith.constant 0 : index
    %c6_149 = arith.constant 6 : index
    %584 = memref.load %arg8[%c0_148, %c6_149] : memref<2x32xf32, #tpu.memory_space<smem>>
    %585 = vector.broadcast %584 : f32 to vector<16x16xf32>
    %586 = arith.mulf %585, %583 : vector<16x16xf32>
    %587 = arith.addf %573, %586 : vector<16x16xf32>
    %588 = vector.extract_strided_slice %9 {offsets = [0, 7], sizes = [16, 1], strides = [1, 1]} : vector<16x64xf32> to vector<16x1xf32>
    %589 = vector.extract_strided_slice %17 {offsets = [7, 0], sizes = [1, 16], strides = [1, 1]} : vector<64x16xf32> to vector<1x16xf32>
    %590 = vector.broadcast %588 : vector<16x1xf32> to vector<16x16xf32>
    %591 = vector.broadcast %589 : vector<1x16xf32> to vector<16x16xf32>
    %592 = arith.addf %590, %591 : vector<16x16xf32>
    %cst_150 = arith.constant 0.000000e+00 : f32
    %593 = vector.broadcast %cst_150 : f32 to vector<16x16xf32>
    %594 = arith.cmpf oge, %592, %593 : vector<16x16xf32>
    %cst_151 = arith.constant 2.000000e-01 : f32
    %595 = vector.broadcast %cst_151 : f32 to vector<16x16xf32>
    %596 = arith.mulf %595, %592 : vector<16x16xf32>
    %597 = arith.select %594, %592, %596 : vector<16x16xi1>, vector<16x16xf32>
    %c0_152 = arith.constant 0 : index
    %c7_153 = arith.constant 7 : index
    %598 = memref.load %arg8[%c0_152, %c7_153] : memref<2x32xf32, #tpu.memory_space<smem>>
    %599 = vector.broadcast %598 : f32 to vector<16x16xf32>
    %600 = arith.mulf %599, %597 : vector<16x16xf32>
    %601 = arith.addf %587, %600 : vector<16x16xf32>
    %602 = vector.extract_strided_slice %9 {offsets = [0, 8], sizes = [16, 1], strides = [1, 1]} : vector<16x64xf32> to vector<16x1xf32>
    %603 = vector.extract_strided_slice %17 {offsets = [8, 0], sizes = [1, 16], strides = [1, 1]} : vector<64x16xf32> to vector<1x16xf32>
    %604 = vector.broadcast %602 : vector<16x1xf32> to vector<16x16xf32>
    %605 = vector.broadcast %603 : vector<1x16xf32> to vector<16x16xf32>
    %606 = arith.addf %604, %605 : vector<16x16xf32>
    %cst_154 = arith.constant 0.000000e+00 : f32
    %607 = vector.broadcast %cst_154 : f32 to vector<16x16xf32>
    %608 = arith.cmpf oge, %606, %607 : vector<16x16xf32>
    %cst_155 = arith.constant 2.000000e-01 : f32
    %609 = vector.broadcast %cst_155 : f32 to vector<16x16xf32>
    %610 = arith.mulf %609, %606 : vector<16x16xf32>
    %611 = arith.select %608, %606, %610 : vector<16x16xi1>, vector<16x16xf32>
    %c0_156 = arith.constant 0 : index
    %c8_157 = arith.constant 8 : index
    %612 = memref.load %arg8[%c0_156, %c8_157] : memref<2x32xf32, #tpu.memory_space<smem>>
    %613 = vector.broadcast %612 : f32 to vector<16x16xf32>
    %614 = arith.mulf %613, %611 : vector<16x16xf32>
    %615 = arith.addf %601, %614 : vector<16x16xf32>
    %616 = vector.extract_strided_slice %9 {offsets = [0, 9], sizes = [16, 1], strides = [1, 1]} : vector<16x64xf32> to vector<16x1xf32>
    %617 = vector.extract_strided_slice %17 {offsets = [9, 0], sizes = [1, 16], strides = [1, 1]} : vector<64x16xf32> to vector<1x16xf32>
    %618 = vector.broadcast %616 : vector<16x1xf32> to vector<16x16xf32>
    %619 = vector.broadcast %617 : vector<1x16xf32> to vector<16x16xf32>
    %620 = arith.addf %618, %619 : vector<16x16xf32>
    %cst_158 = arith.constant 0.000000e+00 : f32
    %621 = vector.broadcast %cst_158 : f32 to vector<16x16xf32>
    %622 = arith.cmpf oge, %620, %621 : vector<16x16xf32>
    %cst_159 = arith.constant 2.000000e-01 : f32
    %623 = vector.broadcast %cst_159 : f32 to vector<16x16xf32>
    %624 = arith.mulf %623, %620 : vector<16x16xf32>
    %625 = arith.select %622, %620, %624 : vector<16x16xi1>, vector<16x16xf32>
    %c0_160 = arith.constant 0 : index
    %c9_161 = arith.constant 9 : index
    %626 = memref.load %arg8[%c0_160, %c9_161] : memref<2x32xf32, #tpu.memory_space<smem>>
    %627 = vector.broadcast %626 : f32 to vector<16x16xf32>
    %628 = arith.mulf %627, %625 : vector<16x16xf32>
    %629 = arith.addf %615, %628 : vector<16x16xf32>
    %630 = vector.extract_strided_slice %9 {offsets = [0, 10], sizes = [16, 1], strides = [1, 1]} : vector<16x64xf32> to vector<16x1xf32>
    %631 = vector.extract_strided_slice %17 {offsets = [10, 0], sizes = [1, 16], strides = [1, 1]} : vector<64x16xf32> to vector<1x16xf32>
    %632 = vector.broadcast %630 : vector<16x1xf32> to vector<16x16xf32>
    %633 = vector.broadcast %631 : vector<1x16xf32> to vector<16x16xf32>
    %634 = arith.addf %632, %633 : vector<16x16xf32>
    %cst_162 = arith.constant 0.000000e+00 : f32
    %635 = vector.broadcast %cst_162 : f32 to vector<16x16xf32>
    %636 = arith.cmpf oge, %634, %635 : vector<16x16xf32>
    %cst_163 = arith.constant 2.000000e-01 : f32
    %637 = vector.broadcast %cst_163 : f32 to vector<16x16xf32>
    %638 = arith.mulf %637, %634 : vector<16x16xf32>
    %639 = arith.select %636, %634, %638 : vector<16x16xi1>, vector<16x16xf32>
    %c0_164 = arith.constant 0 : index
    %c10_165 = arith.constant 10 : index
    %640 = memref.load %arg8[%c0_164, %c10_165] : memref<2x32xf32, #tpu.memory_space<smem>>
    %641 = vector.broadcast %640 : f32 to vector<16x16xf32>
    %642 = arith.mulf %641, %639 : vector<16x16xf32>
    %643 = arith.addf %629, %642 : vector<16x16xf32>
    %644 = vector.extract_strided_slice %9 {offsets = [0, 11], sizes = [16, 1], strides = [1, 1]} : vector<16x64xf32> to vector<16x1xf32>
    %645 = vector.extract_strided_slice %17 {offsets = [11, 0], sizes = [1, 16], strides = [1, 1]} : vector<64x16xf32> to vector<1x16xf32>
    %646 = vector.broadcast %644 : vector<16x1xf32> to vector<16x16xf32>
    %647 = vector.broadcast %645 : vector<1x16xf32> to vector<16x16xf32>
    %648 = arith.addf %646, %647 : vector<16x16xf32>
    %cst_166 = arith.constant 0.000000e+00 : f32
    %649 = vector.broadcast %cst_166 : f32 to vector<16x16xf32>
    %650 = arith.cmpf oge, %648, %649 : vector<16x16xf32>
    %cst_167 = arith.constant 2.000000e-01 : f32
    %651 = vector.broadcast %cst_167 : f32 to vector<16x16xf32>
    %652 = arith.mulf %651, %648 : vector<16x16xf32>
    %653 = arith.select %650, %648, %652 : vector<16x16xi1>, vector<16x16xf32>
    %c0_168 = arith.constant 0 : index
    %c11_169 = arith.constant 11 : index
    %654 = memref.load %arg8[%c0_168, %c11_169] : memref<2x32xf32, #tpu.memory_space<smem>>
    %655 = vector.broadcast %654 : f32 to vector<16x16xf32>
    %656 = arith.mulf %655, %653 : vector<16x16xf32>
    %657 = arith.addf %643, %656 : vector<16x16xf32>
    %658 = vector.extract_strided_slice %9 {offsets = [0, 12], sizes = [16, 1], strides = [1, 1]} : vector<16x64xf32> to vector<16x1xf32>
    %659 = vector.extract_strided_slice %17 {offsets = [12, 0], sizes = [1, 16], strides = [1, 1]} : vector<64x16xf32> to vector<1x16xf32>
    %660 = vector.broadcast %658 : vector<16x1xf32> to vector<16x16xf32>
    %661 = vector.broadcast %659 : vector<1x16xf32> to vector<16x16xf32>
    %662 = arith.addf %660, %661 : vector<16x16xf32>
    %cst_170 = arith.constant 0.000000e+00 : f32
    %663 = vector.broadcast %cst_170 : f32 to vector<16x16xf32>
    %664 = arith.cmpf oge, %662, %663 : vector<16x16xf32>
    %cst_171 = arith.constant 2.000000e-01 : f32
    %665 = vector.broadcast %cst_171 : f32 to vector<16x16xf32>
    %666 = arith.mulf %665, %662 : vector<16x16xf32>
    %667 = arith.select %664, %662, %666 : vector<16x16xi1>, vector<16x16xf32>
    %c0_172 = arith.constant 0 : index
    %c12_173 = arith.constant 12 : index
    %668 = memref.load %arg8[%c0_172, %c12_173] : memref<2x32xf32, #tpu.memory_space<smem>>
    %669 = vector.broadcast %668 : f32 to vector<16x16xf32>
    %670 = arith.mulf %669, %667 : vector<16x16xf32>
    %671 = arith.addf %657, %670 : vector<16x16xf32>
    %672 = vector.extract_strided_slice %9 {offsets = [0, 13], sizes = [16, 1], strides = [1, 1]} : vector<16x64xf32> to vector<16x1xf32>
    %673 = vector.extract_strided_slice %17 {offsets = [13, 0], sizes = [1, 16], strides = [1, 1]} : vector<64x16xf32> to vector<1x16xf32>
    %674 = vector.broadcast %672 : vector<16x1xf32> to vector<16x16xf32>
    %675 = vector.broadcast %673 : vector<1x16xf32> to vector<16x16xf32>
    %676 = arith.addf %674, %675 : vector<16x16xf32>
    %cst_174 = arith.constant 0.000000e+00 : f32
    %677 = vector.broadcast %cst_174 : f32 to vector<16x16xf32>
    %678 = arith.cmpf oge, %676, %677 : vector<16x16xf32>
    %cst_175 = arith.constant 2.000000e-01 : f32
    %679 = vector.broadcast %cst_175 : f32 to vector<16x16xf32>
    %680 = arith.mulf %679, %676 : vector<16x16xf32>
    %681 = arith.select %678, %676, %680 : vector<16x16xi1>, vector<16x16xf32>
    %c0_176 = arith.constant 0 : index
    %c13_177 = arith.constant 13 : index
    %682 = memref.load %arg8[%c0_176, %c13_177] : memref<2x32xf32, #tpu.memory_space<smem>>
    %683 = vector.broadcast %682 : f32 to vector<16x16xf32>
    %684 = arith.mulf %683, %681 : vector<16x16xf32>
    %685 = arith.addf %671, %684 : vector<16x16xf32>
    %686 = vector.extract_strided_slice %9 {offsets = [0, 14], sizes = [16, 1], strides = [1, 1]} : vector<16x64xf32> to vector<16x1xf32>
    %687 = vector.extract_strided_slice %17 {offsets = [14, 0], sizes = [1, 16], strides = [1, 1]} : vector<64x16xf32> to vector<1x16xf32>
    %688 = vector.broadcast %686 : vector<16x1xf32> to vector<16x16xf32>
    %689 = vector.broadcast %687 : vector<1x16xf32> to vector<16x16xf32>
    %690 = arith.addf %688, %689 : vector<16x16xf32>
    %cst_178 = arith.constant 0.000000e+00 : f32
    %691 = vector.broadcast %cst_178 : f32 to vector<16x16xf32>
    %692 = arith.cmpf oge, %690, %691 : vector<16x16xf32>
    %cst_179 = arith.constant 2.000000e-01 : f32
    %693 = vector.broadcast %cst_179 : f32 to vector<16x16xf32>
    %694 = arith.mulf %693, %690 : vector<16x16xf32>
    %695 = arith.select %692, %690, %694 : vector<16x16xi1>, vector<16x16xf32>
    %c0_180 = arith.constant 0 : index
    %c14_181 = arith.constant 14 : index
    %696 = memref.load %arg8[%c0_180, %c14_181] : memref<2x32xf32, #tpu.memory_space<smem>>
    %697 = vector.broadcast %696 : f32 to vector<16x16xf32>
    %698 = arith.mulf %697, %695 : vector<16x16xf32>
    %699 = arith.addf %685, %698 : vector<16x16xf32>
    %700 = vector.extract_strided_slice %9 {offsets = [0, 15], sizes = [16, 1], strides = [1, 1]} : vector<16x64xf32> to vector<16x1xf32>
    %701 = vector.extract_strided_slice %17 {offsets = [15, 0], sizes = [1, 16], strides = [1, 1]} : vector<64x16xf32> to vector<1x16xf32>
    %702 = vector.broadcast %700 : vector<16x1xf32> to vector<16x16xf32>
    %703 = vector.broadcast %701 : vector<1x16xf32> to vector<16x16xf32>
    %704 = arith.addf %702, %703 : vector<16x16xf32>
    %cst_182 = arith.constant 0.000000e+00 : f32
    %705 = vector.broadcast %cst_182 : f32 to vector<16x16xf32>
    %706 = arith.cmpf oge, %704, %705 : vector<16x16xf32>
    %cst_183 = arith.constant 2.000000e-01 : f32
    %707 = vector.broadcast %cst_183 : f32 to vector<16x16xf32>
    %708 = arith.mulf %707, %704 : vector<16x16xf32>
    %709 = arith.select %706, %704, %708 : vector<16x16xi1>, vector<16x16xf32>
    %c0_184 = arith.constant 0 : index
    %c15_185 = arith.constant 15 : index
    %710 = memref.load %arg8[%c0_184, %c15_185] : memref<2x32xf32, #tpu.memory_space<smem>>
    %711 = vector.broadcast %710 : f32 to vector<16x16xf32>
    %712 = arith.mulf %711, %709 : vector<16x16xf32>
    %713 = arith.addf %699, %712 : vector<16x16xf32>
    %714 = vector.extract_strided_slice %9 {offsets = [0, 16], sizes = [16, 1], strides = [1, 1]} : vector<16x64xf32> to vector<16x1xf32>
    %715 = vector.extract_strided_slice %17 {offsets = [16, 0], sizes = [1, 16], strides = [1, 1]} : vector<64x16xf32> to vector<1x16xf32>
    %716 = vector.broadcast %714 : vector<16x1xf32> to vector<16x16xf32>
    %717 = vector.broadcast %715 : vector<1x16xf32> to vector<16x16xf32>
    %718 = arith.addf %716, %717 : vector<16x16xf32>
    %cst_186 = arith.constant 0.000000e+00 : f32
    %719 = vector.broadcast %cst_186 : f32 to vector<16x16xf32>
    %720 = arith.cmpf oge, %718, %719 : vector<16x16xf32>
    %cst_187 = arith.constant 2.000000e-01 : f32
    %721 = vector.broadcast %cst_187 : f32 to vector<16x16xf32>
    %722 = arith.mulf %721, %718 : vector<16x16xf32>
    %723 = arith.select %720, %718, %722 : vector<16x16xi1>, vector<16x16xf32>
    %c0_188 = arith.constant 0 : index
    %c16_189 = arith.constant 16 : index
    %724 = memref.load %arg8[%c0_188, %c16_189] : memref<2x32xf32, #tpu.memory_space<smem>>
    %725 = vector.broadcast %724 : f32 to vector<16x16xf32>
    %726 = arith.mulf %725, %723 : vector<16x16xf32>
    %727 = arith.addf %713, %726 : vector<16x16xf32>
    %728 = vector.extract_strided_slice %9 {offsets = [0, 17], sizes = [16, 1], strides = [1, 1]} : vector<16x64xf32> to vector<16x1xf32>
    %729 = vector.extract_strided_slice %17 {offsets = [17, 0], sizes = [1, 16], strides = [1, 1]} : vector<64x16xf32> to vector<1x16xf32>
    %730 = vector.broadcast %728 : vector<16x1xf32> to vector<16x16xf32>
    %731 = vector.broadcast %729 : vector<1x16xf32> to vector<16x16xf32>
    %732 = arith.addf %730, %731 : vector<16x16xf32>
    %cst_190 = arith.constant 0.000000e+00 : f32
    %733 = vector.broadcast %cst_190 : f32 to vector<16x16xf32>
    %734 = arith.cmpf oge, %732, %733 : vector<16x16xf32>
    %cst_191 = arith.constant 2.000000e-01 : f32
    %735 = vector.broadcast %cst_191 : f32 to vector<16x16xf32>
    %736 = arith.mulf %735, %732 : vector<16x16xf32>
    %737 = arith.select %734, %732, %736 : vector<16x16xi1>, vector<16x16xf32>
    %c0_192 = arith.constant 0 : index
    %c17_193 = arith.constant 17 : index
    %738 = memref.load %arg8[%c0_192, %c17_193] : memref<2x32xf32, #tpu.memory_space<smem>>
    %739 = vector.broadcast %738 : f32 to vector<16x16xf32>
    %740 = arith.mulf %739, %737 : vector<16x16xf32>
    %741 = arith.addf %727, %740 : vector<16x16xf32>
    %742 = vector.extract_strided_slice %9 {offsets = [0, 18], sizes = [16, 1], strides = [1, 1]} : vector<16x64xf32> to vector<16x1xf32>
    %743 = vector.extract_strided_slice %17 {offsets = [18, 0], sizes = [1, 16], strides = [1, 1]} : vector<64x16xf32> to vector<1x16xf32>
    %744 = vector.broadcast %742 : vector<16x1xf32> to vector<16x16xf32>
    %745 = vector.broadcast %743 : vector<1x16xf32> to vector<16x16xf32>
    %746 = arith.addf %744, %745 : vector<16x16xf32>
    %cst_194 = arith.constant 0.000000e+00 : f32
    %747 = vector.broadcast %cst_194 : f32 to vector<16x16xf32>
    %748 = arith.cmpf oge, %746, %747 : vector<16x16xf32>
    %cst_195 = arith.constant 2.000000e-01 : f32
    %749 = vector.broadcast %cst_195 : f32 to vector<16x16xf32>
    %750 = arith.mulf %749, %746 : vector<16x16xf32>
    %751 = arith.select %748, %746, %750 : vector<16x16xi1>, vector<16x16xf32>
    %c0_196 = arith.constant 0 : index
    %c18_197 = arith.constant 18 : index
    %752 = memref.load %arg8[%c0_196, %c18_197] : memref<2x32xf32, #tpu.memory_space<smem>>
    %753 = vector.broadcast %752 : f32 to vector<16x16xf32>
    %754 = arith.mulf %753, %751 : vector<16x16xf32>
    %755 = arith.addf %741, %754 : vector<16x16xf32>
    %756 = vector.extract_strided_slice %9 {offsets = [0, 19], sizes = [16, 1], strides = [1, 1]} : vector<16x64xf32> to vector<16x1xf32>
    %757 = vector.extract_strided_slice %17 {offsets = [19, 0], sizes = [1, 16], strides = [1, 1]} : vector<64x16xf32> to vector<1x16xf32>
    %758 = vector.broadcast %756 : vector<16x1xf32> to vector<16x16xf32>
    %759 = vector.broadcast %757 : vector<1x16xf32> to vector<16x16xf32>
    %760 = arith.addf %758, %759 : vector<16x16xf32>
    %cst_198 = arith.constant 0.000000e+00 : f32
    %761 = vector.broadcast %cst_198 : f32 to vector<16x16xf32>
    %762 = arith.cmpf oge, %760, %761 : vector<16x16xf32>
    %cst_199 = arith.constant 2.000000e-01 : f32
    %763 = vector.broadcast %cst_199 : f32 to vector<16x16xf32>
    %764 = arith.mulf %763, %760 : vector<16x16xf32>
    %765 = arith.select %762, %760, %764 : vector<16x16xi1>, vector<16x16xf32>
    %c0_200 = arith.constant 0 : index
    %c19_201 = arith.constant 19 : index
    %766 = memref.load %arg8[%c0_200, %c19_201] : memref<2x32xf32, #tpu.memory_space<smem>>
    %767 = vector.broadcast %766 : f32 to vector<16x16xf32>
    %768 = arith.mulf %767, %765 : vector<16x16xf32>
    %769 = arith.addf %755, %768 : vector<16x16xf32>
    %770 = vector.extract_strided_slice %9 {offsets = [0, 20], sizes = [16, 1], strides = [1, 1]} : vector<16x64xf32> to vector<16x1xf32>
    %771 = vector.extract_strided_slice %17 {offsets = [20, 0], sizes = [1, 16], strides = [1, 1]} : vector<64x16xf32> to vector<1x16xf32>
    %772 = vector.broadcast %770 : vector<16x1xf32> to vector<16x16xf32>
    %773 = vector.broadcast %771 : vector<1x16xf32> to vector<16x16xf32>
    %774 = arith.addf %772, %773 : vector<16x16xf32>
    %cst_202 = arith.constant 0.000000e+00 : f32
    %775 = vector.broadcast %cst_202 : f32 to vector<16x16xf32>
    %776 = arith.cmpf oge, %774, %775 : vector<16x16xf32>
    %cst_203 = arith.constant 2.000000e-01 : f32
    %777 = vector.broadcast %cst_203 : f32 to vector<16x16xf32>
    %778 = arith.mulf %777, %774 : vector<16x16xf32>
    %779 = arith.select %776, %774, %778 : vector<16x16xi1>, vector<16x16xf32>
    %c0_204 = arith.constant 0 : index
    %c20_205 = arith.constant 20 : index
    %780 = memref.load %arg8[%c0_204, %c20_205] : memref<2x32xf32, #tpu.memory_space<smem>>
    %781 = vector.broadcast %780 : f32 to vector<16x16xf32>
    %782 = arith.mulf %781, %779 : vector<16x16xf32>
    %783 = arith.addf %769, %782 : vector<16x16xf32>
    %784 = vector.extract_strided_slice %9 {offsets = [0, 21], sizes = [16, 1], strides = [1, 1]} : vector<16x64xf32> to vector<16x1xf32>
    %785 = vector.extract_strided_slice %17 {offsets = [21, 0], sizes = [1, 16], strides = [1, 1]} : vector<64x16xf32> to vector<1x16xf32>
    %786 = vector.broadcast %784 : vector<16x1xf32> to vector<16x16xf32>
    %787 = vector.broadcast %785 : vector<1x16xf32> to vector<16x16xf32>
    %788 = arith.addf %786, %787 : vector<16x16xf32>
    %cst_206 = arith.constant 0.000000e+00 : f32
    %789 = vector.broadcast %cst_206 : f32 to vector<16x16xf32>
    %790 = arith.cmpf oge, %788, %789 : vector<16x16xf32>
    %cst_207 = arith.constant 2.000000e-01 : f32
    %791 = vector.broadcast %cst_207 : f32 to vector<16x16xf32>
    %792 = arith.mulf %791, %788 : vector<16x16xf32>
    %793 = arith.select %790, %788, %792 : vector<16x16xi1>, vector<16x16xf32>
    %c0_208 = arith.constant 0 : index
    %c21_209 = arith.constant 21 : index
    %794 = memref.load %arg8[%c0_208, %c21_209] : memref<2x32xf32, #tpu.memory_space<smem>>
    %795 = vector.broadcast %794 : f32 to vector<16x16xf32>
    %796 = arith.mulf %795, %793 : vector<16x16xf32>
    %797 = arith.addf %783, %796 : vector<16x16xf32>
    %798 = vector.extract_strided_slice %9 {offsets = [0, 22], sizes = [16, 1], strides = [1, 1]} : vector<16x64xf32> to vector<16x1xf32>
    %799 = vector.extract_strided_slice %17 {offsets = [22, 0], sizes = [1, 16], strides = [1, 1]} : vector<64x16xf32> to vector<1x16xf32>
    %800 = vector.broadcast %798 : vector<16x1xf32> to vector<16x16xf32>
    %801 = vector.broadcast %799 : vector<1x16xf32> to vector<16x16xf32>
    %802 = arith.addf %800, %801 : vector<16x16xf32>
    %cst_210 = arith.constant 0.000000e+00 : f32
    %803 = vector.broadcast %cst_210 : f32 to vector<16x16xf32>
    %804 = arith.cmpf oge, %802, %803 : vector<16x16xf32>
    %cst_211 = arith.constant 2.000000e-01 : f32
    %805 = vector.broadcast %cst_211 : f32 to vector<16x16xf32>
    %806 = arith.mulf %805, %802 : vector<16x16xf32>
    %807 = arith.select %804, %802, %806 : vector<16x16xi1>, vector<16x16xf32>
    %c0_212 = arith.constant 0 : index
    %c22_213 = arith.constant 22 : index
    %808 = memref.load %arg8[%c0_212, %c22_213] : memref<2x32xf32, #tpu.memory_space<smem>>
    %809 = vector.broadcast %808 : f32 to vector<16x16xf32>
    %810 = arith.mulf %809, %807 : vector<16x16xf32>
    %811 = arith.addf %797, %810 : vector<16x16xf32>
    %812 = vector.extract_strided_slice %9 {offsets = [0, 23], sizes = [16, 1], strides = [1, 1]} : vector<16x64xf32> to vector<16x1xf32>
    %813 = vector.extract_strided_slice %17 {offsets = [23, 0], sizes = [1, 16], strides = [1, 1]} : vector<64x16xf32> to vector<1x16xf32>
    %814 = vector.broadcast %812 : vector<16x1xf32> to vector<16x16xf32>
    %815 = vector.broadcast %813 : vector<1x16xf32> to vector<16x16xf32>
    %816 = arith.addf %814, %815 : vector<16x16xf32>
    %cst_214 = arith.constant 0.000000e+00 : f32
    %817 = vector.broadcast %cst_214 : f32 to vector<16x16xf32>
    %818 = arith.cmpf oge, %816, %817 : vector<16x16xf32>
    %cst_215 = arith.constant 2.000000e-01 : f32
    %819 = vector.broadcast %cst_215 : f32 to vector<16x16xf32>
    %820 = arith.mulf %819, %816 : vector<16x16xf32>
    %821 = arith.select %818, %816, %820 : vector<16x16xi1>, vector<16x16xf32>
    %c0_216 = arith.constant 0 : index
    %c23_217 = arith.constant 23 : index
    %822 = memref.load %arg8[%c0_216, %c23_217] : memref<2x32xf32, #tpu.memory_space<smem>>
    %823 = vector.broadcast %822 : f32 to vector<16x16xf32>
    %824 = arith.mulf %823, %821 : vector<16x16xf32>
    %825 = arith.addf %811, %824 : vector<16x16xf32>
    %826 = vector.extract_strided_slice %9 {offsets = [0, 24], sizes = [16, 1], strides = [1, 1]} : vector<16x64xf32> to vector<16x1xf32>
    %827 = vector.extract_strided_slice %17 {offsets = [24, 0], sizes = [1, 16], strides = [1, 1]} : vector<64x16xf32> to vector<1x16xf32>
    %828 = vector.broadcast %826 : vector<16x1xf32> to vector<16x16xf32>
    %829 = vector.broadcast %827 : vector<1x16xf32> to vector<16x16xf32>
    %830 = arith.addf %828, %829 : vector<16x16xf32>
    %cst_218 = arith.constant 0.000000e+00 : f32
    %831 = vector.broadcast %cst_218 : f32 to vector<16x16xf32>
    %832 = arith.cmpf oge, %830, %831 : vector<16x16xf32>
    %cst_219 = arith.constant 2.000000e-01 : f32
    %833 = vector.broadcast %cst_219 : f32 to vector<16x16xf32>
    %834 = arith.mulf %833, %830 : vector<16x16xf32>
    %835 = arith.select %832, %830, %834 : vector<16x16xi1>, vector<16x16xf32>
    %c0_220 = arith.constant 0 : index
    %c24_221 = arith.constant 24 : index
    %836 = memref.load %arg8[%c0_220, %c24_221] : memref<2x32xf32, #tpu.memory_space<smem>>
    %837 = vector.broadcast %836 : f32 to vector<16x16xf32>
    %838 = arith.mulf %837, %835 : vector<16x16xf32>
    %839 = arith.addf %825, %838 : vector<16x16xf32>
    %840 = vector.extract_strided_slice %9 {offsets = [0, 25], sizes = [16, 1], strides = [1, 1]} : vector<16x64xf32> to vector<16x1xf32>
    %841 = vector.extract_strided_slice %17 {offsets = [25, 0], sizes = [1, 16], strides = [1, 1]} : vector<64x16xf32> to vector<1x16xf32>
    %842 = vector.broadcast %840 : vector<16x1xf32> to vector<16x16xf32>
    %843 = vector.broadcast %841 : vector<1x16xf32> to vector<16x16xf32>
    %844 = arith.addf %842, %843 : vector<16x16xf32>
    %cst_222 = arith.constant 0.000000e+00 : f32
    %845 = vector.broadcast %cst_222 : f32 to vector<16x16xf32>
    %846 = arith.cmpf oge, %844, %845 : vector<16x16xf32>
    %cst_223 = arith.constant 2.000000e-01 : f32
    %847 = vector.broadcast %cst_223 : f32 to vector<16x16xf32>
    %848 = arith.mulf %847, %844 : vector<16x16xf32>
    %849 = arith.select %846, %844, %848 : vector<16x16xi1>, vector<16x16xf32>
    %c0_224 = arith.constant 0 : index
    %c25_225 = arith.constant 25 : index
    %850 = memref.load %arg8[%c0_224, %c25_225] : memref<2x32xf32, #tpu.memory_space<smem>>
    %851 = vector.broadcast %850 : f32 to vector<16x16xf32>
    %852 = arith.mulf %851, %849 : vector<16x16xf32>
    %853 = arith.addf %839, %852 : vector<16x16xf32>
    %854 = vector.extract_strided_slice %9 {offsets = [0, 26], sizes = [16, 1], strides = [1, 1]} : vector<16x64xf32> to vector<16x1xf32>
    %855 = vector.extract_strided_slice %17 {offsets = [26, 0], sizes = [1, 16], strides = [1, 1]} : vector<64x16xf32> to vector<1x16xf32>
    %856 = vector.broadcast %854 : vector<16x1xf32> to vector<16x16xf32>
    %857 = vector.broadcast %855 : vector<1x16xf32> to vector<16x16xf32>
    %858 = arith.addf %856, %857 : vector<16x16xf32>
    %cst_226 = arith.constant 0.000000e+00 : f32
    %859 = vector.broadcast %cst_226 : f32 to vector<16x16xf32>
    %860 = arith.cmpf oge, %858, %859 : vector<16x16xf32>
    %cst_227 = arith.constant 2.000000e-01 : f32
    %861 = vector.broadcast %cst_227 : f32 to vector<16x16xf32>
    %862 = arith.mulf %861, %858 : vector<16x16xf32>
    %863 = arith.select %860, %858, %862 : vector<16x16xi1>, vector<16x16xf32>
    %c0_228 = arith.constant 0 : index
    %c26_229 = arith.constant 26 : index
    %864 = memref.load %arg8[%c0_228, %c26_229] : memref<2x32xf32, #tpu.memory_space<smem>>
    %865 = vector.broadcast %864 : f32 to vector<16x16xf32>
    %866 = arith.mulf %865, %863 : vector<16x16xf32>
    %867 = arith.addf %853, %866 : vector<16x16xf32>
    %868 = vector.extract_strided_slice %9 {offsets = [0, 27], sizes = [16, 1], strides = [1, 1]} : vector<16x64xf32> to vector<16x1xf32>
    %869 = vector.extract_strided_slice %17 {offsets = [27, 0], sizes = [1, 16], strides = [1, 1]} : vector<64x16xf32> to vector<1x16xf32>
    %870 = vector.broadcast %868 : vector<16x1xf32> to vector<16x16xf32>
    %871 = vector.broadcast %869 : vector<1x16xf32> to vector<16x16xf32>
    %872 = arith.addf %870, %871 : vector<16x16xf32>
    %cst_230 = arith.constant 0.000000e+00 : f32
    %873 = vector.broadcast %cst_230 : f32 to vector<16x16xf32>
    %874 = arith.cmpf oge, %872, %873 : vector<16x16xf32>
    %cst_231 = arith.constant 2.000000e-01 : f32
    %875 = vector.broadcast %cst_231 : f32 to vector<16x16xf32>
    %876 = arith.mulf %875, %872 : vector<16x16xf32>
    %877 = arith.select %874, %872, %876 : vector<16x16xi1>, vector<16x16xf32>
    %c0_232 = arith.constant 0 : index
    %c27_233 = arith.constant 27 : index
    %878 = memref.load %arg8[%c0_232, %c27_233] : memref<2x32xf32, #tpu.memory_space<smem>>
    %879 = vector.broadcast %878 : f32 to vector<16x16xf32>
    %880 = arith.mulf %879, %877 : vector<16x16xf32>
    %881 = arith.addf %867, %880 : vector<16x16xf32>
    %882 = vector.extract_strided_slice %9 {offsets = [0, 28], sizes = [16, 1], strides = [1, 1]} : vector<16x64xf32> to vector<16x1xf32>
    %883 = vector.extract_strided_slice %17 {offsets = [28, 0], sizes = [1, 16], strides = [1, 1]} : vector<64x16xf32> to vector<1x16xf32>
    %884 = vector.broadcast %882 : vector<16x1xf32> to vector<16x16xf32>
    %885 = vector.broadcast %883 : vector<1x16xf32> to vector<16x16xf32>
    %886 = arith.addf %884, %885 : vector<16x16xf32>
    %cst_234 = arith.constant 0.000000e+00 : f32
    %887 = vector.broadcast %cst_234 : f32 to vector<16x16xf32>
    %888 = arith.cmpf oge, %886, %887 : vector<16x16xf32>
    %cst_235 = arith.constant 2.000000e-01 : f32
    %889 = vector.broadcast %cst_235 : f32 to vector<16x16xf32>
    %890 = arith.mulf %889, %886 : vector<16x16xf32>
    %891 = arith.select %888, %886, %890 : vector<16x16xi1>, vector<16x16xf32>
    %c0_236 = arith.constant 0 : index
    %c28_237 = arith.constant 28 : index
    %892 = memref.load %arg8[%c0_236, %c28_237] : memref<2x32xf32, #tpu.memory_space<smem>>
    %893 = vector.broadcast %892 : f32 to vector<16x16xf32>
    %894 = arith.mulf %893, %891 : vector<16x16xf32>
    %895 = arith.addf %881, %894 : vector<16x16xf32>
    %896 = vector.extract_strided_slice %9 {offsets = [0, 29], sizes = [16, 1], strides = [1, 1]} : vector<16x64xf32> to vector<16x1xf32>
    %897 = vector.extract_strided_slice %17 {offsets = [29, 0], sizes = [1, 16], strides = [1, 1]} : vector<64x16xf32> to vector<1x16xf32>
    %898 = vector.broadcast %896 : vector<16x1xf32> to vector<16x16xf32>
    %899 = vector.broadcast %897 : vector<1x16xf32> to vector<16x16xf32>
    %900 = arith.addf %898, %899 : vector<16x16xf32>
    %cst_238 = arith.constant 0.000000e+00 : f32
    %901 = vector.broadcast %cst_238 : f32 to vector<16x16xf32>
    %902 = arith.cmpf oge, %900, %901 : vector<16x16xf32>
    %cst_239 = arith.constant 2.000000e-01 : f32
    %903 = vector.broadcast %cst_239 : f32 to vector<16x16xf32>
    %904 = arith.mulf %903, %900 : vector<16x16xf32>
    %905 = arith.select %902, %900, %904 : vector<16x16xi1>, vector<16x16xf32>
    %c0_240 = arith.constant 0 : index
    %c29_241 = arith.constant 29 : index
    %906 = memref.load %arg8[%c0_240, %c29_241] : memref<2x32xf32, #tpu.memory_space<smem>>
    %907 = vector.broadcast %906 : f32 to vector<16x16xf32>
    %908 = arith.mulf %907, %905 : vector<16x16xf32>
    %909 = arith.addf %895, %908 : vector<16x16xf32>
    %910 = vector.extract_strided_slice %9 {offsets = [0, 30], sizes = [16, 1], strides = [1, 1]} : vector<16x64xf32> to vector<16x1xf32>
    %911 = vector.extract_strided_slice %17 {offsets = [30, 0], sizes = [1, 16], strides = [1, 1]} : vector<64x16xf32> to vector<1x16xf32>
    %912 = vector.broadcast %910 : vector<16x1xf32> to vector<16x16xf32>
    %913 = vector.broadcast %911 : vector<1x16xf32> to vector<16x16xf32>
    %914 = arith.addf %912, %913 : vector<16x16xf32>
    %cst_242 = arith.constant 0.000000e+00 : f32
    %915 = vector.broadcast %cst_242 : f32 to vector<16x16xf32>
    %916 = arith.cmpf oge, %914, %915 : vector<16x16xf32>
    %cst_243 = arith.constant 2.000000e-01 : f32
    %917 = vector.broadcast %cst_243 : f32 to vector<16x16xf32>
    %918 = arith.mulf %917, %914 : vector<16x16xf32>
    %919 = arith.select %916, %914, %918 : vector<16x16xi1>, vector<16x16xf32>
    %c0_244 = arith.constant 0 : index
    %c30_245 = arith.constant 30 : index
    %920 = memref.load %arg8[%c0_244, %c30_245] : memref<2x32xf32, #tpu.memory_space<smem>>
    %921 = vector.broadcast %920 : f32 to vector<16x16xf32>
    %922 = arith.mulf %921, %919 : vector<16x16xf32>
    %923 = arith.addf %909, %922 : vector<16x16xf32>
    %924 = vector.extract_strided_slice %9 {offsets = [0, 31], sizes = [16, 1], strides = [1, 1]} : vector<16x64xf32> to vector<16x1xf32>
    %925 = vector.extract_strided_slice %17 {offsets = [31, 0], sizes = [1, 16], strides = [1, 1]} : vector<64x16xf32> to vector<1x16xf32>
    %926 = vector.broadcast %924 : vector<16x1xf32> to vector<16x16xf32>
    %927 = vector.broadcast %925 : vector<1x16xf32> to vector<16x16xf32>
    %928 = arith.addf %926, %927 : vector<16x16xf32>
    %cst_246 = arith.constant 0.000000e+00 : f32
    %929 = vector.broadcast %cst_246 : f32 to vector<16x16xf32>
    %930 = arith.cmpf oge, %928, %929 : vector<16x16xf32>
    %cst_247 = arith.constant 2.000000e-01 : f32
    %931 = vector.broadcast %cst_247 : f32 to vector<16x16xf32>
    %932 = arith.mulf %931, %928 : vector<16x16xf32>
    %933 = arith.select %930, %928, %932 : vector<16x16xi1>, vector<16x16xf32>
    %c0_248 = arith.constant 0 : index
    %c31_249 = arith.constant 31 : index
    %934 = memref.load %arg8[%c0_248, %c31_249] : memref<2x32xf32, #tpu.memory_space<smem>>
    %935 = vector.broadcast %934 : f32 to vector<16x16xf32>
    %936 = arith.mulf %935, %933 : vector<16x16xf32>
    %937 = arith.addf %923, %936 : vector<16x16xf32>
    %938 = arith.addf %937, %3 : vector<16x16xf32>
    %cst_250 = arith.constant dense<0xFF800000> : vector<16xf32>
    %939 = vector.multi_reduction <maximumf>, %938, %cst_250 [0] : vector<16x16xf32> to vector<16xf32>
    %940 = vector.shape_cast %939 : vector<16xf32> to vector<1x16xf32>
    %941 = vector.broadcast %940 : vector<1x16xf32> to vector<16x16xf32>
    %942 = arith.subf %938, %941 : vector<16x16xf32>
    %943 = math.exp %942 : vector<16x16xf32>
    %cst_251 = arith.constant dense<0.000000e+00> : vector<16xf32>
    %944 = vector.multi_reduction <add>, %943, %cst_251 [0] : vector<16x16xf32> to vector<16xf32>
    %945 = vector.shape_cast %944 : vector<16xf32> to vector<1x16xf32>
    %cst_252 = arith.constant 9.99999968E-21 : f32
    %946 = vector.broadcast %cst_252 : f32 to vector<1x16xf32>
    %947 = arith.maximumf %945, %946 : vector<1x16xf32>
    %948 = tpu.reciprocal %947 {approx = true} : vector<1x16xf32> -> vector<1x16xf32>
    %949 = arith.mulf %947, %948 : vector<1x16xf32>
    %cst_253 = arith.constant 2.000000e+00 : f32
    %950 = vector.broadcast %cst_253 : f32 to vector<1x16xf32>
    %951 = arith.subf %950, %949 : vector<1x16xf32>
    %952 = arith.mulf %948, %951 : vector<1x16xf32>
    %953 = vector.broadcast %952 : vector<1x16xf32> to vector<16x16xf32>
    %954 = arith.mulf %943, %953 : vector<16x16xf32>
    %955 = vector.extract_strided_slice %16 {offsets = [0, 0], sizes = [32, 16], strides = [1, 1]} : vector<64x16xf32> to vector<32x16xf32>
    %cst_254 = arith.constant dense<0.000000e+00> : vector<32x16xf32>
    %956 = tpu.matmul %955, %954, %cst_254 {dimension_numbers = #tpu.dot_dimension_numbers<[1], [0], [0], [1], [0, 0, 1, 1], [], []>} : vector<32x16xf32>, vector<16x16xf32>, vector<32x16xf32> -> vector<32x16xf32>
    %957 = arith.addf %19, %956 : vector<32x16xf32>
    %cst_255 = arith.constant 0.000000e+00 : f32
    %958 = vector.broadcast %cst_255 : f32 to vector<16x16xf32>
    %959 = vector.extract_strided_slice %10 {offsets = [0, 32], sizes = [16, 1], strides = [1, 1]} : vector<16x64xf32> to vector<16x1xf32>
    %960 = vector.extract_strided_slice %16 {offsets = [32, 0], sizes = [1, 16], strides = [1, 1]} : vector<64x16xf32> to vector<1x16xf32>
    %961 = vector.broadcast %959 : vector<16x1xf32> to vector<16x16xf32>
    %962 = vector.broadcast %960 : vector<1x16xf32> to vector<16x16xf32>
    %963 = arith.addf %961, %962 : vector<16x16xf32>
    %cst_256 = arith.constant 0.000000e+00 : f32
    %964 = vector.broadcast %cst_256 : f32 to vector<16x16xf32>
    %965 = arith.cmpf oge, %963, %964 : vector<16x16xf32>
    %cst_257 = arith.constant 2.000000e-01 : f32
    %966 = vector.broadcast %cst_257 : f32 to vector<16x16xf32>
    %967 = arith.mulf %966, %963 : vector<16x16xf32>
    %968 = arith.select %965, %963, %967 : vector<16x16xi1>, vector<16x16xf32>
    %c1_258 = arith.constant 1 : index
    %c0_259 = arith.constant 0 : index
    %969 = memref.load %arg8[%c1_258, %c0_259] : memref<2x32xf32, #tpu.memory_space<smem>>
    %970 = vector.broadcast %969 : f32 to vector<16x16xf32>
    %971 = arith.mulf %970, %968 : vector<16x16xf32>
    %972 = arith.addf %958, %971 : vector<16x16xf32>
    %973 = vector.extract_strided_slice %10 {offsets = [0, 33], sizes = [16, 1], strides = [1, 1]} : vector<16x64xf32> to vector<16x1xf32>
    %974 = vector.extract_strided_slice %16 {offsets = [33, 0], sizes = [1, 16], strides = [1, 1]} : vector<64x16xf32> to vector<1x16xf32>
    %975 = vector.broadcast %973 : vector<16x1xf32> to vector<16x16xf32>
    %976 = vector.broadcast %974 : vector<1x16xf32> to vector<16x16xf32>
    %977 = arith.addf %975, %976 : vector<16x16xf32>
    %cst_260 = arith.constant 0.000000e+00 : f32
    %978 = vector.broadcast %cst_260 : f32 to vector<16x16xf32>
    %979 = arith.cmpf oge, %977, %978 : vector<16x16xf32>
    %cst_261 = arith.constant 2.000000e-01 : f32
    %980 = vector.broadcast %cst_261 : f32 to vector<16x16xf32>
    %981 = arith.mulf %980, %977 : vector<16x16xf32>
    %982 = arith.select %979, %977, %981 : vector<16x16xi1>, vector<16x16xf32>
    %c1_262 = arith.constant 1 : index
    %c1_263 = arith.constant 1 : index
    %983 = memref.load %arg8[%c1_262, %c1_263] : memref<2x32xf32, #tpu.memory_space<smem>>
    %984 = vector.broadcast %983 : f32 to vector<16x16xf32>
    %985 = arith.mulf %984, %982 : vector<16x16xf32>
    %986 = arith.addf %972, %985 : vector<16x16xf32>
    %987 = vector.extract_strided_slice %10 {offsets = [0, 34], sizes = [16, 1], strides = [1, 1]} : vector<16x64xf32> to vector<16x1xf32>
    %988 = vector.extract_strided_slice %16 {offsets = [34, 0], sizes = [1, 16], strides = [1, 1]} : vector<64x16xf32> to vector<1x16xf32>
    %989 = vector.broadcast %987 : vector<16x1xf32> to vector<16x16xf32>
    %990 = vector.broadcast %988 : vector<1x16xf32> to vector<16x16xf32>
    %991 = arith.addf %989, %990 : vector<16x16xf32>
    %cst_264 = arith.constant 0.000000e+00 : f32
    %992 = vector.broadcast %cst_264 : f32 to vector<16x16xf32>
    %993 = arith.cmpf oge, %991, %992 : vector<16x16xf32>
    %cst_265 = arith.constant 2.000000e-01 : f32
    %994 = vector.broadcast %cst_265 : f32 to vector<16x16xf32>
    %995 = arith.mulf %994, %991 : vector<16x16xf32>
    %996 = arith.select %993, %991, %995 : vector<16x16xi1>, vector<16x16xf32>
    %c1_266 = arith.constant 1 : index
    %c2_267 = arith.constant 2 : index
    %997 = memref.load %arg8[%c1_266, %c2_267] : memref<2x32xf32, #tpu.memory_space<smem>>
    %998 = vector.broadcast %997 : f32 to vector<16x16xf32>
    %999 = arith.mulf %998, %996 : vector<16x16xf32>
    %1000 = arith.addf %986, %999 : vector<16x16xf32>
    %1001 = vector.extract_strided_slice %10 {offsets = [0, 35], sizes = [16, 1], strides = [1, 1]} : vector<16x64xf32> to vector<16x1xf32>
    %1002 = vector.extract_strided_slice %16 {offsets = [35, 0], sizes = [1, 16], strides = [1, 1]} : vector<64x16xf32> to vector<1x16xf32>
    %1003 = vector.broadcast %1001 : vector<16x1xf32> to vector<16x16xf32>
    %1004 = vector.broadcast %1002 : vector<1x16xf32> to vector<16x16xf32>
    %1005 = arith.addf %1003, %1004 : vector<16x16xf32>
    %cst_268 = arith.constant 0.000000e+00 : f32
    %1006 = vector.broadcast %cst_268 : f32 to vector<16x16xf32>
    %1007 = arith.cmpf oge, %1005, %1006 : vector<16x16xf32>
    %cst_269 = arith.constant 2.000000e-01 : f32
    %1008 = vector.broadcast %cst_269 : f32 to vector<16x16xf32>
    %1009 = arith.mulf %1008, %1005 : vector<16x16xf32>
    %1010 = arith.select %1007, %1005, %1009 : vector<16x16xi1>, vector<16x16xf32>
    %c1_270 = arith.constant 1 : index
    %c3_271 = arith.constant 3 : index
    %1011 = memref.load %arg8[%c1_270, %c3_271] : memref<2x32xf32, #tpu.memory_space<smem>>
    %1012 = vector.broadcast %1011 : f32 to vector<16x16xf32>
    %1013 = arith.mulf %1012, %1010 : vector<16x16xf32>
    %1014 = arith.addf %1000, %1013 : vector<16x16xf32>
    %1015 = vector.extract_strided_slice %10 {offsets = [0, 36], sizes = [16, 1], strides = [1, 1]} : vector<16x64xf32> to vector<16x1xf32>
    %1016 = vector.extract_strided_slice %16 {offsets = [36, 0], sizes = [1, 16], strides = [1, 1]} : vector<64x16xf32> to vector<1x16xf32>
    %1017 = vector.broadcast %1015 : vector<16x1xf32> to vector<16x16xf32>
    %1018 = vector.broadcast %1016 : vector<1x16xf32> to vector<16x16xf32>
    %1019 = arith.addf %1017, %1018 : vector<16x16xf32>
    %cst_272 = arith.constant 0.000000e+00 : f32
    %1020 = vector.broadcast %cst_272 : f32 to vector<16x16xf32>
    %1021 = arith.cmpf oge, %1019, %1020 : vector<16x16xf32>
    %cst_273 = arith.constant 2.000000e-01 : f32
    %1022 = vector.broadcast %cst_273 : f32 to vector<16x16xf32>
    %1023 = arith.mulf %1022, %1019 : vector<16x16xf32>
    %1024 = arith.select %1021, %1019, %1023 : vector<16x16xi1>, vector<16x16xf32>
    %c1_274 = arith.constant 1 : index
    %c4_275 = arith.constant 4 : index
    %1025 = memref.load %arg8[%c1_274, %c4_275] : memref<2x32xf32, #tpu.memory_space<smem>>
    %1026 = vector.broadcast %1025 : f32 to vector<16x16xf32>
    %1027 = arith.mulf %1026, %1024 : vector<16x16xf32>
    %1028 = arith.addf %1014, %1027 : vector<16x16xf32>
    %1029 = vector.extract_strided_slice %10 {offsets = [0, 37], sizes = [16, 1], strides = [1, 1]} : vector<16x64xf32> to vector<16x1xf32>
    %1030 = vector.extract_strided_slice %16 {offsets = [37, 0], sizes = [1, 16], strides = [1, 1]} : vector<64x16xf32> to vector<1x16xf32>
    %1031 = vector.broadcast %1029 : vector<16x1xf32> to vector<16x16xf32>
    %1032 = vector.broadcast %1030 : vector<1x16xf32> to vector<16x16xf32>
    %1033 = arith.addf %1031, %1032 : vector<16x16xf32>
    %cst_276 = arith.constant 0.000000e+00 : f32
    %1034 = vector.broadcast %cst_276 : f32 to vector<16x16xf32>
    %1035 = arith.cmpf oge, %1033, %1034 : vector<16x16xf32>
    %cst_277 = arith.constant 2.000000e-01 : f32
    %1036 = vector.broadcast %cst_277 : f32 to vector<16x16xf32>
    %1037 = arith.mulf %1036, %1033 : vector<16x16xf32>
    %1038 = arith.select %1035, %1033, %1037 : vector<16x16xi1>, vector<16x16xf32>
    %c1_278 = arith.constant 1 : index
    %c5_279 = arith.constant 5 : index
    %1039 = memref.load %arg8[%c1_278, %c5_279] : memref<2x32xf32, #tpu.memory_space<smem>>
    %1040 = vector.broadcast %1039 : f32 to vector<16x16xf32>
    %1041 = arith.mulf %1040, %1038 : vector<16x16xf32>
    %1042 = arith.addf %1028, %1041 : vector<16x16xf32>
    %1043 = vector.extract_strided_slice %10 {offsets = [0, 38], sizes = [16, 1], strides = [1, 1]} : vector<16x64xf32> to vector<16x1xf32>
    %1044 = vector.extract_strided_slice %16 {offsets = [38, 0], sizes = [1, 16], strides = [1, 1]} : vector<64x16xf32> to vector<1x16xf32>
    %1045 = vector.broadcast %1043 : vector<16x1xf32> to vector<16x16xf32>
    %1046 = vector.broadcast %1044 : vector<1x16xf32> to vector<16x16xf32>
    %1047 = arith.addf %1045, %1046 : vector<16x16xf32>
    %cst_280 = arith.constant 0.000000e+00 : f32
    %1048 = vector.broadcast %cst_280 : f32 to vector<16x16xf32>
    %1049 = arith.cmpf oge, %1047, %1048 : vector<16x16xf32>
    %cst_281 = arith.constant 2.000000e-01 : f32
    %1050 = vector.broadcast %cst_281 : f32 to vector<16x16xf32>
    %1051 = arith.mulf %1050, %1047 : vector<16x16xf32>
    %1052 = arith.select %1049, %1047, %1051 : vector<16x16xi1>, vector<16x16xf32>
    %c1_282 = arith.constant 1 : index
    %c6_283 = arith.constant 6 : index
    %1053 = memref.load %arg8[%c1_282, %c6_283] : memref<2x32xf32, #tpu.memory_space<smem>>
    %1054 = vector.broadcast %1053 : f32 to vector<16x16xf32>
    %1055 = arith.mulf %1054, %1052 : vector<16x16xf32>
    %1056 = arith.addf %1042, %1055 : vector<16x16xf32>
    %1057 = vector.extract_strided_slice %10 {offsets = [0, 39], sizes = [16, 1], strides = [1, 1]} : vector<16x64xf32> to vector<16x1xf32>
    %1058 = vector.extract_strided_slice %16 {offsets = [39, 0], sizes = [1, 16], strides = [1, 1]} : vector<64x16xf32> to vector<1x16xf32>
    %1059 = vector.broadcast %1057 : vector<16x1xf32> to vector<16x16xf32>
    %1060 = vector.broadcast %1058 : vector<1x16xf32> to vector<16x16xf32>
    %1061 = arith.addf %1059, %1060 : vector<16x16xf32>
    %cst_284 = arith.constant 0.000000e+00 : f32
    %1062 = vector.broadcast %cst_284 : f32 to vector<16x16xf32>
    %1063 = arith.cmpf oge, %1061, %1062 : vector<16x16xf32>
    %cst_285 = arith.constant 2.000000e-01 : f32
    %1064 = vector.broadcast %cst_285 : f32 to vector<16x16xf32>
    %1065 = arith.mulf %1064, %1061 : vector<16x16xf32>
    %1066 = arith.select %1063, %1061, %1065 : vector<16x16xi1>, vector<16x16xf32>
    %c1_286 = arith.constant 1 : index
    %c7_287 = arith.constant 7 : index
    %1067 = memref.load %arg8[%c1_286, %c7_287] : memref<2x32xf32, #tpu.memory_space<smem>>
    %1068 = vector.broadcast %1067 : f32 to vector<16x16xf32>
    %1069 = arith.mulf %1068, %1066 : vector<16x16xf32>
    %1070 = arith.addf %1056, %1069 : vector<16x16xf32>
    %1071 = vector.extract_strided_slice %10 {offsets = [0, 40], sizes = [16, 1], strides = [1, 1]} : vector<16x64xf32> to vector<16x1xf32>
    %1072 = vector.extract_strided_slice %16 {offsets = [40, 0], sizes = [1, 16], strides = [1, 1]} : vector<64x16xf32> to vector<1x16xf32>
    %1073 = vector.broadcast %1071 : vector<16x1xf32> to vector<16x16xf32>
    %1074 = vector.broadcast %1072 : vector<1x16xf32> to vector<16x16xf32>
    %1075 = arith.addf %1073, %1074 : vector<16x16xf32>
    %cst_288 = arith.constant 0.000000e+00 : f32
    %1076 = vector.broadcast %cst_288 : f32 to vector<16x16xf32>
    %1077 = arith.cmpf oge, %1075, %1076 : vector<16x16xf32>
    %cst_289 = arith.constant 2.000000e-01 : f32
    %1078 = vector.broadcast %cst_289 : f32 to vector<16x16xf32>
    %1079 = arith.mulf %1078, %1075 : vector<16x16xf32>
    %1080 = arith.select %1077, %1075, %1079 : vector<16x16xi1>, vector<16x16xf32>
    %c1_290 = arith.constant 1 : index
    %c8_291 = arith.constant 8 : index
    %1081 = memref.load %arg8[%c1_290, %c8_291] : memref<2x32xf32, #tpu.memory_space<smem>>
    %1082 = vector.broadcast %1081 : f32 to vector<16x16xf32>
    %1083 = arith.mulf %1082, %1080 : vector<16x16xf32>
    %1084 = arith.addf %1070, %1083 : vector<16x16xf32>
    %1085 = vector.extract_strided_slice %10 {offsets = [0, 41], sizes = [16, 1], strides = [1, 1]} : vector<16x64xf32> to vector<16x1xf32>
    %1086 = vector.extract_strided_slice %16 {offsets = [41, 0], sizes = [1, 16], strides = [1, 1]} : vector<64x16xf32> to vector<1x16xf32>
    %1087 = vector.broadcast %1085 : vector<16x1xf32> to vector<16x16xf32>
    %1088 = vector.broadcast %1086 : vector<1x16xf32> to vector<16x16xf32>
    %1089 = arith.addf %1087, %1088 : vector<16x16xf32>
    %cst_292 = arith.constant 0.000000e+00 : f32
    %1090 = vector.broadcast %cst_292 : f32 to vector<16x16xf32>
    %1091 = arith.cmpf oge, %1089, %1090 : vector<16x16xf32>
    %cst_293 = arith.constant 2.000000e-01 : f32
    %1092 = vector.broadcast %cst_293 : f32 to vector<16x16xf32>
    %1093 = arith.mulf %1092, %1089 : vector<16x16xf32>
    %1094 = arith.select %1091, %1089, %1093 : vector<16x16xi1>, vector<16x16xf32>
    %c1_294 = arith.constant 1 : index
    %c9_295 = arith.constant 9 : index
    %1095 = memref.load %arg8[%c1_294, %c9_295] : memref<2x32xf32, #tpu.memory_space<smem>>
    %1096 = vector.broadcast %1095 : f32 to vector<16x16xf32>
    %1097 = arith.mulf %1096, %1094 : vector<16x16xf32>
    %1098 = arith.addf %1084, %1097 : vector<16x16xf32>
    %1099 = vector.extract_strided_slice %10 {offsets = [0, 42], sizes = [16, 1], strides = [1, 1]} : vector<16x64xf32> to vector<16x1xf32>
    %1100 = vector.extract_strided_slice %16 {offsets = [42, 0], sizes = [1, 16], strides = [1, 1]} : vector<64x16xf32> to vector<1x16xf32>
    %1101 = vector.broadcast %1099 : vector<16x1xf32> to vector<16x16xf32>
    %1102 = vector.broadcast %1100 : vector<1x16xf32> to vector<16x16xf32>
    %1103 = arith.addf %1101, %1102 : vector<16x16xf32>
    %cst_296 = arith.constant 0.000000e+00 : f32
    %1104 = vector.broadcast %cst_296 : f32 to vector<16x16xf32>
    %1105 = arith.cmpf oge, %1103, %1104 : vector<16x16xf32>
    %cst_297 = arith.constant 2.000000e-01 : f32
    %1106 = vector.broadcast %cst_297 : f32 to vector<16x16xf32>
    %1107 = arith.mulf %1106, %1103 : vector<16x16xf32>
    %1108 = arith.select %1105, %1103, %1107 : vector<16x16xi1>, vector<16x16xf32>
    %c1_298 = arith.constant 1 : index
    %c10_299 = arith.constant 10 : index
    %1109 = memref.load %arg8[%c1_298, %c10_299] : memref<2x32xf32, #tpu.memory_space<smem>>
    %1110 = vector.broadcast %1109 : f32 to vector<16x16xf32>
    %1111 = arith.mulf %1110, %1108 : vector<16x16xf32>
    %1112 = arith.addf %1098, %1111 : vector<16x16xf32>
    %1113 = vector.extract_strided_slice %10 {offsets = [0, 43], sizes = [16, 1], strides = [1, 1]} : vector<16x64xf32> to vector<16x1xf32>
    %1114 = vector.extract_strided_slice %16 {offsets = [43, 0], sizes = [1, 16], strides = [1, 1]} : vector<64x16xf32> to vector<1x16xf32>
    %1115 = vector.broadcast %1113 : vector<16x1xf32> to vector<16x16xf32>
    %1116 = vector.broadcast %1114 : vector<1x16xf32> to vector<16x16xf32>
    %1117 = arith.addf %1115, %1116 : vector<16x16xf32>
    %cst_300 = arith.constant 0.000000e+00 : f32
    %1118 = vector.broadcast %cst_300 : f32 to vector<16x16xf32>
    %1119 = arith.cmpf oge, %1117, %1118 : vector<16x16xf32>
    %cst_301 = arith.constant 2.000000e-01 : f32
    %1120 = vector.broadcast %cst_301 : f32 to vector<16x16xf32>
    %1121 = arith.mulf %1120, %1117 : vector<16x16xf32>
    %1122 = arith.select %1119, %1117, %1121 : vector<16x16xi1>, vector<16x16xf32>
    %c1_302 = arith.constant 1 : index
    %c11_303 = arith.constant 11 : index
    %1123 = memref.load %arg8[%c1_302, %c11_303] : memref<2x32xf32, #tpu.memory_space<smem>>
    %1124 = vector.broadcast %1123 : f32 to vector<16x16xf32>
    %1125 = arith.mulf %1124, %1122 : vector<16x16xf32>
    %1126 = arith.addf %1112, %1125 : vector<16x16xf32>
    %1127 = vector.extract_strided_slice %10 {offsets = [0, 44], sizes = [16, 1], strides = [1, 1]} : vector<16x64xf32> to vector<16x1xf32>
    %1128 = vector.extract_strided_slice %16 {offsets = [44, 0], sizes = [1, 16], strides = [1, 1]} : vector<64x16xf32> to vector<1x16xf32>
    %1129 = vector.broadcast %1127 : vector<16x1xf32> to vector<16x16xf32>
    %1130 = vector.broadcast %1128 : vector<1x16xf32> to vector<16x16xf32>
    %1131 = arith.addf %1129, %1130 : vector<16x16xf32>
    %cst_304 = arith.constant 0.000000e+00 : f32
    %1132 = vector.broadcast %cst_304 : f32 to vector<16x16xf32>
    %1133 = arith.cmpf oge, %1131, %1132 : vector<16x16xf32>
    %cst_305 = arith.constant 2.000000e-01 : f32
    %1134 = vector.broadcast %cst_305 : f32 to vector<16x16xf32>
    %1135 = arith.mulf %1134, %1131 : vector<16x16xf32>
    %1136 = arith.select %1133, %1131, %1135 : vector<16x16xi1>, vector<16x16xf32>
    %c1_306 = arith.constant 1 : index
    %c12_307 = arith.constant 12 : index
    %1137 = memref.load %arg8[%c1_306, %c12_307] : memref<2x32xf32, #tpu.memory_space<smem>>
    %1138 = vector.broadcast %1137 : f32 to vector<16x16xf32>
    %1139 = arith.mulf %1138, %1136 : vector<16x16xf32>
    %1140 = arith.addf %1126, %1139 : vector<16x16xf32>
    %1141 = vector.extract_strided_slice %10 {offsets = [0, 45], sizes = [16, 1], strides = [1, 1]} : vector<16x64xf32> to vector<16x1xf32>
    %1142 = vector.extract_strided_slice %16 {offsets = [45, 0], sizes = [1, 16], strides = [1, 1]} : vector<64x16xf32> to vector<1x16xf32>
    %1143 = vector.broadcast %1141 : vector<16x1xf32> to vector<16x16xf32>
    %1144 = vector.broadcast %1142 : vector<1x16xf32> to vector<16x16xf32>
    %1145 = arith.addf %1143, %1144 : vector<16x16xf32>
    %cst_308 = arith.constant 0.000000e+00 : f32
    %1146 = vector.broadcast %cst_308 : f32 to vector<16x16xf32>
    %1147 = arith.cmpf oge, %1145, %1146 : vector<16x16xf32>
    %cst_309 = arith.constant 2.000000e-01 : f32
    %1148 = vector.broadcast %cst_309 : f32 to vector<16x16xf32>
    %1149 = arith.mulf %1148, %1145 : vector<16x16xf32>
    %1150 = arith.select %1147, %1145, %1149 : vector<16x16xi1>, vector<16x16xf32>
    %c1_310 = arith.constant 1 : index
    %c13_311 = arith.constant 13 : index
    %1151 = memref.load %arg8[%c1_310, %c13_311] : memref<2x32xf32, #tpu.memory_space<smem>>
    %1152 = vector.broadcast %1151 : f32 to vector<16x16xf32>
    %1153 = arith.mulf %1152, %1150 : vector<16x16xf32>
    %1154 = arith.addf %1140, %1153 : vector<16x16xf32>
    %1155 = vector.extract_strided_slice %10 {offsets = [0, 46], sizes = [16, 1], strides = [1, 1]} : vector<16x64xf32> to vector<16x1xf32>
    %1156 = vector.extract_strided_slice %16 {offsets = [46, 0], sizes = [1, 16], strides = [1, 1]} : vector<64x16xf32> to vector<1x16xf32>
    %1157 = vector.broadcast %1155 : vector<16x1xf32> to vector<16x16xf32>
    %1158 = vector.broadcast %1156 : vector<1x16xf32> to vector<16x16xf32>
    %1159 = arith.addf %1157, %1158 : vector<16x16xf32>
    %cst_312 = arith.constant 0.000000e+00 : f32
    %1160 = vector.broadcast %cst_312 : f32 to vector<16x16xf32>
    %1161 = arith.cmpf oge, %1159, %1160 : vector<16x16xf32>
    %cst_313 = arith.constant 2.000000e-01 : f32
    %1162 = vector.broadcast %cst_313 : f32 to vector<16x16xf32>
    %1163 = arith.mulf %1162, %1159 : vector<16x16xf32>
    %1164 = arith.select %1161, %1159, %1163 : vector<16x16xi1>, vector<16x16xf32>
    %c1_314 = arith.constant 1 : index
    %c14_315 = arith.constant 14 : index
    %1165 = memref.load %arg8[%c1_314, %c14_315] : memref<2x32xf32, #tpu.memory_space<smem>>
    %1166 = vector.broadcast %1165 : f32 to vector<16x16xf32>
    %1167 = arith.mulf %1166, %1164 : vector<16x16xf32>
    %1168 = arith.addf %1154, %1167 : vector<16x16xf32>
    %1169 = vector.extract_strided_slice %10 {offsets = [0, 47], sizes = [16, 1], strides = [1, 1]} : vector<16x64xf32> to vector<16x1xf32>
    %1170 = vector.extract_strided_slice %16 {offsets = [47, 0], sizes = [1, 16], strides = [1, 1]} : vector<64x16xf32> to vector<1x16xf32>
    %1171 = vector.broadcast %1169 : vector<16x1xf32> to vector<16x16xf32>
    %1172 = vector.broadcast %1170 : vector<1x16xf32> to vector<16x16xf32>
    %1173 = arith.addf %1171, %1172 : vector<16x16xf32>
    %cst_316 = arith.constant 0.000000e+00 : f32
    %1174 = vector.broadcast %cst_316 : f32 to vector<16x16xf32>
    %1175 = arith.cmpf oge, %1173, %1174 : vector<16x16xf32>
    %cst_317 = arith.constant 2.000000e-01 : f32
    %1176 = vector.broadcast %cst_317 : f32 to vector<16x16xf32>
    %1177 = arith.mulf %1176, %1173 : vector<16x16xf32>
    %1178 = arith.select %1175, %1173, %1177 : vector<16x16xi1>, vector<16x16xf32>
    %c1_318 = arith.constant 1 : index
    %c15_319 = arith.constant 15 : index
    %1179 = memref.load %arg8[%c1_318, %c15_319] : memref<2x32xf32, #tpu.memory_space<smem>>
    %1180 = vector.broadcast %1179 : f32 to vector<16x16xf32>
    %1181 = arith.mulf %1180, %1178 : vector<16x16xf32>
    %1182 = arith.addf %1168, %1181 : vector<16x16xf32>
    %1183 = vector.extract_strided_slice %10 {offsets = [0, 48], sizes = [16, 1], strides = [1, 1]} : vector<16x64xf32> to vector<16x1xf32>
    %1184 = vector.extract_strided_slice %16 {offsets = [48, 0], sizes = [1, 16], strides = [1, 1]} : vector<64x16xf32> to vector<1x16xf32>
    %1185 = vector.broadcast %1183 : vector<16x1xf32> to vector<16x16xf32>
    %1186 = vector.broadcast %1184 : vector<1x16xf32> to vector<16x16xf32>
    %1187 = arith.addf %1185, %1186 : vector<16x16xf32>
    %cst_320 = arith.constant 0.000000e+00 : f32
    %1188 = vector.broadcast %cst_320 : f32 to vector<16x16xf32>
    %1189 = arith.cmpf oge, %1187, %1188 : vector<16x16xf32>
    %cst_321 = arith.constant 2.000000e-01 : f32
    %1190 = vector.broadcast %cst_321 : f32 to vector<16x16xf32>
    %1191 = arith.mulf %1190, %1187 : vector<16x16xf32>
    %1192 = arith.select %1189, %1187, %1191 : vector<16x16xi1>, vector<16x16xf32>
    %c1_322 = arith.constant 1 : index
    %c16_323 = arith.constant 16 : index
    %1193 = memref.load %arg8[%c1_322, %c16_323] : memref<2x32xf32, #tpu.memory_space<smem>>
    %1194 = vector.broadcast %1193 : f32 to vector<16x16xf32>
    %1195 = arith.mulf %1194, %1192 : vector<16x16xf32>
    %1196 = arith.addf %1182, %1195 : vector<16x16xf32>
    %1197 = vector.extract_strided_slice %10 {offsets = [0, 49], sizes = [16, 1], strides = [1, 1]} : vector<16x64xf32> to vector<16x1xf32>
    %1198 = vector.extract_strided_slice %16 {offsets = [49, 0], sizes = [1, 16], strides = [1, 1]} : vector<64x16xf32> to vector<1x16xf32>
    %1199 = vector.broadcast %1197 : vector<16x1xf32> to vector<16x16xf32>
    %1200 = vector.broadcast %1198 : vector<1x16xf32> to vector<16x16xf32>
    %1201 = arith.addf %1199, %1200 : vector<16x16xf32>
    %cst_324 = arith.constant 0.000000e+00 : f32
    %1202 = vector.broadcast %cst_324 : f32 to vector<16x16xf32>
    %1203 = arith.cmpf oge, %1201, %1202 : vector<16x16xf32>
    %cst_325 = arith.constant 2.000000e-01 : f32
    %1204 = vector.broadcast %cst_325 : f32 to vector<16x16xf32>
    %1205 = arith.mulf %1204, %1201 : vector<16x16xf32>
    %1206 = arith.select %1203, %1201, %1205 : vector<16x16xi1>, vector<16x16xf32>
    %c1_326 = arith.constant 1 : index
    %c17_327 = arith.constant 17 : index
    %1207 = memref.load %arg8[%c1_326, %c17_327] : memref<2x32xf32, #tpu.memory_space<smem>>
    %1208 = vector.broadcast %1207 : f32 to vector<16x16xf32>
    %1209 = arith.mulf %1208, %1206 : vector<16x16xf32>
    %1210 = arith.addf %1196, %1209 : vector<16x16xf32>
    %1211 = vector.extract_strided_slice %10 {offsets = [0, 50], sizes = [16, 1], strides = [1, 1]} : vector<16x64xf32> to vector<16x1xf32>
    %1212 = vector.extract_strided_slice %16 {offsets = [50, 0], sizes = [1, 16], strides = [1, 1]} : vector<64x16xf32> to vector<1x16xf32>
    %1213 = vector.broadcast %1211 : vector<16x1xf32> to vector<16x16xf32>
    %1214 = vector.broadcast %1212 : vector<1x16xf32> to vector<16x16xf32>
    %1215 = arith.addf %1213, %1214 : vector<16x16xf32>
    %cst_328 = arith.constant 0.000000e+00 : f32
    %1216 = vector.broadcast %cst_328 : f32 to vector<16x16xf32>
    %1217 = arith.cmpf oge, %1215, %1216 : vector<16x16xf32>
    %cst_329 = arith.constant 2.000000e-01 : f32
    %1218 = vector.broadcast %cst_329 : f32 to vector<16x16xf32>
    %1219 = arith.mulf %1218, %1215 : vector<16x16xf32>
    %1220 = arith.select %1217, %1215, %1219 : vector<16x16xi1>, vector<16x16xf32>
    %c1_330 = arith.constant 1 : index
    %c18_331 = arith.constant 18 : index
    %1221 = memref.load %arg8[%c1_330, %c18_331] : memref<2x32xf32, #tpu.memory_space<smem>>
    %1222 = vector.broadcast %1221 : f32 to vector<16x16xf32>
    %1223 = arith.mulf %1222, %1220 : vector<16x16xf32>
    %1224 = arith.addf %1210, %1223 : vector<16x16xf32>
    %1225 = vector.extract_strided_slice %10 {offsets = [0, 51], sizes = [16, 1], strides = [1, 1]} : vector<16x64xf32> to vector<16x1xf32>
    %1226 = vector.extract_strided_slice %16 {offsets = [51, 0], sizes = [1, 16], strides = [1, 1]} : vector<64x16xf32> to vector<1x16xf32>
    %1227 = vector.broadcast %1225 : vector<16x1xf32> to vector<16x16xf32>
    %1228 = vector.broadcast %1226 : vector<1x16xf32> to vector<16x16xf32>
    %1229 = arith.addf %1227, %1228 : vector<16x16xf32>
    %cst_332 = arith.constant 0.000000e+00 : f32
    %1230 = vector.broadcast %cst_332 : f32 to vector<16x16xf32>
    %1231 = arith.cmpf oge, %1229, %1230 : vector<16x16xf32>
    %cst_333 = arith.constant 2.000000e-01 : f32
    %1232 = vector.broadcast %cst_333 : f32 to vector<16x16xf32>
    %1233 = arith.mulf %1232, %1229 : vector<16x16xf32>
    %1234 = arith.select %1231, %1229, %1233 : vector<16x16xi1>, vector<16x16xf32>
    %c1_334 = arith.constant 1 : index
    %c19_335 = arith.constant 19 : index
    %1235 = memref.load %arg8[%c1_334, %c19_335] : memref<2x32xf32, #tpu.memory_space<smem>>
    %1236 = vector.broadcast %1235 : f32 to vector<16x16xf32>
    %1237 = arith.mulf %1236, %1234 : vector<16x16xf32>
    %1238 = arith.addf %1224, %1237 : vector<16x16xf32>
    %1239 = vector.extract_strided_slice %10 {offsets = [0, 52], sizes = [16, 1], strides = [1, 1]} : vector<16x64xf32> to vector<16x1xf32>
    %1240 = vector.extract_strided_slice %16 {offsets = [52, 0], sizes = [1, 16], strides = [1, 1]} : vector<64x16xf32> to vector<1x16xf32>
    %1241 = vector.broadcast %1239 : vector<16x1xf32> to vector<16x16xf32>
    %1242 = vector.broadcast %1240 : vector<1x16xf32> to vector<16x16xf32>
    %1243 = arith.addf %1241, %1242 : vector<16x16xf32>
    %cst_336 = arith.constant 0.000000e+00 : f32
    %1244 = vector.broadcast %cst_336 : f32 to vector<16x16xf32>
    %1245 = arith.cmpf oge, %1243, %1244 : vector<16x16xf32>
    %cst_337 = arith.constant 2.000000e-01 : f32
    %1246 = vector.broadcast %cst_337 : f32 to vector<16x16xf32>
    %1247 = arith.mulf %1246, %1243 : vector<16x16xf32>
    %1248 = arith.select %1245, %1243, %1247 : vector<16x16xi1>, vector<16x16xf32>
    %c1_338 = arith.constant 1 : index
    %c20_339 = arith.constant 20 : index
    %1249 = memref.load %arg8[%c1_338, %c20_339] : memref<2x32xf32, #tpu.memory_space<smem>>
    %1250 = vector.broadcast %1249 : f32 to vector<16x16xf32>
    %1251 = arith.mulf %1250, %1248 : vector<16x16xf32>
    %1252 = arith.addf %1238, %1251 : vector<16x16xf32>
    %1253 = vector.extract_strided_slice %10 {offsets = [0, 53], sizes = [16, 1], strides = [1, 1]} : vector<16x64xf32> to vector<16x1xf32>
    %1254 = vector.extract_strided_slice %16 {offsets = [53, 0], sizes = [1, 16], strides = [1, 1]} : vector<64x16xf32> to vector<1x16xf32>
    %1255 = vector.broadcast %1253 : vector<16x1xf32> to vector<16x16xf32>
    %1256 = vector.broadcast %1254 : vector<1x16xf32> to vector<16x16xf32>
    %1257 = arith.addf %1255, %1256 : vector<16x16xf32>
    %cst_340 = arith.constant 0.000000e+00 : f32
    %1258 = vector.broadcast %cst_340 : f32 to vector<16x16xf32>
    %1259 = arith.cmpf oge, %1257, %1258 : vector<16x16xf32>
    %cst_341 = arith.constant 2.000000e-01 : f32
    %1260 = vector.broadcast %cst_341 : f32 to vector<16x16xf32>
    %1261 = arith.mulf %1260, %1257 : vector<16x16xf32>
    %1262 = arith.select %1259, %1257, %1261 : vector<16x16xi1>, vector<16x16xf32>
    %c1_342 = arith.constant 1 : index
    %c21_343 = arith.constant 21 : index
    %1263 = memref.load %arg8[%c1_342, %c21_343] : memref<2x32xf32, #tpu.memory_space<smem>>
    %1264 = vector.broadcast %1263 : f32 to vector<16x16xf32>
    %1265 = arith.mulf %1264, %1262 : vector<16x16xf32>
    %1266 = arith.addf %1252, %1265 : vector<16x16xf32>
    %1267 = vector.extract_strided_slice %10 {offsets = [0, 54], sizes = [16, 1], strides = [1, 1]} : vector<16x64xf32> to vector<16x1xf32>
    %1268 = vector.extract_strided_slice %16 {offsets = [54, 0], sizes = [1, 16], strides = [1, 1]} : vector<64x16xf32> to vector<1x16xf32>
    %1269 = vector.broadcast %1267 : vector<16x1xf32> to vector<16x16xf32>
    %1270 = vector.broadcast %1268 : vector<1x16xf32> to vector<16x16xf32>
    %1271 = arith.addf %1269, %1270 : vector<16x16xf32>
    %cst_344 = arith.constant 0.000000e+00 : f32
    %1272 = vector.broadcast %cst_344 : f32 to vector<16x16xf32>
    %1273 = arith.cmpf oge, %1271, %1272 : vector<16x16xf32>
    %cst_345 = arith.constant 2.000000e-01 : f32
    %1274 = vector.broadcast %cst_345 : f32 to vector<16x16xf32>
    %1275 = arith.mulf %1274, %1271 : vector<16x16xf32>
    %1276 = arith.select %1273, %1271, %1275 : vector<16x16xi1>, vector<16x16xf32>
    %c1_346 = arith.constant 1 : index
    %c22_347 = arith.constant 22 : index
    %1277 = memref.load %arg8[%c1_346, %c22_347] : memref<2x32xf32, #tpu.memory_space<smem>>
    %1278 = vector.broadcast %1277 : f32 to vector<16x16xf32>
    %1279 = arith.mulf %1278, %1276 : vector<16x16xf32>
    %1280 = arith.addf %1266, %1279 : vector<16x16xf32>
    %1281 = vector.extract_strided_slice %10 {offsets = [0, 55], sizes = [16, 1], strides = [1, 1]} : vector<16x64xf32> to vector<16x1xf32>
    %1282 = vector.extract_strided_slice %16 {offsets = [55, 0], sizes = [1, 16], strides = [1, 1]} : vector<64x16xf32> to vector<1x16xf32>
    %1283 = vector.broadcast %1281 : vector<16x1xf32> to vector<16x16xf32>
    %1284 = vector.broadcast %1282 : vector<1x16xf32> to vector<16x16xf32>
    %1285 = arith.addf %1283, %1284 : vector<16x16xf32>
    %cst_348 = arith.constant 0.000000e+00 : f32
    %1286 = vector.broadcast %cst_348 : f32 to vector<16x16xf32>
    %1287 = arith.cmpf oge, %1285, %1286 : vector<16x16xf32>
    %cst_349 = arith.constant 2.000000e-01 : f32
    %1288 = vector.broadcast %cst_349 : f32 to vector<16x16xf32>
    %1289 = arith.mulf %1288, %1285 : vector<16x16xf32>
    %1290 = arith.select %1287, %1285, %1289 : vector<16x16xi1>, vector<16x16xf32>
    %c1_350 = arith.constant 1 : index
    %c23_351 = arith.constant 23 : index
    %1291 = memref.load %arg8[%c1_350, %c23_351] : memref<2x32xf32, #tpu.memory_space<smem>>
    %1292 = vector.broadcast %1291 : f32 to vector<16x16xf32>
    %1293 = arith.mulf %1292, %1290 : vector<16x16xf32>
    %1294 = arith.addf %1280, %1293 : vector<16x16xf32>
    %1295 = vector.extract_strided_slice %10 {offsets = [0, 56], sizes = [16, 1], strides = [1, 1]} : vector<16x64xf32> to vector<16x1xf32>
    %1296 = vector.extract_strided_slice %16 {offsets = [56, 0], sizes = [1, 16], strides = [1, 1]} : vector<64x16xf32> to vector<1x16xf32>
    %1297 = vector.broadcast %1295 : vector<16x1xf32> to vector<16x16xf32>
    %1298 = vector.broadcast %1296 : vector<1x16xf32> to vector<16x16xf32>
    %1299 = arith.addf %1297, %1298 : vector<16x16xf32>
    %cst_352 = arith.constant 0.000000e+00 : f32
    %1300 = vector.broadcast %cst_352 : f32 to vector<16x16xf32>
    %1301 = arith.cmpf oge, %1299, %1300 : vector<16x16xf32>
    %cst_353 = arith.constant 2.000000e-01 : f32
    %1302 = vector.broadcast %cst_353 : f32 to vector<16x16xf32>
    %1303 = arith.mulf %1302, %1299 : vector<16x16xf32>
    %1304 = arith.select %1301, %1299, %1303 : vector<16x16xi1>, vector<16x16xf32>
    %c1_354 = arith.constant 1 : index
    %c24_355 = arith.constant 24 : index
    %1305 = memref.load %arg8[%c1_354, %c24_355] : memref<2x32xf32, #tpu.memory_space<smem>>
    %1306 = vector.broadcast %1305 : f32 to vector<16x16xf32>
    %1307 = arith.mulf %1306, %1304 : vector<16x16xf32>
    %1308 = arith.addf %1294, %1307 : vector<16x16xf32>
    %1309 = vector.extract_strided_slice %10 {offsets = [0, 57], sizes = [16, 1], strides = [1, 1]} : vector<16x64xf32> to vector<16x1xf32>
    %1310 = vector.extract_strided_slice %16 {offsets = [57, 0], sizes = [1, 16], strides = [1, 1]} : vector<64x16xf32> to vector<1x16xf32>
    %1311 = vector.broadcast %1309 : vector<16x1xf32> to vector<16x16xf32>
    %1312 = vector.broadcast %1310 : vector<1x16xf32> to vector<16x16xf32>
    %1313 = arith.addf %1311, %1312 : vector<16x16xf32>
    %cst_356 = arith.constant 0.000000e+00 : f32
    %1314 = vector.broadcast %cst_356 : f32 to vector<16x16xf32>
    %1315 = arith.cmpf oge, %1313, %1314 : vector<16x16xf32>
    %cst_357 = arith.constant 2.000000e-01 : f32
    %1316 = vector.broadcast %cst_357 : f32 to vector<16x16xf32>
    %1317 = arith.mulf %1316, %1313 : vector<16x16xf32>
    %1318 = arith.select %1315, %1313, %1317 : vector<16x16xi1>, vector<16x16xf32>
    %c1_358 = arith.constant 1 : index
    %c25_359 = arith.constant 25 : index
    %1319 = memref.load %arg8[%c1_358, %c25_359] : memref<2x32xf32, #tpu.memory_space<smem>>
    %1320 = vector.broadcast %1319 : f32 to vector<16x16xf32>
    %1321 = arith.mulf %1320, %1318 : vector<16x16xf32>
    %1322 = arith.addf %1308, %1321 : vector<16x16xf32>
    %1323 = vector.extract_strided_slice %10 {offsets = [0, 58], sizes = [16, 1], strides = [1, 1]} : vector<16x64xf32> to vector<16x1xf32>
    %1324 = vector.extract_strided_slice %16 {offsets = [58, 0], sizes = [1, 16], strides = [1, 1]} : vector<64x16xf32> to vector<1x16xf32>
    %1325 = vector.broadcast %1323 : vector<16x1xf32> to vector<16x16xf32>
    %1326 = vector.broadcast %1324 : vector<1x16xf32> to vector<16x16xf32>
    %1327 = arith.addf %1325, %1326 : vector<16x16xf32>
    %cst_360 = arith.constant 0.000000e+00 : f32
    %1328 = vector.broadcast %cst_360 : f32 to vector<16x16xf32>
    %1329 = arith.cmpf oge, %1327, %1328 : vector<16x16xf32>
    %cst_361 = arith.constant 2.000000e-01 : f32
    %1330 = vector.broadcast %cst_361 : f32 to vector<16x16xf32>
    %1331 = arith.mulf %1330, %1327 : vector<16x16xf32>
    %1332 = arith.select %1329, %1327, %1331 : vector<16x16xi1>, vector<16x16xf32>
    %c1_362 = arith.constant 1 : index
    %c26_363 = arith.constant 26 : index
    %1333 = memref.load %arg8[%c1_362, %c26_363] : memref<2x32xf32, #tpu.memory_space<smem>>
    %1334 = vector.broadcast %1333 : f32 to vector<16x16xf32>
    %1335 = arith.mulf %1334, %1332 : vector<16x16xf32>
    %1336 = arith.addf %1322, %1335 : vector<16x16xf32>
    %1337 = vector.extract_strided_slice %10 {offsets = [0, 59], sizes = [16, 1], strides = [1, 1]} : vector<16x64xf32> to vector<16x1xf32>
    %1338 = vector.extract_strided_slice %16 {offsets = [59, 0], sizes = [1, 16], strides = [1, 1]} : vector<64x16xf32> to vector<1x16xf32>
    %1339 = vector.broadcast %1337 : vector<16x1xf32> to vector<16x16xf32>
    %1340 = vector.broadcast %1338 : vector<1x16xf32> to vector<16x16xf32>
    %1341 = arith.addf %1339, %1340 : vector<16x16xf32>
    %cst_364 = arith.constant 0.000000e+00 : f32
    %1342 = vector.broadcast %cst_364 : f32 to vector<16x16xf32>
    %1343 = arith.cmpf oge, %1341, %1342 : vector<16x16xf32>
    %cst_365 = arith.constant 2.000000e-01 : f32
    %1344 = vector.broadcast %cst_365 : f32 to vector<16x16xf32>
    %1345 = arith.mulf %1344, %1341 : vector<16x16xf32>
    %1346 = arith.select %1343, %1341, %1345 : vector<16x16xi1>, vector<16x16xf32>
    %c1_366 = arith.constant 1 : index
    %c27_367 = arith.constant 27 : index
    %1347 = memref.load %arg8[%c1_366, %c27_367] : memref<2x32xf32, #tpu.memory_space<smem>>
    %1348 = vector.broadcast %1347 : f32 to vector<16x16xf32>
    %1349 = arith.mulf %1348, %1346 : vector<16x16xf32>
    %1350 = arith.addf %1336, %1349 : vector<16x16xf32>
    %1351 = vector.extract_strided_slice %10 {offsets = [0, 60], sizes = [16, 1], strides = [1, 1]} : vector<16x64xf32> to vector<16x1xf32>
    %1352 = vector.extract_strided_slice %16 {offsets = [60, 0], sizes = [1, 16], strides = [1, 1]} : vector<64x16xf32> to vector<1x16xf32>
    %1353 = vector.broadcast %1351 : vector<16x1xf32> to vector<16x16xf32>
    %1354 = vector.broadcast %1352 : vector<1x16xf32> to vector<16x16xf32>
    %1355 = arith.addf %1353, %1354 : vector<16x16xf32>
    %cst_368 = arith.constant 0.000000e+00 : f32
    %1356 = vector.broadcast %cst_368 : f32 to vector<16x16xf32>
    %1357 = arith.cmpf oge, %1355, %1356 : vector<16x16xf32>
    %cst_369 = arith.constant 2.000000e-01 : f32
    %1358 = vector.broadcast %cst_369 : f32 to vector<16x16xf32>
    %1359 = arith.mulf %1358, %1355 : vector<16x16xf32>
    %1360 = arith.select %1357, %1355, %1359 : vector<16x16xi1>, vector<16x16xf32>
    %c1_370 = arith.constant 1 : index
    %c28_371 = arith.constant 28 : index
    %1361 = memref.load %arg8[%c1_370, %c28_371] : memref<2x32xf32, #tpu.memory_space<smem>>
    %1362 = vector.broadcast %1361 : f32 to vector<16x16xf32>
    %1363 = arith.mulf %1362, %1360 : vector<16x16xf32>
    %1364 = arith.addf %1350, %1363 : vector<16x16xf32>
    %1365 = vector.extract_strided_slice %10 {offsets = [0, 61], sizes = [16, 1], strides = [1, 1]} : vector<16x64xf32> to vector<16x1xf32>
    %1366 = vector.extract_strided_slice %16 {offsets = [61, 0], sizes = [1, 16], strides = [1, 1]} : vector<64x16xf32> to vector<1x16xf32>
    %1367 = vector.broadcast %1365 : vector<16x1xf32> to vector<16x16xf32>
    %1368 = vector.broadcast %1366 : vector<1x16xf32> to vector<16x16xf32>
    %1369 = arith.addf %1367, %1368 : vector<16x16xf32>
    %cst_372 = arith.constant 0.000000e+00 : f32
    %1370 = vector.broadcast %cst_372 : f32 to vector<16x16xf32>
    %1371 = arith.cmpf oge, %1369, %1370 : vector<16x16xf32>
    %cst_373 = arith.constant 2.000000e-01 : f32
    %1372 = vector.broadcast %cst_373 : f32 to vector<16x16xf32>
    %1373 = arith.mulf %1372, %1369 : vector<16x16xf32>
    %1374 = arith.select %1371, %1369, %1373 : vector<16x16xi1>, vector<16x16xf32>
    %c1_374 = arith.constant 1 : index
    %c29_375 = arith.constant 29 : index
    %1375 = memref.load %arg8[%c1_374, %c29_375] : memref<2x32xf32, #tpu.memory_space<smem>>
    %1376 = vector.broadcast %1375 : f32 to vector<16x16xf32>
    %1377 = arith.mulf %1376, %1374 : vector<16x16xf32>
    %1378 = arith.addf %1364, %1377 : vector<16x16xf32>
    %1379 = vector.extract_strided_slice %10 {offsets = [0, 62], sizes = [16, 1], strides = [1, 1]} : vector<16x64xf32> to vector<16x1xf32>
    %1380 = vector.extract_strided_slice %16 {offsets = [62, 0], sizes = [1, 16], strides = [1, 1]} : vector<64x16xf32> to vector<1x16xf32>
    %1381 = vector.broadcast %1379 : vector<16x1xf32> to vector<16x16xf32>
    %1382 = vector.broadcast %1380 : vector<1x16xf32> to vector<16x16xf32>
    %1383 = arith.addf %1381, %1382 : vector<16x16xf32>
    %cst_376 = arith.constant 0.000000e+00 : f32
    %1384 = vector.broadcast %cst_376 : f32 to vector<16x16xf32>
    %1385 = arith.cmpf oge, %1383, %1384 : vector<16x16xf32>
    %cst_377 = arith.constant 2.000000e-01 : f32
    %1386 = vector.broadcast %cst_377 : f32 to vector<16x16xf32>
    %1387 = arith.mulf %1386, %1383 : vector<16x16xf32>
    %1388 = arith.select %1385, %1383, %1387 : vector<16x16xi1>, vector<16x16xf32>
    %c1_378 = arith.constant 1 : index
    %c30_379 = arith.constant 30 : index
    %1389 = memref.load %arg8[%c1_378, %c30_379] : memref<2x32xf32, #tpu.memory_space<smem>>
    %1390 = vector.broadcast %1389 : f32 to vector<16x16xf32>
    %1391 = arith.mulf %1390, %1388 : vector<16x16xf32>
    %1392 = arith.addf %1378, %1391 : vector<16x16xf32>
    %1393 = vector.extract_strided_slice %10 {offsets = [0, 63], sizes = [16, 1], strides = [1, 1]} : vector<16x64xf32> to vector<16x1xf32>
    %1394 = vector.extract_strided_slice %16 {offsets = [63, 0], sizes = [1, 16], strides = [1, 1]} : vector<64x16xf32> to vector<1x16xf32>
    %1395 = vector.broadcast %1393 : vector<16x1xf32> to vector<16x16xf32>
    %1396 = vector.broadcast %1394 : vector<1x16xf32> to vector<16x16xf32>
    %1397 = arith.addf %1395, %1396 : vector<16x16xf32>
    %cst_380 = arith.constant 0.000000e+00 : f32
    %1398 = vector.broadcast %cst_380 : f32 to vector<16x16xf32>
    %1399 = arith.cmpf oge, %1397, %1398 : vector<16x16xf32>
    %cst_381 = arith.constant 2.000000e-01 : f32
    %1400 = vector.broadcast %cst_381 : f32 to vector<16x16xf32>
    %1401 = arith.mulf %1400, %1397 : vector<16x16xf32>
    %1402 = arith.select %1399, %1397, %1401 : vector<16x16xi1>, vector<16x16xf32>
    %c1_382 = arith.constant 1 : index
    %c31_383 = arith.constant 31 : index
    %1403 = memref.load %arg8[%c1_382, %c31_383] : memref<2x32xf32, #tpu.memory_space<smem>>
    %1404 = vector.broadcast %1403 : f32 to vector<16x16xf32>
    %1405 = arith.mulf %1404, %1402 : vector<16x16xf32>
    %1406 = arith.addf %1392, %1405 : vector<16x16xf32>
    %1407 = arith.addf %1406, %2 : vector<16x16xf32>
    %cst_384 = arith.constant dense<0xFF800000> : vector<16xf32>
    %1408 = vector.multi_reduction <maximumf>, %1407, %cst_384 [1] : vector<16x16xf32> to vector<16xf32>
    %1409 = vector.shape_cast %1408 : vector<16xf32> to vector<16x1xf32>
    %1410 = vector.broadcast %1409 : vector<16x1xf32> to vector<16x16xf32>
    %1411 = arith.subf %1407, %1410 : vector<16x16xf32>
    %1412 = math.exp %1411 : vector<16x16xf32>
    %cst_385 = arith.constant dense<0.000000e+00> : vector<16xf32>
    %1413 = vector.multi_reduction <add>, %1412, %cst_385 [1] : vector<16x16xf32> to vector<16xf32>
    %1414 = vector.shape_cast %1413 : vector<16xf32> to vector<16x1xf32>
    %cst_386 = arith.constant 9.99999968E-21 : f32
    %1415 = vector.broadcast %cst_386 : f32 to vector<16x1xf32>
    %1416 = arith.maximumf %1414, %1415 : vector<16x1xf32>
    %1417 = tpu.reciprocal %1416 {approx = true} : vector<16x1xf32> -> vector<16x1xf32>
    %1418 = arith.mulf %1416, %1417 : vector<16x1xf32>
    %cst_387 = arith.constant 2.000000e+00 : f32
    %1419 = vector.broadcast %cst_387 : f32 to vector<16x1xf32>
    %1420 = arith.subf %1419, %1418 : vector<16x1xf32>
    %1421 = arith.mulf %1417, %1420 : vector<16x1xf32>
    %1422 = vector.broadcast %1421 : vector<16x1xf32> to vector<16x16xf32>
    %1423 = arith.mulf %1412, %1422 : vector<16x16xf32>
    %1424 = vector.extract_strided_slice %9 {offsets = [0, 32], sizes = [16, 32], strides = [1, 1]} : vector<16x64xf32> to vector<16x32xf32>
    %cst_388 = arith.constant dense<0.000000e+00> : vector<16x32xf32>
    %1425 = tpu.matmul %1423, %1424, %cst_388 {dimension_numbers = #tpu.dot_dimension_numbers<[1], [0], [0], [1], [0, 0, 1, 1], [], []>} : vector<16x16xf32>, vector<16x32xf32>, vector<16x32xf32> -> vector<16x32xf32>
    %1426 = arith.addf %488, %1425 : vector<16x32xf32>
    %cst_389 = arith.constant 0.000000e+00 : f32
    %1427 = vector.broadcast %cst_389 : f32 to vector<16x16xf32>
    %1428 = vector.extract_strided_slice %9 {offsets = [0, 32], sizes = [16, 1], strides = [1, 1]} : vector<16x64xf32> to vector<16x1xf32>
    %1429 = vector.extract_strided_slice %17 {offsets = [32, 0], sizes = [1, 16], strides = [1, 1]} : vector<64x16xf32> to vector<1x16xf32>
    %1430 = vector.broadcast %1428 : vector<16x1xf32> to vector<16x16xf32>
    %1431 = vector.broadcast %1429 : vector<1x16xf32> to vector<16x16xf32>
    %1432 = arith.addf %1430, %1431 : vector<16x16xf32>
    %cst_390 = arith.constant 0.000000e+00 : f32
    %1433 = vector.broadcast %cst_390 : f32 to vector<16x16xf32>
    %1434 = arith.cmpf oge, %1432, %1433 : vector<16x16xf32>
    %cst_391 = arith.constant 2.000000e-01 : f32
    %1435 = vector.broadcast %cst_391 : f32 to vector<16x16xf32>
    %1436 = arith.mulf %1435, %1432 : vector<16x16xf32>
    %1437 = arith.select %1434, %1432, %1436 : vector<16x16xi1>, vector<16x16xf32>
    %c1_392 = arith.constant 1 : index
    %c0_393 = arith.constant 0 : index
    %1438 = memref.load %arg8[%c1_392, %c0_393] : memref<2x32xf32, #tpu.memory_space<smem>>
    %1439 = vector.broadcast %1438 : f32 to vector<16x16xf32>
    %1440 = arith.mulf %1439, %1437 : vector<16x16xf32>
    %1441 = arith.addf %1427, %1440 : vector<16x16xf32>
    %1442 = vector.extract_strided_slice %9 {offsets = [0, 33], sizes = [16, 1], strides = [1, 1]} : vector<16x64xf32> to vector<16x1xf32>
    %1443 = vector.extract_strided_slice %17 {offsets = [33, 0], sizes = [1, 16], strides = [1, 1]} : vector<64x16xf32> to vector<1x16xf32>
    %1444 = vector.broadcast %1442 : vector<16x1xf32> to vector<16x16xf32>
    %1445 = vector.broadcast %1443 : vector<1x16xf32> to vector<16x16xf32>
    %1446 = arith.addf %1444, %1445 : vector<16x16xf32>
    %cst_394 = arith.constant 0.000000e+00 : f32
    %1447 = vector.broadcast %cst_394 : f32 to vector<16x16xf32>
    %1448 = arith.cmpf oge, %1446, %1447 : vector<16x16xf32>
    %cst_395 = arith.constant 2.000000e-01 : f32
    %1449 = vector.broadcast %cst_395 : f32 to vector<16x16xf32>
    %1450 = arith.mulf %1449, %1446 : vector<16x16xf32>
    %1451 = arith.select %1448, %1446, %1450 : vector<16x16xi1>, vector<16x16xf32>
    %c1_396 = arith.constant 1 : index
    %c1_397 = arith.constant 1 : index
    %1452 = memref.load %arg8[%c1_396, %c1_397] : memref<2x32xf32, #tpu.memory_space<smem>>
    %1453 = vector.broadcast %1452 : f32 to vector<16x16xf32>
    %1454 = arith.mulf %1453, %1451 : vector<16x16xf32>
    %1455 = arith.addf %1441, %1454 : vector<16x16xf32>
    %1456 = vector.extract_strided_slice %9 {offsets = [0, 34], sizes = [16, 1], strides = [1, 1]} : vector<16x64xf32> to vector<16x1xf32>
    %1457 = vector.extract_strided_slice %17 {offsets = [34, 0], sizes = [1, 16], strides = [1, 1]} : vector<64x16xf32> to vector<1x16xf32>
    %1458 = vector.broadcast %1456 : vector<16x1xf32> to vector<16x16xf32>
    %1459 = vector.broadcast %1457 : vector<1x16xf32> to vector<16x16xf32>
    %1460 = arith.addf %1458, %1459 : vector<16x16xf32>
    %cst_398 = arith.constant 0.000000e+00 : f32
    %1461 = vector.broadcast %cst_398 : f32 to vector<16x16xf32>
    %1462 = arith.cmpf oge, %1460, %1461 : vector<16x16xf32>
    %cst_399 = arith.constant 2.000000e-01 : f32
    %1463 = vector.broadcast %cst_399 : f32 to vector<16x16xf32>
    %1464 = arith.mulf %1463, %1460 : vector<16x16xf32>
    %1465 = arith.select %1462, %1460, %1464 : vector<16x16xi1>, vector<16x16xf32>
    %c1_400 = arith.constant 1 : index
    %c2_401 = arith.constant 2 : index
    %1466 = memref.load %arg8[%c1_400, %c2_401] : memref<2x32xf32, #tpu.memory_space<smem>>
    %1467 = vector.broadcast %1466 : f32 to vector<16x16xf32>
    %1468 = arith.mulf %1467, %1465 : vector<16x16xf32>
    %1469 = arith.addf %1455, %1468 : vector<16x16xf32>
    %1470 = vector.extract_strided_slice %9 {offsets = [0, 35], sizes = [16, 1], strides = [1, 1]} : vector<16x64xf32> to vector<16x1xf32>
    %1471 = vector.extract_strided_slice %17 {offsets = [35, 0], sizes = [1, 16], strides = [1, 1]} : vector<64x16xf32> to vector<1x16xf32>
    %1472 = vector.broadcast %1470 : vector<16x1xf32> to vector<16x16xf32>
    %1473 = vector.broadcast %1471 : vector<1x16xf32> to vector<16x16xf32>
    %1474 = arith.addf %1472, %1473 : vector<16x16xf32>
    %cst_402 = arith.constant 0.000000e+00 : f32
    %1475 = vector.broadcast %cst_402 : f32 to vector<16x16xf32>
    %1476 = arith.cmpf oge, %1474, %1475 : vector<16x16xf32>
    %cst_403 = arith.constant 2.000000e-01 : f32
    %1477 = vector.broadcast %cst_403 : f32 to vector<16x16xf32>
    %1478 = arith.mulf %1477, %1474 : vector<16x16xf32>
    %1479 = arith.select %1476, %1474, %1478 : vector<16x16xi1>, vector<16x16xf32>
    %c1_404 = arith.constant 1 : index
    %c3_405 = arith.constant 3 : index
    %1480 = memref.load %arg8[%c1_404, %c3_405] : memref<2x32xf32, #tpu.memory_space<smem>>
    %1481 = vector.broadcast %1480 : f32 to vector<16x16xf32>
    %1482 = arith.mulf %1481, %1479 : vector<16x16xf32>
    %1483 = arith.addf %1469, %1482 : vector<16x16xf32>
    %1484 = vector.extract_strided_slice %9 {offsets = [0, 36], sizes = [16, 1], strides = [1, 1]} : vector<16x64xf32> to vector<16x1xf32>
    %1485 = vector.extract_strided_slice %17 {offsets = [36, 0], sizes = [1, 16], strides = [1, 1]} : vector<64x16xf32> to vector<1x16xf32>
    %1486 = vector.broadcast %1484 : vector<16x1xf32> to vector<16x16xf32>
    %1487 = vector.broadcast %1485 : vector<1x16xf32> to vector<16x16xf32>
    %1488 = arith.addf %1486, %1487 : vector<16x16xf32>
    %cst_406 = arith.constant 0.000000e+00 : f32
    %1489 = vector.broadcast %cst_406 : f32 to vector<16x16xf32>
    %1490 = arith.cmpf oge, %1488, %1489 : vector<16x16xf32>
    %cst_407 = arith.constant 2.000000e-01 : f32
    %1491 = vector.broadcast %cst_407 : f32 to vector<16x16xf32>
    %1492 = arith.mulf %1491, %1488 : vector<16x16xf32>
    %1493 = arith.select %1490, %1488, %1492 : vector<16x16xi1>, vector<16x16xf32>
    %c1_408 = arith.constant 1 : index
    %c4_409 = arith.constant 4 : index
    %1494 = memref.load %arg8[%c1_408, %c4_409] : memref<2x32xf32, #tpu.memory_space<smem>>
    %1495 = vector.broadcast %1494 : f32 to vector<16x16xf32>
    %1496 = arith.mulf %1495, %1493 : vector<16x16xf32>
    %1497 = arith.addf %1483, %1496 : vector<16x16xf32>
    %1498 = vector.extract_strided_slice %9 {offsets = [0, 37], sizes = [16, 1], strides = [1, 1]} : vector<16x64xf32> to vector<16x1xf32>
    %1499 = vector.extract_strided_slice %17 {offsets = [37, 0], sizes = [1, 16], strides = [1, 1]} : vector<64x16xf32> to vector<1x16xf32>
    %1500 = vector.broadcast %1498 : vector<16x1xf32> to vector<16x16xf32>
    %1501 = vector.broadcast %1499 : vector<1x16xf32> to vector<16x16xf32>
    %1502 = arith.addf %1500, %1501 : vector<16x16xf32>
    %cst_410 = arith.constant 0.000000e+00 : f32
    %1503 = vector.broadcast %cst_410 : f32 to vector<16x16xf32>
    %1504 = arith.cmpf oge, %1502, %1503 : vector<16x16xf32>
    %cst_411 = arith.constant 2.000000e-01 : f32
    %1505 = vector.broadcast %cst_411 : f32 to vector<16x16xf32>
    %1506 = arith.mulf %1505, %1502 : vector<16x16xf32>
    %1507 = arith.select %1504, %1502, %1506 : vector<16x16xi1>, vector<16x16xf32>
    %c1_412 = arith.constant 1 : index
    %c5_413 = arith.constant 5 : index
    %1508 = memref.load %arg8[%c1_412, %c5_413] : memref<2x32xf32, #tpu.memory_space<smem>>
    %1509 = vector.broadcast %1508 : f32 to vector<16x16xf32>
    %1510 = arith.mulf %1509, %1507 : vector<16x16xf32>
    %1511 = arith.addf %1497, %1510 : vector<16x16xf32>
    %1512 = vector.extract_strided_slice %9 {offsets = [0, 38], sizes = [16, 1], strides = [1, 1]} : vector<16x64xf32> to vector<16x1xf32>
    %1513 = vector.extract_strided_slice %17 {offsets = [38, 0], sizes = [1, 16], strides = [1, 1]} : vector<64x16xf32> to vector<1x16xf32>
    %1514 = vector.broadcast %1512 : vector<16x1xf32> to vector<16x16xf32>
    %1515 = vector.broadcast %1513 : vector<1x16xf32> to vector<16x16xf32>
    %1516 = arith.addf %1514, %1515 : vector<16x16xf32>
    %cst_414 = arith.constant 0.000000e+00 : f32
    %1517 = vector.broadcast %cst_414 : f32 to vector<16x16xf32>
    %1518 = arith.cmpf oge, %1516, %1517 : vector<16x16xf32>
    %cst_415 = arith.constant 2.000000e-01 : f32
    %1519 = vector.broadcast %cst_415 : f32 to vector<16x16xf32>
    %1520 = arith.mulf %1519, %1516 : vector<16x16xf32>
    %1521 = arith.select %1518, %1516, %1520 : vector<16x16xi1>, vector<16x16xf32>
    %c1_416 = arith.constant 1 : index
    %c6_417 = arith.constant 6 : index
    %1522 = memref.load %arg8[%c1_416, %c6_417] : memref<2x32xf32, #tpu.memory_space<smem>>
    %1523 = vector.broadcast %1522 : f32 to vector<16x16xf32>
    %1524 = arith.mulf %1523, %1521 : vector<16x16xf32>
    %1525 = arith.addf %1511, %1524 : vector<16x16xf32>
    %1526 = vector.extract_strided_slice %9 {offsets = [0, 39], sizes = [16, 1], strides = [1, 1]} : vector<16x64xf32> to vector<16x1xf32>
    %1527 = vector.extract_strided_slice %17 {offsets = [39, 0], sizes = [1, 16], strides = [1, 1]} : vector<64x16xf32> to vector<1x16xf32>
    %1528 = vector.broadcast %1526 : vector<16x1xf32> to vector<16x16xf32>
    %1529 = vector.broadcast %1527 : vector<1x16xf32> to vector<16x16xf32>
    %1530 = arith.addf %1528, %1529 : vector<16x16xf32>
    %cst_418 = arith.constant 0.000000e+00 : f32
    %1531 = vector.broadcast %cst_418 : f32 to vector<16x16xf32>
    %1532 = arith.cmpf oge, %1530, %1531 : vector<16x16xf32>
    %cst_419 = arith.constant 2.000000e-01 : f32
    %1533 = vector.broadcast %cst_419 : f32 to vector<16x16xf32>
    %1534 = arith.mulf %1533, %1530 : vector<16x16xf32>
    %1535 = arith.select %1532, %1530, %1534 : vector<16x16xi1>, vector<16x16xf32>
    %c1_420 = arith.constant 1 : index
    %c7_421 = arith.constant 7 : index
    %1536 = memref.load %arg8[%c1_420, %c7_421] : memref<2x32xf32, #tpu.memory_space<smem>>
    %1537 = vector.broadcast %1536 : f32 to vector<16x16xf32>
    %1538 = arith.mulf %1537, %1535 : vector<16x16xf32>
    %1539 = arith.addf %1525, %1538 : vector<16x16xf32>
    %1540 = vector.extract_strided_slice %9 {offsets = [0, 40], sizes = [16, 1], strides = [1, 1]} : vector<16x64xf32> to vector<16x1xf32>
    %1541 = vector.extract_strided_slice %17 {offsets = [40, 0], sizes = [1, 16], strides = [1, 1]} : vector<64x16xf32> to vector<1x16xf32>
    %1542 = vector.broadcast %1540 : vector<16x1xf32> to vector<16x16xf32>
    %1543 = vector.broadcast %1541 : vector<1x16xf32> to vector<16x16xf32>
    %1544 = arith.addf %1542, %1543 : vector<16x16xf32>
    %cst_422 = arith.constant 0.000000e+00 : f32
    %1545 = vector.broadcast %cst_422 : f32 to vector<16x16xf32>
    %1546 = arith.cmpf oge, %1544, %1545 : vector<16x16xf32>
    %cst_423 = arith.constant 2.000000e-01 : f32
    %1547 = vector.broadcast %cst_423 : f32 to vector<16x16xf32>
    %1548 = arith.mulf %1547, %1544 : vector<16x16xf32>
    %1549 = arith.select %1546, %1544, %1548 : vector<16x16xi1>, vector<16x16xf32>
    %c1_424 = arith.constant 1 : index
    %c8_425 = arith.constant 8 : index
    %1550 = memref.load %arg8[%c1_424, %c8_425] : memref<2x32xf32, #tpu.memory_space<smem>>
    %1551 = vector.broadcast %1550 : f32 to vector<16x16xf32>
    %1552 = arith.mulf %1551, %1549 : vector<16x16xf32>
    %1553 = arith.addf %1539, %1552 : vector<16x16xf32>
    %1554 = vector.extract_strided_slice %9 {offsets = [0, 41], sizes = [16, 1], strides = [1, 1]} : vector<16x64xf32> to vector<16x1xf32>
    %1555 = vector.extract_strided_slice %17 {offsets = [41, 0], sizes = [1, 16], strides = [1, 1]} : vector<64x16xf32> to vector<1x16xf32>
    %1556 = vector.broadcast %1554 : vector<16x1xf32> to vector<16x16xf32>
    %1557 = vector.broadcast %1555 : vector<1x16xf32> to vector<16x16xf32>
    %1558 = arith.addf %1556, %1557 : vector<16x16xf32>
    %cst_426 = arith.constant 0.000000e+00 : f32
    %1559 = vector.broadcast %cst_426 : f32 to vector<16x16xf32>
    %1560 = arith.cmpf oge, %1558, %1559 : vector<16x16xf32>
    %cst_427 = arith.constant 2.000000e-01 : f32
    %1561 = vector.broadcast %cst_427 : f32 to vector<16x16xf32>
    %1562 = arith.mulf %1561, %1558 : vector<16x16xf32>
    %1563 = arith.select %1560, %1558, %1562 : vector<16x16xi1>, vector<16x16xf32>
    %c1_428 = arith.constant 1 : index
    %c9_429 = arith.constant 9 : index
    %1564 = memref.load %arg8[%c1_428, %c9_429] : memref<2x32xf32, #tpu.memory_space<smem>>
    %1565 = vector.broadcast %1564 : f32 to vector<16x16xf32>
    %1566 = arith.mulf %1565, %1563 : vector<16x16xf32>
    %1567 = arith.addf %1553, %1566 : vector<16x16xf32>
    %1568 = vector.extract_strided_slice %9 {offsets = [0, 42], sizes = [16, 1], strides = [1, 1]} : vector<16x64xf32> to vector<16x1xf32>
    %1569 = vector.extract_strided_slice %17 {offsets = [42, 0], sizes = [1, 16], strides = [1, 1]} : vector<64x16xf32> to vector<1x16xf32>
    %1570 = vector.broadcast %1568 : vector<16x1xf32> to vector<16x16xf32>
    %1571 = vector.broadcast %1569 : vector<1x16xf32> to vector<16x16xf32>
    %1572 = arith.addf %1570, %1571 : vector<16x16xf32>
    %cst_430 = arith.constant 0.000000e+00 : f32
    %1573 = vector.broadcast %cst_430 : f32 to vector<16x16xf32>
    %1574 = arith.cmpf oge, %1572, %1573 : vector<16x16xf32>
    %cst_431 = arith.constant 2.000000e-01 : f32
    %1575 = vector.broadcast %cst_431 : f32 to vector<16x16xf32>
    %1576 = arith.mulf %1575, %1572 : vector<16x16xf32>
    %1577 = arith.select %1574, %1572, %1576 : vector<16x16xi1>, vector<16x16xf32>
    %c1_432 = arith.constant 1 : index
    %c10_433 = arith.constant 10 : index
    %1578 = memref.load %arg8[%c1_432, %c10_433] : memref<2x32xf32, #tpu.memory_space<smem>>
    %1579 = vector.broadcast %1578 : f32 to vector<16x16xf32>
    %1580 = arith.mulf %1579, %1577 : vector<16x16xf32>
    %1581 = arith.addf %1567, %1580 : vector<16x16xf32>
    %1582 = vector.extract_strided_slice %9 {offsets = [0, 43], sizes = [16, 1], strides = [1, 1]} : vector<16x64xf32> to vector<16x1xf32>
    %1583 = vector.extract_strided_slice %17 {offsets = [43, 0], sizes = [1, 16], strides = [1, 1]} : vector<64x16xf32> to vector<1x16xf32>
    %1584 = vector.broadcast %1582 : vector<16x1xf32> to vector<16x16xf32>
    %1585 = vector.broadcast %1583 : vector<1x16xf32> to vector<16x16xf32>
    %1586 = arith.addf %1584, %1585 : vector<16x16xf32>
    %cst_434 = arith.constant 0.000000e+00 : f32
    %1587 = vector.broadcast %cst_434 : f32 to vector<16x16xf32>
    %1588 = arith.cmpf oge, %1586, %1587 : vector<16x16xf32>
    %cst_435 = arith.constant 2.000000e-01 : f32
    %1589 = vector.broadcast %cst_435 : f32 to vector<16x16xf32>
    %1590 = arith.mulf %1589, %1586 : vector<16x16xf32>
    %1591 = arith.select %1588, %1586, %1590 : vector<16x16xi1>, vector<16x16xf32>
    %c1_436 = arith.constant 1 : index
    %c11_437 = arith.constant 11 : index
    %1592 = memref.load %arg8[%c1_436, %c11_437] : memref<2x32xf32, #tpu.memory_space<smem>>
    %1593 = vector.broadcast %1592 : f32 to vector<16x16xf32>
    %1594 = arith.mulf %1593, %1591 : vector<16x16xf32>
    %1595 = arith.addf %1581, %1594 : vector<16x16xf32>
    %1596 = vector.extract_strided_slice %9 {offsets = [0, 44], sizes = [16, 1], strides = [1, 1]} : vector<16x64xf32> to vector<16x1xf32>
    %1597 = vector.extract_strided_slice %17 {offsets = [44, 0], sizes = [1, 16], strides = [1, 1]} : vector<64x16xf32> to vector<1x16xf32>
    %1598 = vector.broadcast %1596 : vector<16x1xf32> to vector<16x16xf32>
    %1599 = vector.broadcast %1597 : vector<1x16xf32> to vector<16x16xf32>
    %1600 = arith.addf %1598, %1599 : vector<16x16xf32>
    %cst_438 = arith.constant 0.000000e+00 : f32
    %1601 = vector.broadcast %cst_438 : f32 to vector<16x16xf32>
    %1602 = arith.cmpf oge, %1600, %1601 : vector<16x16xf32>
    %cst_439 = arith.constant 2.000000e-01 : f32
    %1603 = vector.broadcast %cst_439 : f32 to vector<16x16xf32>
    %1604 = arith.mulf %1603, %1600 : vector<16x16xf32>
    %1605 = arith.select %1602, %1600, %1604 : vector<16x16xi1>, vector<16x16xf32>
    %c1_440 = arith.constant 1 : index
    %c12_441 = arith.constant 12 : index
    %1606 = memref.load %arg8[%c1_440, %c12_441] : memref<2x32xf32, #tpu.memory_space<smem>>
    %1607 = vector.broadcast %1606 : f32 to vector<16x16xf32>
    %1608 = arith.mulf %1607, %1605 : vector<16x16xf32>
    %1609 = arith.addf %1595, %1608 : vector<16x16xf32>
    %1610 = vector.extract_strided_slice %9 {offsets = [0, 45], sizes = [16, 1], strides = [1, 1]} : vector<16x64xf32> to vector<16x1xf32>
    %1611 = vector.extract_strided_slice %17 {offsets = [45, 0], sizes = [1, 16], strides = [1, 1]} : vector<64x16xf32> to vector<1x16xf32>
    %1612 = vector.broadcast %1610 : vector<16x1xf32> to vector<16x16xf32>
    %1613 = vector.broadcast %1611 : vector<1x16xf32> to vector<16x16xf32>
    %1614 = arith.addf %1612, %1613 : vector<16x16xf32>
    %cst_442 = arith.constant 0.000000e+00 : f32
    %1615 = vector.broadcast %cst_442 : f32 to vector<16x16xf32>
    %1616 = arith.cmpf oge, %1614, %1615 : vector<16x16xf32>
    %cst_443 = arith.constant 2.000000e-01 : f32
    %1617 = vector.broadcast %cst_443 : f32 to vector<16x16xf32>
    %1618 = arith.mulf %1617, %1614 : vector<16x16xf32>
    %1619 = arith.select %1616, %1614, %1618 : vector<16x16xi1>, vector<16x16xf32>
    %c1_444 = arith.constant 1 : index
    %c13_445 = arith.constant 13 : index
    %1620 = memref.load %arg8[%c1_444, %c13_445] : memref<2x32xf32, #tpu.memory_space<smem>>
    %1621 = vector.broadcast %1620 : f32 to vector<16x16xf32>
    %1622 = arith.mulf %1621, %1619 : vector<16x16xf32>
    %1623 = arith.addf %1609, %1622 : vector<16x16xf32>
    %1624 = vector.extract_strided_slice %9 {offsets = [0, 46], sizes = [16, 1], strides = [1, 1]} : vector<16x64xf32> to vector<16x1xf32>
    %1625 = vector.extract_strided_slice %17 {offsets = [46, 0], sizes = [1, 16], strides = [1, 1]} : vector<64x16xf32> to vector<1x16xf32>
    %1626 = vector.broadcast %1624 : vector<16x1xf32> to vector<16x16xf32>
    %1627 = vector.broadcast %1625 : vector<1x16xf32> to vector<16x16xf32>
    %1628 = arith.addf %1626, %1627 : vector<16x16xf32>
    %cst_446 = arith.constant 0.000000e+00 : f32
    %1629 = vector.broadcast %cst_446 : f32 to vector<16x16xf32>
    %1630 = arith.cmpf oge, %1628, %1629 : vector<16x16xf32>
    %cst_447 = arith.constant 2.000000e-01 : f32
    %1631 = vector.broadcast %cst_447 : f32 to vector<16x16xf32>
    %1632 = arith.mulf %1631, %1628 : vector<16x16xf32>
    %1633 = arith.select %1630, %1628, %1632 : vector<16x16xi1>, vector<16x16xf32>
    %c1_448 = arith.constant 1 : index
    %c14_449 = arith.constant 14 : index
    %1634 = memref.load %arg8[%c1_448, %c14_449] : memref<2x32xf32, #tpu.memory_space<smem>>
    %1635 = vector.broadcast %1634 : f32 to vector<16x16xf32>
    %1636 = arith.mulf %1635, %1633 : vector<16x16xf32>
    %1637 = arith.addf %1623, %1636 : vector<16x16xf32>
    %1638 = vector.extract_strided_slice %9 {offsets = [0, 47], sizes = [16, 1], strides = [1, 1]} : vector<16x64xf32> to vector<16x1xf32>
    %1639 = vector.extract_strided_slice %17 {offsets = [47, 0], sizes = [1, 16], strides = [1, 1]} : vector<64x16xf32> to vector<1x16xf32>
    %1640 = vector.broadcast %1638 : vector<16x1xf32> to vector<16x16xf32>
    %1641 = vector.broadcast %1639 : vector<1x16xf32> to vector<16x16xf32>
    %1642 = arith.addf %1640, %1641 : vector<16x16xf32>
    %cst_450 = arith.constant 0.000000e+00 : f32
    %1643 = vector.broadcast %cst_450 : f32 to vector<16x16xf32>
    %1644 = arith.cmpf oge, %1642, %1643 : vector<16x16xf32>
    %cst_451 = arith.constant 2.000000e-01 : f32
    %1645 = vector.broadcast %cst_451 : f32 to vector<16x16xf32>
    %1646 = arith.mulf %1645, %1642 : vector<16x16xf32>
    %1647 = arith.select %1644, %1642, %1646 : vector<16x16xi1>, vector<16x16xf32>
    %c1_452 = arith.constant 1 : index
    %c15_453 = arith.constant 15 : index
    %1648 = memref.load %arg8[%c1_452, %c15_453] : memref<2x32xf32, #tpu.memory_space<smem>>
    %1649 = vector.broadcast %1648 : f32 to vector<16x16xf32>
    %1650 = arith.mulf %1649, %1647 : vector<16x16xf32>
    %1651 = arith.addf %1637, %1650 : vector<16x16xf32>
    %1652 = vector.extract_strided_slice %9 {offsets = [0, 48], sizes = [16, 1], strides = [1, 1]} : vector<16x64xf32> to vector<16x1xf32>
    %1653 = vector.extract_strided_slice %17 {offsets = [48, 0], sizes = [1, 16], strides = [1, 1]} : vector<64x16xf32> to vector<1x16xf32>
    %1654 = vector.broadcast %1652 : vector<16x1xf32> to vector<16x16xf32>
    %1655 = vector.broadcast %1653 : vector<1x16xf32> to vector<16x16xf32>
    %1656 = arith.addf %1654, %1655 : vector<16x16xf32>
    %cst_454 = arith.constant 0.000000e+00 : f32
    %1657 = vector.broadcast %cst_454 : f32 to vector<16x16xf32>
    %1658 = arith.cmpf oge, %1656, %1657 : vector<16x16xf32>
    %cst_455 = arith.constant 2.000000e-01 : f32
    %1659 = vector.broadcast %cst_455 : f32 to vector<16x16xf32>
    %1660 = arith.mulf %1659, %1656 : vector<16x16xf32>
    %1661 = arith.select %1658, %1656, %1660 : vector<16x16xi1>, vector<16x16xf32>
    %c1_456 = arith.constant 1 : index
    %c16_457 = arith.constant 16 : index
    %1662 = memref.load %arg8[%c1_456, %c16_457] : memref<2x32xf32, #tpu.memory_space<smem>>
    %1663 = vector.broadcast %1662 : f32 to vector<16x16xf32>
    %1664 = arith.mulf %1663, %1661 : vector<16x16xf32>
    %1665 = arith.addf %1651, %1664 : vector<16x16xf32>
    %1666 = vector.extract_strided_slice %9 {offsets = [0, 49], sizes = [16, 1], strides = [1, 1]} : vector<16x64xf32> to vector<16x1xf32>
    %1667 = vector.extract_strided_slice %17 {offsets = [49, 0], sizes = [1, 16], strides = [1, 1]} : vector<64x16xf32> to vector<1x16xf32>
    %1668 = vector.broadcast %1666 : vector<16x1xf32> to vector<16x16xf32>
    %1669 = vector.broadcast %1667 : vector<1x16xf32> to vector<16x16xf32>
    %1670 = arith.addf %1668, %1669 : vector<16x16xf32>
    %cst_458 = arith.constant 0.000000e+00 : f32
    %1671 = vector.broadcast %cst_458 : f32 to vector<16x16xf32>
    %1672 = arith.cmpf oge, %1670, %1671 : vector<16x16xf32>
    %cst_459 = arith.constant 2.000000e-01 : f32
    %1673 = vector.broadcast %cst_459 : f32 to vector<16x16xf32>
    %1674 = arith.mulf %1673, %1670 : vector<16x16xf32>
    %1675 = arith.select %1672, %1670, %1674 : vector<16x16xi1>, vector<16x16xf32>
    %c1_460 = arith.constant 1 : index
    %c17_461 = arith.constant 17 : index
    %1676 = memref.load %arg8[%c1_460, %c17_461] : memref<2x32xf32, #tpu.memory_space<smem>>
    %1677 = vector.broadcast %1676 : f32 to vector<16x16xf32>
    %1678 = arith.mulf %1677, %1675 : vector<16x16xf32>
    %1679 = arith.addf %1665, %1678 : vector<16x16xf32>
    %1680 = vector.extract_strided_slice %9 {offsets = [0, 50], sizes = [16, 1], strides = [1, 1]} : vector<16x64xf32> to vector<16x1xf32>
    %1681 = vector.extract_strided_slice %17 {offsets = [50, 0], sizes = [1, 16], strides = [1, 1]} : vector<64x16xf32> to vector<1x16xf32>
    %1682 = vector.broadcast %1680 : vector<16x1xf32> to vector<16x16xf32>
    %1683 = vector.broadcast %1681 : vector<1x16xf32> to vector<16x16xf32>
    %1684 = arith.addf %1682, %1683 : vector<16x16xf32>
    %cst_462 = arith.constant 0.000000e+00 : f32
    %1685 = vector.broadcast %cst_462 : f32 to vector<16x16xf32>
    %1686 = arith.cmpf oge, %1684, %1685 : vector<16x16xf32>
    %cst_463 = arith.constant 2.000000e-01 : f32
    %1687 = vector.broadcast %cst_463 : f32 to vector<16x16xf32>
    %1688 = arith.mulf %1687, %1684 : vector<16x16xf32>
    %1689 = arith.select %1686, %1684, %1688 : vector<16x16xi1>, vector<16x16xf32>
    %c1_464 = arith.constant 1 : index
    %c18_465 = arith.constant 18 : index
    %1690 = memref.load %arg8[%c1_464, %c18_465] : memref<2x32xf32, #tpu.memory_space<smem>>
    %1691 = vector.broadcast %1690 : f32 to vector<16x16xf32>
    %1692 = arith.mulf %1691, %1689 : vector<16x16xf32>
    %1693 = arith.addf %1679, %1692 : vector<16x16xf32>
    %1694 = vector.extract_strided_slice %9 {offsets = [0, 51], sizes = [16, 1], strides = [1, 1]} : vector<16x64xf32> to vector<16x1xf32>
    %1695 = vector.extract_strided_slice %17 {offsets = [51, 0], sizes = [1, 16], strides = [1, 1]} : vector<64x16xf32> to vector<1x16xf32>
    %1696 = vector.broadcast %1694 : vector<16x1xf32> to vector<16x16xf32>
    %1697 = vector.broadcast %1695 : vector<1x16xf32> to vector<16x16xf32>
    %1698 = arith.addf %1696, %1697 : vector<16x16xf32>
    %cst_466 = arith.constant 0.000000e+00 : f32
    %1699 = vector.broadcast %cst_466 : f32 to vector<16x16xf32>
    %1700 = arith.cmpf oge, %1698, %1699 : vector<16x16xf32>
    %cst_467 = arith.constant 2.000000e-01 : f32
    %1701 = vector.broadcast %cst_467 : f32 to vector<16x16xf32>
    %1702 = arith.mulf %1701, %1698 : vector<16x16xf32>
    %1703 = arith.select %1700, %1698, %1702 : vector<16x16xi1>, vector<16x16xf32>
    %c1_468 = arith.constant 1 : index
    %c19_469 = arith.constant 19 : index
    %1704 = memref.load %arg8[%c1_468, %c19_469] : memref<2x32xf32, #tpu.memory_space<smem>>
    %1705 = vector.broadcast %1704 : f32 to vector<16x16xf32>
    %1706 = arith.mulf %1705, %1703 : vector<16x16xf32>
    %1707 = arith.addf %1693, %1706 : vector<16x16xf32>
    %1708 = vector.extract_strided_slice %9 {offsets = [0, 52], sizes = [16, 1], strides = [1, 1]} : vector<16x64xf32> to vector<16x1xf32>
    %1709 = vector.extract_strided_slice %17 {offsets = [52, 0], sizes = [1, 16], strides = [1, 1]} : vector<64x16xf32> to vector<1x16xf32>
    %1710 = vector.broadcast %1708 : vector<16x1xf32> to vector<16x16xf32>
    %1711 = vector.broadcast %1709 : vector<1x16xf32> to vector<16x16xf32>
    %1712 = arith.addf %1710, %1711 : vector<16x16xf32>
    %cst_470 = arith.constant 0.000000e+00 : f32
    %1713 = vector.broadcast %cst_470 : f32 to vector<16x16xf32>
    %1714 = arith.cmpf oge, %1712, %1713 : vector<16x16xf32>
    %cst_471 = arith.constant 2.000000e-01 : f32
    %1715 = vector.broadcast %cst_471 : f32 to vector<16x16xf32>
    %1716 = arith.mulf %1715, %1712 : vector<16x16xf32>
    %1717 = arith.select %1714, %1712, %1716 : vector<16x16xi1>, vector<16x16xf32>
    %c1_472 = arith.constant 1 : index
    %c20_473 = arith.constant 20 : index
    %1718 = memref.load %arg8[%c1_472, %c20_473] : memref<2x32xf32, #tpu.memory_space<smem>>
    %1719 = vector.broadcast %1718 : f32 to vector<16x16xf32>
    %1720 = arith.mulf %1719, %1717 : vector<16x16xf32>
    %1721 = arith.addf %1707, %1720 : vector<16x16xf32>
    %1722 = vector.extract_strided_slice %9 {offsets = [0, 53], sizes = [16, 1], strides = [1, 1]} : vector<16x64xf32> to vector<16x1xf32>
    %1723 = vector.extract_strided_slice %17 {offsets = [53, 0], sizes = [1, 16], strides = [1, 1]} : vector<64x16xf32> to vector<1x16xf32>
    %1724 = vector.broadcast %1722 : vector<16x1xf32> to vector<16x16xf32>
    %1725 = vector.broadcast %1723 : vector<1x16xf32> to vector<16x16xf32>
    %1726 = arith.addf %1724, %1725 : vector<16x16xf32>
    %cst_474 = arith.constant 0.000000e+00 : f32
    %1727 = vector.broadcast %cst_474 : f32 to vector<16x16xf32>
    %1728 = arith.cmpf oge, %1726, %1727 : vector<16x16xf32>
    %cst_475 = arith.constant 2.000000e-01 : f32
    %1729 = vector.broadcast %cst_475 : f32 to vector<16x16xf32>
    %1730 = arith.mulf %1729, %1726 : vector<16x16xf32>
    %1731 = arith.select %1728, %1726, %1730 : vector<16x16xi1>, vector<16x16xf32>
    %c1_476 = arith.constant 1 : index
    %c21_477 = arith.constant 21 : index
    %1732 = memref.load %arg8[%c1_476, %c21_477] : memref<2x32xf32, #tpu.memory_space<smem>>
    %1733 = vector.broadcast %1732 : f32 to vector<16x16xf32>
    %1734 = arith.mulf %1733, %1731 : vector<16x16xf32>
    %1735 = arith.addf %1721, %1734 : vector<16x16xf32>
    %1736 = vector.extract_strided_slice %9 {offsets = [0, 54], sizes = [16, 1], strides = [1, 1]} : vector<16x64xf32> to vector<16x1xf32>
    %1737 = vector.extract_strided_slice %17 {offsets = [54, 0], sizes = [1, 16], strides = [1, 1]} : vector<64x16xf32> to vector<1x16xf32>
    %1738 = vector.broadcast %1736 : vector<16x1xf32> to vector<16x16xf32>
    %1739 = vector.broadcast %1737 : vector<1x16xf32> to vector<16x16xf32>
    %1740 = arith.addf %1738, %1739 : vector<16x16xf32>
    %cst_478 = arith.constant 0.000000e+00 : f32
    %1741 = vector.broadcast %cst_478 : f32 to vector<16x16xf32>
    %1742 = arith.cmpf oge, %1740, %1741 : vector<16x16xf32>
    %cst_479 = arith.constant 2.000000e-01 : f32
    %1743 = vector.broadcast %cst_479 : f32 to vector<16x16xf32>
    %1744 = arith.mulf %1743, %1740 : vector<16x16xf32>
    %1745 = arith.select %1742, %1740, %1744 : vector<16x16xi1>, vector<16x16xf32>
    %c1_480 = arith.constant 1 : index
    %c22_481 = arith.constant 22 : index
    %1746 = memref.load %arg8[%c1_480, %c22_481] : memref<2x32xf32, #tpu.memory_space<smem>>
    %1747 = vector.broadcast %1746 : f32 to vector<16x16xf32>
    %1748 = arith.mulf %1747, %1745 : vector<16x16xf32>
    %1749 = arith.addf %1735, %1748 : vector<16x16xf32>
    %1750 = vector.extract_strided_slice %9 {offsets = [0, 55], sizes = [16, 1], strides = [1, 1]} : vector<16x64xf32> to vector<16x1xf32>
    %1751 = vector.extract_strided_slice %17 {offsets = [55, 0], sizes = [1, 16], strides = [1, 1]} : vector<64x16xf32> to vector<1x16xf32>
    %1752 = vector.broadcast %1750 : vector<16x1xf32> to vector<16x16xf32>
    %1753 = vector.broadcast %1751 : vector<1x16xf32> to vector<16x16xf32>
    %1754 = arith.addf %1752, %1753 : vector<16x16xf32>
    %cst_482 = arith.constant 0.000000e+00 : f32
    %1755 = vector.broadcast %cst_482 : f32 to vector<16x16xf32>
    %1756 = arith.cmpf oge, %1754, %1755 : vector<16x16xf32>
    %cst_483 = arith.constant 2.000000e-01 : f32
    %1757 = vector.broadcast %cst_483 : f32 to vector<16x16xf32>
    %1758 = arith.mulf %1757, %1754 : vector<16x16xf32>
    %1759 = arith.select %1756, %1754, %1758 : vector<16x16xi1>, vector<16x16xf32>
    %c1_484 = arith.constant 1 : index
    %c23_485 = arith.constant 23 : index
    %1760 = memref.load %arg8[%c1_484, %c23_485] : memref<2x32xf32, #tpu.memory_space<smem>>
    %1761 = vector.broadcast %1760 : f32 to vector<16x16xf32>
    %1762 = arith.mulf %1761, %1759 : vector<16x16xf32>
    %1763 = arith.addf %1749, %1762 : vector<16x16xf32>
    %1764 = vector.extract_strided_slice %9 {offsets = [0, 56], sizes = [16, 1], strides = [1, 1]} : vector<16x64xf32> to vector<16x1xf32>
    %1765 = vector.extract_strided_slice %17 {offsets = [56, 0], sizes = [1, 16], strides = [1, 1]} : vector<64x16xf32> to vector<1x16xf32>
    %1766 = vector.broadcast %1764 : vector<16x1xf32> to vector<16x16xf32>
    %1767 = vector.broadcast %1765 : vector<1x16xf32> to vector<16x16xf32>
    %1768 = arith.addf %1766, %1767 : vector<16x16xf32>
    %cst_486 = arith.constant 0.000000e+00 : f32
    %1769 = vector.broadcast %cst_486 : f32 to vector<16x16xf32>
    %1770 = arith.cmpf oge, %1768, %1769 : vector<16x16xf32>
    %cst_487 = arith.constant 2.000000e-01 : f32
    %1771 = vector.broadcast %cst_487 : f32 to vector<16x16xf32>
    %1772 = arith.mulf %1771, %1768 : vector<16x16xf32>
    %1773 = arith.select %1770, %1768, %1772 : vector<16x16xi1>, vector<16x16xf32>
    %c1_488 = arith.constant 1 : index
    %c24_489 = arith.constant 24 : index
    %1774 = memref.load %arg8[%c1_488, %c24_489] : memref<2x32xf32, #tpu.memory_space<smem>>
    %1775 = vector.broadcast %1774 : f32 to vector<16x16xf32>
    %1776 = arith.mulf %1775, %1773 : vector<16x16xf32>
    %1777 = arith.addf %1763, %1776 : vector<16x16xf32>
    %1778 = vector.extract_strided_slice %9 {offsets = [0, 57], sizes = [16, 1], strides = [1, 1]} : vector<16x64xf32> to vector<16x1xf32>
    %1779 = vector.extract_strided_slice %17 {offsets = [57, 0], sizes = [1, 16], strides = [1, 1]} : vector<64x16xf32> to vector<1x16xf32>
    %1780 = vector.broadcast %1778 : vector<16x1xf32> to vector<16x16xf32>
    %1781 = vector.broadcast %1779 : vector<1x16xf32> to vector<16x16xf32>
    %1782 = arith.addf %1780, %1781 : vector<16x16xf32>
    %cst_490 = arith.constant 0.000000e+00 : f32
    %1783 = vector.broadcast %cst_490 : f32 to vector<16x16xf32>
    %1784 = arith.cmpf oge, %1782, %1783 : vector<16x16xf32>
    %cst_491 = arith.constant 2.000000e-01 : f32
    %1785 = vector.broadcast %cst_491 : f32 to vector<16x16xf32>
    %1786 = arith.mulf %1785, %1782 : vector<16x16xf32>
    %1787 = arith.select %1784, %1782, %1786 : vector<16x16xi1>, vector<16x16xf32>
    %c1_492 = arith.constant 1 : index
    %c25_493 = arith.constant 25 : index
    %1788 = memref.load %arg8[%c1_492, %c25_493] : memref<2x32xf32, #tpu.memory_space<smem>>
    %1789 = vector.broadcast %1788 : f32 to vector<16x16xf32>
    %1790 = arith.mulf %1789, %1787 : vector<16x16xf32>
    %1791 = arith.addf %1777, %1790 : vector<16x16xf32>
    %1792 = vector.extract_strided_slice %9 {offsets = [0, 58], sizes = [16, 1], strides = [1, 1]} : vector<16x64xf32> to vector<16x1xf32>
    %1793 = vector.extract_strided_slice %17 {offsets = [58, 0], sizes = [1, 16], strides = [1, 1]} : vector<64x16xf32> to vector<1x16xf32>
    %1794 = vector.broadcast %1792 : vector<16x1xf32> to vector<16x16xf32>
    %1795 = vector.broadcast %1793 : vector<1x16xf32> to vector<16x16xf32>
    %1796 = arith.addf %1794, %1795 : vector<16x16xf32>
    %cst_494 = arith.constant 0.000000e+00 : f32
    %1797 = vector.broadcast %cst_494 : f32 to vector<16x16xf32>
    %1798 = arith.cmpf oge, %1796, %1797 : vector<16x16xf32>
    %cst_495 = arith.constant 2.000000e-01 : f32
    %1799 = vector.broadcast %cst_495 : f32 to vector<16x16xf32>
    %1800 = arith.mulf %1799, %1796 : vector<16x16xf32>
    %1801 = arith.select %1798, %1796, %1800 : vector<16x16xi1>, vector<16x16xf32>
    %c1_496 = arith.constant 1 : index
    %c26_497 = arith.constant 26 : index
    %1802 = memref.load %arg8[%c1_496, %c26_497] : memref<2x32xf32, #tpu.memory_space<smem>>
    %1803 = vector.broadcast %1802 : f32 to vector<16x16xf32>
    %1804 = arith.mulf %1803, %1801 : vector<16x16xf32>
    %1805 = arith.addf %1791, %1804 : vector<16x16xf32>
    %1806 = vector.extract_strided_slice %9 {offsets = [0, 59], sizes = [16, 1], strides = [1, 1]} : vector<16x64xf32> to vector<16x1xf32>
    %1807 = vector.extract_strided_slice %17 {offsets = [59, 0], sizes = [1, 16], strides = [1, 1]} : vector<64x16xf32> to vector<1x16xf32>
    %1808 = vector.broadcast %1806 : vector<16x1xf32> to vector<16x16xf32>
    %1809 = vector.broadcast %1807 : vector<1x16xf32> to vector<16x16xf32>
    %1810 = arith.addf %1808, %1809 : vector<16x16xf32>
    %cst_498 = arith.constant 0.000000e+00 : f32
    %1811 = vector.broadcast %cst_498 : f32 to vector<16x16xf32>
    %1812 = arith.cmpf oge, %1810, %1811 : vector<16x16xf32>
    %cst_499 = arith.constant 2.000000e-01 : f32
    %1813 = vector.broadcast %cst_499 : f32 to vector<16x16xf32>
    %1814 = arith.mulf %1813, %1810 : vector<16x16xf32>
    %1815 = arith.select %1812, %1810, %1814 : vector<16x16xi1>, vector<16x16xf32>
    %c1_500 = arith.constant 1 : index
    %c27_501 = arith.constant 27 : index
    %1816 = memref.load %arg8[%c1_500, %c27_501] : memref<2x32xf32, #tpu.memory_space<smem>>
    %1817 = vector.broadcast %1816 : f32 to vector<16x16xf32>
    %1818 = arith.mulf %1817, %1815 : vector<16x16xf32>
    %1819 = arith.addf %1805, %1818 : vector<16x16xf32>
    %1820 = vector.extract_strided_slice %9 {offsets = [0, 60], sizes = [16, 1], strides = [1, 1]} : vector<16x64xf32> to vector<16x1xf32>
    %1821 = vector.extract_strided_slice %17 {offsets = [60, 0], sizes = [1, 16], strides = [1, 1]} : vector<64x16xf32> to vector<1x16xf32>
    %1822 = vector.broadcast %1820 : vector<16x1xf32> to vector<16x16xf32>
    %1823 = vector.broadcast %1821 : vector<1x16xf32> to vector<16x16xf32>
    %1824 = arith.addf %1822, %1823 : vector<16x16xf32>
    %cst_502 = arith.constant 0.000000e+00 : f32
    %1825 = vector.broadcast %cst_502 : f32 to vector<16x16xf32>
    %1826 = arith.cmpf oge, %1824, %1825 : vector<16x16xf32>
    %cst_503 = arith.constant 2.000000e-01 : f32
    %1827 = vector.broadcast %cst_503 : f32 to vector<16x16xf32>
    %1828 = arith.mulf %1827, %1824 : vector<16x16xf32>
    %1829 = arith.select %1826, %1824, %1828 : vector<16x16xi1>, vector<16x16xf32>
    %c1_504 = arith.constant 1 : index
    %c28_505 = arith.constant 28 : index
    %1830 = memref.load %arg8[%c1_504, %c28_505] : memref<2x32xf32, #tpu.memory_space<smem>>
    %1831 = vector.broadcast %1830 : f32 to vector<16x16xf32>
    %1832 = arith.mulf %1831, %1829 : vector<16x16xf32>
    %1833 = arith.addf %1819, %1832 : vector<16x16xf32>
    %1834 = vector.extract_strided_slice %9 {offsets = [0, 61], sizes = [16, 1], strides = [1, 1]} : vector<16x64xf32> to vector<16x1xf32>
    %1835 = vector.extract_strided_slice %17 {offsets = [61, 0], sizes = [1, 16], strides = [1, 1]} : vector<64x16xf32> to vector<1x16xf32>
    %1836 = vector.broadcast %1834 : vector<16x1xf32> to vector<16x16xf32>
    %1837 = vector.broadcast %1835 : vector<1x16xf32> to vector<16x16xf32>
    %1838 = arith.addf %1836, %1837 : vector<16x16xf32>
    %cst_506 = arith.constant 0.000000e+00 : f32
    %1839 = vector.broadcast %cst_506 : f32 to vector<16x16xf32>
    %1840 = arith.cmpf oge, %1838, %1839 : vector<16x16xf32>
    %cst_507 = arith.constant 2.000000e-01 : f32
    %1841 = vector.broadcast %cst_507 : f32 to vector<16x16xf32>
    %1842 = arith.mulf %1841, %1838 : vector<16x16xf32>
    %1843 = arith.select %1840, %1838, %1842 : vector<16x16xi1>, vector<16x16xf32>
    %c1_508 = arith.constant 1 : index
    %c29_509 = arith.constant 29 : index
    %1844 = memref.load %arg8[%c1_508, %c29_509] : memref<2x32xf32, #tpu.memory_space<smem>>
    %1845 = vector.broadcast %1844 : f32 to vector<16x16xf32>
    %1846 = arith.mulf %1845, %1843 : vector<16x16xf32>
    %1847 = arith.addf %1833, %1846 : vector<16x16xf32>
    %1848 = vector.extract_strided_slice %9 {offsets = [0, 62], sizes = [16, 1], strides = [1, 1]} : vector<16x64xf32> to vector<16x1xf32>
    %1849 = vector.extract_strided_slice %17 {offsets = [62, 0], sizes = [1, 16], strides = [1, 1]} : vector<64x16xf32> to vector<1x16xf32>
    %1850 = vector.broadcast %1848 : vector<16x1xf32> to vector<16x16xf32>
    %1851 = vector.broadcast %1849 : vector<1x16xf32> to vector<16x16xf32>
    %1852 = arith.addf %1850, %1851 : vector<16x16xf32>
    %cst_510 = arith.constant 0.000000e+00 : f32
    %1853 = vector.broadcast %cst_510 : f32 to vector<16x16xf32>
    %1854 = arith.cmpf oge, %1852, %1853 : vector<16x16xf32>
    %cst_511 = arith.constant 2.000000e-01 : f32
    %1855 = vector.broadcast %cst_511 : f32 to vector<16x16xf32>
    %1856 = arith.mulf %1855, %1852 : vector<16x16xf32>
    %1857 = arith.select %1854, %1852, %1856 : vector<16x16xi1>, vector<16x16xf32>
    %c1_512 = arith.constant 1 : index
    %c30_513 = arith.constant 30 : index
    %1858 = memref.load %arg8[%c1_512, %c30_513] : memref<2x32xf32, #tpu.memory_space<smem>>
    %1859 = vector.broadcast %1858 : f32 to vector<16x16xf32>
    %1860 = arith.mulf %1859, %1857 : vector<16x16xf32>
    %1861 = arith.addf %1847, %1860 : vector<16x16xf32>
    %1862 = vector.extract_strided_slice %9 {offsets = [0, 63], sizes = [16, 1], strides = [1, 1]} : vector<16x64xf32> to vector<16x1xf32>
    %1863 = vector.extract_strided_slice %17 {offsets = [63, 0], sizes = [1, 16], strides = [1, 1]} : vector<64x16xf32> to vector<1x16xf32>
    %1864 = vector.broadcast %1862 : vector<16x1xf32> to vector<16x16xf32>
    %1865 = vector.broadcast %1863 : vector<1x16xf32> to vector<16x16xf32>
    %1866 = arith.addf %1864, %1865 : vector<16x16xf32>
    %cst_514 = arith.constant 0.000000e+00 : f32
    %1867 = vector.broadcast %cst_514 : f32 to vector<16x16xf32>
    %1868 = arith.cmpf oge, %1866, %1867 : vector<16x16xf32>
    %cst_515 = arith.constant 2.000000e-01 : f32
    %1869 = vector.broadcast %cst_515 : f32 to vector<16x16xf32>
    %1870 = arith.mulf %1869, %1866 : vector<16x16xf32>
    %1871 = arith.select %1868, %1866, %1870 : vector<16x16xi1>, vector<16x16xf32>
    %c1_516 = arith.constant 1 : index
    %c31_517 = arith.constant 31 : index
    %1872 = memref.load %arg8[%c1_516, %c31_517] : memref<2x32xf32, #tpu.memory_space<smem>>
    %1873 = vector.broadcast %1872 : f32 to vector<16x16xf32>
    %1874 = arith.mulf %1873, %1871 : vector<16x16xf32>
    %1875 = arith.addf %1861, %1874 : vector<16x16xf32>
    %1876 = arith.addf %1875, %3 : vector<16x16xf32>
    %cst_518 = arith.constant dense<0xFF800000> : vector<16xf32>
    %1877 = vector.multi_reduction <maximumf>, %1876, %cst_518 [0] : vector<16x16xf32> to vector<16xf32>
    %1878 = vector.shape_cast %1877 : vector<16xf32> to vector<1x16xf32>
    %1879 = vector.broadcast %1878 : vector<1x16xf32> to vector<16x16xf32>
    %1880 = arith.subf %1876, %1879 : vector<16x16xf32>
    %1881 = math.exp %1880 : vector<16x16xf32>
    %cst_519 = arith.constant dense<0.000000e+00> : vector<16xf32>
    %1882 = vector.multi_reduction <add>, %1881, %cst_519 [0] : vector<16x16xf32> to vector<16xf32>
    %1883 = vector.shape_cast %1882 : vector<16xf32> to vector<1x16xf32>
    %cst_520 = arith.constant 9.99999968E-21 : f32
    %1884 = vector.broadcast %cst_520 : f32 to vector<1x16xf32>
    %1885 = arith.maximumf %1883, %1884 : vector<1x16xf32>
    %1886 = tpu.reciprocal %1885 {approx = true} : vector<1x16xf32> -> vector<1x16xf32>
    %1887 = arith.mulf %1885, %1886 : vector<1x16xf32>
    %cst_521 = arith.constant 2.000000e+00 : f32
    %1888 = vector.broadcast %cst_521 : f32 to vector<1x16xf32>
    %1889 = arith.subf %1888, %1887 : vector<1x16xf32>
    %1890 = arith.mulf %1886, %1889 : vector<1x16xf32>
    %1891 = vector.broadcast %1890 : vector<1x16xf32> to vector<16x16xf32>
    %1892 = arith.mulf %1881, %1891 : vector<16x16xf32>
    %1893 = vector.extract_strided_slice %16 {offsets = [32, 0], sizes = [32, 16], strides = [1, 1]} : vector<64x16xf32> to vector<32x16xf32>
    %cst_522 = arith.constant dense<0.000000e+00> : vector<32x16xf32>
    %1894 = tpu.matmul %1893, %1892, %cst_522 {dimension_numbers = #tpu.dot_dimension_numbers<[1], [0], [0], [1], [0, 0, 1, 1], [], []>} : vector<32x16xf32>, vector<16x16xf32>, vector<32x16xf32> -> vector<32x16xf32>
    %1895 = arith.addf %957, %1894 : vector<32x16xf32>
    %cst_523 = arith.constant 5.000000e-01 : f32
    %1896 = vector.broadcast %cst_523 : f32 to vector<16x32xf32>
    %1897 = arith.mulf %1426, %1896 : vector<16x32xf32>
    %c0_524 = arith.constant 0 : index
    %c0_525 = arith.constant 0 : index
    %1898 = vector.load %arg9[%c0_524, %c0_525] : memref<1x32xf32, #tpu.memory_space<vmem>>, vector<1x32xf32>
    %1899 = vector.broadcast %1898 : vector<1x32xf32> to vector<16x32xf32>
    %1900 = arith.addf %1897, %1899 : vector<16x32xf32>
    %cst_526 = arith.constant dense<0.000000e+00> : vector<32xf32>
    %1901 = vector.multi_reduction <add>, %1900, %cst_526 [0] : vector<16x32xf32> to vector<32xf32>
    %1902 = vector.shape_cast %1901 : vector<32xf32> to vector<1x32xf32>
    %cst_527 = arith.constant 1.600000e+01 : f32
    %1903 = vector.broadcast %cst_527 : f32 to vector<1x32xf32>
    %1904 = arith.divf %1902, %1903 : vector<1x32xf32>
    %c0_528 = arith.constant 0 : index
    %c0_529 = arith.constant 0 : index
    %1905 = vector.load %arg13[%c0_528, %c0_529] : memref<1x32xf32, #tpu.memory_space<vmem>>, vector<1x32xf32>
    %1906 = arith.mulf %1904, %1905 : vector<1x32xf32>
    %1907 = vector.broadcast %1906 : vector<1x32xf32> to vector<16x32xf32>
    %1908 = arith.subf %1900, %1907 : vector<16x32xf32>
    %1909 = arith.mulf %1908, %1908 : vector<16x32xf32>
    %cst_530 = arith.constant dense<0.000000e+00> : vector<32xf32>
    %1910 = vector.multi_reduction <add>, %1909, %cst_530 [0] : vector<16x32xf32> to vector<32xf32>
    %1911 = vector.shape_cast %1910 : vector<32xf32> to vector<1x32xf32>
    %cst_531 = arith.constant 1.600000e+01 : f32
    %1912 = vector.broadcast %cst_531 : f32 to vector<1x32xf32>
    %1913 = arith.divf %1911, %1912 : vector<1x32xf32>
    %c0_532 = arith.constant 0 : index
    %c0_533 = arith.constant 0 : index
    %1914 = vector.load %arg11[%c0_532, %c0_533] : memref<1x32xf32, #tpu.memory_space<vmem>>, vector<1x32xf32>
    %1915 = vector.broadcast %1914 : vector<1x32xf32> to vector<16x32xf32>
    %1916 = arith.mulf %1915, %1908 : vector<16x32xf32>
    %cst_534 = arith.constant 9.99999974E-6 : f32
    %1917 = vector.broadcast %cst_534 : f32 to vector<1x32xf32>
    %1918 = arith.addf %1913, %1917 : vector<1x32xf32>
    %1919 = math.rsqrt %1918 : vector<1x32xf32>
    %1920 = vector.broadcast %1919 : vector<1x32xf32> to vector<16x32xf32>
    %1921 = arith.mulf %1916, %1920 : vector<16x32xf32>
    %c0_535 = arith.constant 0 : index
    %c0_536 = arith.constant 0 : index
    %1922 = vector.load %arg12[%c0_535, %c0_536] : memref<1x32xf32, #tpu.memory_space<vmem>>, vector<1x32xf32>
    %1923 = vector.broadcast %1922 : vector<1x32xf32> to vector<16x32xf32>
    %1924 = arith.addf %1921, %1923 : vector<16x32xf32>
    %cst_537 = arith.constant 0.000000e+00 : f32
    %1925 = vector.broadcast %cst_537 : f32 to vector<16x32xf32>
    %1926 = arith.maximumf %1924, %1925 : vector<16x32xf32>
    %cst_538 = arith.constant 5.000000e-01 : f32
    %1927 = vector.broadcast %cst_538 : f32 to vector<32x16xf32>
    %1928 = arith.mulf %1895, %1927 : vector<32x16xf32>
    %c0_539 = arith.constant 0 : index
    %c0_540 = arith.constant 0 : index
    %1929 = vector.load %arg10[%c0_539, %c0_540] : memref<32x1xf32, #tpu.memory_space<vmem>>, vector<32x1xf32>
    %1930 = vector.broadcast %1929 : vector<32x1xf32> to vector<32x16xf32>
    %1931 = arith.addf %1928, %1930 : vector<32x16xf32>
    %cst_541 = arith.constant dense<0.000000e+00> : vector<32xf32>
    %1932 = vector.multi_reduction <add>, %1931, %cst_541 [1] : vector<32x16xf32> to vector<32xf32>
    %1933 = vector.shape_cast %1932 : vector<32xf32> to vector<32x1xf32>
    %cst_542 = arith.constant 1.600000e+01 : f32
    %1934 = vector.broadcast %cst_542 : f32 to vector<32x1xf32>
    %1935 = arith.divf %1933, %1934 : vector<32x1xf32>
    %c0_543 = arith.constant 0 : index
    %c0_544 = arith.constant 0 : index
    %1936 = vector.load %arg16[%c0_543, %c0_544] : memref<32x1xf32, #tpu.memory_space<vmem>>, vector<32x1xf32>
    %1937 = arith.mulf %1935, %1936 : vector<32x1xf32>
    %1938 = vector.broadcast %1937 : vector<32x1xf32> to vector<32x16xf32>
    %1939 = arith.subf %1931, %1938 : vector<32x16xf32>
    %1940 = arith.mulf %1939, %1939 : vector<32x16xf32>
    %cst_545 = arith.constant dense<0.000000e+00> : vector<32xf32>
    %1941 = vector.multi_reduction <add>, %1940, %cst_545 [1] : vector<32x16xf32> to vector<32xf32>
    %1942 = vector.shape_cast %1941 : vector<32xf32> to vector<32x1xf32>
    %cst_546 = arith.constant 1.600000e+01 : f32
    %1943 = vector.broadcast %cst_546 : f32 to vector<32x1xf32>
    %1944 = arith.divf %1942, %1943 : vector<32x1xf32>
    %c0_547 = arith.constant 0 : index
    %c0_548 = arith.constant 0 : index
    %1945 = vector.load %arg14[%c0_547, %c0_548] : memref<32x1xf32, #tpu.memory_space<vmem>>, vector<32x1xf32>
    %1946 = vector.broadcast %1945 : vector<32x1xf32> to vector<32x16xf32>
    %1947 = arith.mulf %1946, %1939 : vector<32x16xf32>
    %cst_549 = arith.constant 9.99999974E-6 : f32
    %1948 = vector.broadcast %cst_549 : f32 to vector<32x1xf32>
    %1949 = arith.addf %1944, %1948 : vector<32x1xf32>
    %1950 = math.rsqrt %1949 : vector<32x1xf32>
    %1951 = vector.broadcast %1950 : vector<32x1xf32> to vector<32x16xf32>
    %1952 = arith.mulf %1947, %1951 : vector<32x16xf32>
    %c0_550 = arith.constant 0 : index
    %c0_551 = arith.constant 0 : index
    %1953 = vector.load %arg15[%c0_550, %c0_551] : memref<32x1xf32, #tpu.memory_space<vmem>>, vector<32x1xf32>
    %1954 = vector.broadcast %1953 : vector<32x1xf32> to vector<32x16xf32>
    %1955 = arith.addf %1952, %1954 : vector<32x16xf32>
    %cst_552 = arith.constant 0.000000e+00 : f32
    %1956 = vector.broadcast %cst_552 : f32 to vector<32x16xf32>
    %1957 = arith.maximumf %1955, %1956 : vector<32x16xf32>
    %c0_553 = arith.constant 0 : index
    %c0_554 = arith.constant 0 : index
    %1958 = vector.load %arg17[%c0_553, %c0_554] : memref<32x64xf32, #tpu.memory_space<vmem>>, vector<32x64xf32>
    %cst_555 = arith.constant dense<0.000000e+00> : vector<16x64xf32>
    %1959 = tpu.matmul %1926, %1958, %cst_555 {dimension_numbers = #tpu.dot_dimension_numbers<[1], [0], [0], [1], [0, 0, 1, 1], [], []>} : vector<16x32xf32>, vector<32x64xf32>, vector<16x64xf32> -> vector<16x64xf32>
    %c0_556 = arith.constant 0 : index
    %c0_557 = arith.constant 0 : index
    %1960 = vector.load %arg18[%c0_556, %c0_557] : memref<1x64xf32, #tpu.memory_space<vmem>>, vector<1x64xf32>
    %1961 = vector.broadcast %1960 : vector<1x64xf32> to vector<16x64xf32>
    %1962 = arith.addf %1959, %1961 : vector<16x64xf32>
    %1963 = vector.extract_strided_slice %1962 {offsets = [0, 0], sizes = [16, 32], strides = [1, 1]} : vector<16x64xf32> to vector<16x32xf32>
    %1964 = vector.extract_strided_slice %1962 {offsets = [0, 32], sizes = [16, 32], strides = [1, 1]} : vector<16x64xf32> to vector<16x32xf32>
    %c0_558 = arith.constant 0 : index
    %c0_559 = arith.constant 0 : index
    %1965 = vector.load %arg19[%c0_558, %c0_559] : memref<64x32xf32, #tpu.memory_space<vmem>>, vector<64x32xf32>
    %cst_560 = arith.constant dense<0.000000e+00> : vector<64x16xf32>
    %1966 = tpu.matmul %1965, %1957, %cst_560 {dimension_numbers = #tpu.dot_dimension_numbers<[1], [0], [0], [1], [0, 0, 1, 1], [], []>} : vector<64x32xf32>, vector<32x16xf32>, vector<64x16xf32> -> vector<64x16xf32>
    %c0_561 = arith.constant 0 : index
    %c0_562 = arith.constant 0 : index
    %1967 = vector.load %arg20[%c0_561, %c0_562] : memref<64x1xf32, #tpu.memory_space<vmem>>, vector<64x1xf32>
    %1968 = vector.broadcast %1967 : vector<64x1xf32> to vector<64x16xf32>
    %1969 = arith.addf %1966, %1968 : vector<64x16xf32>
    %1970 = vector.extract_strided_slice %1969 {offsets = [0, 0], sizes = [32, 16], strides = [1, 1]} : vector<64x16xf32> to vector<32x16xf32>
    %cst_563 = arith.constant 0.000000e+00 : f32
    %1971 = vector.broadcast %cst_563 : f32 to vector<16x16xf32>
    %cst_564 = arith.constant 0.000000e+00 : f32
    %1972 = vector.broadcast %cst_564 : f32 to vector<16x16xf32>
    %1973 = vector.extract_strided_slice %1964 {offsets = [0, 0], sizes = [16, 1], strides = [1, 1]} : vector<16x32xf32> to vector<16x1xf32>
    %1974 = vector.extract_strided_slice %1970 {offsets = [0, 0], sizes = [1, 16], strides = [1, 1]} : vector<32x16xf32> to vector<1x16xf32>
    %1975 = vector.broadcast %1973 : vector<16x1xf32> to vector<16x16xf32>
    %1976 = vector.broadcast %1974 : vector<1x16xf32> to vector<16x16xf32>
    %1977 = arith.addf %1975, %1976 : vector<16x16xf32>
    %cst_565 = arith.constant 0.000000e+00 : f32
    %1978 = vector.broadcast %cst_565 : f32 to vector<16x16xf32>
    %1979 = arith.cmpf oge, %1977, %1978 : vector<16x16xf32>
    %cst_566 = arith.constant 2.000000e-01 : f32
    %1980 = vector.broadcast %cst_566 : f32 to vector<16x16xf32>
    %1981 = arith.mulf %1980, %1977 : vector<16x16xf32>
    %1982 = arith.select %1979, %1977, %1981 : vector<16x16xi1>, vector<16x16xf32>
    %c0_567 = arith.constant 0 : index
    %c0_568 = arith.constant 0 : index
    %1983 = memref.load %arg21[%c0_567, %c0_568] : memref<2x16xf32, #tpu.memory_space<smem>>
    %1984 = vector.broadcast %1983 : f32 to vector<16x16xf32>
    %1985 = arith.mulf %1984, %1982 : vector<16x16xf32>
    %1986 = arith.addf %1972, %1985 : vector<16x16xf32>
    %1987 = vector.extract_strided_slice %1964 {offsets = [0, 1], sizes = [16, 1], strides = [1, 1]} : vector<16x32xf32> to vector<16x1xf32>
    %1988 = vector.extract_strided_slice %1970 {offsets = [1, 0], sizes = [1, 16], strides = [1, 1]} : vector<32x16xf32> to vector<1x16xf32>
    %1989 = vector.broadcast %1987 : vector<16x1xf32> to vector<16x16xf32>
    %1990 = vector.broadcast %1988 : vector<1x16xf32> to vector<16x16xf32>
    %1991 = arith.addf %1989, %1990 : vector<16x16xf32>
    %cst_569 = arith.constant 0.000000e+00 : f32
    %1992 = vector.broadcast %cst_569 : f32 to vector<16x16xf32>
    %1993 = arith.cmpf oge, %1991, %1992 : vector<16x16xf32>
    %cst_570 = arith.constant 2.000000e-01 : f32
    %1994 = vector.broadcast %cst_570 : f32 to vector<16x16xf32>
    %1995 = arith.mulf %1994, %1991 : vector<16x16xf32>
    %1996 = arith.select %1993, %1991, %1995 : vector<16x16xi1>, vector<16x16xf32>
    %c0_571 = arith.constant 0 : index
    %c1_572 = arith.constant 1 : index
    %1997 = memref.load %arg21[%c0_571, %c1_572] : memref<2x16xf32, #tpu.memory_space<smem>>
    %1998 = vector.broadcast %1997 : f32 to vector<16x16xf32>
    %1999 = arith.mulf %1998, %1996 : vector<16x16xf32>
    %2000 = arith.addf %1986, %1999 : vector<16x16xf32>
    %2001 = vector.extract_strided_slice %1964 {offsets = [0, 2], sizes = [16, 1], strides = [1, 1]} : vector<16x32xf32> to vector<16x1xf32>
    %2002 = vector.extract_strided_slice %1970 {offsets = [2, 0], sizes = [1, 16], strides = [1, 1]} : vector<32x16xf32> to vector<1x16xf32>
    %2003 = vector.broadcast %2001 : vector<16x1xf32> to vector<16x16xf32>
    %2004 = vector.broadcast %2002 : vector<1x16xf32> to vector<16x16xf32>
    %2005 = arith.addf %2003, %2004 : vector<16x16xf32>
    %cst_573 = arith.constant 0.000000e+00 : f32
    %2006 = vector.broadcast %cst_573 : f32 to vector<16x16xf32>
    %2007 = arith.cmpf oge, %2005, %2006 : vector<16x16xf32>
    %cst_574 = arith.constant 2.000000e-01 : f32
    %2008 = vector.broadcast %cst_574 : f32 to vector<16x16xf32>
    %2009 = arith.mulf %2008, %2005 : vector<16x16xf32>
    %2010 = arith.select %2007, %2005, %2009 : vector<16x16xi1>, vector<16x16xf32>
    %c0_575 = arith.constant 0 : index
    %c2_576 = arith.constant 2 : index
    %2011 = memref.load %arg21[%c0_575, %c2_576] : memref<2x16xf32, #tpu.memory_space<smem>>
    %2012 = vector.broadcast %2011 : f32 to vector<16x16xf32>
    %2013 = arith.mulf %2012, %2010 : vector<16x16xf32>
    %2014 = arith.addf %2000, %2013 : vector<16x16xf32>
    %2015 = vector.extract_strided_slice %1964 {offsets = [0, 3], sizes = [16, 1], strides = [1, 1]} : vector<16x32xf32> to vector<16x1xf32>
    %2016 = vector.extract_strided_slice %1970 {offsets = [3, 0], sizes = [1, 16], strides = [1, 1]} : vector<32x16xf32> to vector<1x16xf32>
    %2017 = vector.broadcast %2015 : vector<16x1xf32> to vector<16x16xf32>
    %2018 = vector.broadcast %2016 : vector<1x16xf32> to vector<16x16xf32>
    %2019 = arith.addf %2017, %2018 : vector<16x16xf32>
    %cst_577 = arith.constant 0.000000e+00 : f32
    %2020 = vector.broadcast %cst_577 : f32 to vector<16x16xf32>
    %2021 = arith.cmpf oge, %2019, %2020 : vector<16x16xf32>
    %cst_578 = arith.constant 2.000000e-01 : f32
    %2022 = vector.broadcast %cst_578 : f32 to vector<16x16xf32>
    %2023 = arith.mulf %2022, %2019 : vector<16x16xf32>
    %2024 = arith.select %2021, %2019, %2023 : vector<16x16xi1>, vector<16x16xf32>
    %c0_579 = arith.constant 0 : index
    %c3_580 = arith.constant 3 : index
    %2025 = memref.load %arg21[%c0_579, %c3_580] : memref<2x16xf32, #tpu.memory_space<smem>>
    %2026 = vector.broadcast %2025 : f32 to vector<16x16xf32>
    %2027 = arith.mulf %2026, %2024 : vector<16x16xf32>
    %2028 = arith.addf %2014, %2027 : vector<16x16xf32>
    %2029 = vector.extract_strided_slice %1964 {offsets = [0, 4], sizes = [16, 1], strides = [1, 1]} : vector<16x32xf32> to vector<16x1xf32>
    %2030 = vector.extract_strided_slice %1970 {offsets = [4, 0], sizes = [1, 16], strides = [1, 1]} : vector<32x16xf32> to vector<1x16xf32>
    %2031 = vector.broadcast %2029 : vector<16x1xf32> to vector<16x16xf32>
    %2032 = vector.broadcast %2030 : vector<1x16xf32> to vector<16x16xf32>
    %2033 = arith.addf %2031, %2032 : vector<16x16xf32>
    %cst_581 = arith.constant 0.000000e+00 : f32
    %2034 = vector.broadcast %cst_581 : f32 to vector<16x16xf32>
    %2035 = arith.cmpf oge, %2033, %2034 : vector<16x16xf32>
    %cst_582 = arith.constant 2.000000e-01 : f32
    %2036 = vector.broadcast %cst_582 : f32 to vector<16x16xf32>
    %2037 = arith.mulf %2036, %2033 : vector<16x16xf32>
    %2038 = arith.select %2035, %2033, %2037 : vector<16x16xi1>, vector<16x16xf32>
    %c0_583 = arith.constant 0 : index
    %c4_584 = arith.constant 4 : index
    %2039 = memref.load %arg21[%c0_583, %c4_584] : memref<2x16xf32, #tpu.memory_space<smem>>
    %2040 = vector.broadcast %2039 : f32 to vector<16x16xf32>
    %2041 = arith.mulf %2040, %2038 : vector<16x16xf32>
    %2042 = arith.addf %2028, %2041 : vector<16x16xf32>
    %2043 = vector.extract_strided_slice %1964 {offsets = [0, 5], sizes = [16, 1], strides = [1, 1]} : vector<16x32xf32> to vector<16x1xf32>
    %2044 = vector.extract_strided_slice %1970 {offsets = [5, 0], sizes = [1, 16], strides = [1, 1]} : vector<32x16xf32> to vector<1x16xf32>
    %2045 = vector.broadcast %2043 : vector<16x1xf32> to vector<16x16xf32>
    %2046 = vector.broadcast %2044 : vector<1x16xf32> to vector<16x16xf32>
    %2047 = arith.addf %2045, %2046 : vector<16x16xf32>
    %cst_585 = arith.constant 0.000000e+00 : f32
    %2048 = vector.broadcast %cst_585 : f32 to vector<16x16xf32>
    %2049 = arith.cmpf oge, %2047, %2048 : vector<16x16xf32>
    %cst_586 = arith.constant 2.000000e-01 : f32
    %2050 = vector.broadcast %cst_586 : f32 to vector<16x16xf32>
    %2051 = arith.mulf %2050, %2047 : vector<16x16xf32>
    %2052 = arith.select %2049, %2047, %2051 : vector<16x16xi1>, vector<16x16xf32>
    %c0_587 = arith.constant 0 : index
    %c5_588 = arith.constant 5 : index
    %2053 = memref.load %arg21[%c0_587, %c5_588] : memref<2x16xf32, #tpu.memory_space<smem>>
    %2054 = vector.broadcast %2053 : f32 to vector<16x16xf32>
    %2055 = arith.mulf %2054, %2052 : vector<16x16xf32>
    %2056 = arith.addf %2042, %2055 : vector<16x16xf32>
    %2057 = vector.extract_strided_slice %1964 {offsets = [0, 6], sizes = [16, 1], strides = [1, 1]} : vector<16x32xf32> to vector<16x1xf32>
    %2058 = vector.extract_strided_slice %1970 {offsets = [6, 0], sizes = [1, 16], strides = [1, 1]} : vector<32x16xf32> to vector<1x16xf32>
    %2059 = vector.broadcast %2057 : vector<16x1xf32> to vector<16x16xf32>
    %2060 = vector.broadcast %2058 : vector<1x16xf32> to vector<16x16xf32>
    %2061 = arith.addf %2059, %2060 : vector<16x16xf32>
    %cst_589 = arith.constant 0.000000e+00 : f32
    %2062 = vector.broadcast %cst_589 : f32 to vector<16x16xf32>
    %2063 = arith.cmpf oge, %2061, %2062 : vector<16x16xf32>
    %cst_590 = arith.constant 2.000000e-01 : f32
    %2064 = vector.broadcast %cst_590 : f32 to vector<16x16xf32>
    %2065 = arith.mulf %2064, %2061 : vector<16x16xf32>
    %2066 = arith.select %2063, %2061, %2065 : vector<16x16xi1>, vector<16x16xf32>
    %c0_591 = arith.constant 0 : index
    %c6_592 = arith.constant 6 : index
    %2067 = memref.load %arg21[%c0_591, %c6_592] : memref<2x16xf32, #tpu.memory_space<smem>>
    %2068 = vector.broadcast %2067 : f32 to vector<16x16xf32>
    %2069 = arith.mulf %2068, %2066 : vector<16x16xf32>
    %2070 = arith.addf %2056, %2069 : vector<16x16xf32>
    %2071 = vector.extract_strided_slice %1964 {offsets = [0, 7], sizes = [16, 1], strides = [1, 1]} : vector<16x32xf32> to vector<16x1xf32>
    %2072 = vector.extract_strided_slice %1970 {offsets = [7, 0], sizes = [1, 16], strides = [1, 1]} : vector<32x16xf32> to vector<1x16xf32>
    %2073 = vector.broadcast %2071 : vector<16x1xf32> to vector<16x16xf32>
    %2074 = vector.broadcast %2072 : vector<1x16xf32> to vector<16x16xf32>
    %2075 = arith.addf %2073, %2074 : vector<16x16xf32>
    %cst_593 = arith.constant 0.000000e+00 : f32
    %2076 = vector.broadcast %cst_593 : f32 to vector<16x16xf32>
    %2077 = arith.cmpf oge, %2075, %2076 : vector<16x16xf32>
    %cst_594 = arith.constant 2.000000e-01 : f32
    %2078 = vector.broadcast %cst_594 : f32 to vector<16x16xf32>
    %2079 = arith.mulf %2078, %2075 : vector<16x16xf32>
    %2080 = arith.select %2077, %2075, %2079 : vector<16x16xi1>, vector<16x16xf32>
    %c0_595 = arith.constant 0 : index
    %c7_596 = arith.constant 7 : index
    %2081 = memref.load %arg21[%c0_595, %c7_596] : memref<2x16xf32, #tpu.memory_space<smem>>
    %2082 = vector.broadcast %2081 : f32 to vector<16x16xf32>
    %2083 = arith.mulf %2082, %2080 : vector<16x16xf32>
    %2084 = arith.addf %2070, %2083 : vector<16x16xf32>
    %2085 = vector.extract_strided_slice %1964 {offsets = [0, 8], sizes = [16, 1], strides = [1, 1]} : vector<16x32xf32> to vector<16x1xf32>
    %2086 = vector.extract_strided_slice %1970 {offsets = [8, 0], sizes = [1, 16], strides = [1, 1]} : vector<32x16xf32> to vector<1x16xf32>
    %2087 = vector.broadcast %2085 : vector<16x1xf32> to vector<16x16xf32>
    %2088 = vector.broadcast %2086 : vector<1x16xf32> to vector<16x16xf32>
    %2089 = arith.addf %2087, %2088 : vector<16x16xf32>
    %cst_597 = arith.constant 0.000000e+00 : f32
    %2090 = vector.broadcast %cst_597 : f32 to vector<16x16xf32>
    %2091 = arith.cmpf oge, %2089, %2090 : vector<16x16xf32>
    %cst_598 = arith.constant 2.000000e-01 : f32
    %2092 = vector.broadcast %cst_598 : f32 to vector<16x16xf32>
    %2093 = arith.mulf %2092, %2089 : vector<16x16xf32>
    %2094 = arith.select %2091, %2089, %2093 : vector<16x16xi1>, vector<16x16xf32>
    %c0_599 = arith.constant 0 : index
    %c8_600 = arith.constant 8 : index
    %2095 = memref.load %arg21[%c0_599, %c8_600] : memref<2x16xf32, #tpu.memory_space<smem>>
    %2096 = vector.broadcast %2095 : f32 to vector<16x16xf32>
    %2097 = arith.mulf %2096, %2094 : vector<16x16xf32>
    %2098 = arith.addf %2084, %2097 : vector<16x16xf32>
    %2099 = vector.extract_strided_slice %1964 {offsets = [0, 9], sizes = [16, 1], strides = [1, 1]} : vector<16x32xf32> to vector<16x1xf32>
    %2100 = vector.extract_strided_slice %1970 {offsets = [9, 0], sizes = [1, 16], strides = [1, 1]} : vector<32x16xf32> to vector<1x16xf32>
    %2101 = vector.broadcast %2099 : vector<16x1xf32> to vector<16x16xf32>
    %2102 = vector.broadcast %2100 : vector<1x16xf32> to vector<16x16xf32>
    %2103 = arith.addf %2101, %2102 : vector<16x16xf32>
    %cst_601 = arith.constant 0.000000e+00 : f32
    %2104 = vector.broadcast %cst_601 : f32 to vector<16x16xf32>
    %2105 = arith.cmpf oge, %2103, %2104 : vector<16x16xf32>
    %cst_602 = arith.constant 2.000000e-01 : f32
    %2106 = vector.broadcast %cst_602 : f32 to vector<16x16xf32>
    %2107 = arith.mulf %2106, %2103 : vector<16x16xf32>
    %2108 = arith.select %2105, %2103, %2107 : vector<16x16xi1>, vector<16x16xf32>
    %c0_603 = arith.constant 0 : index
    %c9_604 = arith.constant 9 : index
    %2109 = memref.load %arg21[%c0_603, %c9_604] : memref<2x16xf32, #tpu.memory_space<smem>>
    %2110 = vector.broadcast %2109 : f32 to vector<16x16xf32>
    %2111 = arith.mulf %2110, %2108 : vector<16x16xf32>
    %2112 = arith.addf %2098, %2111 : vector<16x16xf32>
    %2113 = vector.extract_strided_slice %1964 {offsets = [0, 10], sizes = [16, 1], strides = [1, 1]} : vector<16x32xf32> to vector<16x1xf32>
    %2114 = vector.extract_strided_slice %1970 {offsets = [10, 0], sizes = [1, 16], strides = [1, 1]} : vector<32x16xf32> to vector<1x16xf32>
    %2115 = vector.broadcast %2113 : vector<16x1xf32> to vector<16x16xf32>
    %2116 = vector.broadcast %2114 : vector<1x16xf32> to vector<16x16xf32>
    %2117 = arith.addf %2115, %2116 : vector<16x16xf32>
    %cst_605 = arith.constant 0.000000e+00 : f32
    %2118 = vector.broadcast %cst_605 : f32 to vector<16x16xf32>
    %2119 = arith.cmpf oge, %2117, %2118 : vector<16x16xf32>
    %cst_606 = arith.constant 2.000000e-01 : f32
    %2120 = vector.broadcast %cst_606 : f32 to vector<16x16xf32>
    %2121 = arith.mulf %2120, %2117 : vector<16x16xf32>
    %2122 = arith.select %2119, %2117, %2121 : vector<16x16xi1>, vector<16x16xf32>
    %c0_607 = arith.constant 0 : index
    %c10_608 = arith.constant 10 : index
    %2123 = memref.load %arg21[%c0_607, %c10_608] : memref<2x16xf32, #tpu.memory_space<smem>>
    %2124 = vector.broadcast %2123 : f32 to vector<16x16xf32>
    %2125 = arith.mulf %2124, %2122 : vector<16x16xf32>
    %2126 = arith.addf %2112, %2125 : vector<16x16xf32>
    %2127 = vector.extract_strided_slice %1964 {offsets = [0, 11], sizes = [16, 1], strides = [1, 1]} : vector<16x32xf32> to vector<16x1xf32>
    %2128 = vector.extract_strided_slice %1970 {offsets = [11, 0], sizes = [1, 16], strides = [1, 1]} : vector<32x16xf32> to vector<1x16xf32>
    %2129 = vector.broadcast %2127 : vector<16x1xf32> to vector<16x16xf32>
    %2130 = vector.broadcast %2128 : vector<1x16xf32> to vector<16x16xf32>
    %2131 = arith.addf %2129, %2130 : vector<16x16xf32>
    %cst_609 = arith.constant 0.000000e+00 : f32
    %2132 = vector.broadcast %cst_609 : f32 to vector<16x16xf32>
    %2133 = arith.cmpf oge, %2131, %2132 : vector<16x16xf32>
    %cst_610 = arith.constant 2.000000e-01 : f32
    %2134 = vector.broadcast %cst_610 : f32 to vector<16x16xf32>
    %2135 = arith.mulf %2134, %2131 : vector<16x16xf32>
    %2136 = arith.select %2133, %2131, %2135 : vector<16x16xi1>, vector<16x16xf32>
    %c0_611 = arith.constant 0 : index
    %c11_612 = arith.constant 11 : index
    %2137 = memref.load %arg21[%c0_611, %c11_612] : memref<2x16xf32, #tpu.memory_space<smem>>
    %2138 = vector.broadcast %2137 : f32 to vector<16x16xf32>
    %2139 = arith.mulf %2138, %2136 : vector<16x16xf32>
    %2140 = arith.addf %2126, %2139 : vector<16x16xf32>
    %2141 = vector.extract_strided_slice %1964 {offsets = [0, 12], sizes = [16, 1], strides = [1, 1]} : vector<16x32xf32> to vector<16x1xf32>
    %2142 = vector.extract_strided_slice %1970 {offsets = [12, 0], sizes = [1, 16], strides = [1, 1]} : vector<32x16xf32> to vector<1x16xf32>
    %2143 = vector.broadcast %2141 : vector<16x1xf32> to vector<16x16xf32>
    %2144 = vector.broadcast %2142 : vector<1x16xf32> to vector<16x16xf32>
    %2145 = arith.addf %2143, %2144 : vector<16x16xf32>
    %cst_613 = arith.constant 0.000000e+00 : f32
    %2146 = vector.broadcast %cst_613 : f32 to vector<16x16xf32>
    %2147 = arith.cmpf oge, %2145, %2146 : vector<16x16xf32>
    %cst_614 = arith.constant 2.000000e-01 : f32
    %2148 = vector.broadcast %cst_614 : f32 to vector<16x16xf32>
    %2149 = arith.mulf %2148, %2145 : vector<16x16xf32>
    %2150 = arith.select %2147, %2145, %2149 : vector<16x16xi1>, vector<16x16xf32>
    %c0_615 = arith.constant 0 : index
    %c12_616 = arith.constant 12 : index
    %2151 = memref.load %arg21[%c0_615, %c12_616] : memref<2x16xf32, #tpu.memory_space<smem>>
    %2152 = vector.broadcast %2151 : f32 to vector<16x16xf32>
    %2153 = arith.mulf %2152, %2150 : vector<16x16xf32>
    %2154 = arith.addf %2140, %2153 : vector<16x16xf32>
    %2155 = vector.extract_strided_slice %1964 {offsets = [0, 13], sizes = [16, 1], strides = [1, 1]} : vector<16x32xf32> to vector<16x1xf32>
    %2156 = vector.extract_strided_slice %1970 {offsets = [13, 0], sizes = [1, 16], strides = [1, 1]} : vector<32x16xf32> to vector<1x16xf32>
    %2157 = vector.broadcast %2155 : vector<16x1xf32> to vector<16x16xf32>
    %2158 = vector.broadcast %2156 : vector<1x16xf32> to vector<16x16xf32>
    %2159 = arith.addf %2157, %2158 : vector<16x16xf32>
    %cst_617 = arith.constant 0.000000e+00 : f32
    %2160 = vector.broadcast %cst_617 : f32 to vector<16x16xf32>
    %2161 = arith.cmpf oge, %2159, %2160 : vector<16x16xf32>
    %cst_618 = arith.constant 2.000000e-01 : f32
    %2162 = vector.broadcast %cst_618 : f32 to vector<16x16xf32>
    %2163 = arith.mulf %2162, %2159 : vector<16x16xf32>
    %2164 = arith.select %2161, %2159, %2163 : vector<16x16xi1>, vector<16x16xf32>
    %c0_619 = arith.constant 0 : index
    %c13_620 = arith.constant 13 : index
    %2165 = memref.load %arg21[%c0_619, %c13_620] : memref<2x16xf32, #tpu.memory_space<smem>>
    %2166 = vector.broadcast %2165 : f32 to vector<16x16xf32>
    %2167 = arith.mulf %2166, %2164 : vector<16x16xf32>
    %2168 = arith.addf %2154, %2167 : vector<16x16xf32>
    %2169 = vector.extract_strided_slice %1964 {offsets = [0, 14], sizes = [16, 1], strides = [1, 1]} : vector<16x32xf32> to vector<16x1xf32>
    %2170 = vector.extract_strided_slice %1970 {offsets = [14, 0], sizes = [1, 16], strides = [1, 1]} : vector<32x16xf32> to vector<1x16xf32>
    %2171 = vector.broadcast %2169 : vector<16x1xf32> to vector<16x16xf32>
    %2172 = vector.broadcast %2170 : vector<1x16xf32> to vector<16x16xf32>
    %2173 = arith.addf %2171, %2172 : vector<16x16xf32>
    %cst_621 = arith.constant 0.000000e+00 : f32
    %2174 = vector.broadcast %cst_621 : f32 to vector<16x16xf32>
    %2175 = arith.cmpf oge, %2173, %2174 : vector<16x16xf32>
    %cst_622 = arith.constant 2.000000e-01 : f32
    %2176 = vector.broadcast %cst_622 : f32 to vector<16x16xf32>
    %2177 = arith.mulf %2176, %2173 : vector<16x16xf32>
    %2178 = arith.select %2175, %2173, %2177 : vector<16x16xi1>, vector<16x16xf32>
    %c0_623 = arith.constant 0 : index
    %c14_624 = arith.constant 14 : index
    %2179 = memref.load %arg21[%c0_623, %c14_624] : memref<2x16xf32, #tpu.memory_space<smem>>
    %2180 = vector.broadcast %2179 : f32 to vector<16x16xf32>
    %2181 = arith.mulf %2180, %2178 : vector<16x16xf32>
    %2182 = arith.addf %2168, %2181 : vector<16x16xf32>
    %2183 = vector.extract_strided_slice %1964 {offsets = [0, 15], sizes = [16, 1], strides = [1, 1]} : vector<16x32xf32> to vector<16x1xf32>
    %2184 = vector.extract_strided_slice %1970 {offsets = [15, 0], sizes = [1, 16], strides = [1, 1]} : vector<32x16xf32> to vector<1x16xf32>
    %2185 = vector.broadcast %2183 : vector<16x1xf32> to vector<16x16xf32>
    %2186 = vector.broadcast %2184 : vector<1x16xf32> to vector<16x16xf32>
    %2187 = arith.addf %2185, %2186 : vector<16x16xf32>
    %cst_625 = arith.constant 0.000000e+00 : f32
    %2188 = vector.broadcast %cst_625 : f32 to vector<16x16xf32>
    %2189 = arith.cmpf oge, %2187, %2188 : vector<16x16xf32>
    %cst_626 = arith.constant 2.000000e-01 : f32
    %2190 = vector.broadcast %cst_626 : f32 to vector<16x16xf32>
    %2191 = arith.mulf %2190, %2187 : vector<16x16xf32>
    %2192 = arith.select %2189, %2187, %2191 : vector<16x16xi1>, vector<16x16xf32>
    %c0_627 = arith.constant 0 : index
    %c15_628 = arith.constant 15 : index
    %2193 = memref.load %arg21[%c0_627, %c15_628] : memref<2x16xf32, #tpu.memory_space<smem>>
    %2194 = vector.broadcast %2193 : f32 to vector<16x16xf32>
    %2195 = arith.mulf %2194, %2192 : vector<16x16xf32>
    %2196 = arith.addf %2182, %2195 : vector<16x16xf32>
    %2197 = arith.addf %2196, %2 : vector<16x16xf32>
    %cst_629 = arith.constant dense<0xFF800000> : vector<16xf32>
    %2198 = vector.multi_reduction <maximumf>, %2197, %cst_629 [1] : vector<16x16xf32> to vector<16xf32>
    %2199 = vector.shape_cast %2198 : vector<16xf32> to vector<16x1xf32>
    %2200 = vector.broadcast %2199 : vector<16x1xf32> to vector<16x16xf32>
    %2201 = arith.subf %2197, %2200 : vector<16x16xf32>
    %2202 = math.exp %2201 : vector<16x16xf32>
    %cst_630 = arith.constant dense<0.000000e+00> : vector<16xf32>
    %2203 = vector.multi_reduction <add>, %2202, %cst_630 [1] : vector<16x16xf32> to vector<16xf32>
    %2204 = vector.shape_cast %2203 : vector<16xf32> to vector<16x1xf32>
    %cst_631 = arith.constant 9.99999968E-21 : f32
    %2205 = vector.broadcast %cst_631 : f32 to vector<16x1xf32>
    %2206 = arith.maximumf %2204, %2205 : vector<16x1xf32>
    %2207 = tpu.reciprocal %2206 {approx = true} : vector<16x1xf32> -> vector<16x1xf32>
    %2208 = arith.mulf %2206, %2207 : vector<16x1xf32>
    %cst_632 = arith.constant 2.000000e+00 : f32
    %2209 = vector.broadcast %cst_632 : f32 to vector<16x1xf32>
    %2210 = arith.subf %2209, %2208 : vector<16x1xf32>
    %2211 = arith.mulf %2207, %2210 : vector<16x1xf32>
    %2212 = vector.broadcast %2211 : vector<16x1xf32> to vector<16x16xf32>
    %2213 = arith.mulf %2202, %2212 : vector<16x16xf32>
    %2214 = vector.extract_strided_slice %1963 {offsets = [0, 0], sizes = [16, 16], strides = [1, 1]} : vector<16x32xf32> to vector<16x16xf32>
    %cst_633 = arith.constant dense<0.000000e+00> : vector<16x16xf32>
    %2215 = tpu.matmul %2213, %2214, %cst_633 {dimension_numbers = #tpu.dot_dimension_numbers<[1], [0], [0], [1], [0, 0, 1, 1], [], []>} : vector<16x16xf32>, vector<16x16xf32>, vector<16x16xf32> -> vector<16x16xf32>
    %2216 = arith.addf %1971, %2215 : vector<16x16xf32>
    %cst_634 = arith.constant 0.000000e+00 : f32
    %2217 = vector.broadcast %cst_634 : f32 to vector<16x16xf32>
    %2218 = vector.extract_strided_slice %1964 {offsets = [0, 16], sizes = [16, 1], strides = [1, 1]} : vector<16x32xf32> to vector<16x1xf32>
    %2219 = vector.extract_strided_slice %1970 {offsets = [16, 0], sizes = [1, 16], strides = [1, 1]} : vector<32x16xf32> to vector<1x16xf32>
    %2220 = vector.broadcast %2218 : vector<16x1xf32> to vector<16x16xf32>
    %2221 = vector.broadcast %2219 : vector<1x16xf32> to vector<16x16xf32>
    %2222 = arith.addf %2220, %2221 : vector<16x16xf32>
    %cst_635 = arith.constant 0.000000e+00 : f32
    %2223 = vector.broadcast %cst_635 : f32 to vector<16x16xf32>
    %2224 = arith.cmpf oge, %2222, %2223 : vector<16x16xf32>
    %cst_636 = arith.constant 2.000000e-01 : f32
    %2225 = vector.broadcast %cst_636 : f32 to vector<16x16xf32>
    %2226 = arith.mulf %2225, %2222 : vector<16x16xf32>
    %2227 = arith.select %2224, %2222, %2226 : vector<16x16xi1>, vector<16x16xf32>
    %c1_637 = arith.constant 1 : index
    %c0_638 = arith.constant 0 : index
    %2228 = memref.load %arg21[%c1_637, %c0_638] : memref<2x16xf32, #tpu.memory_space<smem>>
    %2229 = vector.broadcast %2228 : f32 to vector<16x16xf32>
    %2230 = arith.mulf %2229, %2227 : vector<16x16xf32>
    %2231 = arith.addf %2217, %2230 : vector<16x16xf32>
    %2232 = vector.extract_strided_slice %1964 {offsets = [0, 17], sizes = [16, 1], strides = [1, 1]} : vector<16x32xf32> to vector<16x1xf32>
    %2233 = vector.extract_strided_slice %1970 {offsets = [17, 0], sizes = [1, 16], strides = [1, 1]} : vector<32x16xf32> to vector<1x16xf32>
    %2234 = vector.broadcast %2232 : vector<16x1xf32> to vector<16x16xf32>
    %2235 = vector.broadcast %2233 : vector<1x16xf32> to vector<16x16xf32>
    %2236 = arith.addf %2234, %2235 : vector<16x16xf32>
    %cst_639 = arith.constant 0.000000e+00 : f32
    %2237 = vector.broadcast %cst_639 : f32 to vector<16x16xf32>
    %2238 = arith.cmpf oge, %2236, %2237 : vector<16x16xf32>
    %cst_640 = arith.constant 2.000000e-01 : f32
    %2239 = vector.broadcast %cst_640 : f32 to vector<16x16xf32>
    %2240 = arith.mulf %2239, %2236 : vector<16x16xf32>
    %2241 = arith.select %2238, %2236, %2240 : vector<16x16xi1>, vector<16x16xf32>
    %c1_641 = arith.constant 1 : index
    %c1_642 = arith.constant 1 : index
    %2242 = memref.load %arg21[%c1_641, %c1_642] : memref<2x16xf32, #tpu.memory_space<smem>>
    %2243 = vector.broadcast %2242 : f32 to vector<16x16xf32>
    %2244 = arith.mulf %2243, %2241 : vector<16x16xf32>
    %2245 = arith.addf %2231, %2244 : vector<16x16xf32>
    %2246 = vector.extract_strided_slice %1964 {offsets = [0, 18], sizes = [16, 1], strides = [1, 1]} : vector<16x32xf32> to vector<16x1xf32>
    %2247 = vector.extract_strided_slice %1970 {offsets = [18, 0], sizes = [1, 16], strides = [1, 1]} : vector<32x16xf32> to vector<1x16xf32>
    %2248 = vector.broadcast %2246 : vector<16x1xf32> to vector<16x16xf32>
    %2249 = vector.broadcast %2247 : vector<1x16xf32> to vector<16x16xf32>
    %2250 = arith.addf %2248, %2249 : vector<16x16xf32>
    %cst_643 = arith.constant 0.000000e+00 : f32
    %2251 = vector.broadcast %cst_643 : f32 to vector<16x16xf32>
    %2252 = arith.cmpf oge, %2250, %2251 : vector<16x16xf32>
    %cst_644 = arith.constant 2.000000e-01 : f32
    %2253 = vector.broadcast %cst_644 : f32 to vector<16x16xf32>
    %2254 = arith.mulf %2253, %2250 : vector<16x16xf32>
    %2255 = arith.select %2252, %2250, %2254 : vector<16x16xi1>, vector<16x16xf32>
    %c1_645 = arith.constant 1 : index
    %c2_646 = arith.constant 2 : index
    %2256 = memref.load %arg21[%c1_645, %c2_646] : memref<2x16xf32, #tpu.memory_space<smem>>
    %2257 = vector.broadcast %2256 : f32 to vector<16x16xf32>
    %2258 = arith.mulf %2257, %2255 : vector<16x16xf32>
    %2259 = arith.addf %2245, %2258 : vector<16x16xf32>
    %2260 = vector.extract_strided_slice %1964 {offsets = [0, 19], sizes = [16, 1], strides = [1, 1]} : vector<16x32xf32> to vector<16x1xf32>
    %2261 = vector.extract_strided_slice %1970 {offsets = [19, 0], sizes = [1, 16], strides = [1, 1]} : vector<32x16xf32> to vector<1x16xf32>
    %2262 = vector.broadcast %2260 : vector<16x1xf32> to vector<16x16xf32>
    %2263 = vector.broadcast %2261 : vector<1x16xf32> to vector<16x16xf32>
    %2264 = arith.addf %2262, %2263 : vector<16x16xf32>
    %cst_647 = arith.constant 0.000000e+00 : f32
    %2265 = vector.broadcast %cst_647 : f32 to vector<16x16xf32>
    %2266 = arith.cmpf oge, %2264, %2265 : vector<16x16xf32>
    %cst_648 = arith.constant 2.000000e-01 : f32
    %2267 = vector.broadcast %cst_648 : f32 to vector<16x16xf32>
    %2268 = arith.mulf %2267, %2264 : vector<16x16xf32>
    %2269 = arith.select %2266, %2264, %2268 : vector<16x16xi1>, vector<16x16xf32>
    %c1_649 = arith.constant 1 : index
    %c3_650 = arith.constant 3 : index
    %2270 = memref.load %arg21[%c1_649, %c3_650] : memref<2x16xf32, #tpu.memory_space<smem>>
    %2271 = vector.broadcast %2270 : f32 to vector<16x16xf32>
    %2272 = arith.mulf %2271, %2269 : vector<16x16xf32>
    %2273 = arith.addf %2259, %2272 : vector<16x16xf32>
    %2274 = vector.extract_strided_slice %1964 {offsets = [0, 20], sizes = [16, 1], strides = [1, 1]} : vector<16x32xf32> to vector<16x1xf32>
    %2275 = vector.extract_strided_slice %1970 {offsets = [20, 0], sizes = [1, 16], strides = [1, 1]} : vector<32x16xf32> to vector<1x16xf32>
    %2276 = vector.broadcast %2274 : vector<16x1xf32> to vector<16x16xf32>
    %2277 = vector.broadcast %2275 : vector<1x16xf32> to vector<16x16xf32>
    %2278 = arith.addf %2276, %2277 : vector<16x16xf32>
    %cst_651 = arith.constant 0.000000e+00 : f32
    %2279 = vector.broadcast %cst_651 : f32 to vector<16x16xf32>
    %2280 = arith.cmpf oge, %2278, %2279 : vector<16x16xf32>
    %cst_652 = arith.constant 2.000000e-01 : f32
    %2281 = vector.broadcast %cst_652 : f32 to vector<16x16xf32>
    %2282 = arith.mulf %2281, %2278 : vector<16x16xf32>
    %2283 = arith.select %2280, %2278, %2282 : vector<16x16xi1>, vector<16x16xf32>
    %c1_653 = arith.constant 1 : index
    %c4_654 = arith.constant 4 : index
    %2284 = memref.load %arg21[%c1_653, %c4_654] : memref<2x16xf32, #tpu.memory_space<smem>>
    %2285 = vector.broadcast %2284 : f32 to vector<16x16xf32>
    %2286 = arith.mulf %2285, %2283 : vector<16x16xf32>
    %2287 = arith.addf %2273, %2286 : vector<16x16xf32>
    %2288 = vector.extract_strided_slice %1964 {offsets = [0, 21], sizes = [16, 1], strides = [1, 1]} : vector<16x32xf32> to vector<16x1xf32>
    %2289 = vector.extract_strided_slice %1970 {offsets = [21, 0], sizes = [1, 16], strides = [1, 1]} : vector<32x16xf32> to vector<1x16xf32>
    %2290 = vector.broadcast %2288 : vector<16x1xf32> to vector<16x16xf32>
    %2291 = vector.broadcast %2289 : vector<1x16xf32> to vector<16x16xf32>
    %2292 = arith.addf %2290, %2291 : vector<16x16xf32>
    %cst_655 = arith.constant 0.000000e+00 : f32
    %2293 = vector.broadcast %cst_655 : f32 to vector<16x16xf32>
    %2294 = arith.cmpf oge, %2292, %2293 : vector<16x16xf32>
    %cst_656 = arith.constant 2.000000e-01 : f32
    %2295 = vector.broadcast %cst_656 : f32 to vector<16x16xf32>
    %2296 = arith.mulf %2295, %2292 : vector<16x16xf32>
    %2297 = arith.select %2294, %2292, %2296 : vector<16x16xi1>, vector<16x16xf32>
    %c1_657 = arith.constant 1 : index
    %c5_658 = arith.constant 5 : index
    %2298 = memref.load %arg21[%c1_657, %c5_658] : memref<2x16xf32, #tpu.memory_space<smem>>
    %2299 = vector.broadcast %2298 : f32 to vector<16x16xf32>
    %2300 = arith.mulf %2299, %2297 : vector<16x16xf32>
    %2301 = arith.addf %2287, %2300 : vector<16x16xf32>
    %2302 = vector.extract_strided_slice %1964 {offsets = [0, 22], sizes = [16, 1], strides = [1, 1]} : vector<16x32xf32> to vector<16x1xf32>
    %2303 = vector.extract_strided_slice %1970 {offsets = [22, 0], sizes = [1, 16], strides = [1, 1]} : vector<32x16xf32> to vector<1x16xf32>
    %2304 = vector.broadcast %2302 : vector<16x1xf32> to vector<16x16xf32>
    %2305 = vector.broadcast %2303 : vector<1x16xf32> to vector<16x16xf32>
    %2306 = arith.addf %2304, %2305 : vector<16x16xf32>
    %cst_659 = arith.constant 0.000000e+00 : f32
    %2307 = vector.broadcast %cst_659 : f32 to vector<16x16xf32>
    %2308 = arith.cmpf oge, %2306, %2307 : vector<16x16xf32>
    %cst_660 = arith.constant 2.000000e-01 : f32
    %2309 = vector.broadcast %cst_660 : f32 to vector<16x16xf32>
    %2310 = arith.mulf %2309, %2306 : vector<16x16xf32>
    %2311 = arith.select %2308, %2306, %2310 : vector<16x16xi1>, vector<16x16xf32>
    %c1_661 = arith.constant 1 : index
    %c6_662 = arith.constant 6 : index
    %2312 = memref.load %arg21[%c1_661, %c6_662] : memref<2x16xf32, #tpu.memory_space<smem>>
    %2313 = vector.broadcast %2312 : f32 to vector<16x16xf32>
    %2314 = arith.mulf %2313, %2311 : vector<16x16xf32>
    %2315 = arith.addf %2301, %2314 : vector<16x16xf32>
    %2316 = vector.extract_strided_slice %1964 {offsets = [0, 23], sizes = [16, 1], strides = [1, 1]} : vector<16x32xf32> to vector<16x1xf32>
    %2317 = vector.extract_strided_slice %1970 {offsets = [23, 0], sizes = [1, 16], strides = [1, 1]} : vector<32x16xf32> to vector<1x16xf32>
    %2318 = vector.broadcast %2316 : vector<16x1xf32> to vector<16x16xf32>
    %2319 = vector.broadcast %2317 : vector<1x16xf32> to vector<16x16xf32>
    %2320 = arith.addf %2318, %2319 : vector<16x16xf32>
    %cst_663 = arith.constant 0.000000e+00 : f32
    %2321 = vector.broadcast %cst_663 : f32 to vector<16x16xf32>
    %2322 = arith.cmpf oge, %2320, %2321 : vector<16x16xf32>
    %cst_664 = arith.constant 2.000000e-01 : f32
    %2323 = vector.broadcast %cst_664 : f32 to vector<16x16xf32>
    %2324 = arith.mulf %2323, %2320 : vector<16x16xf32>
    %2325 = arith.select %2322, %2320, %2324 : vector<16x16xi1>, vector<16x16xf32>
    %c1_665 = arith.constant 1 : index
    %c7_666 = arith.constant 7 : index
    %2326 = memref.load %arg21[%c1_665, %c7_666] : memref<2x16xf32, #tpu.memory_space<smem>>
    %2327 = vector.broadcast %2326 : f32 to vector<16x16xf32>
    %2328 = arith.mulf %2327, %2325 : vector<16x16xf32>
    %2329 = arith.addf %2315, %2328 : vector<16x16xf32>
    %2330 = vector.extract_strided_slice %1964 {offsets = [0, 24], sizes = [16, 1], strides = [1, 1]} : vector<16x32xf32> to vector<16x1xf32>
    %2331 = vector.extract_strided_slice %1970 {offsets = [24, 0], sizes = [1, 16], strides = [1, 1]} : vector<32x16xf32> to vector<1x16xf32>
    %2332 = vector.broadcast %2330 : vector<16x1xf32> to vector<16x16xf32>
    %2333 = vector.broadcast %2331 : vector<1x16xf32> to vector<16x16xf32>
    %2334 = arith.addf %2332, %2333 : vector<16x16xf32>
    %cst_667 = arith.constant 0.000000e+00 : f32
    %2335 = vector.broadcast %cst_667 : f32 to vector<16x16xf32>
    %2336 = arith.cmpf oge, %2334, %2335 : vector<16x16xf32>
    %cst_668 = arith.constant 2.000000e-01 : f32
    %2337 = vector.broadcast %cst_668 : f32 to vector<16x16xf32>
    %2338 = arith.mulf %2337, %2334 : vector<16x16xf32>
    %2339 = arith.select %2336, %2334, %2338 : vector<16x16xi1>, vector<16x16xf32>
    %c1_669 = arith.constant 1 : index
    %c8_670 = arith.constant 8 : index
    %2340 = memref.load %arg21[%c1_669, %c8_670] : memref<2x16xf32, #tpu.memory_space<smem>>
    %2341 = vector.broadcast %2340 : f32 to vector<16x16xf32>
    %2342 = arith.mulf %2341, %2339 : vector<16x16xf32>
    %2343 = arith.addf %2329, %2342 : vector<16x16xf32>
    %2344 = vector.extract_strided_slice %1964 {offsets = [0, 25], sizes = [16, 1], strides = [1, 1]} : vector<16x32xf32> to vector<16x1xf32>
    %2345 = vector.extract_strided_slice %1970 {offsets = [25, 0], sizes = [1, 16], strides = [1, 1]} : vector<32x16xf32> to vector<1x16xf32>
    %2346 = vector.broadcast %2344 : vector<16x1xf32> to vector<16x16xf32>
    %2347 = vector.broadcast %2345 : vector<1x16xf32> to vector<16x16xf32>
    %2348 = arith.addf %2346, %2347 : vector<16x16xf32>
    %cst_671 = arith.constant 0.000000e+00 : f32
    %2349 = vector.broadcast %cst_671 : f32 to vector<16x16xf32>
    %2350 = arith.cmpf oge, %2348, %2349 : vector<16x16xf32>
    %cst_672 = arith.constant 2.000000e-01 : f32
    %2351 = vector.broadcast %cst_672 : f32 to vector<16x16xf32>
    %2352 = arith.mulf %2351, %2348 : vector<16x16xf32>
    %2353 = arith.select %2350, %2348, %2352 : vector<16x16xi1>, vector<16x16xf32>
    %c1_673 = arith.constant 1 : index
    %c9_674 = arith.constant 9 : index
    %2354 = memref.load %arg21[%c1_673, %c9_674] : memref<2x16xf32, #tpu.memory_space<smem>>
    %2355 = vector.broadcast %2354 : f32 to vector<16x16xf32>
    %2356 = arith.mulf %2355, %2353 : vector<16x16xf32>
    %2357 = arith.addf %2343, %2356 : vector<16x16xf32>
    %2358 = vector.extract_strided_slice %1964 {offsets = [0, 26], sizes = [16, 1], strides = [1, 1]} : vector<16x32xf32> to vector<16x1xf32>
    %2359 = vector.extract_strided_slice %1970 {offsets = [26, 0], sizes = [1, 16], strides = [1, 1]} : vector<32x16xf32> to vector<1x16xf32>
    %2360 = vector.broadcast %2358 : vector<16x1xf32> to vector<16x16xf32>
    %2361 = vector.broadcast %2359 : vector<1x16xf32> to vector<16x16xf32>
    %2362 = arith.addf %2360, %2361 : vector<16x16xf32>
    %cst_675 = arith.constant 0.000000e+00 : f32
    %2363 = vector.broadcast %cst_675 : f32 to vector<16x16xf32>
    %2364 = arith.cmpf oge, %2362, %2363 : vector<16x16xf32>
    %cst_676 = arith.constant 2.000000e-01 : f32
    %2365 = vector.broadcast %cst_676 : f32 to vector<16x16xf32>
    %2366 = arith.mulf %2365, %2362 : vector<16x16xf32>
    %2367 = arith.select %2364, %2362, %2366 : vector<16x16xi1>, vector<16x16xf32>
    %c1_677 = arith.constant 1 : index
    %c10_678 = arith.constant 10 : index
    %2368 = memref.load %arg21[%c1_677, %c10_678] : memref<2x16xf32, #tpu.memory_space<smem>>
    %2369 = vector.broadcast %2368 : f32 to vector<16x16xf32>
    %2370 = arith.mulf %2369, %2367 : vector<16x16xf32>
    %2371 = arith.addf %2357, %2370 : vector<16x16xf32>
    %2372 = vector.extract_strided_slice %1964 {offsets = [0, 27], sizes = [16, 1], strides = [1, 1]} : vector<16x32xf32> to vector<16x1xf32>
    %2373 = vector.extract_strided_slice %1970 {offsets = [27, 0], sizes = [1, 16], strides = [1, 1]} : vector<32x16xf32> to vector<1x16xf32>
    %2374 = vector.broadcast %2372 : vector<16x1xf32> to vector<16x16xf32>
    %2375 = vector.broadcast %2373 : vector<1x16xf32> to vector<16x16xf32>
    %2376 = arith.addf %2374, %2375 : vector<16x16xf32>
    %cst_679 = arith.constant 0.000000e+00 : f32
    %2377 = vector.broadcast %cst_679 : f32 to vector<16x16xf32>
    %2378 = arith.cmpf oge, %2376, %2377 : vector<16x16xf32>
    %cst_680 = arith.constant 2.000000e-01 : f32
    %2379 = vector.broadcast %cst_680 : f32 to vector<16x16xf32>
    %2380 = arith.mulf %2379, %2376 : vector<16x16xf32>
    %2381 = arith.select %2378, %2376, %2380 : vector<16x16xi1>, vector<16x16xf32>
    %c1_681 = arith.constant 1 : index
    %c11_682 = arith.constant 11 : index
    %2382 = memref.load %arg21[%c1_681, %c11_682] : memref<2x16xf32, #tpu.memory_space<smem>>
    %2383 = vector.broadcast %2382 : f32 to vector<16x16xf32>
    %2384 = arith.mulf %2383, %2381 : vector<16x16xf32>
    %2385 = arith.addf %2371, %2384 : vector<16x16xf32>
    %2386 = vector.extract_strided_slice %1964 {offsets = [0, 28], sizes = [16, 1], strides = [1, 1]} : vector<16x32xf32> to vector<16x1xf32>
    %2387 = vector.extract_strided_slice %1970 {offsets = [28, 0], sizes = [1, 16], strides = [1, 1]} : vector<32x16xf32> to vector<1x16xf32>
    %2388 = vector.broadcast %2386 : vector<16x1xf32> to vector<16x16xf32>
    %2389 = vector.broadcast %2387 : vector<1x16xf32> to vector<16x16xf32>
    %2390 = arith.addf %2388, %2389 : vector<16x16xf32>
    %cst_683 = arith.constant 0.000000e+00 : f32
    %2391 = vector.broadcast %cst_683 : f32 to vector<16x16xf32>
    %2392 = arith.cmpf oge, %2390, %2391 : vector<16x16xf32>
    %cst_684 = arith.constant 2.000000e-01 : f32
    %2393 = vector.broadcast %cst_684 : f32 to vector<16x16xf32>
    %2394 = arith.mulf %2393, %2390 : vector<16x16xf32>
    %2395 = arith.select %2392, %2390, %2394 : vector<16x16xi1>, vector<16x16xf32>
    %c1_685 = arith.constant 1 : index
    %c12_686 = arith.constant 12 : index
    %2396 = memref.load %arg21[%c1_685, %c12_686] : memref<2x16xf32, #tpu.memory_space<smem>>
    %2397 = vector.broadcast %2396 : f32 to vector<16x16xf32>
    %2398 = arith.mulf %2397, %2395 : vector<16x16xf32>
    %2399 = arith.addf %2385, %2398 : vector<16x16xf32>
    %2400 = vector.extract_strided_slice %1964 {offsets = [0, 29], sizes = [16, 1], strides = [1, 1]} : vector<16x32xf32> to vector<16x1xf32>
    %2401 = vector.extract_strided_slice %1970 {offsets = [29, 0], sizes = [1, 16], strides = [1, 1]} : vector<32x16xf32> to vector<1x16xf32>
    %2402 = vector.broadcast %2400 : vector<16x1xf32> to vector<16x16xf32>
    %2403 = vector.broadcast %2401 : vector<1x16xf32> to vector<16x16xf32>
    %2404 = arith.addf %2402, %2403 : vector<16x16xf32>
    %cst_687 = arith.constant 0.000000e+00 : f32
    %2405 = vector.broadcast %cst_687 : f32 to vector<16x16xf32>
    %2406 = arith.cmpf oge, %2404, %2405 : vector<16x16xf32>
    %cst_688 = arith.constant 2.000000e-01 : f32
    %2407 = vector.broadcast %cst_688 : f32 to vector<16x16xf32>
    %2408 = arith.mulf %2407, %2404 : vector<16x16xf32>
    %2409 = arith.select %2406, %2404, %2408 : vector<16x16xi1>, vector<16x16xf32>
    %c1_689 = arith.constant 1 : index
    %c13_690 = arith.constant 13 : index
    %2410 = memref.load %arg21[%c1_689, %c13_690] : memref<2x16xf32, #tpu.memory_space<smem>>
    %2411 = vector.broadcast %2410 : f32 to vector<16x16xf32>
    %2412 = arith.mulf %2411, %2409 : vector<16x16xf32>
    %2413 = arith.addf %2399, %2412 : vector<16x16xf32>
    %2414 = vector.extract_strided_slice %1964 {offsets = [0, 30], sizes = [16, 1], strides = [1, 1]} : vector<16x32xf32> to vector<16x1xf32>
    %2415 = vector.extract_strided_slice %1970 {offsets = [30, 0], sizes = [1, 16], strides = [1, 1]} : vector<32x16xf32> to vector<1x16xf32>
    %2416 = vector.broadcast %2414 : vector<16x1xf32> to vector<16x16xf32>
    %2417 = vector.broadcast %2415 : vector<1x16xf32> to vector<16x16xf32>
    %2418 = arith.addf %2416, %2417 : vector<16x16xf32>
    %cst_691 = arith.constant 0.000000e+00 : f32
    %2419 = vector.broadcast %cst_691 : f32 to vector<16x16xf32>
    %2420 = arith.cmpf oge, %2418, %2419 : vector<16x16xf32>
    %cst_692 = arith.constant 2.000000e-01 : f32
    %2421 = vector.broadcast %cst_692 : f32 to vector<16x16xf32>
    %2422 = arith.mulf %2421, %2418 : vector<16x16xf32>
    %2423 = arith.select %2420, %2418, %2422 : vector<16x16xi1>, vector<16x16xf32>
    %c1_693 = arith.constant 1 : index
    %c14_694 = arith.constant 14 : index
    %2424 = memref.load %arg21[%c1_693, %c14_694] : memref<2x16xf32, #tpu.memory_space<smem>>
    %2425 = vector.broadcast %2424 : f32 to vector<16x16xf32>
    %2426 = arith.mulf %2425, %2423 : vector<16x16xf32>
    %2427 = arith.addf %2413, %2426 : vector<16x16xf32>
    %2428 = vector.extract_strided_slice %1964 {offsets = [0, 31], sizes = [16, 1], strides = [1, 1]} : vector<16x32xf32> to vector<16x1xf32>
    %2429 = vector.extract_strided_slice %1970 {offsets = [31, 0], sizes = [1, 16], strides = [1, 1]} : vector<32x16xf32> to vector<1x16xf32>
    %2430 = vector.broadcast %2428 : vector<16x1xf32> to vector<16x16xf32>
    %2431 = vector.broadcast %2429 : vector<1x16xf32> to vector<16x16xf32>
    %2432 = arith.addf %2430, %2431 : vector<16x16xf32>
    %cst_695 = arith.constant 0.000000e+00 : f32
    %2433 = vector.broadcast %cst_695 : f32 to vector<16x16xf32>
    %2434 = arith.cmpf oge, %2432, %2433 : vector<16x16xf32>
    %cst_696 = arith.constant 2.000000e-01 : f32
    %2435 = vector.broadcast %cst_696 : f32 to vector<16x16xf32>
    %2436 = arith.mulf %2435, %2432 : vector<16x16xf32>
    %2437 = arith.select %2434, %2432, %2436 : vector<16x16xi1>, vector<16x16xf32>
    %c1_697 = arith.constant 1 : index
    %c15_698 = arith.constant 15 : index
    %2438 = memref.load %arg21[%c1_697, %c15_698] : memref<2x16xf32, #tpu.memory_space<smem>>
    %2439 = vector.broadcast %2438 : f32 to vector<16x16xf32>
    %2440 = arith.mulf %2439, %2437 : vector<16x16xf32>
    %2441 = arith.addf %2427, %2440 : vector<16x16xf32>
    %2442 = arith.addf %2441, %2 : vector<16x16xf32>
    %cst_699 = arith.constant dense<0xFF800000> : vector<16xf32>
    %2443 = vector.multi_reduction <maximumf>, %2442, %cst_699 [1] : vector<16x16xf32> to vector<16xf32>
    %2444 = vector.shape_cast %2443 : vector<16xf32> to vector<16x1xf32>
    %2445 = vector.broadcast %2444 : vector<16x1xf32> to vector<16x16xf32>
    %2446 = arith.subf %2442, %2445 : vector<16x16xf32>
    %2447 = math.exp %2446 : vector<16x16xf32>
    %cst_700 = arith.constant dense<0.000000e+00> : vector<16xf32>
    %2448 = vector.multi_reduction <add>, %2447, %cst_700 [1] : vector<16x16xf32> to vector<16xf32>
    %2449 = vector.shape_cast %2448 : vector<16xf32> to vector<16x1xf32>
    %cst_701 = arith.constant 9.99999968E-21 : f32
    %2450 = vector.broadcast %cst_701 : f32 to vector<16x1xf32>
    %2451 = arith.maximumf %2449, %2450 : vector<16x1xf32>
    %2452 = tpu.reciprocal %2451 {approx = true} : vector<16x1xf32> -> vector<16x1xf32>
    %2453 = arith.mulf %2451, %2452 : vector<16x1xf32>
    %cst_702 = arith.constant 2.000000e+00 : f32
    %2454 = vector.broadcast %cst_702 : f32 to vector<16x1xf32>
    %2455 = arith.subf %2454, %2453 : vector<16x1xf32>
    %2456 = arith.mulf %2452, %2455 : vector<16x1xf32>
    %2457 = vector.broadcast %2456 : vector<16x1xf32> to vector<16x16xf32>
    %2458 = arith.mulf %2447, %2457 : vector<16x16xf32>
    %2459 = vector.extract_strided_slice %1963 {offsets = [0, 16], sizes = [16, 16], strides = [1, 1]} : vector<16x32xf32> to vector<16x16xf32>
    %cst_703 = arith.constant dense<0.000000e+00> : vector<16x16xf32>
    %2460 = tpu.matmul %2458, %2459, %cst_703 {dimension_numbers = #tpu.dot_dimension_numbers<[1], [0], [0], [1], [0, 0, 1, 1], [], []>} : vector<16x16xf32>, vector<16x16xf32>, vector<16x16xf32> -> vector<16x16xf32>
    %2461 = arith.addf %2216, %2460 : vector<16x16xf32>
    %cst_704 = arith.constant 5.000000e-01 : f32
    %2462 = vector.broadcast %cst_704 : f32 to vector<16x16xf32>
    %2463 = arith.mulf %2461, %2462 : vector<16x16xf32>
    %c0_705 = arith.constant 0 : index
    %c0_706 = arith.constant 0 : index
    %2464 = vector.load %arg22[%c0_705, %c0_706] : memref<1x16xf32, #tpu.memory_space<vmem>>, vector<1x16xf32>
    %2465 = vector.broadcast %2464 : vector<1x16xf32> to vector<16x16xf32>
    %2466 = arith.addf %2463, %2465 : vector<16x16xf32>
    %cst_707 = arith.constant dense<0.000000e+00> : vector<16xf32>
    %2467 = vector.multi_reduction <add>, %2466, %cst_707 [0] : vector<16x16xf32> to vector<16xf32>
    %2468 = vector.shape_cast %2467 : vector<16xf32> to vector<1x16xf32>
    %cst_708 = arith.constant 1.600000e+01 : f32
    %2469 = vector.broadcast %cst_708 : f32 to vector<1x16xf32>
    %2470 = arith.divf %2468, %2469 : vector<1x16xf32>
    %c0_709 = arith.constant 0 : index
    %c0_710 = arith.constant 0 : index
    %2471 = vector.load %arg26[%c0_709, %c0_710] : memref<1x16xf32, #tpu.memory_space<vmem>>, vector<1x16xf32>
    %2472 = arith.mulf %2470, %2471 : vector<1x16xf32>
    %2473 = vector.broadcast %2472 : vector<1x16xf32> to vector<16x16xf32>
    %2474 = arith.subf %2466, %2473 : vector<16x16xf32>
    %2475 = arith.mulf %2474, %2474 : vector<16x16xf32>
    %cst_711 = arith.constant dense<0.000000e+00> : vector<16xf32>
    %2476 = vector.multi_reduction <add>, %2475, %cst_711 [0] : vector<16x16xf32> to vector<16xf32>
    %2477 = vector.shape_cast %2476 : vector<16xf32> to vector<1x16xf32>
    %cst_712 = arith.constant 1.600000e+01 : f32
    %2478 = vector.broadcast %cst_712 : f32 to vector<1x16xf32>
    %2479 = arith.divf %2477, %2478 : vector<1x16xf32>
    %c0_713 = arith.constant 0 : index
    %c0_714 = arith.constant 0 : index
    %2480 = vector.load %arg24[%c0_713, %c0_714] : memref<1x16xf32, #tpu.memory_space<vmem>>, vector<1x16xf32>
    %2481 = vector.broadcast %2480 : vector<1x16xf32> to vector<16x16xf32>
    %2482 = arith.mulf %2481, %2474 : vector<16x16xf32>
    %cst_715 = arith.constant 9.99999974E-6 : f32
    %2483 = vector.broadcast %cst_715 : f32 to vector<1x16xf32>
    %2484 = arith.addf %2479, %2483 : vector<1x16xf32>
    %2485 = math.rsqrt %2484 : vector<1x16xf32>
    %2486 = vector.broadcast %2485 : vector<1x16xf32> to vector<16x16xf32>
    %2487 = arith.mulf %2482, %2486 : vector<16x16xf32>
    %c0_716 = arith.constant 0 : index
    %c0_717 = arith.constant 0 : index
    %2488 = vector.load %arg25[%c0_716, %c0_717] : memref<1x16xf32, #tpu.memory_space<vmem>>, vector<1x16xf32>
    %2489 = vector.broadcast %2488 : vector<1x16xf32> to vector<16x16xf32>
    %2490 = arith.addf %2487, %2489 : vector<16x16xf32>
    %cst_718 = arith.constant 0.000000e+00 : f32
    %2491 = vector.broadcast %cst_718 : f32 to vector<16x16xf32>
    %2492 = arith.maximumf %2490, %2491 : vector<16x16xf32>
    %c0_719 = arith.constant 0 : index
    %c0_720 = arith.constant 0 : index
    %2493 = vector.load %arg30[%c0_719, %c0_720] : memref<16x16xf32, #tpu.memory_space<vmem>>, vector<16x16xf32>
    tpu.vector_store %arg30[%c0_719, %c0_720], %2492 {strides = array<i32>} : memref<16x16xf32, #tpu.memory_space<vmem>>, vector<16x16xf32>,
    return
  }
}

</mosaic_0001>

<llo_original>
// kernel: forward.1
$region0: #{forward.1}
  #allocation0 [shape = 'u32[]', space=smem, size = 0x4, offset = 0x4, fixed_abs, tag = 'smem constant byte address 0x4 - core index']
  #allocation1 [shape = 'u32[144,128]{1,0:T(1,128)}', space=vmem, size = 0x12000, scoped, tag = 'internal scratch']
  %s0 = inlined_call_operand.smem [shape: u32[31], index: -1, kind: input, shape index: {}]
  %s1 = sld [smem:[%s0]]
  %s2 = scalar_lea.smem %s0, 1
  %s3 = sld [smem:[%s2]]
  %s4 = scalar_lea.smem %s0, 2
  %s5 = sld [smem:[%s4]]
  %s6 = scalar_lea.smem %s0, 3
  %s7 = sld [smem:[%s6]]
  %s8 = scalar_lea.smem %s0, 4
  %s9 = sld [smem:[%s8]]
  %s10 = scalar_lea.smem %s0, 5
  %s11 = sld [smem:[%s10]]
  %s12 = scalar_lea.smem %s0, 6
  %s13 = sld [smem:[%s12]]
  %s14 = scalar_lea.smem %s0, 7
  %s15 = sld [smem:[%s14]]
  %s16 = scalar_lea.smem %s0, 8
  %s17 = sld [smem:[%s16]]
  %s18 = scalar_lea.smem %s0, 9
  %s19 = sld [smem:[%s18]]
  %s20 = scalar_lea.smem %s0, 10
  %s21 = sld [smem:[%s20]]
  %s22 = scalar_lea.smem %s0, 11
  %s23 = sld [smem:[%s22]]
  %s24 = scalar_lea.smem %s0, 12
  %s25 = sld [smem:[%s24]]
  %s26 = scalar_lea.smem %s0, 13
  %s27 = sld [smem:[%s26]]
  %s28 = scalar_lea.smem %s0, 14
  %s29 = sld [smem:[%s28]]
  %s30 = scalar_lea.smem %s0, 15
  %s31 = sld [smem:[%s30]]
  %s32 = scalar_lea.smem %s0, 16
  %s33 = sld [smem:[%s32]]
  %s34 = scalar_lea.smem %s0, 17
  %s35 = sld [smem:[%s34]]
  %s36 = scalar_lea.smem %s0, 18
  %s37 = sld [smem:[%s36]]
  %s38 = scalar_lea.smem %s0, 19
  %s39 = sld [smem:[%s38]]
  %s40 = scalar_lea.smem %s0, 20
  %s41 = sld [smem:[%s40]]
  %s42 = scalar_lea.smem %s0, 21
  %s43 = sld [smem:[%s42]]
  %s44 = scalar_lea.smem %s0, 22
  %s45 = sld [smem:[%s44]]
  %s46 = scalar_lea.smem %s0, 23
  %s47 = sld [smem:[%s46]]
  %s48 = scalar_lea.smem %s0, 24
  %s49 = sld [smem:[%s48]]
  %s50 = scalar_lea.smem %s0, 25
  %s51 = sld [smem:[%s50]]
  %s52 = scalar_lea.smem %s0, 26
  %s53 = sld [smem:[%s52]]
  %s54 = scalar_lea.smem %s0, 27
  %s55 = sld [smem:[%s54]]
  %s56 = scalar_lea.smem %s0, 28
  %s57 = sld [smem:[%s56]]
  %s58 = scalar_lea.smem %s0, 29
  %s59 = sld [smem:[%s58]]
  %s60 = scalar_lea.smem %s0, 30
  %s61 = sld [smem:[%s60]]
  %s62 = sld [smem:[#allocation0]]
  $region162: #{forward.1} parent=0
    _
  %s64 = ssub.s32 1, %s62
  %s65 = scalar_select 0, %s64, %s62
  $region1: #{forward.1} parent=0
    #allocation2 [shape = 'u8[2048]{0}', space=vmem, size = 0x800, scoped, tag = 'input window, operand 1, single buffered']
    #allocation3 [shape = 's32[1]{0}', space=sflag, size = 0x4, scoped, tag = 'scoped memory for forward.1']
    #allocation4 [shape = 's32[1]{0}', space=sflag, size = 0x4, scoped, tag = 'scoped memory for forward.1']
    #allocation5 [shape = 's32[1]{0}', space=sflag, size = 0x4, scoped, tag = 'scoped memory for forward.1']
    #allocation6 [shape = 's32[1]{0}', space=sflag, size = 0x4, scoped, tag = 'scoped memory for forward.1']
    #allocation7 [shape = 'u8[2048]{0}', space=vmem, size = 0x800, scoped, tag = 'input window, operand 4, single buffered']
    #allocation8 [shape = 's32[1]{0}', space=sflag, size = 0x4, scoped, tag = 'scoped memory for forward.1']
    #allocation9 [shape = 'u8[512]{0}', space=vmem, size = 0x400, scoped, tag = 'input window, operand 5, single buffered']
    #allocation10 [shape = 'u8[1024]{0}', space=smem, size = 0x400, scoped, tag = 'input window, operand 8, single buffered']
    #allocation11 [shape = 'u8[16384]{0}', space=vmem, size = 0x4000, scoped, tag = 'input window, operand 17, single buffered']
    #allocation12 [shape = 's32[1]{0}', space=sflag, size = 0x4, scoped, tag = 'scoped memory for forward.1']
    #allocation13 [shape = 'u8[32768]{0}', space=vmem, size = 0x8000, scoped, tag = 'input window, operand 19, single buffered']
    #allocation14 [shape = 'u8[32768]{0}', space=vmem, size = 0x8000, scoped, tag = 'input window, operand 20, single buffered']
    #allocation15 [shape = 's32[1]{0}', space=sflag, size = 0x4, scoped, tag = 'scoped memory for forward.1']
    #allocation16 [shape = 'u8[1024]{0}', space=smem, size = 0x400, scoped, tag = 'input window, operand 21, single buffered']
    #allocation17 [shape = 'u8[8192]{0}', space=vmem, size = 0x2000, scoped, tag = 'output window, operand 0, single buffered']
    %66 = vsyncpa [#allocation3], 0
    %67 = vsyncpa [#allocation8], 0
    %68 = vsyncpa [#allocation5], 0
    %69 = vsyncpa [#allocation12], 0
    %70 = vsyncpa [#allocation15], 0
    %71 = vsyncpa [#allocation6], 0
    %72 = vsyncpa [#allocation4], 0
    // Predicated region
    $region2: #{forward.1} parent=1 // pred_check
      _
    $region3: #{forward.1} parent=1 // pred_check_branch
      %74 = sbr.rel (0) target = $region5
    $region4: #{forward.1} parent=1 // pred_region
      _
    $region5: #{forward.1} parent=1 // pred_fallthru
      _
    // Predicated region
    $region6: #{forward.1} parent=1 // pred_check
      _
    $region7: #{forward.1} parent=1 // pred_check_branch
      %76 = sbr.rel (0) target = $region9
    $region8: #{forward.1} parent=1 // pred_region
      %s78 = ssub.s32 64, 64
      %79 = vsyncadd [#allocation3], %s78
      %s81 = sshll.u32 [#allocation2], 4
      %s82 = int_to_ptr.vmem [resolvable:$true] %s81
      %84 = dma.hbm_to_vmem [thread:$0]  %s3, 64, %s82, [#allocation3]
    $region9: #{forward.1} parent=1 // pred_fallthru
      _
    // Predicated region
    $region10: #{forward.1} parent=1 // pred_check
      _
    $region11: #{forward.1} parent=1 // pred_check_branch
      %86 = sbr.rel (0) target = $region13
    $region12: #{forward.1} parent=1 // pred_region
      _
    $region13: #{forward.1} parent=1 // pred_fallthru
      _
    // Predicated region
    $region14: #{forward.1} parent=1 // pred_check
      _
    $region15: #{forward.1} parent=1 // pred_check_branch
      %88 = sbr.rel (0) target = $region17
    $region16: #{forward.1} parent=1 // pred_region
      _
    $region17: #{forward.1} parent=1 // pred_fallthru
      _
    // Predicated region
    $region18: #{forward.1} parent=1 // pred_check
      _
    $region19: #{forward.1} parent=1 // pred_check_branch
      %90 = sbr.rel (0) target = $region21
    $region20: #{forward.1} parent=1 // pred_region
      %s92 = ssub.s32 64, 64
      %93 = vsyncadd [#allocation8], %s92
      %s95 = sshll.u32 [#allocation7], 4
      %s96 = int_to_ptr.vmem [resolvable:$true] %s95
      %98 = dma.hbm_to_vmem [thread:$0]  %s9, 64, %s96, [#allocation8]
    $region21: #{forward.1} parent=1 // pred_fallthru
      _
    // Predicated region
    $region22: #{forward.1} parent=1 // pred_check
      _
    $region23: #{forward.1} parent=1 // pred_check_branch
      %100 = sbr.rel (0) target = $region25
    $region24: #{forward.1} parent=1 // pred_region
      %s102 = ssub.s32 16, 16
      %103 = vsyncadd [#allocation8], %s102
      %s105 = sshll.u32 [#allocation9], 4
      %s106 = int_to_ptr.vmem [resolvable:$true] %s105
      %108 = dma.hbm_to_vmem [thread:$0]  %s11, 16, %s106, [#allocation8]
    $region25: #{forward.1} parent=1 // pred_fallthru
      _
    // Predicated region
    $region26: #{forward.1} parent=1 // pred_check
      _
    $region27: #{forward.1} parent=1 // pred_check_branch
      %110 = sbr.rel (0) target = $region29
    $region28: #{forward.1} parent=1 // pred_region
      _
    $region29: #{forward.1} parent=1 // pred_fallthru
      _
    // Predicated region
    $region30: #{forward.1} parent=1 // pred_check
      _
    $region31: #{forward.1} parent=1 // pred_check_branch
      %112 = sbr.rel (0) target = $region33
    $region32: #{forward.1} parent=1 // pred_region
      _
    $region33: #{forward.1} parent=1 // pred_fallthru
      _
    // Predicated region
    $region34: #{forward.1} parent=1 // pred_check
      _
    $region35: #{forward.1} parent=1 // pred_check_branch
      %114 = sbr.rel (0) target = $region37
    $region36: #{forward.1} parent=1 // pred_region
      %s116 = ssub.s32 32, 32
      %117 = vsyncadd [#allocation5], %s116
      %120 = dma.hbm_to_smem %s17, 32, [#allocation10], [#allocation5]
    $region37: #{forward.1} parent=1 // pred_fallthru
      _
    // Predicated region
    $region38: #{forward.1} parent=1 // pred_check
      _
    $region39: #{forward.1} parent=1 // pred_check_branch
      %122 = sbr.rel (0) target = $region41
    $region40: #{forward.1} parent=1 // pred_region
      _
    $region41: #{forward.1} parent=1 // pred_fallthru
      _
    // Predicated region
    $region42: #{forward.1} parent=1 // pred_check
      _
    $region43: #{forward.1} parent=1 // pred_check_branch
      %124 = sbr.rel (0) target = $region45
    $region44: #{forward.1} parent=1 // pred_region
      _
    $region45: #{forward.1} parent=1 // pred_fallthru
      _
    // Predicated region
    $region46: #{forward.1} parent=1 // pred_check
      _
    $region47: #{forward.1} parent=1 // pred_check_branch
      %126 = sbr.rel (0) target = $region49
    $region48: #{forward.1} parent=1 // pred_region
      _
    $region49: #{forward.1} parent=1 // pred_fallthru
      _
    // Predicated region
    $region50: #{forward.1} parent=1 // pred_check
      _
    $region51: #{forward.1} parent=1 // pred_check_branch
      %128 = sbr.rel (0) target = $region53
    $region52: #{forward.1} parent=1 // pred_region
      _
    $region53: #{forward.1} parent=1 // pred_fallthru
      _
    // Predicated region
    $region54: #{forward.1} parent=1 // pred_check
      _
    $region55: #{forward.1} parent=1 // pred_check_branch
      %130 = sbr.rel (0) target = $region57
    $region56: #{forward.1} parent=1 // pred_region
      _
    $region57: #{forward.1} parent=1 // pred_fallthru
      _
    // Predicated region
    $region58: #{forward.1} parent=1 // pred_check
      _
    $region59: #{forward.1} parent=1 // pred_check_branch
      %132 = sbr.rel (0) target = $region61
    $region60: #{forward.1} parent=1 // pred_region
      _
    $region61: #{forward.1} parent=1 // pred_fallthru
      _
    // Predicated region
    $region62: #{forward.1} parent=1 // pred_check
      _
    $region63: #{forward.1} parent=1 // pred_check_branch
      %134 = sbr.rel (0) target = $region65
    $region64: #{forward.1} parent=1 // pred_region
      _
    $region65: #{forward.1} parent=1 // pred_fallthru
      _
    // Predicated region
    $region66: #{forward.1} parent=1 // pred_check
      _
    $region67: #{forward.1} parent=1 // pred_check_branch
      %136 = sbr.rel (0) target = $region69
    $region68: #{forward.1} parent=1 // pred_region
      _
    $region69: #{forward.1} parent=1 // pred_fallthru
      _
    // Predicated region
    $region70: #{forward.1} parent=1 // pred_check
      _
    $region71: #{forward.1} parent=1 // pred_check_branch
      %138 = sbr.rel (0) target = $region73
    $region72: #{forward.1} parent=1 // pred_region
      %s140 = ssub.s32 512, 512
      %141 = vsyncadd [#allocation12], %s140
      %s142 = sshll.u32 [#allocation11], 4
      %s143 = int_to_ptr.vmem [resolvable:$true] %s142
      %148 = dma.hbm_to_vmem [thread:$0]  %s35, 512, %s143, [#allocation12], 128, 128, 8
    $region73: #{forward.1} parent=1 // pred_fallthru
      _
    // Predicated region
    $region74: #{forward.1} parent=1 // pred_check
      _
    $region75: #{forward.1} parent=1 // pred_check_branch
      %150 = sbr.rel (0) target = $region77
    $region76: #{forward.1} parent=1 // pred_region
      _
    $region77: #{forward.1} parent=1 // pred_fallthru
      _
    // Predicated region
    $region78: #{forward.1} parent=1 // pred_check
      _
    $region79: #{forward.1} parent=1 // pred_check_branch
      %152 = sbr.rel (0) target = $region81
    $region80: #{forward.1} parent=1 // pred_region
      %s154 = ssub.s32 1024, 1024
      %155 = vsyncadd [#allocation12], %s154
      %s156 = sshll.u32 [#allocation13], 4
      %s157 = int_to_ptr.vmem [resolvable:$true] %s156
      %162 = dma.hbm_to_vmem [thread:$0]  %s39, 1024, %s157, [#allocation12], 128, 128, 8
    $region81: #{forward.1} parent=1 // pred_fallthru
      _
    // Predicated region
    $region82: #{forward.1} parent=1 // pred_check
      _
    $region83: #{forward.1} parent=1 // pred_check_branch
      %164 = sbr.rel (0) target = $region85
    $region84: #{forward.1} parent=1 // pred_region
      %s166 = ssub.s32 1024, 1024
      %167 = vsyncadd [#allocation15], %s166
      %s168 = sshll.u32 [#allocation14], 4
      %s169 = int_to_ptr.vmem [resolvable:$true] %s168
      %174 = dma.hbm_to_vmem [thread:$0]  %s41, 1024, %s169, [#allocation15], 128, 128, 8
    $region85: #{forward.1} parent=1 // pred_fallthru
      _
    // Predicated region
    $region86: #{forward.1} parent=1 // pred_check
      _
    $region87: #{forward.1} parent=1 // pred_check_branch
      %176 = sbr.rel (0) target = $region89
    $region88: #{forward.1} parent=1 // pred_region
      %s178 = ssub.s32 32, 32
      %179 = vsyncadd [#allocation6], %s178
      %s181 = sshll.u32 %s43, 4
      %s182 = int_to_ptr.vmem [resolvable:$true] %s181
      %184 = dma.vmem_to_smem %s182, 32, [#allocation16], [#allocation6]
    $region89: #{forward.1} parent=1 // pred_fallthru
      _
    // Predicated region
    $region90: #{forward.1} parent=1 // pred_check
      _
    $region91: #{forward.1} parent=1 // pred_check_branch
      %186 = sbr.rel (0) target = $region93
    $region92: #{forward.1} parent=1 // pred_region
      _
    $region93: #{forward.1} parent=1 // pred_fallthru
      _
    // Predicated region
    $region94: #{forward.1} parent=1 // pred_check
      _
    $region95: #{forward.1} parent=1 // pred_check_branch
      %188 = sbr.rel (0) target = $region97
    $region96: #{forward.1} parent=1 // pred_region
      _
    $region97: #{forward.1} parent=1 // pred_fallthru
      _
    // Predicated region
    $region98: #{forward.1} parent=1 // pred_check
      _
    $region99: #{forward.1} parent=1 // pred_check_branch
      %190 = sbr.rel (0) target = $region101
    $region100: #{forward.1} parent=1 // pred_region
      _
    $region101: #{forward.1} parent=1 // pred_fallthru
      _
    // Predicated region
    $region102: #{forward.1} parent=1 // pred_check
      _
    $region103: #{forward.1} parent=1 // pred_check_branch
      %192 = sbr.rel (0) target = $region105
    $region104: #{forward.1} parent=1 // pred_region
      _
    $region105: #{forward.1} parent=1 // pred_fallthru
      _
    // Predicated region
    $region106: #{forward.1} parent=1 // pred_check
      _
    $region107: #{forward.1} parent=1 // pred_check_branch
      %194 = sbr.rel (0) target = $region109
    $region108: #{forward.1} parent=1 // pred_region
      _
    $region109: #{forward.1} parent=1 // pred_fallthru
      _
    // Predicated region
    $region110: #{forward.1} parent=1 // pred_check
      _
    $region111: #{forward.1} parent=1 // pred_check_branch
      %196 = sbr.rel (0) target = $region113
    $region112: #{forward.1} parent=1 // pred_region
      _
    $region113: #{forward.1} parent=1 // pred_fallthru
      _
    // Predicated region
    $region114: #{forward.1} parent=1 // pred_check
      _
    $region115: #{forward.1} parent=1 // pred_check_branch
      %198 = sbr.rel (0) target = $region117
    $region116: #{forward.1} parent=1 // pred_region
      _
    $region117: #{forward.1} parent=1 // pred_fallthru
      _
    // Predicated region
    $region118: #{forward.1} parent=1 // pred_check
      _
    $region119: #{forward.1} parent=1 // pred_check_branch
      %200 = sbr.rel (0) target = $region121
    $region120: #{forward.1} parent=1 // pred_region
      _
    $region121: #{forward.1} parent=1 // pred_fallthru
      _
    // Predicated region
    $region122: #{forward.1} parent=1 // pred_check
      _
    $region123: #{forward.1} parent=1 // pred_check_branch
      %202 = sbr.rel (0) target = $region125
    $region124: #{forward.1} parent=1 // pred_region
      %203 = dma.done [#allocation3], 64
    $region125: #{forward.1} parent=1 // pred_fallthru
      _
    // Predicated region
    $region126: #{forward.1} parent=1 // pred_check
      _
    $region127: #{forward.1} parent=1 // pred_check_branch
      %205 = sbr.rel (0) target = $region129
    $region128: #{forward.1} parent=1 // pred_region
      %206 = dma.done [#allocation8], 64
    $region129: #{forward.1} parent=1 // pred_fallthru
      _
    // Predicated region
    $region130: #{forward.1} parent=1 // pred_check
      _
    $region131: #{forward.1} parent=1 // pred_check_branch
      %208 = sbr.rel (0) target = $region133
    $region132: #{forward.1} parent=1 // pred_region
      %209 = dma.done [#allocation8], 16
    $region133: #{forward.1} parent=1 // pred_fallthru
      _
    // Predicated region
    $region134: #{forward.1} parent=1 // pred_check
      _
    $region135: #{forward.1} parent=1 // pred_check_branch
      %211 = sbr.rel (0) target = $region137
    $region136: #{forward.1} parent=1 // pred_region
      %212 = dma.done [#allocation5], 32
    $region137: #{forward.1} parent=1 // pred_fallthru
      _
    // Predicated region
    $region138: #{forward.1} parent=1 // pred_check
      _
    $region139: #{forward.1} parent=1 // pred_check_branch
      %214 = sbr.rel (0) target = $region141
    $region140: #{forward.1} parent=1 // pred_region
      %215 = dma.done [#allocation12], 512
    $region141: #{forward.1} parent=1 // pred_fallthru
      _
    // Predicated region
    $region142: #{forward.1} parent=1 // pred_check
      _
    $region143: #{forward.1} parent=1 // pred_check_branch
      %217 = sbr.rel (0) target = $region145
    $region144: #{forward.1} parent=1 // pred_region
      %218 = dma.done [#allocation12], 1024
    $region145: #{forward.1} parent=1 // pred_fallthru
      _
    // Predicated region
    $region146: #{forward.1} parent=1 // pred_check
      _
    $region147: #{forward.1} parent=1 // pred_check_branch
      %220 = sbr.rel (0) target = $region149
    $region148: #{forward.1} parent=1 // pred_region
      %221 = dma.done [#allocation15], 1024
    $region149: #{forward.1} parent=1 // pred_fallthru
      _
    // Predicated region
    $region150: #{forward.1} parent=1 // pred_check
      _
    $region151: #{forward.1} parent=1 // pred_check_branch
      %223 = sbr.rel (0) target = $region153
    $region152: #{forward.1} parent=1 // pred_region
      %224 = dma.done [#allocation6], 32
    $region153: #{forward.1} parent=1 // pred_fallthru
      _
    %225 = sfence
    %v226 = vld [vmem:[%s1] sm:$0xff]
    %v227 = vld [vmem:[%s1 + $0x8] sm:$0xff]
    %v228 = vld [vmem:[#allocation2] sm:$0xf]
    %v229 = vld [vmem:[%s5] sm:$0xff]
    %v230 = vld [vmem:[%s5 + $0x8] sm:$0xff]
    %v231 = vld [vmem:[%s7] sm:$0xff]
    %v232 = vld [vmem:[%s7 + $0x8] sm:$0xff]
    %v233 = vld [vmem:[#allocation7] sm:$0xf]
    %v234 = vld [vmem:[#allocation9] sm:$0x1]
    %v236 = vlaneseq
    %v237 = vshrl.u32 %v236, 7
    %v238 = vsub.s32 0, %v237
    %v239 = vrot.slane %v234, %v238
    %vm241 = vcmask 31744
    %v243 = vsel %vm241, %v226, 0
    %v246 = vsel %vm241, %v227, 0
    %vm248 = vcmask 1043456
    %v250 = vsel %vm248, %v233, 0
    %252 = vmatprep.subr.mxu0 0.0
    %253 = vmatpush1.msra.mxu0 0.0
    %254 = vmatprep.subr.mxu0 0.0
    %255 = vmatpush1.msra.mxu0 0.0
    %256 = vmatprep.subr.mxu0 0.0
    %257 = vmatpush1.msra.mxu0 0.0
    %258 = vmatprep.subr.mxu0 0.0
    %259 = vmatpush1.msra.mxu0 0.0
    %260 = vmatprep.subr.mxu0 0.0
    %261 = vmatpush1.msra.mxu0 0.0
    %262 = vmatprep.subr.mxu0 0.0
    %263 = vmatpush1.msra.mxu0 0.0
    %264 = vmatprep.subr.mxu0 0.0
    %265 = vmatpush1.msra.mxu0 0.0
    %266 = vmatprep.subr.mxu0 0.0
    %267 = vmatpush1.msra.mxu0 0.0
    %268 = vmatprep.subr.mxu0 0.0
    %269 = vmatpush1.msra.mxu0 0.0
    %270 = vmatprep.subr.mxu0 0.0
    %271 = vmatpush1.msra.mxu0 0.0
    %272 = vmatprep.subr.mxu0 0.0
    %273 = vmatpush1.msra.mxu0 0.0
    %274 = vmatprep.subr.mxu0 0.0
    %275 = vmatpush1.msra.mxu0 0.0
    %276 = vmatprep.subr.mxu0 0.0
    %277 = vmatpush1.msra.mxu0 0.0
    %278 = vmatprep.subr.mxu0 0.0
    %279 = vmatpush1.msra.mxu0 0.0
    %280 = vmatprep.subr.mxu0 0.0
    %281 = vmatpush1.msra.mxu0 0.0
    %282 = vmatprep.subr.mxu0 0.0
    %283 = vmatpush1.msra.mxu0 %v250
    %284 = vmatprep.subr.mxu0 0.0
    %285 = vmatpush2.msra.mxu0 0.0
    %286 = vmatprep.subr.mxu0 0.0
    %287 = vmatpush2.msra.mxu0 0.0
    %288 = vmatprep.subr.mxu0 0.0
    %289 = vmatpush2.msra.mxu0 0.0
    %290 = vmatprep.subr.mxu0 0.0
    %291 = vmatpush2.msra.mxu0 0.0
    %292 = vmatprep.subr.mxu0 0.0
    %293 = vmatpush2.msra.mxu0 0.0
    %294 = vmatprep.subr.mxu0 0.0
    %295 = vmatpush2.msra.mxu0 0.0
    %296 = vmatprep.subr.mxu0 0.0
    %297 = vmatpush2.msra.mxu0 0.0
    %298 = vmatprep.subr.mxu0 0.0
    %299 = vmatpush2.msra.mxu0 0.0
    %300 = vmatprep.subr.mxu0 0.0
    %301 = vmatpush2.msra.mxu0 0.0
    %302 = vmatprep.subr.mxu0 0.0
    %303 = vmatpush2.msra.mxu0 0.0
    %304 = vmatprep.subr.mxu0 0.0
    %305 = vmatpush2.msra.mxu0 0.0
    %306 = vmatprep.subr.mxu0 0.0
    %307 = vmatpush2.msra.mxu0 0.0
    %308 = vmatprep.subr.mxu0 0.0
    %309 = vmatpush2.msra.mxu0 0.0
    %310 = vmatprep.subr.mxu0 0.0
    %311 = vmatpush2.msra.mxu0 0.0
    %312 = vmatprep.subr.mxu0 0.0
    %313 = vmatpush2.msra.mxu0 0.0
    %314 = vmatprep.subr.mxu0 0.0
    %315 = vmatpush2.msra.mxu0 0.0
    %316 = vmatprep.mubr.f32.mxu0 0.0
    %317 = vmatmul.mubr.f32.gmra.mxu0 %v243
    %v318 = vpop.f32.mrf.mxu0
    %v319 = vadd.f32 %v239, %v318
    %v320 = vpop.f32.mrf.mxu0
    %321 = vmatprep.mubr.f32.mxu0 0.0
    %322 = vmatmul.mubr.f32.gmra.mxu0 %v246
    %v323 = vpop.f32.mrf.mxu0
    %v324 = vadd.f32 %v239, %v323
    %v325 = vpop.f32.mrf.mxu0
    %326 = vdwg.mxu0
    %v327 = vld [vmem:[%s13] sm:$0xff]
    %v328 = vld [vmem:[%s13 + $0x8] sm:$0xff]
    %v329 = vld [vmem:[%s13 + $0x10] sm:$0xff]
    %v330 = vld [vmem:[%s13 + $0x18] sm:$0xff]
    %v331 = vld [vmem:[%s13 + $0x20] sm:$0xff]
    %v332 = vld [vmem:[%s13 + $0x28] sm:$0xff]
    %v333 = vld [vmem:[%s13 + $0x30] sm:$0xff]
    %v334 = vld [vmem:[%s13 + $0x38] sm:$0xff]
    %v335 = vld [vmem:[%s13 + $0x40] sm:$0xff]
    %v336 = vld [vmem:[%s13 + $0x48] sm:$0xff]
    %v337 = vld [vmem:[%s13 + $0x50] sm:$0xff]
    %v338 = vld [vmem:[%s13 + $0x58] sm:$0xff]
    %v339 = vld [vmem:[%s13 + $0x60] sm:$0xff]
    %v340 = vld [vmem:[%s13 + $0x68] sm:$0xff]
    %v341 = vld [vmem:[%s13 + $0x70] sm:$0xff]
    %v342 = vld [vmem:[%s13 + $0x78] sm:$0xff]
    %v343 = vld [vmem:[%s15] sm:$0xff]
    %v344 = vld [vmem:[%s15 + $0x8] sm:$0xff]
    %v345 = vld [vmem:[%s15 + $0x10] sm:$0xff]
    %v346 = vld [vmem:[%s15 + $0x18] sm:$0xff]
    %v347 = vld [vmem:[%s15 + $0x20] sm:$0xff]
    %v348 = vld [vmem:[%s15 + $0x28] sm:$0xff]
    %v349 = vld [vmem:[%s15 + $0x30] sm:$0xff]
    %v350 = vld [vmem:[%s15 + $0x38] sm:$0xff]
    %v351 = vld [vmem:[%s15 + $0x40] sm:$0xff]
    %v352 = vld [vmem:[%s15 + $0x48] sm:$0xff]
    %v353 = vld [vmem:[%s15 + $0x50] sm:$0xff]
    %v354 = vld [vmem:[%s15 + $0x58] sm:$0xff]
    %v355 = vld [vmem:[%s15 + $0x60] sm:$0xff]
    %v356 = vld [vmem:[%s15 + $0x68] sm:$0xff]
    %v357 = vld [vmem:[%s15 + $0x70] sm:$0xff]
    %v358 = vld [vmem:[%s15 + $0x78] sm:$0xff]
    %360 = vset.pattern.permute.xlu0 0
    %361 = vperm.xlu0 %360, %v343
    %v362 = vpop.permute.xlu0 %361
    %365 = vset.pattern.permute.xlu0 0
    %366 = vperm.xlu0 %365, %v344
    %v367 = vpop.permute.xlu0 %366
    %370 = vset.pattern.permute.xlu0 0
    %371 = vperm.xlu0 %370, %v345
    %v372 = vpop.permute.xlu0 %371
    %375 = vset.pattern.permute.xlu0 0
    %376 = vperm.xlu0 %375, %v346
    %v377 = vpop.permute.xlu0 %376
    %380 = vset.pattern.permute.xlu0 0
    %381 = vperm.xlu0 %380, %v347
    %v382 = vpop.permute.xlu0 %381
    %385 = vset.pattern.permute.xlu0 0
    %386 = vperm.xlu0 %385, %v348
    %v387 = vpop.permute.xlu0 %386
    %390 = vset.pattern.permute.xlu0 0
    %391 = vperm.xlu0 %390, %v349
    %v392 = vpop.permute.xlu0 %391
    %395 = vset.pattern.permute.xlu0 0
    %396 = vperm.xlu0 %395, %v350
    %v397 = vpop.permute.xlu0 %396
    %400 = vset.pattern.permute.xlu0 0
    %401 = vperm.xlu0 %400, %v351
    %v402 = vpop.permute.xlu0 %401
    %405 = vset.pattern.permute.xlu0 0
    %406 = vperm.xlu0 %405, %v352
    %v407 = vpop.permute.xlu0 %406
    %410 = vset.pattern.permute.xlu0 0
    %411 = vperm.xlu0 %410, %v353
    %v412 = vpop.permute.xlu0 %411
    %415 = vset.pattern.permute.xlu0 0
    %416 = vperm.xlu0 %415, %v354
    %v417 = vpop.permute.xlu0 %416
    %420 = vset.pattern.permute.xlu0 0
    %421 = vperm.xlu0 %420, %v355
    %v422 = vpop.permute.xlu0 %421
    %425 = vset.pattern.permute.xlu0 0
    %426 = vperm.xlu0 %425, %v356
    %v427 = vpop.permute.xlu0 %426
    %430 = vset.pattern.permute.xlu0 0
    %431 = vperm.xlu0 %430, %v357
    %v432 = vpop.permute.xlu0 %431
    %435 = vset.pattern.permute.xlu0 0
    %436 = vperm.xlu0 %435, %v358
    %v437 = vpop.permute.xlu0 %436
    %v440 = vsel %vm241, %v327, 0
    %v443 = vsel %vm241, %v328, 0
    %v446 = vsel %vm241, %v329, 0
    %v449 = vsel %vm241, %v330, 0
    %v452 = vsel %vm241, %v331, 0
    %v455 = vsel %vm241, %v332, 0
    %v458 = vsel %vm241, %v333, 0
    %v461 = vsel %vm241, %v334, 0
    %v464 = vsel %vm241, %v335, 0
    %v467 = vsel %vm241, %v336, 0
    %v470 = vsel %vm241, %v337, 0
    %v473 = vsel %vm241, %v338, 0
    %v476 = vsel %vm241, %v339, 0
    %v479 = vsel %vm241, %v340, 0
    %v482 = vsel %vm241, %v341, 0
    %v485 = vsel %vm241, %v342, 0
    %v488 = vsel %vm248, %v228, 0
    %490 = vmatprep.subr.mxu0 0.0
    %491 = vmatpush1.msra.mxu0 0.0
    %492 = vmatprep.subr.mxu0 0.0
    %493 = vmatpush1.msra.mxu0 0.0
    %494 = vmatprep.subr.mxu0 0.0
    %495 = vmatpush1.msra.mxu0 0.0
    %496 = vmatprep.subr.mxu0 0.0
    %497 = vmatpush1.msra.mxu0 0.0
    %498 = vmatprep.subr.mxu0 0.0
    %499 = vmatpush1.msra.mxu0 0.0
    %500 = vmatprep.subr.mxu0 0.0
    %501 = vmatpush1.msra.mxu0 0.0
    %502 = vmatprep.subr.mxu0 0.0
    %503 = vmatpush1.msra.mxu0 0.0
    %504 = vmatprep.subr.mxu0 0.0
    %505 = vmatpush1.msra.mxu0 0.0
    %506 = vmatprep.subr.mxu0 0.0
    %507 = vmatpush1.msra.mxu0 0.0
    %508 = vmatprep.subr.mxu0 0.0
    %509 = vmatpush1.msra.mxu0 0.0
    %510 = vmatprep.subr.mxu0 0.0
    %511 = vmatpush1.msra.mxu0 0.0
    %512 = vmatprep.subr.mxu0 0.0
    %513 = vmatpush1.msra.mxu0 0.0
    %514 = vmatprep.subr.mxu0 0.0
    %515 = vmatpush1.msra.mxu0 0.0
    %516 = vmatprep.subr.mxu0 0.0
    %517 = vmatpush1.msra.mxu0 0.0
    %518 = vmatprep.subr.mxu0 0.0
    %519 = vmatpush1.msra.mxu0 0.0
    %520 = vmatprep.subr.mxu0 0.0
    %521 = vmatpush1.msra.mxu0 %v488
    %522 = vmatprep.subr.mxu0 0.0
    %523 = vmatpush2.msra.mxu0 0.0
    %524 = vmatprep.subr.mxu0 0.0
    %525 = vmatpush2.msra.mxu0 0.0
    %526 = vmatprep.subr.mxu0 0.0
    %527 = vmatpush2.msra.mxu0 0.0
    %528 = vmatprep.subr.mxu0 0.0
    %529 = vmatpush2.msra.mxu0 0.0
    %530 = vmatprep.subr.mxu0 0.0
    %531 = vmatpush2.msra.mxu0 0.0
    %532 = vmatprep.subr.mxu0 0.0
    %533 = vmatpush2.msra.mxu0 0.0
    %534 = vmatprep.subr.mxu0 0.0
    %535 = vmatpush2.msra.mxu0 0.0
    %536 = vmatprep.subr.mxu0 0.0
    %537 = vmatpush2.msra.mxu0 0.0
    %538 = vmatprep.subr.mxu0 0.0
    %539 = vmatpush2.msra.mxu0 0.0
    %540 = vmatprep.subr.mxu0 0.0
    %541 = vmatpush2.msra.mxu0 0.0
    %542 = vmatprep.subr.mxu0 0.0
    %543 = vmatpush2.msra.mxu0 0.0
    %544 = vmatprep.subr.mxu0 0.0
    %545 = vmatpush2.msra.mxu0 0.0
    %546 = vmatprep.subr.mxu0 0.0
    %547 = vmatpush2.msra.mxu0 0.0
    %548 = vmatprep.subr.mxu0 0.0
    %549 = vmatpush2.msra.mxu0 0.0
    %550 = vmatprep.subr.mxu0 0.0
    %551 = vmatpush2.msra.mxu0 0.0
    %552 = vmatprep.subr.mxu0 0.0
    %553 = vmatpush2.msra.mxu0 0.0
    %554 = vmatprep.mubr.f32.mxu0 0.0
    %555 = vmatmul.mubr.f32.gmra.mxu0 %v440
    %v556 = vpop.f32.mrf.mxu0
    %v557 = vadd.f32 %v362, %v556
    %v558 = vpop.f32.mrf.mxu0
    %559 = vmatprep.mubr.f32.mxu0 0.0
    %560 = vmatmul.mubr.f32.gmra.mxu0 %v443
    %v561 = vpop.f32.mrf.mxu0
    %v562 = vadd.f32 %v367, %v561
    %v563 = vpop.f32.mrf.mxu0
    %564 = vmatprep.mubr.f32.mxu0 0.0
    %565 = vmatmul.mubr.f32.gmra.mxu0 %v446
    %v566 = vpop.f32.mrf.mxu0
    %v567 = vadd.f32 %v372, %v566
    %v568 = vpop.f32.mrf.mxu0
    %569 = vmatprep.mubr.f32.mxu0 0.0
    %570 = vmatmul.mubr.f32.gmra.mxu0 %v449
    %v571 = vpop.f32.mrf.mxu0
    %v572 = vadd.f32 %v377, %v571
    %v573 = vpop.f32.mrf.mxu0
    %574 = vmatprep.mubr.f32.mxu0 0.0
    %575 = vmatmul.mubr.f32.gmra.mxu0 %v452
    %v576 = vpop.f32.mrf.mxu0
    %v577 = vadd.f32 %v382, %v576
    %v578 = vpop.f32.mrf.mxu0
    %579 = vmatprep.mubr.f32.mxu0 0.0
    %580 = vmatmul.mubr.f32.gmra.mxu0 %v455
    %v581 = vpop.f32.mrf.mxu0
    %v582 = vadd.f32 %v387, %v581
    %v583 = vpop.f32.mrf.mxu0
    %584 = vmatprep.mubr.f32.mxu0 0.0
    %585 = vmatmul.mubr.f32.gmra.mxu0 %v458
    %v586 = vpop.f32.mrf.mxu0
    %v587 = vadd.f32 %v392, %v586
    %v588 = vpop.f32.mrf.mxu0
    %589 = vmatprep.mubr.f32.mxu0 0.0
    %590 = vmatmul.mubr.f32.gmra.mxu0 %v461
    %v591 = vpop.f32.mrf.mxu0
    %v592 = vadd.f32 %v397, %v591
    %v593 = vpop.f32.mrf.mxu0
    %594 = vmatprep.mubr.f32.mxu0 0.0
    %595 = vmatmul.mubr.f32.gmra.mxu0 %v464
    %v596 = vpop.f32.mrf.mxu0
    %v597 = vadd.f32 %v402, %v596
    %v598 = vpop.f32.mrf.mxu0
    %599 = vmatprep.mubr.f32.mxu0 0.0
    %600 = vmatmul.mubr.f32.gmra.mxu0 %v467
    %v601 = vpop.f32.mrf.mxu0
    %v602 = vadd.f32 %v407, %v601
    %v603 = vpop.f32.mrf.mxu0
    %604 = vmatprep.mubr.f32.mxu0 0.0
    %605 = vmatmul.mubr.f32.gmra.mxu0 %v470
    %v606 = vpop.f32.mrf.mxu0
    %v607 = vadd.f32 %v412, %v606
    %v608 = vpop.f32.mrf.mxu0
    %609 = vmatprep.mubr.f32.mxu0 0.0
    %610 = vmatmul.mubr.f32.gmra.mxu0 %v473
    %v611 = vpop.f32.mrf.mxu0
    %v612 = vadd.f32 %v417, %v611
    %v613 = vpop.f32.mrf.mxu0
    %614 = vmatprep.mubr.f32.mxu0 0.0
    %615 = vmatmul.mubr.f32.gmra.mxu0 %v476
    %v616 = vpop.f32.mrf.mxu0
    %v617 = vadd.f32 %v422, %v616
    %v618 = vpop.f32.mrf.mxu0
    %619 = vmatprep.mubr.f32.mxu0 0.0
    %620 = vmatmul.mubr.f32.gmra.mxu0 %v479
    %v621 = vpop.f32.mrf.mxu0
    %v622 = vadd.f32 %v427, %v621
    %v623 = vpop.f32.mrf.mxu0
    %624 = vmatprep.mubr.f32.mxu0 0.0
    %625 = vmatmul.mubr.f32.gmra.mxu0 %v482
    %v626 = vpop.f32.mrf.mxu0
    %v627 = vadd.f32 %v432, %v626
    %v628 = vpop.f32.mrf.mxu0
    %629 = vmatprep.mubr.f32.mxu0 0.0
    %630 = vmatmul.mubr.f32.gmra.mxu0 %v485
    %v631 = vpop.f32.mrf.mxu0
    %v632 = vadd.f32 %v437, %v631
    %v633 = vpop.f32.mrf.mxu0
    %634 = vdwg.mxu0
    %636 = vset.pattern.permute.xlu0 64
    %637 = vperm.xlu0 %636, %v319
    %v638 = vpop.permute.xlu0 %637
    %641 = vset.pattern.permute.xlu0 64
    %642 = vperm.xlu0 %641, %v324
    %v643 = vpop.permute.xlu0 %642
    %v645 = vlaneseq
    %v646 = vshrl.u32 %v645, 7
    %v647 = vsub.s32 0, %v646
    %v648 = vrot.slane %v557, %v647
    %v649 = vadd.f32 %v638, %v648
    %v650 = vadd.f32 %v643, %v648
    %vm651 = vcmp.ge.f32.partialorder %v649, 0.0
    %vm652 = vcmp.ge.f32.partialorder %v650, 0.0
    %v653 = vmul.f32 %v649, 0.2
    %v654 = vmul.f32 %v650, 0.2
    %v655 = vsel %vm651, %v649, %v653
    %v656 = vsel %vm652, %v650, %v654
    %s657 = sld [smem:[#allocation10]]
    %v658 = vstv %s657
    %v659 = vmul.f32 %v658, %v655
    %v660 = vmul.f32 %v658, %v656
    %v661 = vadd.f32 %v659, 0.0
    %v662 = vadd.f32 %v660, 0.0
    %663 = vset.pattern.permute.xlu0 65
    %664 = vperm.xlu0 %663, %v319
    %v665 = vpop.permute.xlu0 %664
    %667 = vset.pattern.permute.xlu0 65
    %668 = vperm.xlu0 %667, %v324
    %v669 = vpop.permute.xlu0 %668
    %v671 = vlaneseq
    %v672 = vshrl.u32 %v671, 7
    %v673 = vsub.s32 1, %v672
    %v674 = vrot.slane %v557, %v673
    %v675 = vadd.f32 %v665, %v674
    %v676 = vadd.f32 %v669, %v674
    %vm677 = vcmp.ge.f32.partialorder %v675, 0.0
    %vm678 = vcmp.ge.f32.partialorder %v676, 0.0
    %v679 = vmul.f32 %v675, 0.2
    %v680 = vmul.f32 %v676, 0.2
    %v681 = vsel %vm677, %v675, %v679
    %v682 = vsel %vm678, %v676, %v680
    %s683 = sld [smem:[#allocation10 + $0x1]]
    %v684 = vstv %s683
    %v685 = vmul.f32 %v684, %v681
    %v686 = vmul.f32 %v684, %v682
    %v687 = vadd.f32 %v661, %v685
    %v688 = vadd.f32 %v662, %v686
    %689 = vset.pattern.permute.xlu0 66
    %690 = vperm.xlu0 %689, %v319
    %v691 = vpop.permute.xlu0 %690
    %693 = vset.pattern.permute.xlu0 66
    %694 = vperm.xlu0 %693, %v324
    %v695 = vpop.permute.xlu0 %694
    %v697 = vlaneseq
    %v698 = vshrl.u32 %v697, 7
    %v699 = vsub.s32 2, %v698
    %v700 = vrot.slane %v557, %v699
    %v701 = vadd.f32 %v691, %v700
    %v702 = vadd.f32 %v695, %v700
    %vm703 = vcmp.ge.f32.partialorder %v701, 0.0
    %vm704 = vcmp.ge.f32.partialorder %v702, 0.0
    %v705 = vmul.f32 %v701, 0.2
    %v706 = vmul.f32 %v702, 0.2
    %v707 = vsel %vm703, %v701, %v705
    %v708 = vsel %vm704, %v702, %v706
    %s709 = sld [smem:[#allocation10 + $0x2]]
    %v710 = vstv %s709
    %v711 = vmul.f32 %v710, %v707
    %v712 = vmul.f32 %v710, %v708
    %v713 = vadd.f32 %v687, %v711
    %v714 = vadd.f32 %v688, %v712
    %715 = vset.pattern.permute.xlu0 67
    %716 = vperm.xlu0 %715, %v319
    %v717 = vpop.permute.xlu0 %716
    %719 = vset.pattern.permute.xlu0 67
    %720 = vperm.xlu0 %719, %v324
    %v721 = vpop.permute.xlu0 %720
    %v723 = vlaneseq
    %v724 = vshrl.u32 %v723, 7
    %v725 = vsub.s32 3, %v724
    %v726 = vrot.slane %v557, %v725
    %v727 = vadd.f32 %v717, %v726
    %v728 = vadd.f32 %v721, %v726
    %vm729 = vcmp.ge.f32.partialorder %v727, 0.0
    %vm730 = vcmp.ge.f32.partialorder %v728, 0.0
    %v731 = vmul.f32 %v727, 0.2
    %v732 = vmul.f32 %v728, 0.2
    %v733 = vsel %vm729, %v727, %v731
    %v734 = vsel %vm730, %v728, %v732
    %s735 = sld [smem:[#allocation10 + $0x3]]
    %v736 = vstv %s735
    %v737 = vmul.f32 %v736, %v733
    %v738 = vmul.f32 %v736, %v734
    %v739 = vadd.f32 %v713, %v737
    %v740 = vadd.f32 %v714, %v738
    %741 = vset.pattern.permute.xlu0 68
    %742 = vperm.xlu0 %741, %v319
    %v743 = vpop.permute.xlu0 %742
    %745 = vset.pattern.permute.xlu0 68
    %746 = vperm.xlu0 %745, %v324
    %v747 = vpop.permute.xlu0 %746
    %v749 = vlaneseq
    %v750 = vshrl.u32 %v749, 7
    %v751 = vsub.s32 4, %v750
    %v752 = vrot.slane %v557, %v751
    %v753 = vadd.f32 %v743, %v752
    %v754 = vadd.f32 %v747, %v752
    %vm755 = vcmp.ge.f32.partialorder %v753, 0.0
    %vm756 = vcmp.ge.f32.partialorder %v754, 0.0
    %v757 = vmul.f32 %v753, 0.2
    %v758 = vmul.f32 %v754, 0.2
    %v759 = vsel %vm755, %v753, %v757
    %v760 = vsel %vm756, %v754, %v758
    %s761 = sld [smem:[#allocation10 + $0x4]]
    %v762 = vstv %s761
    %v763 = vmul.f32 %v762, %v759
    %v764 = vmul.f32 %v762, %v760
    %v765 = vadd.f32 %v739, %v763
    %v766 = vadd.f32 %v740, %v764
    %767 = vset.pattern.permute.xlu0 69
    %768 = vperm.xlu0 %767, %v319
    %v769 = vpop.permute.xlu0 %768
    %771 = vset.pattern.permute.xlu0 69
    %772 = vperm.xlu0 %771, %v324
    %v773 = vpop.permute.xlu0 %772
    %v775 = vlaneseq
    %v776 = vshrl.u32 %v775, 7
    %v777 = vsub.s32 5, %v776
    %v778 = vrot.slane %v557, %v777
    %v779 = vadd.f32 %v769, %v778
    %v780 = vadd.f32 %v773, %v778
    %vm781 = vcmp.ge.f32.partialorder %v779, 0.0
    %vm782 = vcmp.ge.f32.partialorder %v780, 0.0
    %v783 = vmul.f32 %v779, 0.2
    %v784 = vmul.f32 %v780, 0.2
    %v785 = vsel %vm781, %v779, %v783
    %v786 = vsel %vm782, %v780, %v784
    %s787 = sld [smem:[#allocation10 + $0x5]]
    %v788 = vstv %s787
    %v789 = vmul.f32 %v788, %v785
    %v790 = vmul.f32 %v788, %v786
    %v791 = vadd.f32 %v765, %v789
    %v792 = vadd.f32 %v766, %v790
    %793 = vset.pattern.permute.xlu0 70
    %794 = vperm.xlu0 %793, %v319
    %v795 = vpop.permute.xlu0 %794
    %797 = vset.pattern.permute.xlu0 70
    %798 = vperm.xlu0 %797, %v324
    %v799 = vpop.permute.xlu0 %798
    %v801 = vlaneseq
    %v802 = vshrl.u32 %v801, 7
    %v803 = vsub.s32 6, %v802
    %v804 = vrot.slane %v557, %v803
    %v805 = vadd.f32 %v795, %v804
    %v806 = vadd.f32 %v799, %v804
    %vm807 = vcmp.ge.f32.partialorder %v805, 0.0
    %vm808 = vcmp.ge.f32.partialorder %v806, 0.0
    %v809 = vmul.f32 %v805, 0.2
    %v810 = vmul.f32 %v806, 0.2
    %v811 = vsel %vm807, %v805, %v809
    %v812 = vsel %vm808, %v806, %v810
    %s813 = sld [smem:[#allocation10 + $0x6]]
    %v814 = vstv %s813
    %v815 = vmul.f32 %v814, %v811
    %v816 = vmul.f32 %v814, %v812
    %v817 = vadd.f32 %v791, %v815
    %v818 = vadd.f32 %v792, %v816
    %819 = vset.pattern.permute.xlu0 71
    %820 = vperm.xlu0 %819, %v319
    %v821 = vpop.permute.xlu0 %820
    %823 = vset.pattern.permute.xlu0 71
    %824 = vperm.xlu0 %823, %v324
    %v825 = vpop.permute.xlu0 %824
    %v827 = vlaneseq
    %v828 = vshrl.u32 %v827, 7
    %v829 = vsub.s32 7, %v828
    %v830 = vrot.slane %v557, %v829
    %v831 = vadd.f32 %v821, %v830
    %v832 = vadd.f32 %v825, %v830
    %vm833 = vcmp.ge.f32.partialorder %v831, 0.0
    %vm834 = vcmp.ge.f32.partialorder %v832, 0.0
    %v835 = vmul.f32 %v831, 0.2
    %v836 = vmul.f32 %v832, 0.2
    %v837 = vsel %vm833, %v831, %v835
    %v838 = vsel %vm834, %v832, %v836
    %s839 = sld [smem:[#allocation10 + $0x7]]
    %v840 = vstv %s839
    %v841 = vmul.f32 %v840, %v837
    %v842 = vmul.f32 %v840, %v838
    %v843 = vadd.f32 %v817, %v841
    %v844 = vadd.f32 %v818, %v842
    %845 = vset.pattern.permute.xlu0 72
    %846 = vperm.xlu0 %845, %v319
    %v847 = vpop.permute.xlu0 %846
    %849 = vset.pattern.permute.xlu0 72
    %850 = vperm.xlu0 %849, %v324
    %v851 = vpop.permute.xlu0 %850
    %v853 = vlaneseq
    %v854 = vshrl.u32 %v853, 7
    %v855 = vsub.s32 0, %v854
    %v856 = vrot.slane %v562, %v855
    %v857 = vadd.f32 %v847, %v856
    %v858 = vadd.f32 %v851, %v856
    %vm859 = vcmp.ge.f32.partialorder %v857, 0.0
    %vm860 = vcmp.ge.f32.partialorder %v858, 0.0
    %v861 = vmul.f32 %v857, 0.2
    %v862 = vmul.f32 %v858, 0.2
    %v863 = vsel %vm859, %v857, %v861
    %v864 = vsel %vm860, %v858, %v862
    %s865 = sld [smem:[#allocation10 + $0x8]]
    %v866 = vstv %s865
    %v867 = vmul.f32 %v866, %v863
    %v868 = vmul.f32 %v866, %v864
    %v869 = vadd.f32 %v843, %v867
    %v870 = vadd.f32 %v844, %v868
    %871 = vset.pattern.permute.xlu0 73
    %872 = vperm.xlu0 %871, %v319
    %v873 = vpop.permute.xlu0 %872
    %875 = vset.pattern.permute.xlu0 73
    %876 = vperm.xlu0 %875, %v324
    %v877 = vpop.permute.xlu0 %876
    %v879 = vlaneseq
    %v880 = vshrl.u32 %v879, 7
    %v881 = vsub.s32 1, %v880
    %v882 = vrot.slane %v562, %v881
    %v883 = vadd.f32 %v873, %v882
    %v884 = vadd.f32 %v877, %v882
    %vm885 = vcmp.ge.f32.partialorder %v883, 0.0
    %vm886 = vcmp.ge.f32.partialorder %v884, 0.0
    %v887 = vmul.f32 %v883, 0.2
    %v888 = vmul.f32 %v884, 0.2
    %v889 = vsel %vm885, %v883, %v887
    %v890 = vsel %vm886, %v884, %v888
    %s891 = sld [smem:[#allocation10 + $0x9]]
    %v892 = vstv %s891
    %v893 = vmul.f32 %v892, %v889
    %v894 = vmul.f32 %v892, %v890
    %v895 = vadd.f32 %v869, %v893
    %v896 = vadd.f32 %v870, %v894
    %897 = vset.pattern.permute.xlu0 74
    %898 = vperm.xlu0 %897, %v319
    %v899 = vpop.permute.xlu0 %898
    %901 = vset.pattern.permute.xlu0 74
    %902 = vperm.xlu0 %901, %v324
    %v903 = vpop.permute.xlu0 %902
    %v905 = vlaneseq
    %v906 = vshrl.u32 %v905, 7
    %v907 = vsub.s32 2, %v906
    %v908 = vrot.slane %v562, %v907
    %v909 = vadd.f32 %v899, %v908
    %v910 = vadd.f32 %v903, %v908
    %vm911 = vcmp.ge.f32.partialorder %v909, 0.0
    %vm912 = vcmp.ge.f32.partialorder %v910, 0.0
    %v913 = vmul.f32 %v909, 0.2
    %v914 = vmul.f32 %v910, 0.2
    %v915 = vsel %vm911, %v909, %v913
    %v916 = vsel %vm912, %v910, %v914
    %s917 = sld [smem:[#allocation10 + $0xa]]
    %v918 = vstv %s917
    %v919 = vmul.f32 %v918, %v915
    %v920 = vmul.f32 %v918, %v916
    %v921 = vadd.f32 %v895, %v919
    %v922 = vadd.f32 %v896, %v920
    %923 = vset.pattern.permute.xlu0 75
    %924 = vperm.xlu0 %923, %v319
    %v925 = vpop.permute.xlu0 %924
    %927 = vset.pattern.permute.xlu0 75
    %928 = vperm.xlu0 %927, %v324
    %v929 = vpop.permute.xlu0 %928
    %v931 = vlaneseq
    %v932 = vshrl.u32 %v931, 7
    %v933 = vsub.s32 3, %v932
    %v934 = vrot.slane %v562, %v933
    %v935 = vadd.f32 %v925, %v934
    %v936 = vadd.f32 %v929, %v934
    %vm937 = vcmp.ge.f32.partialorder %v935, 0.0
    %vm938 = vcmp.ge.f32.partialorder %v936, 0.0
    %v939 = vmul.f32 %v935, 0.2
    %v940 = vmul.f32 %v936, 0.2
    %v941 = vsel %vm937, %v935, %v939
    %v942 = vsel %vm938, %v936, %v940
    %s943 = sld [smem:[#allocation10 + $0xb]]
    %v944 = vstv %s943
    %v945 = vmul.f32 %v944, %v941
    %v946 = vmul.f32 %v944, %v942
    %v947 = vadd.f32 %v921, %v945
    %v948 = vadd.f32 %v922, %v946
    %949 = vset.pattern.permute.xlu0 76
    %950 = vperm.xlu0 %949, %v319
    %v951 = vpop.permute.xlu0 %950
    %953 = vset.pattern.permute.xlu0 76
    %954 = vperm.xlu0 %953, %v324
    %v955 = vpop.permute.xlu0 %954
    %v957 = vlaneseq
    %v958 = vshrl.u32 %v957, 7
    %v959 = vsub.s32 4, %v958
    %v960 = vrot.slane %v562, %v959
    %v961 = vadd.f32 %v951, %v960
    %v962 = vadd.f32 %v955, %v960
    %vm963 = vcmp.ge.f32.partialorder %v961, 0.0
    %vm964 = vcmp.ge.f32.partialorder %v962, 0.0
    %v965 = vmul.f32 %v961, 0.2
    %v966 = vmul.f32 %v962, 0.2
    %v967 = vsel %vm963, %v961, %v965
    %v968 = vsel %vm964, %v962, %v966
    %s969 = sld [smem:[#allocation10 + $0xc]]
    %v970 = vstv %s969
    %v971 = vmul.f32 %v970, %v967
    %v972 = vmul.f32 %v970, %v968
    %v973 = vadd.f32 %v947, %v971
    %v974 = vadd.f32 %v948, %v972
    %975 = vset.pattern.permute.xlu0 77
    %976 = vperm.xlu0 %975, %v319
    %v977 = vpop.permute.xlu0 %976
    %979 = vset.pattern.permute.xlu0 77
    %980 = vperm.xlu0 %979, %v324
    %v981 = vpop.permute.xlu0 %980
    %v983 = vlaneseq
    %v984 = vshrl.u32 %v983, 7
    %v985 = vsub.s32 5, %v984
    %v986 = vrot.slane %v562, %v985
    %v987 = vadd.f32 %v977, %v986
    %v988 = vadd.f32 %v981, %v986
    %vm989 = vcmp.ge.f32.partialorder %v987, 0.0
    %vm990 = vcmp.ge.f32.partialorder %v988, 0.0
    %v991 = vmul.f32 %v987, 0.2
    %v992 = vmul.f32 %v988, 0.2
    %v993 = vsel %vm989, %v987, %v991
    %v994 = vsel %vm990, %v988, %v992
    %s995 = sld [smem:[#allocation10 + $0xd]]
    %v996 = vstv %s995
    %v997 = vmul.f32 %v996, %v993
    %v998 = vmul.f32 %v996, %v994
    %v999 = vadd.f32 %v973, %v997
    %v1000 = vadd.f32 %v974, %v998
    %1001 = vset.pattern.permute.xlu0 78
    %1002 = vperm.xlu0 %1001, %v319
    %v1003 = vpop.permute.xlu0 %1002
    %1005 = vset.pattern.permute.xlu0 78
    %1006 = vperm.xlu0 %1005, %v324
    %v1007 = vpop.permute.xlu0 %1006
    %v1009 = vlaneseq
    %v1010 = vshrl.u32 %v1009, 7
    %v1011 = vsub.s32 6, %v1010
    %v1012 = vrot.slane %v562, %v1011
    %v1013 = vadd.f32 %v1003, %v1012
    %v1014 = vadd.f32 %v1007, %v1012
    %vm1015 = vcmp.ge.f32.partialorder %v1013, 0.0
    %vm1016 = vcmp.ge.f32.partialorder %v1014, 0.0
    %v1017 = vmul.f32 %v1013, 0.2
    %v1018 = vmul.f32 %v1014, 0.2
    %v1019 = vsel %vm1015, %v1013, %v1017
    %v1020 = vsel %vm1016, %v1014, %v1018
    %s1021 = sld [smem:[#allocation10 + $0xe]]
    %v1022 = vstv %s1021
    %v1023 = vmul.f32 %v1022, %v1019
    %v1024 = vmul.f32 %v1022, %v1020
    %v1025 = vadd.f32 %v999, %v1023
    %v1026 = vadd.f32 %v1000, %v1024
    %1027 = vset.pattern.permute.xlu0 79
    %1028 = vperm.xlu0 %1027, %v319
    %v1029 = vpop.permute.xlu0 %1028
    %1031 = vset.pattern.permute.xlu0 79
    %1032 = vperm.xlu0 %1031, %v324
    %v1033 = vpop.permute.xlu0 %1032
    %v1035 = vlaneseq
    %v1036 = vshrl.u32 %v1035, 7
    %v1037 = vsub.s32 7, %v1036
    %v1038 = vrot.slane %v562, %v1037
    %v1039 = vadd.f32 %v1029, %v1038
    %v1040 = vadd.f32 %v1033, %v1038
    %vm1041 = vcmp.ge.f32.partialorder %v1039, 0.0
    %vm1042 = vcmp.ge.f32.partialorder %v1040, 0.0
    %v1043 = vmul.f32 %v1039, 0.2
    %v1044 = vmul.f32 %v1040, 0.2
    %v1045 = vsel %vm1041, %v1039, %v1043
    %v1046 = vsel %vm1042, %v1040, %v1044
    %s1047 = sld [smem:[#allocation10 + $0xf]]
    %v1048 = vstv %s1047
    %v1049 = vmul.f32 %v1048, %v1045
    %v1050 = vmul.f32 %v1048, %v1046
    %v1051 = vadd.f32 %v1025, %v1049
    %v1052 = vadd.f32 %v1026, %v1050
    %1053 = vset.pattern.permute.xlu0 80
    %1054 = vperm.xlu0 %1053, %v319
    %v1055 = vpop.permute.xlu0 %1054
    %1057 = vset.pattern.permute.xlu0 80
    %1058 = vperm.xlu0 %1057, %v324
    %v1059 = vpop.permute.xlu0 %1058
    %v1061 = vlaneseq
    %v1062 = vshrl.u32 %v1061, 7
    %v1063 = vsub.s32 0, %v1062
    %v1064 = vrot.slane %v567, %v1063
    %v1065 = vadd.f32 %v1055, %v1064
    %v1066 = vadd.f32 %v1059, %v1064
    %vm1067 = vcmp.ge.f32.partialorder %v1065, 0.0
    %vm1068 = vcmp.ge.f32.partialorder %v1066, 0.0
    %v1069 = vmul.f32 %v1065, 0.2
    %v1070 = vmul.f32 %v1066, 0.2
    %v1071 = vsel %vm1067, %v1065, %v1069
    %v1072 = vsel %vm1068, %v1066, %v1070
    %s1073 = sld [smem:[#allocation10 + $0x10]]
    %v1074 = vstv %s1073
    %v1075 = vmul.f32 %v1074, %v1071
    %v1076 = vmul.f32 %v1074, %v1072
    %v1077 = vadd.f32 %v1051, %v1075
    %v1078 = vadd.f32 %v1052, %v1076
    %1079 = vset.pattern.permute.xlu0 81
    %1080 = vperm.xlu0 %1079, %v319
    %v1081 = vpop.permute.xlu0 %1080
    %1083 = vset.pattern.permute.xlu0 81
    %1084 = vperm.xlu0 %1083, %v324
    %v1085 = vpop.permute.xlu0 %1084
    %v1087 = vlaneseq
    %v1088 = vshrl.u32 %v1087, 7
    %v1089 = vsub.s32 1, %v1088
    %v1090 = vrot.slane %v567, %v1089
    %v1091 = vadd.f32 %v1081, %v1090
    %v1092 = vadd.f32 %v1085, %v1090
    %vm1093 = vcmp.ge.f32.partialorder %v1091, 0.0
    %vm1094 = vcmp.ge.f32.partialorder %v1092, 0.0
    %v1095 = vmul.f32 %v1091, 0.2
    %v1096 = vmul.f32 %v1092, 0.2
    %v1097 = vsel %vm1093, %v1091, %v1095
    %v1098 = vsel %vm1094, %v1092, %v1096
    %s1099 = sld [smem:[#allocation10 + $0x11]]
    %v1100 = vstv %s1099
    %v1101 = vmul.f32 %v1100, %v1097
    %v1102 = vmul.f32 %v1100, %v1098
    %v1103 = vadd.f32 %v1077, %v1101
    %v1104 = vadd.f32 %v1078, %v1102
    %1105 = vset.pattern.permute.xlu0 82
    %1106 = vperm.xlu0 %1105, %v319
    %v1107 = vpop.permute.xlu0 %1106
    %1109 = vset.pattern.permute.xlu0 82
    %1110 = vperm.xlu0 %1109, %v324
    %v1111 = vpop.permute.xlu0 %1110
    %v1113 = vlaneseq
    %v1114 = vshrl.u32 %v1113, 7
    %v1115 = vsub.s32 2, %v1114
    %v1116 = vrot.slane %v567, %v1115
    %v1117 = vadd.f32 %v1107, %v1116
    %v1118 = vadd.f32 %v1111, %v1116
    %vm1119 = vcmp.ge.f32.partialorder %v1117, 0.0
    %vm1120 = vcmp.ge.f32.partialorder %v1118, 0.0
    %v1121 = vmul.f32 %v1117, 0.2
    %v1122 = vmul.f32 %v1118, 0.2
    %v1123 = vsel %vm1119, %v1117, %v1121
    %v1124 = vsel %vm1120, %v1118, %v1122
    %s1125 = sld [smem:[#allocation10 + $0x12]]
    %v1126 = vstv %s1125
    %v1127 = vmul.f32 %v1126, %v1123
    %v1128 = vmul.f32 %v1126, %v1124
    %v1129 = vadd.f32 %v1103, %v1127
    %v1130 = vadd.f32 %v1104, %v1128
    %1131 = vset.pattern.permute.xlu0 83
    %1132 = vperm.xlu0 %1131, %v319
    %v1133 = vpop.permute.xlu0 %1132
    %1135 = vset.pattern.permute.xlu0 83
    %1136 = vperm.xlu0 %1135, %v324
    %v1137 = vpop.permute.xlu0 %1136
    %v1139 = vlaneseq
    %v1140 = vshrl.u32 %v1139, 7
    %v1141 = vsub.s32 3, %v1140
    %v1142 = vrot.slane %v567, %v1141
    %v1143 = vadd.f32 %v1133, %v1142
    %v1144 = vadd.f32 %v1137, %v1142
    %vm1145 = vcmp.ge.f32.partialorder %v1143, 0.0
    %vm1146 = vcmp.ge.f32.partialorder %v1144, 0.0
    %v1147 = vmul.f32 %v1143, 0.2
    %v1148 = vmul.f32 %v1144, 0.2
    %v1149 = vsel %vm1145, %v1143, %v1147
    %v1150 = vsel %vm1146, %v1144, %v1148
    %s1151 = sld [smem:[#allocation10 + $0x13]]
    %v1152 = vstv %s1151
    %v1153 = vmul.f32 %v1152, %v1149
    %v1154 = vmul.f32 %v1152, %v1150
    %v1155 = vadd.f32 %v1129, %v1153
    %v1156 = vadd.f32 %v1130, %v1154
    %1157 = vset.pattern.permute.xlu0 84
    %1158 = vperm.xlu0 %1157, %v319
    %v1159 = vpop.permute.xlu0 %1158
    %1161 = vset.pattern.permute.xlu0 84
    %1162 = vperm.xlu0 %1161, %v324
    %v1163 = vpop.permute.xlu0 %1162
    %v1165 = vlaneseq
    %v1166 = vshrl.u32 %v1165, 7
    %v1167 = vsub.s32 4, %v1166
    %v1168 = vrot.slane %v567, %v1167
    %v1169 = vadd.f32 %v1159, %v1168
    %v1170 = vadd.f32 %v1163, %v1168
    %vm1171 = vcmp.ge.f32.partialorder %v1169, 0.0
    %vm1172 = vcmp.ge.f32.partialorder %v1170, 0.0
    %v1173 = vmul.f32 %v1169, 0.2
    %v1174 = vmul.f32 %v1170, 0.2
    %v1175 = vsel %vm1171, %v1169, %v1173
    %v1176 = vsel %vm1172, %v1170, %v1174
    %s1177 = sld [smem:[#allocation10 + $0x14]]
    %v1178 = vstv %s1177
    %v1179 = vmul.f32 %v1178, %v1175
    %v1180 = vmul.f32 %v1178, %v1176
    %v1181 = vadd.f32 %v1155, %v1179
    %v1182 = vadd.f32 %v1156, %v1180
    %1183 = vset.pattern.permute.xlu0 85
    %1184 = vperm.xlu0 %1183, %v319
    %v1185 = vpop.permute.xlu0 %1184
    %1187 = vset.pattern.permute.xlu0 85
    %1188 = vperm.xlu0 %1187, %v324
    %v1189 = vpop.permute.xlu0 %1188
    %v1191 = vlaneseq
    %v1192 = vshrl.u32 %v1191, 7
    %v1193 = vsub.s32 5, %v1192
    %v1194 = vrot.slane %v567, %v1193
    %v1195 = vadd.f32 %v1185, %v1194
    %v1196 = vadd.f32 %v1189, %v1194
    %vm1197 = vcmp.ge.f32.partialorder %v1195, 0.0
    %vm1198 = vcmp.ge.f32.partialorder %v1196, 0.0
    %v1199 = vmul.f32 %v1195, 0.2
    %v1200 = vmul.f32 %v1196, 0.2
    %v1201 = vsel %vm1197, %v1195, %v1199
    %v1202 = vsel %vm1198, %v1196, %v1200
    %s1203 = sld [smem:[#allocation10 + $0x15]]
    %v1204 = vstv %s1203
    %v1205 = vmul.f32 %v1204, %v1201
    %v1206 = vmul.f32 %v1204, %v1202
    %v1207 = vadd.f32 %v1181, %v1205
    %v1208 = vadd.f32 %v1182, %v1206
    %1209 = vset.pattern.permute.xlu0 86
    %1210 = vperm.xlu0 %1209, %v319
    %v1211 = vpop.permute.xlu0 %1210
    %1213 = vset.pattern.permute.xlu0 86
    %1214 = vperm.xlu0 %1213, %v324
    %v1215 = vpop.permute.xlu0 %1214
    %v1217 = vlaneseq
    %v1218 = vshrl.u32 %v1217, 7
    %v1219 = vsub.s32 6, %v1218
    %v1220 = vrot.slane %v567, %v1219
    %v1221 = vadd.f32 %v1211, %v1220
    %v1222 = vadd.f32 %v1215, %v1220
    %vm1223 = vcmp.ge.f32.partialorder %v1221, 0.0
    %vm1224 = vcmp.ge.f32.partialorder %v1222, 0.0
    %v1225 = vmul.f32 %v1221, 0.2
    %v1226 = vmul.f32 %v1222, 0.2
    %v1227 = vsel %vm1223, %v1221, %v1225
    %v1228 = vsel %vm1224, %v1222, %v1226
    %s1229 = sld [smem:[#allocation10 + $0x16]]
    %v1230 = vstv %s1229
    %v1231 = vmul.f32 %v1230, %v1227
    %v1232 = vmul.f32 %v1230, %v1228
    %v1233 = vadd.f32 %v1207, %v1231
    %v1234 = vadd.f32 %v1208, %v1232
    %1235 = vset.pattern.permute.xlu0 87
    %1236 = vperm.xlu0 %1235, %v319
    %v1237 = vpop.permute.xlu0 %1236
    %1239 = vset.pattern.permute.xlu0 87
    %1240 = vperm.xlu0 %1239, %v324
    %v1241 = vpop.permute.xlu0 %1240
    %v1243 = vlaneseq
    %v1244 = vshrl.u32 %v1243, 7
    %v1245 = vsub.s32 7, %v1244
    %v1246 = vrot.slane %v567, %v1245
    %v1247 = vadd.f32 %v1237, %v1246
    %v1248 = vadd.f32 %v1241, %v1246
    %vm1249 = vcmp.ge.f32.partialorder %v1247, 0.0
    %vm1250 = vcmp.ge.f32.partialorder %v1248, 0.0
    %v1251 = vmul.f32 %v1247, 0.2
    %v1252 = vmul.f32 %v1248, 0.2
    %v1253 = vsel %vm1249, %v1247, %v1251
    %v1254 = vsel %vm1250, %v1248, %v1252
    %s1255 = sld [smem:[#allocation10 + $0x17]]
    %v1256 = vstv %s1255
    %v1257 = vmul.f32 %v1256, %v1253
    %v1258 = vmul.f32 %v1256, %v1254
    %v1259 = vadd.f32 %v1233, %v1257
    %v1260 = vadd.f32 %v1234, %v1258
    %1261 = vset.pattern.permute.xlu0 88
    %1262 = vperm.xlu0 %1261, %v319
    %v1263 = vpop.permute.xlu0 %1262
    %1265 = vset.pattern.permute.xlu0 88
    %1266 = vperm.xlu0 %1265, %v324
    %v1267 = vpop.permute.xlu0 %1266
    %v1269 = vlaneseq
    %v1270 = vshrl.u32 %v1269, 7
    %v1271 = vsub.s32 0, %v1270
    %v1272 = vrot.slane %v572, %v1271
    %v1273 = vadd.f32 %v1263, %v1272
    %v1274 = vadd.f32 %v1267, %v1272
    %vm1275 = vcmp.ge.f32.partialorder %v1273, 0.0
    %vm1276 = vcmp.ge.f32.partialorder %v1274, 0.0
    %v1277 = vmul.f32 %v1273, 0.2
    %v1278 = vmul.f32 %v1274, 0.2
    %v1279 = vsel %vm1275, %v1273, %v1277
    %v1280 = vsel %vm1276, %v1274, %v1278
    %s1281 = sld [smem:[#allocation10 + $0x18]]
    %v1282 = vstv %s1281
    %v1283 = vmul.f32 %v1282, %v1279
    %v1284 = vmul.f32 %v1282, %v1280
    %v1285 = vadd.f32 %v1259, %v1283
    %v1286 = vadd.f32 %v1260, %v1284
    %1287 = vset.pattern.permute.xlu0 89
    %1288 = vperm.xlu0 %1287, %v319
    %v1289 = vpop.permute.xlu0 %1288
    %1291 = vset.pattern.permute.xlu0 89
    %1292 = vperm.xlu0 %1291, %v324
    %v1293 = vpop.permute.xlu0 %1292
    %v1295 = vlaneseq
    %v1296 = vshrl.u32 %v1295, 7
    %v1297 = vsub.s32 1, %v1296
    %v1298 = vrot.slane %v572, %v1297
    %v1299 = vadd.f32 %v1289, %v1298
    %v1300 = vadd.f32 %v1293, %v1298
    %vm1301 = vcmp.ge.f32.partialorder %v1299, 0.0
    %vm1302 = vcmp.ge.f32.partialorder %v1300, 0.0
    %v1303 = vmul.f32 %v1299, 0.2
    %v1304 = vmul.f32 %v1300, 0.2
    %v1305 = vsel %vm1301, %v1299, %v1303
    %v1306 = vsel %vm1302, %v1300, %v1304
    %s1307 = sld [smem:[#allocation10 + $0x19]]
    %v1308 = vstv %s1307
    %v1309 = vmul.f32 %v1308, %v1305
    %v1310 = vmul.f32 %v1308, %v1306
    %v1311 = vadd.f32 %v1285, %v1309
    %v1312 = vadd.f32 %v1286, %v1310
    %1313 = vset.pattern.permute.xlu0 90
    %1314 = vperm.xlu0 %1313, %v319
    %v1315 = vpop.permute.xlu0 %1314
    %1317 = vset.pattern.permute.xlu0 90
    %1318 = vperm.xlu0 %1317, %v324
    %v1319 = vpop.permute.xlu0 %1318
    %v1321 = vlaneseq
    %v1322 = vshrl.u32 %v1321, 7
    %v1323 = vsub.s32 2, %v1322
    %v1324 = vrot.slane %v572, %v1323
    %v1325 = vadd.f32 %v1315, %v1324
    %v1326 = vadd.f32 %v1319, %v1324
    %vm1327 = vcmp.ge.f32.partialorder %v1325, 0.0
    %vm1328 = vcmp.ge.f32.partialorder %v1326, 0.0
    %v1329 = vmul.f32 %v1325, 0.2
    %v1330 = vmul.f32 %v1326, 0.2
    %v1331 = vsel %vm1327, %v1325, %v1329
    %v1332 = vsel %vm1328, %v1326, %v1330
    %s1333 = sld [smem:[#allocation10 + $0x1a]]
    %v1334 = vstv %s1333
    %v1335 = vmul.f32 %v1334, %v1331
    %v1336 = vmul.f32 %v1334, %v1332
    %v1337 = vadd.f32 %v1311, %v1335
    %v1338 = vadd.f32 %v1312, %v1336
    %1339 = vset.pattern.permute.xlu0 91
    %1340 = vperm.xlu0 %1339, %v319
    %v1341 = vpop.permute.xlu0 %1340
    %1343 = vset.pattern.permute.xlu0 91
    %1344 = vperm.xlu0 %1343, %v324
    %v1345 = vpop.permute.xlu0 %1344
    %v1347 = vlaneseq
    %v1348 = vshrl.u32 %v1347, 7
    %v1349 = vsub.s32 3, %v1348
    %v1350 = vrot.slane %v572, %v1349
    %v1351 = vadd.f32 %v1341, %v1350
    %v1352 = vadd.f32 %v1345, %v1350
    %vm1353 = vcmp.ge.f32.partialorder %v1351, 0.0
    %vm1354 = vcmp.ge.f32.partialorder %v1352, 0.0
    %v1355 = vmul.f32 %v1351, 0.2
    %v1356 = vmul.f32 %v1352, 0.2
    %v1357 = vsel %vm1353, %v1351, %v1355
    %v1358 = vsel %vm1354, %v1352, %v1356
    %s1359 = sld [smem:[#allocation10 + $0x1b]]
    %v1360 = vstv %s1359
    %v1361 = vmul.f32 %v1360, %v1357
    %v1362 = vmul.f32 %v1360, %v1358
    %v1363 = vadd.f32 %v1337, %v1361
    %v1364 = vadd.f32 %v1338, %v1362
    %1365 = vset.pattern.permute.xlu0 92
    %1366 = vperm.xlu0 %1365, %v319
    %v1367 = vpop.permute.xlu0 %1366
    %1369 = vset.pattern.permute.xlu0 92
    %1370 = vperm.xlu0 %1369, %v324
    %v1371 = vpop.permute.xlu0 %1370
    %v1373 = vlaneseq
    %v1374 = vshrl.u32 %v1373, 7
    %v1375 = vsub.s32 4, %v1374
    %v1376 = vrot.slane %v572, %v1375
    %v1377 = vadd.f32 %v1367, %v1376
    %v1378 = vadd.f32 %v1371, %v1376
    %vm1379 = vcmp.ge.f32.partialorder %v1377, 0.0
    %vm1380 = vcmp.ge.f32.partialorder %v1378, 0.0
    %v1381 = vmul.f32 %v1377, 0.2
    %v1382 = vmul.f32 %v1378, 0.2
    %v1383 = vsel %vm1379, %v1377, %v1381
    %v1384 = vsel %vm1380, %v1378, %v1382
    %s1385 = sld [smem:[#allocation10 + $0x1c]]
    %v1386 = vstv %s1385
    %v1387 = vmul.f32 %v1386, %v1383
    %v1388 = vmul.f32 %v1386, %v1384
    %v1389 = vadd.f32 %v1363, %v1387
    %v1390 = vadd.f32 %v1364, %v1388
    %1391 = vset.pattern.permute.xlu0 93
    %1392 = vperm.xlu0 %1391, %v319
    %v1393 = vpop.permute.xlu0 %1392
    %1395 = vset.pattern.permute.xlu0 93
    %1396 = vperm.xlu0 %1395, %v324
    %v1397 = vpop.permute.xlu0 %1396
    %v1399 = vlaneseq
    %v1400 = vshrl.u32 %v1399, 7
    %v1401 = vsub.s32 5, %v1400
    %v1402 = vrot.slane %v572, %v1401
    %v1403 = vadd.f32 %v1393, %v1402
    %v1404 = vadd.f32 %v1397, %v1402
    %vm1405 = vcmp.ge.f32.partialorder %v1403, 0.0
    %vm1406 = vcmp.ge.f32.partialorder %v1404, 0.0
    %v1407 = vmul.f32 %v1403, 0.2
    %v1408 = vmul.f32 %v1404, 0.2
    %v1409 = vsel %vm1405, %v1403, %v1407
    %v1410 = vsel %vm1406, %v1404, %v1408
    %s1411 = sld [smem:[#allocation10 + $0x1d]]
    %v1412 = vstv %s1411
    %v1413 = vmul.f32 %v1412, %v1409
    %v1414 = vmul.f32 %v1412, %v1410
    %v1415 = vadd.f32 %v1389, %v1413
    %v1416 = vadd.f32 %v1390, %v1414
    %1417 = vset.pattern.permute.xlu0 94
    %1418 = vperm.xlu0 %1417, %v319
    %v1419 = vpop.permute.xlu0 %1418
    %1421 = vset.pattern.permute.xlu0 94
    %1422 = vperm.xlu0 %1421, %v324
    %v1423 = vpop.permute.xlu0 %1422
    %v1425 = vlaneseq
    %v1426 = vshrl.u32 %v1425, 7
    %v1427 = vsub.s32 6, %v1426
    %v1428 = vrot.slane %v572, %v1427
    %v1429 = vadd.f32 %v1419, %v1428
    %v1430 = vadd.f32 %v1423, %v1428
    %vm1431 = vcmp.ge.f32.partialorder %v1429, 0.0
    %vm1432 = vcmp.ge.f32.partialorder %v1430, 0.0
    %v1433 = vmul.f32 %v1429, 0.2
    %v1434 = vmul.f32 %v1430, 0.2
    %v1435 = vsel %vm1431, %v1429, %v1433
    %v1436 = vsel %vm1432, %v1430, %v1434
    %s1437 = sld [smem:[#allocation10 + $0x1e]]
    %v1438 = vstv %s1437
    %v1439 = vmul.f32 %v1438, %v1435
    %v1440 = vmul.f32 %v1438, %v1436
    %v1441 = vadd.f32 %v1415, %v1439
    %v1442 = vadd.f32 %v1416, %v1440
    %1443 = vset.pattern.permute.xlu0 95
    %1444 = vperm.xlu0 %1443, %v319
    %v1445 = vpop.permute.xlu0 %1444
    %1447 = vset.pattern.permute.xlu0 95
    %1448 = vperm.xlu0 %1447, %v324
    %v1449 = vpop.permute.xlu0 %1448
    %v1451 = vlaneseq
    %v1452 = vshrl.u32 %v1451, 7
    %v1453 = vsub.s32 7, %v1452
    %v1454 = vrot.slane %v572, %v1453
    %v1455 = vadd.f32 %v1445, %v1454
    %v1456 = vadd.f32 %v1449, %v1454
    %vm1457 = vcmp.ge.f32.partialorder %v1455, 0.0
    %vm1458 = vcmp.ge.f32.partialorder %v1456, 0.0
    %v1459 = vmul.f32 %v1455, 0.2
    %v1460 = vmul.f32 %v1456, 0.2
    %v1461 = vsel %vm1457, %v1455, %v1459
    %v1462 = vsel %vm1458, %v1456, %v1460
    %s1463 = sld [smem:[#allocation10 + $0x1f]]
    %v1464 = vstv %s1463
    %v1465 = vmul.f32 %v1464, %v1461
    %v1466 = vmul.f32 %v1464, %v1462
    %v1467 = vadd.f32 %v1441, %v1465
    %v1468 = vadd.f32 %v1442, %v1466
    %v1469 = vadd.f32 %v1467, %v229
    %v1470 = vadd.f32 %v1468, %v230
    %vm1471 = vcmask 130048
    %v1472 = vsel %vm1471, %v1469, -inf
    %1473 = vmax.xlane.f32.xlu0 %v1472
    %v1474 = vpop.xlane.xlu0 %1473
    %v1475 = vsel %vm1471, %v1470, -inf
    %1476 = vmax.xlane.f32.xlu0 %v1475
    %v1477 = vpop.xlane.xlu0 %1476
    %v1478 = vsub.f32 %v1469, %v1474
    %v1479 = vsub.f32 %v1470, %v1477
    %v1480 = vmul.f32 %v1478, 1.442695
    %v1481 = vpow.pop %v1480
    %v1482 = vmul.f32 %v1479, 1.442695
    %v1483 = vpow.pop %v1482
    %v1484 = vsel %vm1471, %v1481, 0.0
    %1485 = vadd.xlane.f32.xlu0 %v1484
    %v1486 = vpop.xlane.xlu0 %1485
    %v1487 = vsel %vm1471, %v1483, 0.0
    %1488 = vadd.xlane.f32.xlu0 %v1487
    %v1489 = vpop.xlane.xlu0 %1488
    %v1490 = vmax.f32 %v1486, 1e-20
    %v1491 = vmax.f32 %v1489, 1e-20
    %v1492 = vrcp.pop %v1490
    %v1493 = vrcp.pop %v1491
    %v1494 = vmul.f32 %v1490, %v1492
    %v1495 = vmul.f32 %v1491, %v1493
    %v1496 = vsub.f32 2.0, %v1494
    %v1497 = vsub.f32 2.0, %v1495
    %v1498 = vmul.f32 %v1492, %v1496
    %v1499 = vmul.f32 %v1493, %v1497
    %v1500 = vmul.f32 %v1481, %v1498
    %v1501 = vmul.f32 %v1483, %v1499
    %1502 = vset.pattern.permute.xlu0 0
    %1503 = vperm.xlu0 %1502, %v319
    %v1504 = vpop.permute.xlu0 %1503
    %1506 = vset.pattern.permute.xlu0 0
    %1507 = vperm.xlu0 %1506, %v324
    %v1508 = vpop.permute.xlu0 %1507
    %v1510 = vlaneseq
    %v1511 = vshrl.u32 %v1510, 7
    %v1512 = vsub.s32 0, %v1511
    %v1513 = vrot.slane %v597, %v1512
    %v1514 = vadd.f32 %v1504, %v1513
    %v1515 = vadd.f32 %v1508, %v1513
    %vm1516 = vcmp.ge.f32.partialorder %v1514, 0.0
    %vm1517 = vcmp.ge.f32.partialorder %v1515, 0.0
    %v1518 = vmul.f32 %v1514, 0.2
    %v1519 = vmul.f32 %v1515, 0.2
    %v1520 = vsel %vm1516, %v1514, %v1518
    %v1521 = vsel %vm1517, %v1515, %v1519
    %v1522 = vmul.f32 %v658, %v1520
    %v1523 = vmul.f32 %v658, %v1521
    %v1524 = vadd.f32 %v1522, 0.0
    %v1525 = vadd.f32 %v1523, 0.0
    %1526 = vset.pattern.permute.xlu0 1
    %1527 = vperm.xlu0 %1526, %v319
    %v1528 = vpop.permute.xlu0 %1527
    %1530 = vset.pattern.permute.xlu0 1
    %1531 = vperm.xlu0 %1530, %v324
    %v1532 = vpop.permute.xlu0 %1531
    %v1534 = vlaneseq
    %v1535 = vshrl.u32 %v1534, 7
    %v1536 = vsub.s32 1, %v1535
    %v1537 = vrot.slane %v597, %v1536
    %v1538 = vadd.f32 %v1528, %v1537
    %v1539 = vadd.f32 %v1532, %v1537
    %vm1540 = vcmp.ge.f32.partialorder %v1538, 0.0
    %vm1541 = vcmp.ge.f32.partialorder %v1539, 0.0
    %v1542 = vmul.f32 %v1538, 0.2
    %v1543 = vmul.f32 %v1539, 0.2
    %v1544 = vsel %vm1540, %v1538, %v1542
    %v1545 = vsel %vm1541, %v1539, %v1543
    %v1546 = vmul.f32 %v684, %v1544
    %v1547 = vmul.f32 %v684, %v1545
    %v1548 = vadd.f32 %v1524, %v1546
    %v1549 = vadd.f32 %v1525, %v1547
    %1550 = vset.pattern.permute.xlu0 2
    %1551 = vperm.xlu0 %1550, %v319
    %v1552 = vpop.permute.xlu0 %1551
    %1554 = vset.pattern.permute.xlu0 2
    %1555 = vperm.xlu0 %1554, %v324
    %v1556 = vpop.permute.xlu0 %1555
    %v1558 = vlaneseq
    %v1559 = vshrl.u32 %v1558, 7
    %v1560 = vsub.s32 2, %v1559
    %v1561 = vrot.slane %v597, %v1560
    %v1562 = vadd.f32 %v1552, %v1561
    %v1563 = vadd.f32 %v1556, %v1561
    %vm1564 = vcmp.ge.f32.partialorder %v1562, 0.0
    %vm1565 = vcmp.ge.f32.partialorder %v1563, 0.0
    %v1566 = vmul.f32 %v1562, 0.2
    %v1567 = vmul.f32 %v1563, 0.2
    %v1568 = vsel %vm1564, %v1562, %v1566
    %v1569 = vsel %vm1565, %v1563, %v1567
    %v1570 = vmul.f32 %v710, %v1568
    %v1571 = vmul.f32 %v710, %v1569
    %v1572 = vadd.f32 %v1548, %v1570
    %v1573 = vadd.f32 %v1549, %v1571
    %1574 = vset.pattern.permute.xlu0 3
    %1575 = vperm.xlu0 %1574, %v319
    %v1576 = vpop.permute.xlu0 %1575
    %1578 = vset.pattern.permute.xlu0 3
    %1579 = vperm.xlu0 %1578, %v324
    %v1580 = vpop.permute.xlu0 %1579
    %v1582 = vlaneseq
    %v1583 = vshrl.u32 %v1582, 7
    %v1584 = vsub.s32 3, %v1583
    %v1585 = vrot.slane %v597, %v1584
    %v1586 = vadd.f32 %v1576, %v1585
    %v1587 = vadd.f32 %v1580, %v1585
    %vm1588 = vcmp.ge.f32.partialorder %v1586, 0.0
    %vm1589 = vcmp.ge.f32.partialorder %v1587, 0.0
    %v1590 = vmul.f32 %v1586, 0.2
    %v1591 = vmul.f32 %v1587, 0.2
    %v1592 = vsel %vm1588, %v1586, %v1590
    %v1593 = vsel %vm1589, %v1587, %v1591
    %v1594 = vmul.f32 %v736, %v1592
    %v1595 = vmul.f32 %v736, %v1593
    %v1596 = vadd.f32 %v1572, %v1594
    %v1597 = vadd.f32 %v1573, %v1595
    %1598 = vset.pattern.permute.xlu0 4
    %1599 = vperm.xlu0 %1598, %v319
    %v1600 = vpop.permute.xlu0 %1599
    %1602 = vset.pattern.permute.xlu0 4
    %1603 = vperm.xlu0 %1602, %v324
    %v1604 = vpop.permute.xlu0 %1603
    %v1606 = vlaneseq
    %v1607 = vshrl.u32 %v1606, 7
    %v1608 = vsub.s32 4, %v1607
    %v1609 = vrot.slane %v597, %v1608
    %v1610 = vadd.f32 %v1600, %v1609
    %v1611 = vadd.f32 %v1604, %v1609
    %vm1612 = vcmp.ge.f32.partialorder %v1610, 0.0
    %vm1613 = vcmp.ge.f32.partialorder %v1611, 0.0
    %v1614 = vmul.f32 %v1610, 0.2
    %v1615 = vmul.f32 %v1611, 0.2
    %v1616 = vsel %vm1612, %v1610, %v1614
    %v1617 = vsel %vm1613, %v1611, %v1615
    %v1618 = vmul.f32 %v762, %v1616
    %v1619 = vmul.f32 %v762, %v1617
    %v1620 = vadd.f32 %v1596, %v1618
    %v1621 = vadd.f32 %v1597, %v1619
    %1622 = vset.pattern.permute.xlu0 5
    %1623 = vperm.xlu0 %1622, %v319
    %v1624 = vpop.permute.xlu0 %1623
    %1626 = vset.pattern.permute.xlu0 5
    %1627 = vperm.xlu0 %1626, %v324
    %v1628 = vpop.permute.xlu0 %1627
    %v1630 = vlaneseq
    %v1631 = vshrl.u32 %v1630, 7
    %v1632 = vsub.s32 5, %v1631
    %v1633 = vrot.slane %v597, %v1632
    %v1634 = vadd.f32 %v1624, %v1633
    %v1635 = vadd.f32 %v1628, %v1633
    %vm1636 = vcmp.ge.f32.partialorder %v1634, 0.0
    %vm1637 = vcmp.ge.f32.partialorder %v1635, 0.0
    %v1638 = vmul.f32 %v1634, 0.2
    %v1639 = vmul.f32 %v1635, 0.2
    %v1640 = vsel %vm1636, %v1634, %v1638
    %v1641 = vsel %vm1637, %v1635, %v1639
    %v1642 = vmul.f32 %v788, %v1640
    %v1643 = vmul.f32 %v788, %v1641
    %v1644 = vadd.f32 %v1620, %v1642
    %v1645 = vadd.f32 %v1621, %v1643
    %1646 = vset.pattern.permute.xlu0 6
    %1647 = vperm.xlu0 %1646, %v319
    %v1648 = vpop.permute.xlu0 %1647
    %1650 = vset.pattern.permute.xlu0 6
    %1651 = vperm.xlu0 %1650, %v324
    %v1652 = vpop.permute.xlu0 %1651
    %v1654 = vlaneseq
    %v1655 = vshrl.u32 %v1654, 7
    %v1656 = vsub.s32 6, %v1655
    %v1657 = vrot.slane %v597, %v1656
    %v1658 = vadd.f32 %v1648, %v1657
    %v1659 = vadd.f32 %v1652, %v1657
    %vm1660 = vcmp.ge.f32.partialorder %v1658, 0.0
    %vm1661 = vcmp.ge.f32.partialorder %v1659, 0.0
    %v1662 = vmul.f32 %v1658, 0.2
    %v1663 = vmul.f32 %v1659, 0.2
    %v1664 = vsel %vm1660, %v1658, %v1662
    %v1665 = vsel %vm1661, %v1659, %v1663
    %v1666 = vmul.f32 %v814, %v1664
    %v1667 = vmul.f32 %v814, %v1665
    %v1668 = vadd.f32 %v1644, %v1666
    %v1669 = vadd.f32 %v1645, %v1667
    %1670 = vset.pattern.permute.xlu0 7
    %1671 = vperm.xlu0 %1670, %v319
    %v1672 = vpop.permute.xlu0 %1671
    %1674 = vset.pattern.permute.xlu0 7
    %1675 = vperm.xlu0 %1674, %v324
    %v1676 = vpop.permute.xlu0 %1675
    %v1678 = vlaneseq
    %v1679 = vshrl.u32 %v1678, 7
    %v1680 = vsub.s32 7, %v1679
    %v1681 = vrot.slane %v597, %v1680
    %v1682 = vadd.f32 %v1672, %v1681
    %v1683 = vadd.f32 %v1676, %v1681
    %vm1684 = vcmp.ge.f32.partialorder %v1682, 0.0
    %vm1685 = vcmp.ge.f32.partialorder %v1683, 0.0
    %v1686 = vmul.f32 %v1682, 0.2
    %v1687 = vmul.f32 %v1683, 0.2
    %v1688 = vsel %vm1684, %v1682, %v1686
    %v1689 = vsel %vm1685, %v1683, %v1687
    %v1690 = vmul.f32 %v840, %v1688
    %v1691 = vmul.f32 %v840, %v1689
    %v1692 = vadd.f32 %v1668, %v1690
    %v1693 = vadd.f32 %v1669, %v1691
    %1694 = vset.pattern.permute.xlu0 8
    %1695 = vperm.xlu0 %1694, %v319
    %v1696 = vpop.permute.xlu0 %1695
    %1698 = vset.pattern.permute.xlu0 8
    %1699 = vperm.xlu0 %1698, %v324
    %v1700 = vpop.permute.xlu0 %1699
    %v1702 = vlaneseq
    %v1703 = vshrl.u32 %v1702, 7
    %v1704 = vsub.s32 0, %v1703
    %v1705 = vrot.slane %v602, %v1704
    %v1706 = vadd.f32 %v1696, %v1705
    %v1707 = vadd.f32 %v1700, %v1705
    %vm1708 = vcmp.ge.f32.partialorder %v1706, 0.0
    %vm1709 = vcmp.ge.f32.partialorder %v1707, 0.0
    %v1710 = vmul.f32 %v1706, 0.2
    %v1711 = vmul.f32 %v1707, 0.2
    %v1712 = vsel %vm1708, %v1706, %v1710
    %v1713 = vsel %vm1709, %v1707, %v1711
    %v1714 = vmul.f32 %v866, %v1712
    %v1715 = vmul.f32 %v866, %v1713
    %v1716 = vadd.f32 %v1692, %v1714
    %v1717 = vadd.f32 %v1693, %v1715
    %1718 = vset.pattern.permute.xlu0 9
    %1719 = vperm.xlu0 %1718, %v319
    %v1720 = vpop.permute.xlu0 %1719
    %1722 = vset.pattern.permute.xlu0 9
    %1723 = vperm.xlu0 %1722, %v324
    %v1724 = vpop.permute.xlu0 %1723
    %v1726 = vlaneseq
    %v1727 = vshrl.u32 %v1726, 7
    %v1728 = vsub.s32 1, %v1727
    %v1729 = vrot.slane %v602, %v1728
    %v1730 = vadd.f32 %v1720, %v1729
    %v1731 = vadd.f32 %v1724, %v1729
    %vm1732 = vcmp.ge.f32.partialorder %v1730, 0.0
    %vm1733 = vcmp.ge.f32.partialorder %v1731, 0.0
    %v1734 = vmul.f32 %v1730, 0.2
    %v1735 = vmul.f32 %v1731, 0.2
    %v1736 = vsel %vm1732, %v1730, %v1734
    %v1737 = vsel %vm1733, %v1731, %v1735
    %v1738 = vmul.f32 %v892, %v1736
    %v1739 = vmul.f32 %v892, %v1737
    %v1740 = vadd.f32 %v1716, %v1738
    %v1741 = vadd.f32 %v1717, %v1739
    %1742 = vset.pattern.permute.xlu0 10
    %1743 = vperm.xlu0 %1742, %v319
    %v1744 = vpop.permute.xlu0 %1743
    %1746 = vset.pattern.permute.xlu0 10
    %1747 = vperm.xlu0 %1746, %v324
    %v1748 = vpop.permute.xlu0 %1747
    %v1750 = vlaneseq
    %v1751 = vshrl.u32 %v1750, 7
    %v1752 = vsub.s32 2, %v1751
    %v1753 = vrot.slane %v602, %v1752
    %v1754 = vadd.f32 %v1744, %v1753
    %v1755 = vadd.f32 %v1748, %v1753
    %vm1756 = vcmp.ge.f32.partialorder %v1754, 0.0
    %vm1757 = vcmp.ge.f32.partialorder %v1755, 0.0
    %v1758 = vmul.f32 %v1754, 0.2
    %v1759 = vmul.f32 %v1755, 0.2
    %v1760 = vsel %vm1756, %v1754, %v1758
    %v1761 = vsel %vm1757, %v1755, %v1759
    %v1762 = vmul.f32 %v918, %v1760
    %v1763 = vmul.f32 %v918, %v1761
    %v1764 = vadd.f32 %v1740, %v1762
    %v1765 = vadd.f32 %v1741, %v1763
    %1766 = vset.pattern.permute.xlu0 11
    %1767 = vperm.xlu0 %1766, %v319
    %v1768 = vpop.permute.xlu0 %1767
    %1770 = vset.pattern.permute.xlu0 11
    %1771 = vperm.xlu0 %1770, %v324
    %v1772 = vpop.permute.xlu0 %1771
    %v1774 = vlaneseq
    %v1775 = vshrl.u32 %v1774, 7
    %v1776 = vsub.s32 3, %v1775
    %v1777 = vrot.slane %v602, %v1776
    %v1778 = vadd.f32 %v1768, %v1777
    %v1779 = vadd.f32 %v1772, %v1777
    %vm1780 = vcmp.ge.f32.partialorder %v1778, 0.0
    %vm1781 = vcmp.ge.f32.partialorder %v1779, 0.0
    %v1782 = vmul.f32 %v1778, 0.2
    %v1783 = vmul.f32 %v1779, 0.2
    %v1784 = vsel %vm1780, %v1778, %v1782
    %v1785 = vsel %vm1781, %v1779, %v1783
    %v1786 = vmul.f32 %v944, %v1784
    %v1787 = vmul.f32 %v944, %v1785
    %v1788 = vadd.f32 %v1764, %v1786
    %v1789 = vadd.f32 %v1765, %v1787
    %1790 = vset.pattern.permute.xlu0 12
    %1791 = vperm.xlu0 %1790, %v319
    %v1792 = vpop.permute.xlu0 %1791
    %1794 = vset.pattern.permute.xlu0 12
    %1795 = vperm.xlu0 %1794, %v324
    %v1796 = vpop.permute.xlu0 %1795
    %v1798 = vlaneseq
    %v1799 = vshrl.u32 %v1798, 7
    %v1800 = vsub.s32 4, %v1799
    %v1801 = vrot.slane %v602, %v1800
    %v1802 = vadd.f32 %v1792, %v1801
    %v1803 = vadd.f32 %v1796, %v1801
    %vm1804 = vcmp.ge.f32.partialorder %v1802, 0.0
    %vm1805 = vcmp.ge.f32.partialorder %v1803, 0.0
    %v1806 = vmul.f32 %v1802, 0.2
    %v1807 = vmul.f32 %v1803, 0.2
    %v1808 = vsel %vm1804, %v1802, %v1806
    %v1809 = vsel %vm1805, %v1803, %v1807
    %v1810 = vmul.f32 %v970, %v1808
    %v1811 = vmul.f32 %v970, %v1809
    %v1812 = vadd.f32 %v1788, %v1810
    %v1813 = vadd.f32 %v1789, %v1811
    %1814 = vset.pattern.permute.xlu0 13
    %1815 = vperm.xlu0 %1814, %v319
    %v1816 = vpop.permute.xlu0 %1815
    %1818 = vset.pattern.permute.xlu0 13
    %1819 = vperm.xlu0 %1818, %v324
    %v1820 = vpop.permute.xlu0 %1819
    %v1822 = vlaneseq
    %v1823 = vshrl.u32 %v1822, 7
    %v1824 = vsub.s32 5, %v1823
    %v1825 = vrot.slane %v602, %v1824
    %v1826 = vadd.f32 %v1816, %v1825
    %v1827 = vadd.f32 %v1820, %v1825
    %vm1828 = vcmp.ge.f32.partialorder %v1826, 0.0
    %vm1829 = vcmp.ge.f32.partialorder %v1827, 0.0
    %v1830 = vmul.f32 %v1826, 0.2
    %v1831 = vmul.f32 %v1827, 0.2
    %v1832 = vsel %vm1828, %v1826, %v1830
    %v1833 = vsel %vm1829, %v1827, %v1831
    %v1834 = vmul.f32 %v996, %v1832
    %v1835 = vmul.f32 %v996, %v1833
    %v1836 = vadd.f32 %v1812, %v1834
    %v1837 = vadd.f32 %v1813, %v1835
    %1838 = vset.pattern.permute.xlu0 14
    %1839 = vperm.xlu0 %1838, %v319
    %v1840 = vpop.permute.xlu0 %1839
    %1842 = vset.pattern.permute.xlu0 14
    %1843 = vperm.xlu0 %1842, %v324
    %v1844 = vpop.permute.xlu0 %1843
    %v1846 = vlaneseq
    %v1847 = vshrl.u32 %v1846, 7
    %v1848 = vsub.s32 6, %v1847
    %v1849 = vrot.slane %v602, %v1848
    %v1850 = vadd.f32 %v1840, %v1849
    %v1851 = vadd.f32 %v1844, %v1849
    %vm1852 = vcmp.ge.f32.partialorder %v1850, 0.0
    %vm1853 = vcmp.ge.f32.partialorder %v1851, 0.0
    %v1854 = vmul.f32 %v1850, 0.2
    %v1855 = vmul.f32 %v1851, 0.2
    %v1856 = vsel %vm1852, %v1850, %v1854
    %v1857 = vsel %vm1853, %v1851, %v1855
    %v1858 = vmul.f32 %v1022, %v1856
    %v1859 = vmul.f32 %v1022, %v1857
    %v1860 = vadd.f32 %v1836, %v1858
    %v1861 = vadd.f32 %v1837, %v1859
    %1862 = vset.pattern.permute.xlu0 15
    %1863 = vperm.xlu0 %1862, %v319
    %v1864 = vpop.permute.xlu0 %1863
    %1866 = vset.pattern.permute.xlu0 15
    %1867 = vperm.xlu0 %1866, %v324
    %v1868 = vpop.permute.xlu0 %1867
    %v1870 = vlaneseq
    %v1871 = vshrl.u32 %v1870, 7
    %v1872 = vsub.s32 7, %v1871
    %v1873 = vrot.slane %v602, %v1872
    %v1874 = vadd.f32 %v1864, %v1873
    %v1875 = vadd.f32 %v1868, %v1873
    %vm1876 = vcmp.ge.f32.partialorder %v1874, 0.0
    %vm1877 = vcmp.ge.f32.partialorder %v1875, 0.0
    %v1878 = vmul.f32 %v1874, 0.2
    %v1879 = vmul.f32 %v1875, 0.2
    %v1880 = vsel %vm1876, %v1874, %v1878
    %v1881 = vsel %vm1877, %v1875, %v1879
    %v1882 = vmul.f32 %v1048, %v1880
    %v1883 = vmul.f32 %v1048, %v1881
    %v1884 = vadd.f32 %v1860, %v1882
    %v1885 = vadd.f32 %v1861, %v1883
    %1886 = vset.pattern.permute.xlu0 16
    %1887 = vperm.xlu0 %1886, %v319
    %v1888 = vpop.permute.xlu0 %1887
    %1890 = vset.pattern.permute.xlu0 16
    %1891 = vperm.xlu0 %1890, %v324
    %v1892 = vpop.permute.xlu0 %1891
    %v1894 = vlaneseq
    %v1895 = vshrl.u32 %v1894, 7
    %v1896 = vsub.s32 0, %v1895
    %v1897 = vrot.slane %v607, %v1896
    %v1898 = vadd.f32 %v1888, %v1897
    %v1899 = vadd.f32 %v1892, %v1897
    %vm1900 = vcmp.ge.f32.partialorder %v1898, 0.0
    %vm1901 = vcmp.ge.f32.partialorder %v1899, 0.0
    %v1902 = vmul.f32 %v1898, 0.2
    %v1903 = vmul.f32 %v1899, 0.2
    %v1904 = vsel %vm1900, %v1898, %v1902
    %v1905 = vsel %vm1901, %v1899, %v1903
    %v1906 = vmul.f32 %v1074, %v1904
    %v1907 = vmul.f32 %v1074, %v1905
    %v1908 = vadd.f32 %v1884, %v1906
    %v1909 = vadd.f32 %v1885, %v1907
    %1910 = vset.pattern.permute.xlu0 17
    %1911 = vperm.xlu0 %1910, %v319
    %v1912 = vpop.permute.xlu0 %1911
    %1914 = vset.pattern.permute.xlu0 17
    %1915 = vperm.xlu0 %1914, %v324
    %v1916 = vpop.permute.xlu0 %1915
    %v1918 = vlaneseq
    %v1919 = vshrl.u32 %v1918, 7
    %v1920 = vsub.s32 1, %v1919
    %v1921 = vrot.slane %v607, %v1920
    %v1922 = vadd.f32 %v1912, %v1921
    %v1923 = vadd.f32 %v1916, %v1921
    %vm1924 = vcmp.ge.f32.partialorder %v1922, 0.0
    %vm1925 = vcmp.ge.f32.partialorder %v1923, 0.0
    %v1926 = vmul.f32 %v1922, 0.2
    %v1927 = vmul.f32 %v1923, 0.2
    %v1928 = vsel %vm1924, %v1922, %v1926
    %v1929 = vsel %vm1925, %v1923, %v1927
    %v1930 = vmul.f32 %v1100, %v1928
    %v1931 = vmul.f32 %v1100, %v1929
    %v1932 = vadd.f32 %v1908, %v1930
    %v1933 = vadd.f32 %v1909, %v1931
    %1934 = vset.pattern.permute.xlu0 18
    %1935 = vperm.xlu0 %1934, %v319
    %v1936 = vpop.permute.xlu0 %1935
    %1938 = vset.pattern.permute.xlu0 18
    %1939 = vperm.xlu0 %1938, %v324
    %v1940 = vpop.permute.xlu0 %1939
    %v1942 = vlaneseq
    %v1943 = vshrl.u32 %v1942, 7
    %v1944 = vsub.s32 2, %v1943
    %v1945 = vrot.slane %v607, %v1944
    %v1946 = vadd.f32 %v1936, %v1945
    %v1947 = vadd.f32 %v1940, %v1945
    %vm1948 = vcmp.ge.f32.partialorder %v1946, 0.0
    %vm1949 = vcmp.ge.f32.partialorder %v1947, 0.0
    %v1950 = vmul.f32 %v1946, 0.2
    %v1951 = vmul.f32 %v1947, 0.2
    %v1952 = vsel %vm1948, %v1946, %v1950
    %v1953 = vsel %vm1949, %v1947, %v1951
    %v1954 = vmul.f32 %v1126, %v1952
    %v1955 = vmul.f32 %v1126, %v1953
    %v1956 = vadd.f32 %v1932, %v1954
    %v1957 = vadd.f32 %v1933, %v1955
    %1958 = vset.pattern.permute.xlu0 19
    %1959 = vperm.xlu0 %1958, %v319
    %v1960 = vpop.permute.xlu0 %1959
    %1962 = vset.pattern.permute.xlu0 19
    %1963 = vperm.xlu0 %1962, %v324
    %v1964 = vpop.permute.xlu0 %1963
    %v1966 = vlaneseq
    %v1967 = vshrl.u32 %v1966, 7
    %v1968 = vsub.s32 3, %v1967
    %v1969 = vrot.slane %v607, %v1968
    %v1970 = vadd.f32 %v1960, %v1969
    %v1971 = vadd.f32 %v1964, %v1969
    %vm1972 = vcmp.ge.f32.partialorder %v1970, 0.0
    %vm1973 = vcmp.ge.f32.partialorder %v1971, 0.0
    %v1974 = vmul.f32 %v1970, 0.2
    %v1975 = vmul.f32 %v1971, 0.2
    %v1976 = vsel %vm1972, %v1970, %v1974
    %v1977 = vsel %vm1973, %v1971, %v1975
    %v1978 = vmul.f32 %v1152, %v1976
    %v1979 = vmul.f32 %v1152, %v1977
    %v1980 = vadd.f32 %v1956, %v1978
    %v1981 = vadd.f32 %v1957, %v1979
    %1982 = vset.pattern.permute.xlu0 20
    %1983 = vperm.xlu0 %1982, %v319
    %v1984 = vpop.permute.xlu0 %1983
    %1986 = vset.pattern.permute.xlu0 20
    %1987 = vperm.xlu0 %1986, %v324
    %v1988 = vpop.permute.xlu0 %1987
    %v1990 = vlaneseq
    %v1991 = vshrl.u32 %v1990, 7
    %v1992 = vsub.s32 4, %v1991
    %v1993 = vrot.slane %v607, %v1992
    %v1994 = vadd.f32 %v1984, %v1993
    %v1995 = vadd.f32 %v1988, %v1993
    %vm1996 = vcmp.ge.f32.partialorder %v1994, 0.0
    %vm1997 = vcmp.ge.f32.partialorder %v1995, 0.0
    %v1998 = vmul.f32 %v1994, 0.2
    %v1999 = vmul.f32 %v1995, 0.2
    %v2000 = vsel %vm1996, %v1994, %v1998
    %v2001 = vsel %vm1997, %v1995, %v1999
    %v2002 = vmul.f32 %v1178, %v2000
    %v2003 = vmul.f32 %v1178, %v2001
    %v2004 = vadd.f32 %v1980, %v2002
    %v2005 = vadd.f32 %v1981, %v2003
    %2006 = vset.pattern.permute.xlu0 21
    %2007 = vperm.xlu0 %2006, %v319
    %v2008 = vpop.permute.xlu0 %2007
    %2010 = vset.pattern.permute.xlu0 21
    %2011 = vperm.xlu0 %2010, %v324
    %v2012 = vpop.permute.xlu0 %2011
    %v2014 = vlaneseq
    %v2015 = vshrl.u32 %v2014, 7
    %v2016 = vsub.s32 5, %v2015
    %v2017 = vrot.slane %v607, %v2016
    %v2018 = vadd.f32 %v2008, %v2017
    %v2019 = vadd.f32 %v2012, %v2017
    %vm2020 = vcmp.ge.f32.partialorder %v2018, 0.0
    %vm2021 = vcmp.ge.f32.partialorder %v2019, 0.0
    %v2022 = vmul.f32 %v2018, 0.2
    %v2023 = vmul.f32 %v2019, 0.2
    %v2024 = vsel %vm2020, %v2018, %v2022
    %v2025 = vsel %vm2021, %v2019, %v2023
    %v2026 = vmul.f32 %v1204, %v2024
    %v2027 = vmul.f32 %v1204, %v2025
    %v2028 = vadd.f32 %v2004, %v2026
    %v2029 = vadd.f32 %v2005, %v2027
    %2030 = vset.pattern.permute.xlu0 22
    %2031 = vperm.xlu0 %2030, %v319
    %v2032 = vpop.permute.xlu0 %2031
    %2034 = vset.pattern.permute.xlu0 22
    %2035 = vperm.xlu0 %2034, %v324
    %v2036 = vpop.permute.xlu0 %2035
    %v2038 = vlaneseq
    %v2039 = vshrl.u32 %v2038, 7
    %v2040 = vsub.s32 6, %v2039
    %v2041 = vrot.slane %v607, %v2040
    %v2042 = vadd.f32 %v2032, %v2041
    %v2043 = vadd.f32 %v2036, %v2041
    %vm2044 = vcmp.ge.f32.partialorder %v2042, 0.0
    %vm2045 = vcmp.ge.f32.partialorder %v2043, 0.0
    %v2046 = vmul.f32 %v2042, 0.2
    %v2047 = vmul.f32 %v2043, 0.2
    %v2048 = vsel %vm2044, %v2042, %v2046
    %v2049 = vsel %vm2045, %v2043, %v2047
    %v2050 = vmul.f32 %v1230, %v2048
    %v2051 = vmul.f32 %v1230, %v2049
    %v2052 = vadd.f32 %v2028, %v2050
    %v2053 = vadd.f32 %v2029, %v2051
    %2054 = vset.pattern.permute.xlu0 23
    %2055 = vperm.xlu0 %2054, %v319
    %v2056 = vpop.permute.xlu0 %2055
    %2058 = vset.pattern.permute.xlu0 23
    %2059 = vperm.xlu0 %2058, %v324
    %v2060 = vpop.permute.xlu0 %2059
    %v2062 = vlaneseq
    %v2063 = vshrl.u32 %v2062, 7
    %v2064 = vsub.s32 7, %v2063
    %v2065 = vrot.slane %v607, %v2064
    %v2066 = vadd.f32 %v2056, %v2065
    %v2067 = vadd.f32 %v2060, %v2065
    %vm2068 = vcmp.ge.f32.partialorder %v2066, 0.0
    %vm2069 = vcmp.ge.f32.partialorder %v2067, 0.0
    %v2070 = vmul.f32 %v2066, 0.2
    %v2071 = vmul.f32 %v2067, 0.2
    %v2072 = vsel %vm2068, %v2066, %v2070
    %v2073 = vsel %vm2069, %v2067, %v2071
    %v2074 = vmul.f32 %v1256, %v2072
    %v2075 = vmul.f32 %v1256, %v2073
    %v2076 = vadd.f32 %v2052, %v2074
    %v2077 = vadd.f32 %v2053, %v2075
    %2078 = vset.pattern.permute.xlu0 24
    %2079 = vperm.xlu0 %2078, %v319
    %v2080 = vpop.permute.xlu0 %2079
    %2082 = vset.pattern.permute.xlu0 24
    %2083 = vperm.xlu0 %2082, %v324
    %v2084 = vpop.permute.xlu0 %2083
    %v2086 = vlaneseq
    %v2087 = vshrl.u32 %v2086, 7
    %v2088 = vsub.s32 0, %v2087
    %v2089 = vrot.slane %v612, %v2088
    %v2090 = vadd.f32 %v2080, %v2089
    %v2091 = vadd.f32 %v2084, %v2089
    %vm2092 = vcmp.ge.f32.partialorder %v2090, 0.0
    %vm2093 = vcmp.ge.f32.partialorder %v2091, 0.0
    %v2094 = vmul.f32 %v2090, 0.2
    %v2095 = vmul.f32 %v2091, 0.2
    %v2096 = vsel %vm2092, %v2090, %v2094
    %v2097 = vsel %vm2093, %v2091, %v2095
    %v2098 = vmul.f32 %v1282, %v2096
    %v2099 = vmul.f32 %v1282, %v2097
    %v2100 = vadd.f32 %v2076, %v2098
    %v2101 = vadd.f32 %v2077, %v2099
    %2102 = vset.pattern.permute.xlu0 25
    %2103 = vperm.xlu0 %2102, %v319
    %v2104 = vpop.permute.xlu0 %2103
    %2106 = vset.pattern.permute.xlu0 25
    %2107 = vperm.xlu0 %2106, %v324
    %v2108 = vpop.permute.xlu0 %2107
    %v2110 = vlaneseq
    %v2111 = vshrl.u32 %v2110, 7
    %v2112 = vsub.s32 1, %v2111
    %v2113 = vrot.slane %v612, %v2112
    %v2114 = vadd.f32 %v2104, %v2113
    %v2115 = vadd.f32 %v2108, %v2113
    %vm2116 = vcmp.ge.f32.partialorder %v2114, 0.0
    %vm2117 = vcmp.ge.f32.partialorder %v2115, 0.0
    %v2118 = vmul.f32 %v2114, 0.2
    %v2119 = vmul.f32 %v2115, 0.2
    %v2120 = vsel %vm2116, %v2114, %v2118
    %v2121 = vsel %vm2117, %v2115, %v2119
    %v2122 = vmul.f32 %v1308, %v2120
    %v2123 = vmul.f32 %v1308, %v2121
    %v2124 = vadd.f32 %v2100, %v2122
    %v2125 = vadd.f32 %v2101, %v2123
    %2126 = vset.pattern.permute.xlu0 26
    %2127 = vperm.xlu0 %2126, %v319
    %v2128 = vpop.permute.xlu0 %2127
    %2130 = vset.pattern.permute.xlu0 26
    %2131 = vperm.xlu0 %2130, %v324
    %v2132 = vpop.permute.xlu0 %2131
    %v2134 = vlaneseq
    %v2135 = vshrl.u32 %v2134, 7
    %v2136 = vsub.s32 2, %v2135
    %v2137 = vrot.slane %v612, %v2136
    %v2138 = vadd.f32 %v2128, %v2137
    %v2139 = vadd.f32 %v2132, %v2137
    %vm2140 = vcmp.ge.f32.partialorder %v2138, 0.0
    %vm2141 = vcmp.ge.f32.partialorder %v2139, 0.0
    %v2142 = vmul.f32 %v2138, 0.2
    %v2143 = vmul.f32 %v2139, 0.2
    %v2144 = vsel %vm2140, %v2138, %v2142
    %v2145 = vsel %vm2141, %v2139, %v2143
    %v2146 = vmul.f32 %v1334, %v2144
    %v2147 = vmul.f32 %v1334, %v2145
    %v2148 = vadd.f32 %v2124, %v2146
    %v2149 = vadd.f32 %v2125, %v2147
    %2150 = vset.pattern.permute.xlu0 27
    %2151 = vperm.xlu0 %2150, %v319
    %v2152 = vpop.permute.xlu0 %2151
    %2154 = vset.pattern.permute.xlu0 27
    %2155 = vperm.xlu0 %2154, %v324
    %v2156 = vpop.permute.xlu0 %2155
    %v2158 = vlaneseq
    %v2159 = vshrl.u32 %v2158, 7
    %v2160 = vsub.s32 3, %v2159
    %v2161 = vrot.slane %v612, %v2160
    %v2162 = vadd.f32 %v2152, %v2161
    %v2163 = vadd.f32 %v2156, %v2161
    %vm2164 = vcmp.ge.f32.partialorder %v2162, 0.0
    %vm2165 = vcmp.ge.f32.partialorder %v2163, 0.0
    %v2166 = vmul.f32 %v2162, 0.2
    %v2167 = vmul.f32 %v2163, 0.2
    %v2168 = vsel %vm2164, %v2162, %v2166
    %v2169 = vsel %vm2165, %v2163, %v2167
    %v2170 = vmul.f32 %v1360, %v2168
    %v2171 = vmul.f32 %v1360, %v2169
    %v2172 = vadd.f32 %v2148, %v2170
    %v2173 = vadd.f32 %v2149, %v2171
    %2174 = vset.pattern.permute.xlu0 28
    %2175 = vperm.xlu0 %2174, %v319
    %v2176 = vpop.permute.xlu0 %2175
    %2178 = vset.pattern.permute.xlu0 28
    %2179 = vperm.xlu0 %2178, %v324
    %v2180 = vpop.permute.xlu0 %2179
    %v2182 = vlaneseq
    %v2183 = vshrl.u32 %v2182, 7
    %v2184 = vsub.s32 4, %v2183
    %v2185 = vrot.slane %v612, %v2184
    %v2186 = vadd.f32 %v2176, %v2185
    %v2187 = vadd.f32 %v2180, %v2185
    %vm2188 = vcmp.ge.f32.partialorder %v2186, 0.0
    %vm2189 = vcmp.ge.f32.partialorder %v2187, 0.0
    %v2190 = vmul.f32 %v2186, 0.2
    %v2191 = vmul.f32 %v2187, 0.2
    %v2192 = vsel %vm2188, %v2186, %v2190
    %v2193 = vsel %vm2189, %v2187, %v2191
    %v2194 = vmul.f32 %v1386, %v2192
    %v2195 = vmul.f32 %v1386, %v2193
    %v2196 = vadd.f32 %v2172, %v2194
    %v2197 = vadd.f32 %v2173, %v2195
    %2198 = vset.pattern.permute.xlu0 29
    %2199 = vperm.xlu0 %2198, %v319
    %v2200 = vpop.permute.xlu0 %2199
    %2202 = vset.pattern.permute.xlu0 29
    %2203 = vperm.xlu0 %2202, %v324
    %v2204 = vpop.permute.xlu0 %2203
    %v2206 = vlaneseq
    %v2207 = vshrl.u32 %v2206, 7
    %v2208 = vsub.s32 5, %v2207
    %v2209 = vrot.slane %v612, %v2208
    %v2210 = vadd.f32 %v2200, %v2209
    %v2211 = vadd.f32 %v2204, %v2209
    %vm2212 = vcmp.ge.f32.partialorder %v2210, 0.0
    %vm2213 = vcmp.ge.f32.partialorder %v2211, 0.0
    %v2214 = vmul.f32 %v2210, 0.2
    %v2215 = vmul.f32 %v2211, 0.2
    %v2216 = vsel %vm2212, %v2210, %v2214
    %v2217 = vsel %vm2213, %v2211, %v2215
    %v2218 = vmul.f32 %v1412, %v2216
    %v2219 = vmul.f32 %v1412, %v2217
    %v2220 = vadd.f32 %v2196, %v2218
    %v2221 = vadd.f32 %v2197, %v2219
    %2222 = vset.pattern.permute.xlu0 30
    %2223 = vperm.xlu0 %2222, %v319
    %v2224 = vpop.permute.xlu0 %2223
    %2226 = vset.pattern.permute.xlu0 30
    %2227 = vperm.xlu0 %2226, %v324
    %v2228 = vpop.permute.xlu0 %2227
    %v2230 = vlaneseq
    %v2231 = vshrl.u32 %v2230, 7
    %v2232 = vsub.s32 6, %v2231
    %v2233 = vrot.slane %v612, %v2232
    %v2234 = vadd.f32 %v2224, %v2233
    %v2235 = vadd.f32 %v2228, %v2233
    %vm2236 = vcmp.ge.f32.partialorder %v2234, 0.0
    %vm2237 = vcmp.ge.f32.partialorder %v2235, 0.0
    %v2238 = vmul.f32 %v2234, 0.2
    %v2239 = vmul.f32 %v2235, 0.2
    %v2240 = vsel %vm2236, %v2234, %v2238
    %v2241 = vsel %vm2237, %v2235, %v2239
    %v2242 = vmul.f32 %v1438, %v2240
    %v2243 = vmul.f32 %v1438, %v2241
    %v2244 = vadd.f32 %v2220, %v2242
    %v2245 = vadd.f32 %v2221, %v2243
    %2246 = vset.pattern.permute.xlu0 31
    %2247 = vperm.xlu0 %2246, %v319
    %v2248 = vpop.permute.xlu0 %2247
    %2250 = vset.pattern.permute.xlu0 31
    %2251 = vperm.xlu0 %2250, %v324
    %v2252 = vpop.permute.xlu0 %2251
    %v2254 = vlaneseq
    %v2255 = vshrl.u32 %v2254, 7
    %v2256 = vsub.s32 7, %v2255
    %v2257 = vrot.slane %v612, %v2256
    %v2258 = vadd.f32 %v2248, %v2257
    %v2259 = vadd.f32 %v2252, %v2257
    %vm2260 = vcmp.ge.f32.partialorder %v2258, 0.0
    %vm2261 = vcmp.ge.f32.partialorder %v2259, 0.0
    %v2262 = vmul.f32 %v2258, 0.2
    %v2263 = vmul.f32 %v2259, 0.2
    %v2264 = vsel %vm2260, %v2258, %v2262
    %v2265 = vsel %vm2261, %v2259, %v2263
    %v2266 = vmul.f32 %v1464, %v2264
    %v2267 = vmul.f32 %v1464, %v2265
    %v2268 = vadd.f32 %v2244, %v2266
    %v2269 = vadd.f32 %v2245, %v2267
    %v2270 = vadd.f32 %v2268, %v231
    %v2271 = vadd.f32 %v2269, %v232
    %v2272 = vsel %vm1471, %v2270, -inf
    %v2273 = vsel %vm1471, %v2271, -inf
    %v2274 = vmax.f32 %v2272, %v2273
    %v2275 = vrot.slane %v2274, 4
    %v2276 = vmax.f32 %v2274, %v2275
    %v2277 = vrot.slane %v2276, 2
    %v2278 = vmax.f32 %v2276, %v2277
    %v2279 = vrot.slane %v2278, 1
    %v2280 = vmax.f32 %v2278, %v2279
    %v2281 = vsub.f32 %v2270, %v2280
    %v2282 = vsub.f32 %v2271, %v2280
    %v2283 = vmul.f32 %v2281, 1.442695
    %v2284 = vpow.pop %v2283
    %v2285 = vmul.f32 %v2282, 1.442695
    %v2286 = vpow.pop %v2285
    %v2287 = vsel %vm1471, %v2284, 0.0
    %v2288 = vsel %vm1471, %v2286, 0.0
    %v2289 = vadd.f32 %v2287, %v2288
    %v2290 = vrot.slane %v2289, 4
    %v2291 = vadd.f32 %v2289, %v2290
    %v2292 = vrot.slane %v2291, 2
    %v2293 = vadd.f32 %v2291, %v2292
    %v2294 = vrot.slane %v2293, 1
    %v2295 = vadd.f32 %v2293, %v2294
    %v2296 = vmax.f32 %v2295, 1e-20
    %v2297 = vrcp.pop %v2296
    %v2298 = vmul.f32 %v2296, %v2297
    %v2299 = vsub.f32 2.0, %v2298
    %v2300 = vmul.f32 %v2297, %v2299
    %v2301 = vmul.f32 %v2284, %v2300
    %v2302 = vmul.f32 %v2286, %v2300
    %2303 = vset.pattern.permute.xlu0 96
    %2304 = vperm.xlu0 %2303, %v319
    %v2305 = vpop.permute.xlu0 %2304
    %2307 = vset.pattern.permute.xlu0 96
    %2308 = vperm.xlu0 %2307, %v324
    %v2309 = vpop.permute.xlu0 %2308
    %v2311 = vlaneseq
    %v2312 = vshrl.u32 %v2311, 7
    %v2313 = vsub.s32 0, %v2312
    %v2314 = vrot.slane %v577, %v2313
    %v2315 = vadd.f32 %v2305, %v2314
    %v2316 = vadd.f32 %v2309, %v2314
    %vm2317 = vcmp.ge.f32.partialorder %v2315, 0.0
    %vm2318 = vcmp.ge.f32.partialorder %v2316, 0.0
    %v2319 = vmul.f32 %v2315, 0.2
    %v2320 = vmul.f32 %v2316, 0.2
    %v2321 = vsel %vm2317, %v2315, %v2319
    %v2322 = vsel %vm2318, %v2316, %v2320
    %s2323 = sld [smem:[#allocation10 + $0x80]]
    %v2324 = vstv %s2323
    %v2325 = vmul.f32 %v2324, %v2321
    %v2326 = vmul.f32 %v2324, %v2322
    %v2327 = vadd.f32 %v2325, 0.0
    %v2328 = vadd.f32 %v2326, 0.0
    %2329 = vset.pattern.permute.xlu0 97
    %2330 = vperm.xlu0 %2329, %v319
    %v2331 = vpop.permute.xlu0 %2330
    %2333 = vset.pattern.permute.xlu0 97
    %2334 = vperm.xlu0 %2333, %v324
    %v2335 = vpop.permute.xlu0 %2334
    %v2337 = vlaneseq
    %v2338 = vshrl.u32 %v2337, 7
    %v2339 = vsub.s32 1, %v2338
    %v2340 = vrot.slane %v577, %v2339
    %v2341 = vadd.f32 %v2331, %v2340
    %v2342 = vadd.f32 %v2335, %v2340
    %vm2343 = vcmp.ge.f32.partialorder %v2341, 0.0
    %vm2344 = vcmp.ge.f32.partialorder %v2342, 0.0
    %v2345 = vmul.f32 %v2341, 0.2
    %v2346 = vmul.f32 %v2342, 0.2
    %v2347 = vsel %vm2343, %v2341, %v2345
    %v2348 = vsel %vm2344, %v2342, %v2346
    %s2349 = sld [smem:[#allocation10 + $0x81]]
    %v2350 = vstv %s2349
    %v2351 = vmul.f32 %v2350, %v2347
    %v2352 = vmul.f32 %v2350, %v2348
    %v2353 = vadd.f32 %v2327, %v2351
    %v2354 = vadd.f32 %v2328, %v2352
    %2355 = vset.pattern.permute.xlu0 98
    %2356 = vperm.xlu0 %2355, %v319
    %v2357 = vpop.permute.xlu0 %2356
    %2359 = vset.pattern.permute.xlu0 98
    %2360 = vperm.xlu0 %2359, %v324
    %v2361 = vpop.permute.xlu0 %2360
    %v2363 = vlaneseq
    %v2364 = vshrl.u32 %v2363, 7
    %v2365 = vsub.s32 2, %v2364
    %v2366 = vrot.slane %v577, %v2365
    %v2367 = vadd.f32 %v2357, %v2366
    %v2368 = vadd.f32 %v2361, %v2366
    %vm2369 = vcmp.ge.f32.partialorder %v2367, 0.0
    %vm2370 = vcmp.ge.f32.partialorder %v2368, 0.0
    %v2371 = vmul.f32 %v2367, 0.2
    %v2372 = vmul.f32 %v2368, 0.2
    %v2373 = vsel %vm2369, %v2367, %v2371
    %v2374 = vsel %vm2370, %v2368, %v2372
    %s2375 = sld [smem:[#allocation10 + $0x82]]
    %v2376 = vstv %s2375
    %v2377 = vmul.f32 %v2376, %v2373
    %v2378 = vmul.f32 %v2376, %v2374
    %v2379 = vadd.f32 %v2353, %v2377
    %v2380 = vadd.f32 %v2354, %v2378
    %2381 = vset.pattern.permute.xlu0 99
    %2382 = vperm.xlu0 %2381, %v319
    %v2383 = vpop.permute.xlu0 %2382
    %2385 = vset.pattern.permute.xlu0 99
    %2386 = vperm.xlu0 %2385, %v324
    %v2387 = vpop.permute.xlu0 %2386
    %v2389 = vlaneseq
    %v2390 = vshrl.u32 %v2389, 7
    %v2391 = vsub.s32 3, %v2390
    %v2392 = vrot.slane %v577, %v2391
    %v2393 = vadd.f32 %v2383, %v2392
    %v2394 = vadd.f32 %v2387, %v2392
    %vm2395 = vcmp.ge.f32.partialorder %v2393, 0.0
    %vm2396 = vcmp.ge.f32.partialorder %v2394, 0.0
    %v2397 = vmul.f32 %v2393, 0.2
    %v2398 = vmul.f32 %v2394, 0.2
    %v2399 = vsel %vm2395, %v2393, %v2397
    %v2400 = vsel %vm2396, %v2394, %v2398
    %s2401 = sld [smem:[#allocation10 + $0x83]]
    %v2402 = vstv %s2401
    %v2403 = vmul.f32 %v2402, %v2399
    %v2404 = vmul.f32 %v2402, %v2400
    %v2405 = vadd.f32 %v2379, %v2403
    %v2406 = vadd.f32 %v2380, %v2404
    %2407 = vset.pattern.permute.xlu0 100
    %2408 = vperm.xlu0 %2407, %v319
    %v2409 = vpop.permute.xlu0 %2408
    %2411 = vset.pattern.permute.xlu0 100
    %2412 = vperm.xlu0 %2411, %v324
    %v2413 = vpop.permute.xlu0 %2412
    %v2415 = vlaneseq
    %v2416 = vshrl.u32 %v2415, 7
    %v2417 = vsub.s32 4, %v2416
    %v2418 = vrot.slane %v577, %v2417
    %v2419 = vadd.f32 %v2409, %v2418
    %v2420 = vadd.f32 %v2413, %v2418
    %vm2421 = vcmp.ge.f32.partialorder %v2419, 0.0
    %vm2422 = vcmp.ge.f32.partialorder %v2420, 0.0
    %v2423 = vmul.f32 %v2419, 0.2
    %v2424 = vmul.f32 %v2420, 0.2
    %v2425 = vsel %vm2421, %v2419, %v2423
    %v2426 = vsel %vm2422, %v2420, %v2424
    %s2427 = sld [smem:[#allocation10 + $0x84]]
    %v2428 = vstv %s2427
    %v2429 = vmul.f32 %v2428, %v2425
    %v2430 = vmul.f32 %v2428, %v2426
    %v2431 = vadd.f32 %v2405, %v2429
    %v2432 = vadd.f32 %v2406, %v2430
    %2433 = vset.pattern.permute.xlu0 101
    %2434 = vperm.xlu0 %2433, %v319
    %v2435 = vpop.permute.xlu0 %2434
    %2437 = vset.pattern.permute.xlu0 101
    %2438 = vperm.xlu0 %2437, %v324
    %v2439 = vpop.permute.xlu0 %2438
    %v2441 = vlaneseq
    %v2442 = vshrl.u32 %v2441, 7
    %v2443 = vsub.s32 5, %v2442
    %v2444 = vrot.slane %v577, %v2443
    %v2445 = vadd.f32 %v2435, %v2444
    %v2446 = vadd.f32 %v2439, %v2444
    %vm2447 = vcmp.ge.f32.partialorder %v2445, 0.0
    %vm2448 = vcmp.ge.f32.partialorder %v2446, 0.0
    %v2449 = vmul.f32 %v2445, 0.2
    %v2450 = vmul.f32 %v2446, 0.2
    %v2451 = vsel %vm2447, %v2445, %v2449
    %v2452 = vsel %vm2448, %v2446, %v2450
    %s2453 = sld [smem:[#allocation10 + $0x85]]
    %v2454 = vstv %s2453
    %v2455 = vmul.f32 %v2454, %v2451
    %v2456 = vmul.f32 %v2454, %v2452
    %v2457 = vadd.f32 %v2431, %v2455
    %v2458 = vadd.f32 %v2432, %v2456
    %2459 = vset.pattern.permute.xlu0 102
    %2460 = vperm.xlu0 %2459, %v319
    %v2461 = vpop.permute.xlu0 %2460
    %2463 = vset.pattern.permute.xlu0 102
    %2464 = vperm.xlu0 %2463, %v324
    %v2465 = vpop.permute.xlu0 %2464
    %v2467 = vlaneseq
    %v2468 = vshrl.u32 %v2467, 7
    %v2469 = vsub.s32 6, %v2468
    %v2470 = vrot.slane %v577, %v2469
    %v2471 = vadd.f32 %v2461, %v2470
    %v2472 = vadd.f32 %v2465, %v2470
    %vm2473 = vcmp.ge.f32.partialorder %v2471, 0.0
    %vm2474 = vcmp.ge.f32.partialorder %v2472, 0.0
    %v2475 = vmul.f32 %v2471, 0.2
    %v2476 = vmul.f32 %v2472, 0.2
    %v2477 = vsel %vm2473, %v2471, %v2475
    %v2478 = vsel %vm2474, %v2472, %v2476
    %s2479 = sld [smem:[#allocation10 + $0x86]]
    %v2480 = vstv %s2479
    %v2481 = vmul.f32 %v2480, %v2477
    %v2482 = vmul.f32 %v2480, %v2478
    %v2483 = vadd.f32 %v2457, %v2481
    %v2484 = vadd.f32 %v2458, %v2482
    %2485 = vset.pattern.permute.xlu0 103
    %2486 = vperm.xlu0 %2485, %v319
    %v2487 = vpop.permute.xlu0 %2486
    %2489 = vset.pattern.permute.xlu0 103
    %2490 = vperm.xlu0 %2489, %v324
    %v2491 = vpop.permute.xlu0 %2490
    %v2493 = vlaneseq
    %v2494 = vshrl.u32 %v2493, 7
    %v2495 = vsub.s32 7, %v2494
    %v2496 = vrot.slane %v577, %v2495
    %v2497 = vadd.f32 %v2487, %v2496
    %v2498 = vadd.f32 %v2491, %v2496
    %vm2499 = vcmp.ge.f32.partialorder %v2497, 0.0
    %vm2500 = vcmp.ge.f32.partialorder %v2498, 0.0
    %v2501 = vmul.f32 %v2497, 0.2
    %v2502 = vmul.f32 %v2498, 0.2
    %v2503 = vsel %vm2499, %v2497, %v2501
    %v2504 = vsel %vm2500, %v2498, %v2502
    %s2505 = sld [smem:[#allocation10 + $0x87]]
    %v2506 = vstv %s2505
    %v2507 = vmul.f32 %v2506, %v2503
    %v2508 = vmul.f32 %v2506, %v2504
    %v2509 = vadd.f32 %v2483, %v2507
    %v2510 = vadd.f32 %v2484, %v2508
    %2511 = vset.pattern.permute.xlu0 104
    %2512 = vperm.xlu0 %2511, %v319
    %v2513 = vpop.permute.xlu0 %2512
    %2515 = vset.pattern.permute.xlu0 104
    %2516 = vperm.xlu0 %2515, %v324
    %v2517 = vpop.permute.xlu0 %2516
    %v2519 = vlaneseq
    %v2520 = vshrl.u32 %v2519, 7
    %v2521 = vsub.s32 0, %v2520
    %v2522 = vrot.slane %v582, %v2521
    %v2523 = vadd.f32 %v2513, %v2522
    %v2524 = vadd.f32 %v2517, %v2522
    %vm2525 = vcmp.ge.f32.partialorder %v2523, 0.0
    %vm2526 = vcmp.ge.f32.partialorder %v2524, 0.0
    %v2527 = vmul.f32 %v2523, 0.2
    %v2528 = vmul.f32 %v2524, 0.2
    %v2529 = vsel %vm2525, %v2523, %v2527
    %v2530 = vsel %vm2526, %v2524, %v2528
    %s2531 = sld [smem:[#allocation10 + $0x88]]
    %v2532 = vstv %s2531
    %v2533 = vmul.f32 %v2532, %v2529
    %v2534 = vmul.f32 %v2532, %v2530
    %v2535 = vadd.f32 %v2509, %v2533
    %v2536 = vadd.f32 %v2510, %v2534
    %2537 = vset.pattern.permute.xlu0 105
    %2538 = vperm.xlu0 %2537, %v319
    %v2539 = vpop.permute.xlu0 %2538
    %2541 = vset.pattern.permute.xlu0 105
    %2542 = vperm.xlu0 %2541, %v324
    %v2543 = vpop.permute.xlu0 %2542
    %v2545 = vlaneseq
    %v2546 = vshrl.u32 %v2545, 7
    %v2547 = vsub.s32 1, %v2546
    %v2548 = vrot.slane %v582, %v2547
    %v2549 = vadd.f32 %v2539, %v2548
    %v2550 = vadd.f32 %v2543, %v2548
    %vm2551 = vcmp.ge.f32.partialorder %v2549, 0.0
    %vm2552 = vcmp.ge.f32.partialorder %v2550, 0.0
    %v2553 = vmul.f32 %v2549, 0.2
    %v2554 = vmul.f32 %v2550, 0.2
    %v2555 = vsel %vm2551, %v2549, %v2553
    %v2556 = vsel %vm2552, %v2550, %v2554
    %s2557 = sld [smem:[#allocation10 + $0x89]]
    %v2558 = vstv %s2557
    %v2559 = vmul.f32 %v2558, %v2555
    %v2560 = vmul.f32 %v2558, %v2556
    %v2561 = vadd.f32 %v2535, %v2559
    %v2562 = vadd.f32 %v2536, %v2560
    %2563 = vset.pattern.permute.xlu0 106
    %2564 = vperm.xlu0 %2563, %v319
    %v2565 = vpop.permute.xlu0 %2564
    %2567 = vset.pattern.permute.xlu0 106
    %2568 = vperm.xlu0 %2567, %v324
    %v2569 = vpop.permute.xlu0 %2568
    %v2571 = vlaneseq
    %v2572 = vshrl.u32 %v2571, 7
    %v2573 = vsub.s32 2, %v2572
    %v2574 = vrot.slane %v582, %v2573
    %v2575 = vadd.f32 %v2565, %v2574
    %v2576 = vadd.f32 %v2569, %v2574
    %vm2577 = vcmp.ge.f32.partialorder %v2575, 0.0
    %vm2578 = vcmp.ge.f32.partialorder %v2576, 0.0
    %v2579 = vmul.f32 %v2575, 0.2
    %v2580 = vmul.f32 %v2576, 0.2
    %v2581 = vsel %vm2577, %v2575, %v2579
    %v2582 = vsel %vm2578, %v2576, %v2580
    %s2583 = sld [smem:[#allocation10 + $0x8a]]
    %v2584 = vstv %s2583
    %v2585 = vmul.f32 %v2584, %v2581
    %v2586 = vmul.f32 %v2584, %v2582
    %v2587 = vadd.f32 %v2561, %v2585
    %v2588 = vadd.f32 %v2562, %v2586
    %2589 = vset.pattern.permute.xlu0 107
    %2590 = vperm.xlu0 %2589, %v319
    %v2591 = vpop.permute.xlu0 %2590
    %2593 = vset.pattern.permute.xlu0 107
    %2594 = vperm.xlu0 %2593, %v324
    %v2595 = vpop.permute.xlu0 %2594
    %v2597 = vlaneseq
    %v2598 = vshrl.u32 %v2597, 7
    %v2599 = vsub.s32 3, %v2598
    %v2600 = vrot.slane %v582, %v2599
    %v2601 = vadd.f32 %v2591, %v2600
    %v2602 = vadd.f32 %v2595, %v2600
    %vm2603 = vcmp.ge.f32.partialorder %v2601, 0.0
    %vm2604 = vcmp.ge.f32.partialorder %v2602, 0.0
    %v2605 = vmul.f32 %v2601, 0.2
    %v2606 = vmul.f32 %v2602, 0.2
    %v2607 = vsel %vm2603, %v2601, %v2605
    %v2608 = vsel %vm2604, %v2602, %v2606
    %s2609 = sld [smem:[#allocation10 + $0x8b]]
    %v2610 = vstv %s2609
    %v2611 = vmul.f32 %v2610, %v2607
    %v2612 = vmul.f32 %v2610, %v2608
    %v2613 = vadd.f32 %v2587, %v2611
    %v2614 = vadd.f32 %v2588, %v2612
    %2615 = vset.pattern.permute.xlu0 108
    %2616 = vperm.xlu0 %2615, %v319
    %v2617 = vpop.permute.xlu0 %2616
    %2619 = vset.pattern.permute.xlu0 108
    %2620 = vperm.xlu0 %2619, %v324
    %v2621 = vpop.permute.xlu0 %2620
    %v2623 = vlaneseq
    %v2624 = vshrl.u32 %v2623, 7
    %v2625 = vsub.s32 4, %v2624
    %v2626 = vrot.slane %v582, %v2625
    %v2627 = vadd.f32 %v2617, %v2626
    %v2628 = vadd.f32 %v2621, %v2626
    %vm2629 = vcmp.ge.f32.partialorder %v2627, 0.0
    %vm2630 = vcmp.ge.f32.partialorder %v2628, 0.0
    %v2631 = vmul.f32 %v2627, 0.2
    %v2632 = vmul.f32 %v2628, 0.2
    %v2633 = vsel %vm2629, %v2627, %v2631
    %v2634 = vsel %vm2630, %v2628, %v2632
    %s2635 = sld [smem:[#allocation10 + $0x8c]]
    %v2636 = vstv %s2635
    %v2637 = vmul.f32 %v2636, %v2633
    %v2638 = vmul.f32 %v2636, %v2634
    %v2639 = vadd.f32 %v2613, %v2637
    %v2640 = vadd.f32 %v2614, %v2638
    %2641 = vset.pattern.permute.xlu0 109
    %2642 = vperm.xlu0 %2641, %v319
    %v2643 = vpop.permute.xlu0 %2642
    %2645 = vset.pattern.permute.xlu0 109
    %2646 = vperm.xlu0 %2645, %v324
    %v2647 = vpop.permute.xlu0 %2646
    %v2649 = vlaneseq
    %v2650 = vshrl.u32 %v2649, 7
    %v2651 = vsub.s32 5, %v2650
    %v2652 = vrot.slane %v582, %v2651
    %v2653 = vadd.f32 %v2643, %v2652
    %v2654 = vadd.f32 %v2647, %v2652
    %vm2655 = vcmp.ge.f32.partialorder %v2653, 0.0
    %vm2656 = vcmp.ge.f32.partialorder %v2654, 0.0
    %v2657 = vmul.f32 %v2653, 0.2
    %v2658 = vmul.f32 %v2654, 0.2
    %v2659 = vsel %vm2655, %v2653, %v2657
    %v2660 = vsel %vm2656, %v2654, %v2658
    %s2661 = sld [smem:[#allocation10 + $0x8d]]
    %v2662 = vstv %s2661
    %v2663 = vmul.f32 %v2662, %v2659
    %v2664 = vmul.f32 %v2662, %v2660
    %v2665 = vadd.f32 %v2639, %v2663
    %v2666 = vadd.f32 %v2640, %v2664
    %2667 = vset.pattern.permute.xlu0 110
    %2668 = vperm.xlu0 %2667, %v319
    %v2669 = vpop.permute.xlu0 %2668
    %2671 = vset.pattern.permute.xlu0 110
    %2672 = vperm.xlu0 %2671, %v324
    %v2673 = vpop.permute.xlu0 %2672
    %v2675 = vlaneseq
    %v2676 = vshrl.u32 %v2675, 7
    %v2677 = vsub.s32 6, %v2676
    %v2678 = vrot.slane %v582, %v2677
    %v2679 = vadd.f32 %v2669, %v2678
    %v2680 = vadd.f32 %v2673, %v2678
    %vm2681 = vcmp.ge.f32.partialorder %v2679, 0.0
    %vm2682 = vcmp.ge.f32.partialorder %v2680, 0.0
    %v2683 = vmul.f32 %v2679, 0.2
    %v2684 = vmul.f32 %v2680, 0.2
    %v2685 = vsel %vm2681, %v2679, %v2683
    %v2686 = vsel %vm2682, %v2680, %v2684
    %s2687 = sld [smem:[#allocation10 + $0x8e]]
    %v2688 = vstv %s2687
    %v2689 = vmul.f32 %v2688, %v2685
    %v2690 = vmul.f32 %v2688, %v2686
    %v2691 = vadd.f32 %v2665, %v2689
    %v2692 = vadd.f32 %v2666, %v2690
    %2693 = vset.pattern.permute.xlu0 111
    %2694 = vperm.xlu0 %2693, %v319
    %v2695 = vpop.permute.xlu0 %2694
    %2697 = vset.pattern.permute.xlu0 111
    %2698 = vperm.xlu0 %2697, %v324
    %v2699 = vpop.permute.xlu0 %2698
    %v2701 = vlaneseq
    %v2702 = vshrl.u32 %v2701, 7
    %v2703 = vsub.s32 7, %v2702
    %v2704 = vrot.slane %v582, %v2703
    %v2705 = vadd.f32 %v2695, %v2704
    %v2706 = vadd.f32 %v2699, %v2704
    %vm2707 = vcmp.ge.f32.partialorder %v2705, 0.0
    %vm2708 = vcmp.ge.f32.partialorder %v2706, 0.0
    %v2709 = vmul.f32 %v2705, 0.2
    %v2710 = vmul.f32 %v2706, 0.2
    %v2711 = vsel %vm2707, %v2705, %v2709
    %v2712 = vsel %vm2708, %v2706, %v2710
    %s2713 = sld [smem:[#allocation10 + $0x8f]]
    %v2714 = vstv %s2713
    %v2715 = vmul.f32 %v2714, %v2711
    %v2716 = vmul.f32 %v2714, %v2712
    %v2717 = vadd.f32 %v2691, %v2715
    %v2718 = vadd.f32 %v2692, %v2716
    %2719 = vset.pattern.permute.xlu0 112
    %2720 = vperm.xlu0 %2719, %v319
    %v2721 = vpop.permute.xlu0 %2720
    %2723 = vset.pattern.permute.xlu0 112
    %2724 = vperm.xlu0 %2723, %v324
    %v2725 = vpop.permute.xlu0 %2724
    %v2727 = vlaneseq
    %v2728 = vshrl.u32 %v2727, 7
    %v2729 = vsub.s32 0, %v2728
    %v2730 = vrot.slane %v587, %v2729
    %v2731 = vadd.f32 %v2721, %v2730
    %v2732 = vadd.f32 %v2725, %v2730
    %vm2733 = vcmp.ge.f32.partialorder %v2731, 0.0
    %vm2734 = vcmp.ge.f32.partialorder %v2732, 0.0
    %v2735 = vmul.f32 %v2731, 0.2
    %v2736 = vmul.f32 %v2732, 0.2
    %v2737 = vsel %vm2733, %v2731, %v2735
    %v2738 = vsel %vm2734, %v2732, %v2736
    %s2739 = sld [smem:[#allocation10 + $0x90]]
    %v2740 = vstv %s2739
    %v2741 = vmul.f32 %v2740, %v2737
    %v2742 = vmul.f32 %v2740, %v2738
    %v2743 = vadd.f32 %v2717, %v2741
    %v2744 = vadd.f32 %v2718, %v2742
    %2745 = vset.pattern.permute.xlu0 113
    %2746 = vperm.xlu0 %2745, %v319
    %v2747 = vpop.permute.xlu0 %2746
    %2749 = vset.pattern.permute.xlu0 113
    %2750 = vperm.xlu0 %2749, %v324
    %v2751 = vpop.permute.xlu0 %2750
    %v2753 = vlaneseq
    %v2754 = vshrl.u32 %v2753, 7
    %v2755 = vsub.s32 1, %v2754
    %v2756 = vrot.slane %v587, %v2755
    %v2757 = vadd.f32 %v2747, %v2756
    %v2758 = vadd.f32 %v2751, %v2756
    %vm2759 = vcmp.ge.f32.partialorder %v2757, 0.0
    %vm2760 = vcmp.ge.f32.partialorder %v2758, 0.0
    %v2761 = vmul.f32 %v2757, 0.2
    %v2762 = vmul.f32 %v2758, 0.2
    %v2763 = vsel %vm2759, %v2757, %v2761
    %v2764 = vsel %vm2760, %v2758, %v2762
    %s2765 = sld [smem:[#allocation10 + $0x91]]
    %v2766 = vstv %s2765
    %v2767 = vmul.f32 %v2766, %v2763
    %v2768 = vmul.f32 %v2766, %v2764
    %v2769 = vadd.f32 %v2743, %v2767
    %v2770 = vadd.f32 %v2744, %v2768
    %2771 = vset.pattern.permute.xlu0 114
    %2772 = vperm.xlu0 %2771, %v319
    %v2773 = vpop.permute.xlu0 %2772
    %2775 = vset.pattern.permute.xlu0 114
    %2776 = vperm.xlu0 %2775, %v324
    %v2777 = vpop.permute.xlu0 %2776
    %v2779 = vlaneseq
    %v2780 = vshrl.u32 %v2779, 7
    %v2781 = vsub.s32 2, %v2780
    %v2782 = vrot.slane %v587, %v2781
    %v2783 = vadd.f32 %v2773, %v2782
    %v2784 = vadd.f32 %v2777, %v2782
    %vm2785 = vcmp.ge.f32.partialorder %v2783, 0.0
    %vm2786 = vcmp.ge.f32.partialorder %v2784, 0.0
    %v2787 = vmul.f32 %v2783, 0.2
    %v2788 = vmul.f32 %v2784, 0.2
    %v2789 = vsel %vm2785, %v2783, %v2787
    %v2790 = vsel %vm2786, %v2784, %v2788
    %s2791 = sld [smem:[#allocation10 + $0x92]]
    %v2792 = vstv %s2791
    %v2793 = vmul.f32 %v2792, %v2789
    %v2794 = vmul.f32 %v2792, %v2790
    %v2795 = vadd.f32 %v2769, %v2793
    %v2796 = vadd.f32 %v2770, %v2794
    %2797 = vset.pattern.permute.xlu0 115
    %2798 = vperm.xlu0 %2797, %v319
    %v2799 = vpop.permute.xlu0 %2798
    %2801 = vset.pattern.permute.xlu0 115
    %2802 = vperm.xlu0 %2801, %v324
    %v2803 = vpop.permute.xlu0 %2802
    %v2805 = vlaneseq
    %v2806 = vshrl.u32 %v2805, 7
    %v2807 = vsub.s32 3, %v2806
    %v2808 = vrot.slane %v587, %v2807
    %v2809 = vadd.f32 %v2799, %v2808
    %v2810 = vadd.f32 %v2803, %v2808
    %vm2811 = vcmp.ge.f32.partialorder %v2809, 0.0
    %vm2812 = vcmp.ge.f32.partialorder %v2810, 0.0
    %v2813 = vmul.f32 %v2809, 0.2
    %v2814 = vmul.f32 %v2810, 0.2
    %v2815 = vsel %vm2811, %v2809, %v2813
    %v2816 = vsel %vm2812, %v2810, %v2814
    %s2817 = sld [smem:[#allocation10 + $0x93]]
    %v2818 = vstv %s2817
    %v2819 = vmul.f32 %v2818, %v2815
    %v2820 = vmul.f32 %v2818, %v2816
    %v2821 = vadd.f32 %v2795, %v2819
    %v2822 = vadd.f32 %v2796, %v2820
    %2823 = vset.pattern.permute.xlu0 116
    %2824 = vperm.xlu0 %2823, %v319
    %v2825 = vpop.permute.xlu0 %2824
    %2827 = vset.pattern.permute.xlu0 116
    %2828 = vperm.xlu0 %2827, %v324
    %v2829 = vpop.permute.xlu0 %2828
    %v2831 = vlaneseq
    %v2832 = vshrl.u32 %v2831, 7
    %v2833 = vsub.s32 4, %v2832
    %v2834 = vrot.slane %v587, %v2833
    %v2835 = vadd.f32 %v2825, %v2834
    %v2836 = vadd.f32 %v2829, %v2834
    %vm2837 = vcmp.ge.f32.partialorder %v2835, 0.0
    %vm2838 = vcmp.ge.f32.partialorder %v2836, 0.0
    %v2839 = vmul.f32 %v2835, 0.2
    %v2840 = vmul.f32 %v2836, 0.2
    %v2841 = vsel %vm2837, %v2835, %v2839
    %v2842 = vsel %vm2838, %v2836, %v2840
    %s2843 = sld [smem:[#allocation10 + $0x94]]
    %v2844 = vstv %s2843
    %v2845 = vmul.f32 %v2844, %v2841
    %v2846 = vmul.f32 %v2844, %v2842
    %v2847 = vadd.f32 %v2821, %v2845
    %v2848 = vadd.f32 %v2822, %v2846
    %2849 = vset.pattern.permute.xlu0 117
    %2850 = vperm.xlu0 %2849, %v319
    %v2851 = vpop.permute.xlu0 %2850
    %2853 = vset.pattern.permute.xlu0 117
    %2854 = vperm.xlu0 %2853, %v324
    %v2855 = vpop.permute.xlu0 %2854
    %v2857 = vlaneseq
    %v2858 = vshrl.u32 %v2857, 7
    %v2859 = vsub.s32 5, %v2858
    %v2860 = vrot.slane %v587, %v2859
    %v2861 = vadd.f32 %v2851, %v2860
    %v2862 = vadd.f32 %v2855, %v2860
    %vm2863 = vcmp.ge.f32.partialorder %v2861, 0.0
    %vm2864 = vcmp.ge.f32.partialorder %v2862, 0.0
    %v2865 = vmul.f32 %v2861, 0.2
    %v2866 = vmul.f32 %v2862, 0.2
    %v2867 = vsel %vm2863, %v2861, %v2865
    %v2868 = vsel %vm2864, %v2862, %v2866
    %s2869 = sld [smem:[#allocation10 + $0x95]]
    %v2870 = vstv %s2869
    %v2871 = vmul.f32 %v2870, %v2867
    %v2872 = vmul.f32 %v2870, %v2868
    %v2873 = vadd.f32 %v2847, %v2871
    %v2874 = vadd.f32 %v2848, %v2872
    %2875 = vset.pattern.permute.xlu0 118
    %2876 = vperm.xlu0 %2875, %v319
    %v2877 = vpop.permute.xlu0 %2876
    %2879 = vset.pattern.permute.xlu0 118
    %2880 = vperm.xlu0 %2879, %v324
    %v2881 = vpop.permute.xlu0 %2880
    %v2883 = vlaneseq
    %v2884 = vshrl.u32 %v2883, 7
    %v2885 = vsub.s32 6, %v2884
    %v2886 = vrot.slane %v587, %v2885
    %v2887 = vadd.f32 %v2877, %v2886
    %v2888 = vadd.f32 %v2881, %v2886
    %vm2889 = vcmp.ge.f32.partialorder %v2887, 0.0
    %vm2890 = vcmp.ge.f32.partialorder %v2888, 0.0
    %v2891 = vmul.f32 %v2887, 0.2
    %v2892 = vmul.f32 %v2888, 0.2
    %v2893 = vsel %vm2889, %v2887, %v2891
    %v2894 = vsel %vm2890, %v2888, %v2892
    %s2895 = sld [smem:[#allocation10 + $0x96]]
    %v2896 = vstv %s2895
    %v2897 = vmul.f32 %v2896, %v2893
    %v2898 = vmul.f32 %v2896, %v2894
    %v2899 = vadd.f32 %v2873, %v2897
    %v2900 = vadd.f32 %v2874, %v2898
    %2901 = vset.pattern.permute.xlu0 119
    %2902 = vperm.xlu0 %2901, %v319
    %v2903 = vpop.permute.xlu0 %2902
    %2905 = vset.pattern.permute.xlu0 119
    %2906 = vperm.xlu0 %2905, %v324
    %v2907 = vpop.permute.xlu0 %2906
    %v2909 = vlaneseq
    %v2910 = vshrl.u32 %v2909, 7
    %v2911 = vsub.s32 7, %v2910
    %v2912 = vrot.slane %v587, %v2911
    %v2913 = vadd.f32 %v2903, %v2912
    %v2914 = vadd.f32 %v2907, %v2912
    %vm2915 = vcmp.ge.f32.partialorder %v2913, 0.0
    %vm2916 = vcmp.ge.f32.partialorder %v2914, 0.0
    %v2917 = vmul.f32 %v2913, 0.2
    %v2918 = vmul.f32 %v2914, 0.2
    %v2919 = vsel %vm2915, %v2913, %v2917
    %v2920 = vsel %vm2916, %v2914, %v2918
    %s2921 = sld [smem:[#allocation10 + $0x97]]
    %v2922 = vstv %s2921
    %v2923 = vmul.f32 %v2922, %v2919
    %v2924 = vmul.f32 %v2922, %v2920
    %v2925 = vadd.f32 %v2899, %v2923
    %v2926 = vadd.f32 %v2900, %v2924
    %2927 = vset.pattern.permute.xlu0 120
    %2928 = vperm.xlu0 %2927, %v319
    %v2929 = vpop.permute.xlu0 %2928
    %2931 = vset.pattern.permute.xlu0 120
    %2932 = vperm.xlu0 %2931, %v324
    %v2933 = vpop.permute.xlu0 %2932
    %v2935 = vlaneseq
    %v2936 = vshrl.u32 %v2935, 7
    %v2937 = vsub.s32 0, %v2936
    %v2938 = vrot.slane %v592, %v2937
    %v2939 = vadd.f32 %v2929, %v2938
    %v2940 = vadd.f32 %v2933, %v2938
    %vm2941 = vcmp.ge.f32.partialorder %v2939, 0.0
    %vm2942 = vcmp.ge.f32.partialorder %v2940, 0.0
    %v2943 = vmul.f32 %v2939, 0.2
    %v2944 = vmul.f32 %v2940, 0.2
    %v2945 = vsel %vm2941, %v2939, %v2943
    %v2946 = vsel %vm2942, %v2940, %v2944
    %s2947 = sld [smem:[#allocation10 + $0x98]]
    %v2948 = vstv %s2947
    %v2949 = vmul.f32 %v2948, %v2945
    %v2950 = vmul.f32 %v2948, %v2946
    %v2951 = vadd.f32 %v2925, %v2949
    %v2952 = vadd.f32 %v2926, %v2950
    %2953 = vset.pattern.permute.xlu0 121
    %2954 = vperm.xlu0 %2953, %v319
    %v2955 = vpop.permute.xlu0 %2954
    %2957 = vset.pattern.permute.xlu0 121
    %2958 = vperm.xlu0 %2957, %v324
    %v2959 = vpop.permute.xlu0 %2958
    %v2961 = vlaneseq
    %v2962 = vshrl.u32 %v2961, 7
    %v2963 = vsub.s32 1, %v2962
    %v2964 = vrot.slane %v592, %v2963
    %v2965 = vadd.f32 %v2955, %v2964
    %v2966 = vadd.f32 %v2959, %v2964
    %vm2967 = vcmp.ge.f32.partialorder %v2965, 0.0
    %vm2968 = vcmp.ge.f32.partialorder %v2966, 0.0
    %v2969 = vmul.f32 %v2965, 0.2
    %v2970 = vmul.f32 %v2966, 0.2
    %v2971 = vsel %vm2967, %v2965, %v2969
    %v2972 = vsel %vm2968, %v2966, %v2970
    %s2973 = sld [smem:[#allocation10 + $0x99]]
    %v2974 = vstv %s2973
    %v2975 = vmul.f32 %v2974, %v2971
    %v2976 = vmul.f32 %v2974, %v2972
    %v2977 = vadd.f32 %v2951, %v2975
    %v2978 = vadd.f32 %v2952, %v2976
    %2979 = vset.pattern.permute.xlu0 122
    %2980 = vperm.xlu0 %2979, %v319
    %v2981 = vpop.permute.xlu0 %2980
    %2983 = vset.pattern.permute.xlu0 122
    %2984 = vperm.xlu0 %2983, %v324
    %v2985 = vpop.permute.xlu0 %2984
    %v2987 = vlaneseq
    %v2988 = vshrl.u32 %v2987, 7
    %v2989 = vsub.s32 2, %v2988
    %v2990 = vrot.slane %v592, %v2989
    %v2991 = vadd.f32 %v2981, %v2990
    %v2992 = vadd.f32 %v2985, %v2990
    %vm2993 = vcmp.ge.f32.partialorder %v2991, 0.0
    %vm2994 = vcmp.ge.f32.partialorder %v2992, 0.0
    %v2995 = vmul.f32 %v2991, 0.2
    %v2996 = vmul.f32 %v2992, 0.2
    %v2997 = vsel %vm2993, %v2991, %v2995
    %v2998 = vsel %vm2994, %v2992, %v2996
    %s2999 = sld [smem:[#allocation10 + $0x9a]]
    %v3000 = vstv %s2999
    %v3001 = vmul.f32 %v3000, %v2997
    %v3002 = vmul.f32 %v3000, %v2998
    %v3003 = vadd.f32 %v2977, %v3001
    %v3004 = vadd.f32 %v2978, %v3002
    %3005 = vset.pattern.permute.xlu0 123
    %3006 = vperm.xlu0 %3005, %v319
    %v3007 = vpop.permute.xlu0 %3006
    %3009 = vset.pattern.permute.xlu0 123
    %3010 = vperm.xlu0 %3009, %v324
    %v3011 = vpop.permute.xlu0 %3010
    %v3013 = vlaneseq
    %v3014 = vshrl.u32 %v3013, 7
    %v3015 = vsub.s32 3, %v3014
    %v3016 = vrot.slane %v592, %v3015
    %v3017 = vadd.f32 %v3007, %v3016
    %v3018 = vadd.f32 %v3011, %v3016
    %vm3019 = vcmp.ge.f32.partialorder %v3017, 0.0
    %vm3020 = vcmp.ge.f32.partialorder %v3018, 0.0
    %v3021 = vmul.f32 %v3017, 0.2
    %v3022 = vmul.f32 %v3018, 0.2
    %v3023 = vsel %vm3019, %v3017, %v3021
    %v3024 = vsel %vm3020, %v3018, %v3022
    %s3025 = sld [smem:[#allocation10 + $0x9b]]
    %v3026 = vstv %s3025
    %v3027 = vmul.f32 %v3026, %v3023
    %v3028 = vmul.f32 %v3026, %v3024
    %v3029 = vadd.f32 %v3003, %v3027
    %v3030 = vadd.f32 %v3004, %v3028
    %3031 = vset.pattern.permute.xlu0 124
    %3032 = vperm.xlu0 %3031, %v319
    %v3033 = vpop.permute.xlu0 %3032
    %3035 = vset.pattern.permute.xlu0 124
    %3036 = vperm.xlu0 %3035, %v324
    %v3037 = vpop.permute.xlu0 %3036
    %v3039 = vlaneseq
    %v3040 = vshrl.u32 %v3039, 7
    %v3041 = vsub.s32 4, %v3040
    %v3042 = vrot.slane %v592, %v3041
    %v3043 = vadd.f32 %v3033, %v3042
    %v3044 = vadd.f32 %v3037, %v3042
    %vm3045 = vcmp.ge.f32.partialorder %v3043, 0.0
    %vm3046 = vcmp.ge.f32.partialorder %v3044, 0.0
    %v3047 = vmul.f32 %v3043, 0.2
    %v3048 = vmul.f32 %v3044, 0.2
    %v3049 = vsel %vm3045, %v3043, %v3047
    %v3050 = vsel %vm3046, %v3044, %v3048
    %s3051 = sld [smem:[#allocation10 + $0x9c]]
    %v3052 = vstv %s3051
    %v3053 = vmul.f32 %v3052, %v3049
    %v3054 = vmul.f32 %v3052, %v3050
    %v3055 = vadd.f32 %v3029, %v3053
    %v3056 = vadd.f32 %v3030, %v3054
    %3057 = vset.pattern.permute.xlu0 125
    %3058 = vperm.xlu0 %3057, %v319
    %v3059 = vpop.permute.xlu0 %3058
    %3061 = vset.pattern.permute.xlu0 125
    %3062 = vperm.xlu0 %3061, %v324
    %v3063 = vpop.permute.xlu0 %3062
    %v3065 = vlaneseq
    %v3066 = vshrl.u32 %v3065, 7
    %v3067 = vsub.s32 5, %v3066
    %v3068 = vrot.slane %v592, %v3067
    %v3069 = vadd.f32 %v3059, %v3068
    %v3070 = vadd.f32 %v3063, %v3068
    %vm3071 = vcmp.ge.f32.partialorder %v3069, 0.0
    %vm3072 = vcmp.ge.f32.partialorder %v3070, 0.0
    %v3073 = vmul.f32 %v3069, 0.2
    %v3074 = vmul.f32 %v3070, 0.2
    %v3075 = vsel %vm3071, %v3069, %v3073
    %v3076 = vsel %vm3072, %v3070, %v3074
    %s3077 = sld [smem:[#allocation10 + $0x9d]]
    %v3078 = vstv %s3077
    %v3079 = vmul.f32 %v3078, %v3075
    %v3080 = vmul.f32 %v3078, %v3076
    %v3081 = vadd.f32 %v3055, %v3079
    %v3082 = vadd.f32 %v3056, %v3080
    %3083 = vset.pattern.permute.xlu0 126
    %3084 = vperm.xlu0 %3083, %v319
    %v3085 = vpop.permute.xlu0 %3084
    %3087 = vset.pattern.permute.xlu0 126
    %3088 = vperm.xlu0 %3087, %v324
    %v3089 = vpop.permute.xlu0 %3088
    %v3091 = vlaneseq
    %v3092 = vshrl.u32 %v3091, 7
    %v3093 = vsub.s32 6, %v3092
    %v3094 = vrot.slane %v592, %v3093
    %v3095 = vadd.f32 %v3085, %v3094
    %v3096 = vadd.f32 %v3089, %v3094
    %vm3097 = vcmp.ge.f32.partialorder %v3095, 0.0
    %vm3098 = vcmp.ge.f32.partialorder %v3096, 0.0
    %v3099 = vmul.f32 %v3095, 0.2
    %v3100 = vmul.f32 %v3096, 0.2
    %v3101 = vsel %vm3097, %v3095, %v3099
    %v3102 = vsel %vm3098, %v3096, %v3100
    %s3103 = sld [smem:[#allocation10 + $0x9e]]
    %v3104 = vstv %s3103
    %v3105 = vmul.f32 %v3104, %v3101
    %v3106 = vmul.f32 %v3104, %v3102
    %v3107 = vadd.f32 %v3081, %v3105
    %v3108 = vadd.f32 %v3082, %v3106
    %3109 = vset.pattern.permute.xlu0 127
    %3110 = vperm.xlu0 %3109, %v319
    %v3111 = vpop.permute.xlu0 %3110
    %3113 = vset.pattern.permute.xlu0 127
    %3114 = vperm.xlu0 %3113, %v324
    %v3115 = vpop.permute.xlu0 %3114
    %v3117 = vlaneseq
    %v3118 = vshrl.u32 %v3117, 7
    %v3119 = vsub.s32 7, %v3118
    %v3120 = vrot.slane %v592, %v3119
    %v3121 = vadd.f32 %v3111, %v3120
    %v3122 = vadd.f32 %v3115, %v3120
    %vm3123 = vcmp.ge.f32.partialorder %v3121, 0.0
    %vm3124 = vcmp.ge.f32.partialorder %v3122, 0.0
    %v3125 = vmul.f32 %v3121, 0.2
    %v3126 = vmul.f32 %v3122, 0.2
    %v3127 = vsel %vm3123, %v3121, %v3125
    %v3128 = vsel %vm3124, %v3122, %v3126
    %s3129 = sld [smem:[#allocation10 + $0x9f]]
    %v3130 = vstv %s3129
    %v3131 = vmul.f32 %v3130, %v3127
    %v3132 = vmul.f32 %v3130, %v3128
    %v3133 = vadd.f32 %v3107, %v3131
    %v3134 = vadd.f32 %v3108, %v3132
    %v3135 = vadd.f32 %v3133, %v229
    %v3136 = vadd.f32 %v3134, %v230
    %v3137 = vsel %vm1471, %v3135, -inf
    %3138 = vmax.xlane.f32.xlu0 %v3137
    %v3139 = vpop.xlane.xlu0 %3138
    %v3140 = vsel %vm1471, %v3136, -inf
    %3141 = vmax.xlane.f32.xlu0 %v3140
    %v3142 = vpop.xlane.xlu0 %3141
    %v3143 = vsub.f32 %v3135, %v3139
    %v3144 = vsub.f32 %v3136, %v3142
    %v3145 = vmul.f32 %v3143, 1.442695
    %v3146 = vpow.pop %v3145
    %v3147 = vmul.f32 %v3144, 1.442695
    %v3148 = vpow.pop %v3147
    %v3149 = vsel %vm1471, %v3146, 0.0
    %3150 = vadd.xlane.f32.xlu0 %v3149
    %v3151 = vpop.xlane.xlu0 %3150
    %v3152 = vsel %vm1471, %v3148, 0.0
    %3153 = vadd.xlane.f32.xlu0 %v3152
    %v3154 = vpop.xlane.xlu0 %3153
    %v3155 = vmax.f32 %v3151, 1e-20
    %v3156 = vmax.f32 %v3154, 1e-20
    %v3157 = vrcp.pop %v3155
    %v3158 = vrcp.pop %v3156
    %v3159 = vmul.f32 %v3155, %v3157
    %v3160 = vmul.f32 %v3156, %v3158
    %v3161 = vsub.f32 2.0, %v3159
    %v3162 = vsub.f32 2.0, %v3160
    %v3163 = vmul.f32 %v3157, %v3161
    %v3164 = vmul.f32 %v3158, %v3162
    %v3165 = vmul.f32 %v3146, %v3163
    %v3166 = vmul.f32 %v3148, %v3164
    %3167 = vrot.lane.b32.xlu0 %v319, 96
    %v3168 = vpop.permute.xlu0 %3167
    %3169 = vrot.lane.b32.xlu0 %v324, 96
    %v3170 = vpop.permute.xlu0 %3169
    %v3174 = vsel %vm1471, %v3165, 0
    %v3177 = vsel %vm1471, %v3166, 0
    %3179 = vmatprep.subr.mxu0 0.0
    %3180 = vmatpush1.msra.mxu0 0.0
    %3181 = vmatprep.subr.mxu0 0.0
    %3182 = vmatpush1.msra.mxu0 0.0
    %3183 = vmatprep.subr.mxu0 0.0
    %3184 = vmatpush1.msra.mxu0 0.0
    %3185 = vmatprep.subr.mxu0 0.0
    %3186 = vmatpush1.msra.mxu0 0.0
    %3187 = vmatprep.subr.mxu0 0.0
    %3188 = vmatpush1.msra.mxu0 0.0
    %3189 = vmatprep.subr.mxu0 0.0
    %3190 = vmatpush1.msra.mxu0 0.0
    %3191 = vmatprep.subr.mxu0 0.0
    %3192 = vmatpush1.msra.mxu0 0.0
    %3193 = vmatprep.subr.mxu0 0.0
    %3194 = vmatpush1.msra.mxu0 0.0
    %3195 = vmatprep.subr.mxu0 0.0
    %3196 = vmatpush1.msra.mxu0 0.0
    %3197 = vmatprep.subr.mxu0 0.0
    %3198 = vmatpush1.msra.mxu0 0.0
    %3199 = vmatprep.subr.mxu0 0.0
    %3200 = vmatpush1.msra.mxu0 0.0
    %3201 = vmatprep.subr.mxu0 0.0
    %3202 = vmatpush1.msra.mxu0 0.0
    %3203 = vmatprep.subr.mxu0 0.0
    %3204 = vmatpush1.msra.mxu0 0.0
    %3205 = vmatprep.subr.mxu0 0.0
    %3206 = vmatpush1.msra.mxu0 0.0
    %3207 = vmatprep.subr.mxu0 0.0
    %3208 = vmatpush1.msra.mxu0 %v3170
    %3209 = vmatprep.subr.mxu0 0.0
    %3210 = vmatpush1.msra.mxu0 %v3168
    %3211 = vmatprep.subr.mxu0 0.0
    %3212 = vmatpush2.msra.mxu0 0.0
    %3213 = vmatprep.subr.mxu0 0.0
    %3214 = vmatpush2.msra.mxu0 0.0
    %3215 = vmatprep.subr.mxu0 0.0
    %3216 = vmatpush2.msra.mxu0 0.0
    %3217 = vmatprep.subr.mxu0 0.0
    %3218 = vmatpush2.msra.mxu0 0.0
    %3219 = vmatprep.subr.mxu0 0.0
    %3220 = vmatpush2.msra.mxu0 0.0
    %3221 = vmatprep.subr.mxu0 0.0
    %3222 = vmatpush2.msra.mxu0 0.0
    %3223 = vmatprep.subr.mxu0 0.0
    %3224 = vmatpush2.msra.mxu0 0.0
    %3225 = vmatprep.subr.mxu0 0.0
    %3226 = vmatpush2.msra.mxu0 0.0
    %3227 = vmatprep.subr.mxu0 0.0
    %3228 = vmatpush2.msra.mxu0 0.0
    %3229 = vmatprep.subr.mxu0 0.0
    %3230 = vmatpush2.msra.mxu0 0.0
    %3231 = vmatprep.subr.mxu0 0.0
    %3232 = vmatpush2.msra.mxu0 0.0
    %3233 = vmatprep.subr.mxu0 0.0
    %3234 = vmatpush2.msra.mxu0 0.0
    %3235 = vmatprep.subr.mxu0 0.0
    %3236 = vmatpush2.msra.mxu0 0.0
    %3237 = vmatprep.subr.mxu0 0.0
    %3238 = vmatpush2.msra.mxu0 0.0
    %3239 = vmatprep.subr.mxu0 0.0
    %3240 = vmatpush2.msra.mxu0 0.0
    %3241 = vmatprep.subr.mxu0 0.0
    %3242 = vmatpush2.msra.mxu0 0.0
    %3243 = vmatprep.mubr.f32.mxu0 0.0
    %3244 = vmatmul.mubr.f32.gmra.mxu0 %v3174
    %v3245 = vpop.f32.mrf.mxu0
    %v3246 = vadd.f32 0.0, %v3245
    %v3247 = vpop.f32.mrf.mxu0
    %3248 = vmatprep.mubr.f32.mxu0 0.0
    %3249 = vmatmul.mubr.f32.gmra.mxu0 %v3177
    %v3250 = vpop.f32.mrf.mxu0
    %v3251 = vadd.f32 0.0, %v3250
    %v3252 = vpop.f32.mrf.mxu0
    %3253 = vdwg.mxu0
    %v3255 = vsel %vm1471, %v1500, 0
    %v3258 = vsel %vm1471, %v1501, 0
    %3260 = vmatprep.subr.mxu0 0.0
    %3261 = vmatpush1.msra.mxu0 0.0
    %3262 = vmatprep.subr.mxu0 0.0
    %3263 = vmatpush1.msra.mxu0 0.0
    %3264 = vmatprep.subr.mxu0 0.0
    %3265 = vmatpush1.msra.mxu0 0.0
    %3266 = vmatprep.subr.mxu0 0.0
    %3267 = vmatpush1.msra.mxu0 0.0
    %3268 = vmatprep.subr.mxu0 0.0
    %3269 = vmatpush1.msra.mxu0 0.0
    %3270 = vmatprep.subr.mxu0 0.0
    %3271 = vmatpush1.msra.mxu0 0.0
    %3272 = vmatprep.subr.mxu0 0.0
    %3273 = vmatpush1.msra.mxu0 0.0
    %3274 = vmatprep.subr.mxu0 0.0
    %3275 = vmatpush1.msra.mxu0 0.0
    %3276 = vmatprep.subr.mxu0 0.0
    %3277 = vmatpush1.msra.mxu0 0.0
    %3278 = vmatprep.subr.mxu0 0.0
    %3279 = vmatpush1.msra.mxu0 0.0
    %3280 = vmatprep.subr.mxu0 0.0
    %3281 = vmatpush1.msra.mxu0 0.0
    %3282 = vmatprep.subr.mxu0 0.0
    %3283 = vmatpush1.msra.mxu0 0.0
    %3284 = vmatprep.subr.mxu0 0.0
    %3285 = vmatpush1.msra.mxu0 0.0
    %3286 = vmatprep.subr.mxu0 0.0
    %3287 = vmatpush1.msra.mxu0 0.0
    %3288 = vmatprep.subr.mxu0 0.0
    %3289 = vmatpush1.msra.mxu0 %v324
    %3290 = vmatprep.subr.mxu0 0.0
    %3291 = vmatpush1.msra.mxu0 %v319
    %3292 = vmatprep.subr.mxu0 0.0
    %3293 = vmatpush2.msra.mxu0 0.0
    %3294 = vmatprep.subr.mxu0 0.0
    %3295 = vmatpush2.msra.mxu0 0.0
    %3296 = vmatprep.subr.mxu0 0.0
    %3297 = vmatpush2.msra.mxu0 0.0
    %3298 = vmatprep.subr.mxu0 0.0
    %3299 = vmatpush2.msra.mxu0 0.0
    %3300 = vmatprep.subr.mxu0 0.0
    %3301 = vmatpush2.msra.mxu0 0.0
    %3302 = vmatprep.subr.mxu0 0.0
    %3303 = vmatpush2.msra.mxu0 0.0
    %3304 = vmatprep.subr.mxu0 0.0
    %3305 = vmatpush2.msra.mxu0 0.0
    %3306 = vmatprep.subr.mxu0 0.0
    %3307 = vmatpush2.msra.mxu0 0.0
    %3308 = vmatprep.subr.mxu0 0.0
    %3309 = vmatpush2.msra.mxu0 0.0
    %3310 = vmatprep.subr.mxu0 0.0
    %3311 = vmatpush2.msra.mxu0 0.0
    %3312 = vmatprep.subr.mxu0 0.0
    %3313 = vmatpush2.msra.mxu0 0.0
    %3314 = vmatprep.subr.mxu0 0.0
    %3315 = vmatpush2.msra.mxu0 0.0
    %3316 = vmatprep.subr.mxu0 0.0
    %3317 = vmatpush2.msra.mxu0 0.0
    %3318 = vmatprep.subr.mxu0 0.0
    %3319 = vmatpush2.msra.mxu0 0.0
    %3320 = vmatprep.subr.mxu0 0.0
    %3321 = vmatpush2.msra.mxu0 0.0
    %3322 = vmatprep.subr.mxu0 0.0
    %3323 = vmatpush2.msra.mxu0 0.0
    %3324 = vmatprep.mubr.f32.mxu0 0.0
    %3325 = vmatmul.mubr.f32.gmra.mxu0 %v3255
    %v3326 = vpop.f32.mrf.mxu0
    %v3327 = vadd.f32 %v3246, %v3326
    %v3328 = vpop.f32.mrf.mxu0
    %3329 = vmatprep.mubr.f32.mxu0 0.0
    %3330 = vmatmul.mubr.f32.gmra.mxu0 %v3258
    %v3331 = vpop.f32.mrf.mxu0
    %v3332 = vadd.f32 %v3251, %v3331
    %v3333 = vpop.f32.mrf.mxu0
    %3334 = vdwg.mxu0
    %3335 = vset.pattern.permute.xlu0 32
    %3336 = vperm.xlu0 %3335, %v319
    %v3337 = vpop.permute.xlu0 %3336
    %3339 = vset.pattern.permute.xlu0 32
    %3340 = vperm.xlu0 %3339, %v324
    %v3341 = vpop.permute.xlu0 %3340
    %v3343 = vlaneseq
    %v3344 = vshrl.u32 %v3343, 7
    %v3345 = vsub.s32 0, %v3344
    %v3346 = vrot.slane %v617, %v3345
    %v3347 = vadd.f32 %v3337, %v3346
    %v3348 = vadd.f32 %v3341, %v3346
    %vm3349 = vcmp.ge.f32.partialorder %v3347, 0.0
    %vm3350 = vcmp.ge.f32.partialorder %v3348, 0.0
    %v3351 = vmul.f32 %v3347, 0.2
    %v3352 = vmul.f32 %v3348, 0.2
    %v3353 = vsel %vm3349, %v3347, %v3351
    %v3354 = vsel %vm3350, %v3348, %v3352
    %v3355 = vmul.f32 %v2324, %v3353
    %v3356 = vmul.f32 %v2324, %v3354
    %v3357 = vadd.f32 %v3355, 0.0
    %v3358 = vadd.f32 %v3356, 0.0
    %3359 = vset.pattern.permute.xlu0 33
    %3360 = vperm.xlu0 %3359, %v319
    %v3361 = vpop.permute.xlu0 %3360
    %3363 = vset.pattern.permute.xlu0 33
    %3364 = vperm.xlu0 %3363, %v324
    %v3365 = vpop.permute.xlu0 %3364
    %v3367 = vlaneseq
    %v3368 = vshrl.u32 %v3367, 7
    %v3369 = vsub.s32 1, %v3368
    %v3370 = vrot.slane %v617, %v3369
    %v3371 = vadd.f32 %v3361, %v3370
    %v3372 = vadd.f32 %v3365, %v3370
    %vm3373 = vcmp.ge.f32.partialorder %v3371, 0.0
    %vm3374 = vcmp.ge.f32.partialorder %v3372, 0.0
    %v3375 = vmul.f32 %v3371, 0.2
    %v3376 = vmul.f32 %v3372, 0.2
    %v3377 = vsel %vm3373, %v3371, %v3375
    %v3378 = vsel %vm3374, %v3372, %v3376
    %v3379 = vmul.f32 %v2350, %v3377
    %v3380 = vmul.f32 %v2350, %v3378
    %v3381 = vadd.f32 %v3357, %v3379
    %v3382 = vadd.f32 %v3358, %v3380
    %3383 = vset.pattern.permute.xlu0 34
    %3384 = vperm.xlu0 %3383, %v319
    %v3385 = vpop.permute.xlu0 %3384
    %3387 = vset.pattern.permute.xlu0 34
    %3388 = vperm.xlu0 %3387, %v324
    %v3389 = vpop.permute.xlu0 %3388
    %v3391 = vlaneseq
    %v3392 = vshrl.u32 %v3391, 7
    %v3393 = vsub.s32 2, %v3392
    %v3394 = vrot.slane %v617, %v3393
    %v3395 = vadd.f32 %v3385, %v3394
    %v3396 = vadd.f32 %v3389, %v3394
    %vm3397 = vcmp.ge.f32.partialorder %v3395, 0.0
    %vm3398 = vcmp.ge.f32.partialorder %v3396, 0.0
    %v3399 = vmul.f32 %v3395, 0.2
    %v3400 = vmul.f32 %v3396, 0.2
    %v3401 = vsel %vm3397, %v3395, %v3399
    %v3402 = vsel %vm3398, %v3396, %v3400
    %v3403 = vmul.f32 %v2376, %v3401
    %v3404 = vmul.f32 %v2376, %v3402
    %v3405 = vadd.f32 %v3381, %v3403
    %v3406 = vadd.f32 %v3382, %v3404
    %3407 = vset.pattern.permute.xlu0 35
    %3408 = vperm.xlu0 %3407, %v319
    %v3409 = vpop.permute.xlu0 %3408
    %3411 = vset.pattern.permute.xlu0 35
    %3412 = vperm.xlu0 %3411, %v324
    %v3413 = vpop.permute.xlu0 %3412
    %v3415 = vlaneseq
    %v3416 = vshrl.u32 %v3415, 7
    %v3417 = vsub.s32 3, %v3416
    %v3418 = vrot.slane %v617, %v3417
    %v3419 = vadd.f32 %v3409, %v3418
    %v3420 = vadd.f32 %v3413, %v3418
    %vm3421 = vcmp.ge.f32.partialorder %v3419, 0.0
    %vm3422 = vcmp.ge.f32.partialorder %v3420, 0.0
    %v3423 = vmul.f32 %v3419, 0.2
    %v3424 = vmul.f32 %v3420, 0.2
    %v3425 = vsel %vm3421, %v3419, %v3423
    %v3426 = vsel %vm3422, %v3420, %v3424
    %v3427 = vmul.f32 %v2402, %v3425
    %v3428 = vmul.f32 %v2402, %v3426
    %v3429 = vadd.f32 %v3405, %v3427
    %v3430 = vadd.f32 %v3406, %v3428
    %3431 = vset.pattern.permute.xlu0 36
    %3432 = vperm.xlu0 %3431, %v319
    %v3433 = vpop.permute.xlu0 %3432
    %3435 = vset.pattern.permute.xlu0 36
    %3436 = vperm.xlu0 %3435, %v324
    %v3437 = vpop.permute.xlu0 %3436
    %v3439 = vlaneseq
    %v3440 = vshrl.u32 %v3439, 7
    %v3441 = vsub.s32 4, %v3440
    %v3442 = vrot.slane %v617, %v3441
    %v3443 = vadd.f32 %v3433, %v3442
    %v3444 = vadd.f32 %v3437, %v3442
    %vm3445 = vcmp.ge.f32.partialorder %v3443, 0.0
    %vm3446 = vcmp.ge.f32.partialorder %v3444, 0.0
    %v3447 = vmul.f32 %v3443, 0.2
    %v3448 = vmul.f32 %v3444, 0.2
    %v3449 = vsel %vm3445, %v3443, %v3447
    %v3450 = vsel %vm3446, %v3444, %v3448
    %v3451 = vmul.f32 %v2428, %v3449
    %v3452 = vmul.f32 %v2428, %v3450
    %v3453 = vadd.f32 %v3429, %v3451
    %v3454 = vadd.f32 %v3430, %v3452
    %3455 = vset.pattern.permute.xlu0 37
    %3456 = vperm.xlu0 %3455, %v319
    %v3457 = vpop.permute.xlu0 %3456
    %3459 = vset.pattern.permute.xlu0 37
    %3460 = vperm.xlu0 %3459, %v324
    %v3461 = vpop.permute.xlu0 %3460
    %v3463 = vlaneseq
    %v3464 = vshrl.u32 %v3463, 7
    %v3465 = vsub.s32 5, %v3464
    %v3466 = vrot.slane %v617, %v3465
    %v3467 = vadd.f32 %v3457, %v3466
    %v3468 = vadd.f32 %v3461, %v3466
    %vm3469 = vcmp.ge.f32.partialorder %v3467, 0.0
    %vm3470 = vcmp.ge.f32.partialorder %v3468, 0.0
    %v3471 = vmul.f32 %v3467, 0.2
    %v3472 = vmul.f32 %v3468, 0.2
    %v3473 = vsel %vm3469, %v3467, %v3471
    %v3474 = vsel %vm3470, %v3468, %v3472
    %v3475 = vmul.f32 %v2454, %v3473
    %v3476 = vmul.f32 %v2454, %v3474
    %v3477 = vadd.f32 %v3453, %v3475
    %v3478 = vadd.f32 %v3454, %v3476
    %3479 = vset.pattern.permute.xlu0 38
    %3480 = vperm.xlu0 %3479, %v319
    %v3481 = vpop.permute.xlu0 %3480
    %3483 = vset.pattern.permute.xlu0 38
    %3484 = vperm.xlu0 %3483, %v324
    %v3485 = vpop.permute.xlu0 %3484
    %v3487 = vlaneseq
    %v3488 = vshrl.u32 %v3487, 7
    %v3489 = vsub.s32 6, %v3488
    %v3490 = vrot.slane %v617, %v3489
    %v3491 = vadd.f32 %v3481, %v3490
    %v3492 = vadd.f32 %v3485, %v3490
    %vm3493 = vcmp.ge.f32.partialorder %v3491, 0.0
    %vm3494 = vcmp.ge.f32.partialorder %v3492, 0.0
    %v3495 = vmul.f32 %v3491, 0.2
    %v3496 = vmul.f32 %v3492, 0.2
    %v3497 = vsel %vm3493, %v3491, %v3495
    %v3498 = vsel %vm3494, %v3492, %v3496
    %v3499 = vmul.f32 %v2480, %v3497
    %v3500 = vmul.f32 %v2480, %v3498
    %v3501 = vadd.f32 %v3477, %v3499
    %v3502 = vadd.f32 %v3478, %v3500
    %3503 = vset.pattern.permute.xlu0 39
    %3504 = vperm.xlu0 %3503, %v319
    %v3505 = vpop.permute.xlu0 %3504
    %3507 = vset.pattern.permute.xlu0 39
    %3508 = vperm.xlu0 %3507, %v324
    %v3509 = vpop.permute.xlu0 %3508
    %v3511 = vlaneseq
    %v3512 = vshrl.u32 %v3511, 7
    %v3513 = vsub.s32 7, %v3512
    %v3514 = vrot.slane %v617, %v3513
    %v3515 = vadd.f32 %v3505, %v3514
    %v3516 = vadd.f32 %v3509, %v3514
    %vm3517 = vcmp.ge.f32.partialorder %v3515, 0.0
    %vm3518 = vcmp.ge.f32.partialorder %v3516, 0.0
    %v3519 = vmul.f32 %v3515, 0.2
    %v3520 = vmul.f32 %v3516, 0.2
    %v3521 = vsel %vm3517, %v3515, %v3519
    %v3522 = vsel %vm3518, %v3516, %v3520
    %v3523 = vmul.f32 %v2506, %v3521
    %v3524 = vmul.f32 %v2506, %v3522
    %v3525 = vadd.f32 %v3501, %v3523
    %v3526 = vadd.f32 %v3502, %v3524
    %3527 = vset.pattern.permute.xlu0 40
    %3528 = vperm.xlu0 %3527, %v319
    %v3529 = vpop.permute.xlu0 %3528
    %3531 = vset.pattern.permute.xlu0 40
    %3532 = vperm.xlu0 %3531, %v324
    %v3533 = vpop.permute.xlu0 %3532
    %v3535 = vlaneseq
    %v3536 = vshrl.u32 %v3535, 7
    %v3537 = vsub.s32 0, %v3536
    %v3538 = vrot.slane %v622, %v3537
    %v3539 = vadd.f32 %v3529, %v3538
    %v3540 = vadd.f32 %v3533, %v3538
    %vm3541 = vcmp.ge.f32.partialorder %v3539, 0.0
    %vm3542 = vcmp.ge.f32.partialorder %v3540, 0.0
    %v3543 = vmul.f32 %v3539, 0.2
    %v3544 = vmul.f32 %v3540, 0.2
    %v3545 = vsel %vm3541, %v3539, %v3543
    %v3546 = vsel %vm3542, %v3540, %v3544
    %v3547 = vmul.f32 %v2532, %v3545
    %v3548 = vmul.f32 %v2532, %v3546
    %v3549 = vadd.f32 %v3525, %v3547
    %v3550 = vadd.f32 %v3526, %v3548
    %3551 = vset.pattern.permute.xlu0 41
    %3552 = vperm.xlu0 %3551, %v319
    %v3553 = vpop.permute.xlu0 %3552
    %3555 = vset.pattern.permute.xlu0 41
    %3556 = vperm.xlu0 %3555, %v324
    %v3557 = vpop.permute.xlu0 %3556
    %v3559 = vlaneseq
    %v3560 = vshrl.u32 %v3559, 7
    %v3561 = vsub.s32 1, %v3560
    %v3562 = vrot.slane %v622, %v3561
    %v3563 = vadd.f32 %v3553, %v3562
    %v3564 = vadd.f32 %v3557, %v3562
    %vm3565 = vcmp.ge.f32.partialorder %v3563, 0.0
    %vm3566 = vcmp.ge.f32.partialorder %v3564, 0.0
    %v3567 = vmul.f32 %v3563, 0.2
    %v3568 = vmul.f32 %v3564, 0.2
    %v3569 = vsel %vm3565, %v3563, %v3567
    %v3570 = vsel %vm3566, %v3564, %v3568
    %v3571 = vmul.f32 %v2558, %v3569
    %v3572 = vmul.f32 %v2558, %v3570
    %v3573 = vadd.f32 %v3549, %v3571
    %v3574 = vadd.f32 %v3550, %v3572
    %3575 = vset.pattern.permute.xlu0 42
    %3576 = vperm.xlu0 %3575, %v319
    %v3577 = vpop.permute.xlu0 %3576
    %3579 = vset.pattern.permute.xlu0 42
    %3580 = vperm.xlu0 %3579, %v324
    %v3581 = vpop.permute.xlu0 %3580
    %v3583 = vlaneseq
    %v3584 = vshrl.u32 %v3583, 7
    %v3585 = vsub.s32 2, %v3584
    %v3586 = vrot.slane %v622, %v3585
    %v3587 = vadd.f32 %v3577, %v3586
    %v3588 = vadd.f32 %v3581, %v3586
    %vm3589 = vcmp.ge.f32.partialorder %v3587, 0.0
    %vm3590 = vcmp.ge.f32.partialorder %v3588, 0.0
    %v3591 = vmul.f32 %v3587, 0.2
    %v3592 = vmul.f32 %v3588, 0.2
    %v3593 = vsel %vm3589, %v3587, %v3591
    %v3594 = vsel %vm3590, %v3588, %v3592
    %v3595 = vmul.f32 %v2584, %v3593
    %v3596 = vmul.f32 %v2584, %v3594
    %v3597 = vadd.f32 %v3573, %v3595
    %v3598 = vadd.f32 %v3574, %v3596
    %3599 = vset.pattern.permute.xlu0 43
    %3600 = vperm.xlu0 %3599, %v319
    %v3601 = vpop.permute.xlu0 %3600
    %3603 = vset.pattern.permute.xlu0 43
    %3604 = vperm.xlu0 %3603, %v324
    %v3605 = vpop.permute.xlu0 %3604
    %v3607 = vlaneseq
    %v3608 = vshrl.u32 %v3607, 7
    %v3609 = vsub.s32 3, %v3608
    %v3610 = vrot.slane %v622, %v3609
    %v3611 = vadd.f32 %v3601, %v3610
    %v3612 = vadd.f32 %v3605, %v3610
    %vm3613 = vcmp.ge.f32.partialorder %v3611, 0.0
    %vm3614 = vcmp.ge.f32.partialorder %v3612, 0.0
    %v3615 = vmul.f32 %v3611, 0.2
    %v3616 = vmul.f32 %v3612, 0.2
    %v3617 = vsel %vm3613, %v3611, %v3615
    %v3618 = vsel %vm3614, %v3612, %v3616
    %v3619 = vmul.f32 %v2610, %v3617
    %v3620 = vmul.f32 %v2610, %v3618
    %v3621 = vadd.f32 %v3597, %v3619
    %v3622 = vadd.f32 %v3598, %v3620
    %3623 = vset.pattern.permute.xlu0 44
    %3624 = vperm.xlu0 %3623, %v319
    %v3625 = vpop.permute.xlu0 %3624
    %3627 = vset.pattern.permute.xlu0 44
    %3628 = vperm.xlu0 %3627, %v324
    %v3629 = vpop.permute.xlu0 %3628
    %v3631 = vlaneseq
    %v3632 = vshrl.u32 %v3631, 7
    %v3633 = vsub.s32 4, %v3632
    %v3634 = vrot.slane %v622, %v3633
    %v3635 = vadd.f32 %v3625, %v3634
    %v3636 = vadd.f32 %v3629, %v3634
    %vm3637 = vcmp.ge.f32.partialorder %v3635, 0.0
    %vm3638 = vcmp.ge.f32.partialorder %v3636, 0.0
    %v3639 = vmul.f32 %v3635, 0.2
    %v3640 = vmul.f32 %v3636, 0.2
    %v3641 = vsel %vm3637, %v3635, %v3639
    %v3642 = vsel %vm3638, %v3636, %v3640
    %v3643 = vmul.f32 %v2636, %v3641
    %v3644 = vmul.f32 %v2636, %v3642
    %v3645 = vadd.f32 %v3621, %v3643
    %v3646 = vadd.f32 %v3622, %v3644
    %3647 = vset.pattern.permute.xlu0 45
    %3648 = vperm.xlu0 %3647, %v319
    %v3649 = vpop.permute.xlu0 %3648
    %3651 = vset.pattern.permute.xlu0 45
    %3652 = vperm.xlu0 %3651, %v324
    %v3653 = vpop.permute.xlu0 %3652
    %v3655 = vlaneseq
    %v3656 = vshrl.u32 %v3655, 7
    %v3657 = vsub.s32 5, %v3656
    %v3658 = vrot.slane %v622, %v3657
    %v3659 = vadd.f32 %v3649, %v3658
    %v3660 = vadd.f32 %v3653, %v3658
    %vm3661 = vcmp.ge.f32.partialorder %v3659, 0.0
    %vm3662 = vcmp.ge.f32.partialorder %v3660, 0.0
    %v3663 = vmul.f32 %v3659, 0.2
    %v3664 = vmul.f32 %v3660, 0.2
    %v3665 = vsel %vm3661, %v3659, %v3663
    %v3666 = vsel %vm3662, %v3660, %v3664
    %v3667 = vmul.f32 %v2662, %v3665
    %v3668 = vmul.f32 %v2662, %v3666
    %v3669 = vadd.f32 %v3645, %v3667
    %v3670 = vadd.f32 %v3646, %v3668
    %3671 = vset.pattern.permute.xlu0 46
    %3672 = vperm.xlu0 %3671, %v319
    %v3673 = vpop.permute.xlu0 %3672
    %3675 = vset.pattern.permute.xlu0 46
    %3676 = vperm.xlu0 %3675, %v324
    %v3677 = vpop.permute.xlu0 %3676
    %v3679 = vlaneseq
    %v3680 = vshrl.u32 %v3679, 7
    %v3681 = vsub.s32 6, %v3680
    %v3682 = vrot.slane %v622, %v3681
    %v3683 = vadd.f32 %v3673, %v3682
    %v3684 = vadd.f32 %v3677, %v3682
    %vm3685 = vcmp.ge.f32.partialorder %v3683, 0.0
    %vm3686 = vcmp.ge.f32.partialorder %v3684, 0.0
    %v3687 = vmul.f32 %v3683, 0.2
    %v3688 = vmul.f32 %v3684, 0.2
    %v3689 = vsel %vm3685, %v3683, %v3687
    %v3690 = vsel %vm3686, %v3684, %v3688
    %v3691 = vmul.f32 %v2688, %v3689
    %v3692 = vmul.f32 %v2688, %v3690
    %v3693 = vadd.f32 %v3669, %v3691
    %v3694 = vadd.f32 %v3670, %v3692
    %3695 = vset.pattern.permute.xlu0 47
    %3696 = vperm.xlu0 %3695, %v319
    %v3697 = vpop.permute.xlu0 %3696
    %3699 = vset.pattern.permute.xlu0 47
    %3700 = vperm.xlu0 %3699, %v324
    %v3701 = vpop.permute.xlu0 %3700
    %v3703 = vlaneseq
    %v3704 = vshrl.u32 %v3703, 7
    %v3705 = vsub.s32 7, %v3704
    %v3706 = vrot.slane %v622, %v3705
    %v3707 = vadd.f32 %v3697, %v3706
    %v3708 = vadd.f32 %v3701, %v3706
    %vm3709 = vcmp.ge.f32.partialorder %v3707, 0.0
    %vm3710 = vcmp.ge.f32.partialorder %v3708, 0.0
    %v3711 = vmul.f32 %v3707, 0.2
    %v3712 = vmul.f32 %v3708, 0.2
    %v3713 = vsel %vm3709, %v3707, %v3711
    %v3714 = vsel %vm3710, %v3708, %v3712
    %v3715 = vmul.f32 %v2714, %v3713
    %v3716 = vmul.f32 %v2714, %v3714
    %v3717 = vadd.f32 %v3693, %v3715
    %v3718 = vadd.f32 %v3694, %v3716
    %3719 = vset.pattern.permute.xlu0 48
    %3720 = vperm.xlu0 %3719, %v319
    %v3721 = vpop.permute.xlu0 %3720
    %3723 = vset.pattern.permute.xlu0 48
    %3724 = vperm.xlu0 %3723, %v324
    %v3725 = vpop.permute.xlu0 %3724
    %v3727 = vlaneseq
    %v3728 = vshrl.u32 %v3727, 7
    %v3729 = vsub.s32 0, %v3728
    %v3730 = vrot.slane %v627, %v3729
    %v3731 = vadd.f32 %v3721, %v3730
    %v3732 = vadd.f32 %v3725, %v3730
    %vm3733 = vcmp.ge.f32.partialorder %v3731, 0.0
    %vm3734 = vcmp.ge.f32.partialorder %v3732, 0.0
    %v3735 = vmul.f32 %v3731, 0.2
    %v3736 = vmul.f32 %v3732, 0.2
    %v3737 = vsel %vm3733, %v3731, %v3735
    %v3738 = vsel %vm3734, %v3732, %v3736
    %v3739 = vmul.f32 %v2740, %v3737
    %v3740 = vmul.f32 %v2740, %v3738
    %v3741 = vadd.f32 %v3717, %v3739
    %v3742 = vadd.f32 %v3718, %v3740
    %3743 = vset.pattern.permute.xlu0 49
    %3744 = vperm.xlu0 %3743, %v319
    %v3745 = vpop.permute.xlu0 %3744
    %3747 = vset.pattern.permute.xlu0 49
    %3748 = vperm.xlu0 %3747, %v324
    %v3749 = vpop.permute.xlu0 %3748
    %v3751 = vlaneseq
    %v3752 = vshrl.u32 %v3751, 7
    %v3753 = vsub.s32 1, %v3752
    %v3754 = vrot.slane %v627, %v3753
    %v3755 = vadd.f32 %v3745, %v3754
    %v3756 = vadd.f32 %v3749, %v3754
    %vm3757 = vcmp.ge.f32.partialorder %v3755, 0.0
    %vm3758 = vcmp.ge.f32.partialorder %v3756, 0.0
    %v3759 = vmul.f32 %v3755, 0.2
    %v3760 = vmul.f32 %v3756, 0.2
    %v3761 = vsel %vm3757, %v3755, %v3759
    %v3762 = vsel %vm3758, %v3756, %v3760
    %v3763 = vmul.f32 %v2766, %v3761
    %v3764 = vmul.f32 %v2766, %v3762
    %v3765 = vadd.f32 %v3741, %v3763
    %v3766 = vadd.f32 %v3742, %v3764
    %3767 = vset.pattern.permute.xlu0 50
    %3768 = vperm.xlu0 %3767, %v319
    %v3769 = vpop.permute.xlu0 %3768
    %3771 = vset.pattern.permute.xlu0 50
    %3772 = vperm.xlu0 %3771, %v324
    %v3773 = vpop.permute.xlu0 %3772
    %v3775 = vlaneseq
    %v3776 = vshrl.u32 %v3775, 7
    %v3777 = vsub.s32 2, %v3776
    %v3778 = vrot.slane %v627, %v3777
    %v3779 = vadd.f32 %v3769, %v3778
    %v3780 = vadd.f32 %v3773, %v3778
    %vm3781 = vcmp.ge.f32.partialorder %v3779, 0.0
    %vm3782 = vcmp.ge.f32.partialorder %v3780, 0.0
    %v3783 = vmul.f32 %v3779, 0.2
    %v3784 = vmul.f32 %v3780, 0.2
    %v3785 = vsel %vm3781, %v3779, %v3783
    %v3786 = vsel %vm3782, %v3780, %v3784
    %v3787 = vmul.f32 %v2792, %v3785
    %v3788 = vmul.f32 %v2792, %v3786
    %v3789 = vadd.f32 %v3765, %v3787
    %v3790 = vadd.f32 %v3766, %v3788
    %3791 = vset.pattern.permute.xlu0 51
    %3792 = vperm.xlu0 %3791, %v319
    %v3793 = vpop.permute.xlu0 %3792
    %3795 = vset.pattern.permute.xlu0 51
    %3796 = vperm.xlu0 %3795, %v324
    %v3797 = vpop.permute.xlu0 %3796
    %v3799 = vlaneseq
    %v3800 = vshrl.u32 %v3799, 7
    %v3801 = vsub.s32 3, %v3800
    %v3802 = vrot.slane %v627, %v3801
    %v3803 = vadd.f32 %v3793, %v3802
    %v3804 = vadd.f32 %v3797, %v3802
    %vm3805 = vcmp.ge.f32.partialorder %v3803, 0.0
    %vm3806 = vcmp.ge.f32.partialorder %v3804, 0.0
    %v3807 = vmul.f32 %v3803, 0.2
    %v3808 = vmul.f32 %v3804, 0.2
    %v3809 = vsel %vm3805, %v3803, %v3807
    %v3810 = vsel %vm3806, %v3804, %v3808
    %v3811 = vmul.f32 %v2818, %v3809
    %v3812 = vmul.f32 %v2818, %v3810
    %v3813 = vadd.f32 %v3789, %v3811
    %v3814 = vadd.f32 %v3790, %v3812
    %3815 = vset.pattern.permute.xlu0 52
    %3816 = vperm.xlu0 %3815, %v319
    %v3817 = vpop.permute.xlu0 %3816
    %3819 = vset.pattern.permute.xlu0 52
    %3820 = vperm.xlu0 %3819, %v324
    %v3821 = vpop.permute.xlu0 %3820
    %v3823 = vlaneseq
    %v3824 = vshrl.u32 %v3823, 7
    %v3825 = vsub.s32 4, %v3824
    %v3826 = vrot.slane %v627, %v3825
    %v3827 = vadd.f32 %v3817, %v3826
    %v3828 = vadd.f32 %v3821, %v3826
    %vm3829 = vcmp.ge.f32.partialorder %v3827, 0.0
    %vm3830 = vcmp.ge.f32.partialorder %v3828, 0.0
    %v3831 = vmul.f32 %v3827, 0.2
    %v3832 = vmul.f32 %v3828, 0.2
    %v3833 = vsel %vm3829, %v3827, %v3831
    %v3834 = vsel %vm3830, %v3828, %v3832
    %v3835 = vmul.f32 %v2844, %v3833
    %v3836 = vmul.f32 %v2844, %v3834
    %v3837 = vadd.f32 %v3813, %v3835
    %v3838 = vadd.f32 %v3814, %v3836
    %3839 = vset.pattern.permute.xlu0 53
    %3840 = vperm.xlu0 %3839, %v319
    %v3841 = vpop.permute.xlu0 %3840
    %3843 = vset.pattern.permute.xlu0 53
    %3844 = vperm.xlu0 %3843, %v324
    %v3845 = vpop.permute.xlu0 %3844
    %v3847 = vlaneseq
    %v3848 = vshrl.u32 %v3847, 7
    %v3849 = vsub.s32 5, %v3848
    %v3850 = vrot.slane %v627, %v3849
    %v3851 = vadd.f32 %v3841, %v3850
    %v3852 = vadd.f32 %v3845, %v3850
    %vm3853 = vcmp.ge.f32.partialorder %v3851, 0.0
    %vm3854 = vcmp.ge.f32.partialorder %v3852, 0.0
    %v3855 = vmul.f32 %v3851, 0.2
    %v3856 = vmul.f32 %v3852, 0.2
    %v3857 = vsel %vm3853, %v3851, %v3855
    %v3858 = vsel %vm3854, %v3852, %v3856
    %v3859 = vmul.f32 %v2870, %v3857
    %v3860 = vmul.f32 %v2870, %v3858
    %v3861 = vadd.f32 %v3837, %v3859
    %v3862 = vadd.f32 %v3838, %v3860
    %3863 = vset.pattern.permute.xlu0 54
    %3864 = vperm.xlu0 %3863, %v319
    %v3865 = vpop.permute.xlu0 %3864
    %3867 = vset.pattern.permute.xlu0 54
    %3868 = vperm.xlu0 %3867, %v324
    %v3869 = vpop.permute.xlu0 %3868
    %v3871 = vlaneseq
    %v3872 = vshrl.u32 %v3871, 7
    %v3873 = vsub.s32 6, %v3872
    %v3874 = vrot.slane %v627, %v3873
    %v3875 = vadd.f32 %v3865, %v3874
    %v3876 = vadd.f32 %v3869, %v3874
    %vm3877 = vcmp.ge.f32.partialorder %v3875, 0.0
    %vm3878 = vcmp.ge.f32.partialorder %v3876, 0.0
    %v3879 = vmul.f32 %v3875, 0.2
    %v3880 = vmul.f32 %v3876, 0.2
    %v3881 = vsel %vm3877, %v3875, %v3879
    %v3882 = vsel %vm3878, %v3876, %v3880
    %v3883 = vmul.f32 %v2896, %v3881
    %v3884 = vmul.f32 %v2896, %v3882
    %v3885 = vadd.f32 %v3861, %v3883
    %v3886 = vadd.f32 %v3862, %v3884
    %3887 = vset.pattern.permute.xlu0 55
    %3888 = vperm.xlu0 %3887, %v319
    %v3889 = vpop.permute.xlu0 %3888
    %3891 = vset.pattern.permute.xlu0 55
    %3892 = vperm.xlu0 %3891, %v324
    %v3893 = vpop.permute.xlu0 %3892
    %v3895 = vlaneseq
    %v3896 = vshrl.u32 %v3895, 7
    %v3897 = vsub.s32 7, %v3896
    %v3898 = vrot.slane %v627, %v3897
    %v3899 = vadd.f32 %v3889, %v3898
    %v3900 = vadd.f32 %v3893, %v3898
    %vm3901 = vcmp.ge.f32.partialorder %v3899, 0.0
    %vm3902 = vcmp.ge.f32.partialorder %v3900, 0.0
    %v3903 = vmul.f32 %v3899, 0.2
    %v3904 = vmul.f32 %v3900, 0.2
    %v3905 = vsel %vm3901, %v3899, %v3903
    %v3906 = vsel %vm3902, %v3900, %v3904
    %v3907 = vmul.f32 %v2922, %v3905
    %v3908 = vmul.f32 %v2922, %v3906
    %v3909 = vadd.f32 %v3885, %v3907
    %v3910 = vadd.f32 %v3886, %v3908
    %3911 = vset.pattern.permute.xlu0 56
    %3912 = vperm.xlu0 %3911, %v319
    %v3913 = vpop.permute.xlu0 %3912
    %3915 = vset.pattern.permute.xlu0 56
    %3916 = vperm.xlu0 %3915, %v324
    %v3917 = vpop.permute.xlu0 %3916
    %v3919 = vlaneseq
    %v3920 = vshrl.u32 %v3919, 7
    %v3921 = vsub.s32 0, %v3920
    %v3922 = vrot.slane %v632, %v3921
    %v3923 = vadd.f32 %v3913, %v3922
    %v3924 = vadd.f32 %v3917, %v3922
    %vm3925 = vcmp.ge.f32.partialorder %v3923, 0.0
    %vm3926 = vcmp.ge.f32.partialorder %v3924, 0.0
    %v3927 = vmul.f32 %v3923, 0.2
    %v3928 = vmul.f32 %v3924, 0.2
    %v3929 = vsel %vm3925, %v3923, %v3927
    %v3930 = vsel %vm3926, %v3924, %v3928
    %v3931 = vmul.f32 %v2948, %v3929
    %v3932 = vmul.f32 %v2948, %v3930
    %v3933 = vadd.f32 %v3909, %v3931
    %v3934 = vadd.f32 %v3910, %v3932
    %3935 = vset.pattern.permute.xlu0 57
    %3936 = vperm.xlu0 %3935, %v319
    %v3937 = vpop.permute.xlu0 %3936
    %3939 = vset.pattern.permute.xlu0 57
    %3940 = vperm.xlu0 %3939, %v324
    %v3941 = vpop.permute.xlu0 %3940
    %v3943 = vlaneseq
    %v3944 = vshrl.u32 %v3943, 7
    %v3945 = vsub.s32 1, %v3944
    %v3946 = vrot.slane %v632, %v3945
    %v3947 = vadd.f32 %v3937, %v3946
    %v3948 = vadd.f32 %v3941, %v3946
    %vm3949 = vcmp.ge.f32.partialorder %v3947, 0.0
    %vm3950 = vcmp.ge.f32.partialorder %v3948, 0.0
    %v3951 = vmul.f32 %v3947, 0.2
    %v3952 = vmul.f32 %v3948, 0.2
    %v3953 = vsel %vm3949, %v3947, %v3951
    %v3954 = vsel %vm3950, %v3948, %v3952
    %v3955 = vmul.f32 %v2974, %v3953
    %v3956 = vmul.f32 %v2974, %v3954
    %v3957 = vadd.f32 %v3933, %v3955
    %v3958 = vadd.f32 %v3934, %v3956
    %3959 = vset.pattern.permute.xlu0 58
    %3960 = vperm.xlu0 %3959, %v319
    %v3961 = vpop.permute.xlu0 %3960
    %3963 = vset.pattern.permute.xlu0 58
    %3964 = vperm.xlu0 %3963, %v324
    %v3965 = vpop.permute.xlu0 %3964
    %v3967 = vlaneseq
    %v3968 = vshrl.u32 %v3967, 7
    %v3969 = vsub.s32 2, %v3968
    %v3970 = vrot.slane %v632, %v3969
    %v3971 = vadd.f32 %v3961, %v3970
    %v3972 = vadd.f32 %v3965, %v3970
    %vm3973 = vcmp.ge.f32.partialorder %v3971, 0.0
    %vm3974 = vcmp.ge.f32.partialorder %v3972, 0.0
    %v3975 = vmul.f32 %v3971, 0.2
    %v3976 = vmul.f32 %v3972, 0.2
    %v3977 = vsel %vm3973, %v3971, %v3975
    %v3978 = vsel %vm3974, %v3972, %v3976
    %v3979 = vmul.f32 %v3000, %v3977
    %v3980 = vmul.f32 %v3000, %v3978
    %v3981 = vadd.f32 %v3957, %v3979
    %v3982 = vadd.f32 %v3958, %v3980
    %3983 = vset.pattern.permute.xlu0 59
    %3984 = vperm.xlu0 %3983, %v319
    %v3985 = vpop.permute.xlu0 %3984
    %3987 = vset.pattern.permute.xlu0 59
    %3988 = vperm.xlu0 %3987, %v324
    %v3989 = vpop.permute.xlu0 %3988
    %v3991 = vlaneseq
    %v3992 = vshrl.u32 %v3991, 7
    %v3993 = vsub.s32 3, %v3992
    %v3994 = vrot.slane %v632, %v3993
    %v3995 = vadd.f32 %v3985, %v3994
    %v3996 = vadd.f32 %v3989, %v3994
    %vm3997 = vcmp.ge.f32.partialorder %v3995, 0.0
    %vm3998 = vcmp.ge.f32.partialorder %v3996, 0.0
    %v3999 = vmul.f32 %v3995, 0.2
    %v4000 = vmul.f32 %v3996, 0.2
    %v4001 = vsel %vm3997, %v3995, %v3999
    %v4002 = vsel %vm3998, %v3996, %v4000
    %v4003 = vmul.f32 %v3026, %v4001
    %v4004 = vmul.f32 %v3026, %v4002
    %v4005 = vadd.f32 %v3981, %v4003
    %v4006 = vadd.f32 %v3982, %v4004
    %4007 = vset.pattern.permute.xlu0 60
    %4008 = vperm.xlu0 %4007, %v319
    %v4009 = vpop.permute.xlu0 %4008
    %4011 = vset.pattern.permute.xlu0 60
    %4012 = vperm.xlu0 %4011, %v324
    %v4013 = vpop.permute.xlu0 %4012
    %v4015 = vlaneseq
    %v4016 = vshrl.u32 %v4015, 7
    %v4017 = vsub.s32 4, %v4016
    %v4018 = vrot.slane %v632, %v4017
    %v4019 = vadd.f32 %v4009, %v4018
    %v4020 = vadd.f32 %v4013, %v4018
    %vm4021 = vcmp.ge.f32.partialorder %v4019, 0.0
    %vm4022 = vcmp.ge.f32.partialorder %v4020, 0.0
    %v4023 = vmul.f32 %v4019, 0.2
    %v4024 = vmul.f32 %v4020, 0.2
    %v4025 = vsel %vm4021, %v4019, %v4023
    %v4026 = vsel %vm4022, %v4020, %v4024
    %v4027 = vmul.f32 %v3052, %v4025
    %v4028 = vmul.f32 %v3052, %v4026
    %v4029 = vadd.f32 %v4005, %v4027
    %v4030 = vadd.f32 %v4006, %v4028
    %4031 = vset.pattern.permute.xlu0 61
    %4032 = vperm.xlu0 %4031, %v319
    %v4033 = vpop.permute.xlu0 %4032
    %4035 = vset.pattern.permute.xlu0 61
    %4036 = vperm.xlu0 %4035, %v324
    %v4037 = vpop.permute.xlu0 %4036
    %v4039 = vlaneseq
    %v4040 = vshrl.u32 %v4039, 7
    %v4041 = vsub.s32 5, %v4040
    %v4042 = vrot.slane %v632, %v4041
    %v4043 = vadd.f32 %v4033, %v4042
    %v4044 = vadd.f32 %v4037, %v4042
    %vm4045 = vcmp.ge.f32.partialorder %v4043, 0.0
    %vm4046 = vcmp.ge.f32.partialorder %v4044, 0.0
    %v4047 = vmul.f32 %v4043, 0.2
    %v4048 = vmul.f32 %v4044, 0.2
    %v4049 = vsel %vm4045, %v4043, %v4047
    %v4050 = vsel %vm4046, %v4044, %v4048
    %v4051 = vmul.f32 %v3078, %v4049
    %v4052 = vmul.f32 %v3078, %v4050
    %v4053 = vadd.f32 %v4029, %v4051
    %v4054 = vadd.f32 %v4030, %v4052
    %4055 = vset.pattern.permute.xlu0 62
    %4056 = vperm.xlu0 %4055, %v319
    %v4057 = vpop.permute.xlu0 %4056
    %4059 = vset.pattern.permute.xlu0 62
    %4060 = vperm.xlu0 %4059, %v324
    %v4061 = vpop.permute.xlu0 %4060
    %v4063 = vlaneseq
    %v4064 = vshrl.u32 %v4063, 7
    %v4065 = vsub.s32 6, %v4064
    %v4066 = vrot.slane %v632, %v4065
    %v4067 = vadd.f32 %v4057, %v4066
    %v4068 = vadd.f32 %v4061, %v4066
    %vm4069 = vcmp.ge.f32.partialorder %v4067, 0.0
    %vm4070 = vcmp.ge.f32.partialorder %v4068, 0.0
    %v4071 = vmul.f32 %v4067, 0.2
    %v4072 = vmul.f32 %v4068, 0.2
    %v4073 = vsel %vm4069, %v4067, %v4071
    %v4074 = vsel %vm4070, %v4068, %v4072
    %v4075 = vmul.f32 %v3104, %v4073
    %v4076 = vmul.f32 %v3104, %v4074
    %v4077 = vadd.f32 %v4053, %v4075
    %v4078 = vadd.f32 %v4054, %v4076
    %4079 = vset.pattern.permute.xlu0 63
    %4080 = vperm.xlu0 %4079, %v319
    %v4081 = vpop.permute.xlu0 %4080
    %4083 = vset.pattern.permute.xlu0 63
    %4084 = vperm.xlu0 %4083, %v324
    %v4085 = vpop.permute.xlu0 %4084
    %v4087 = vlaneseq
    %v4088 = vshrl.u32 %v4087, 7
    %v4089 = vsub.s32 7, %v4088
    %v4090 = vrot.slane %v632, %v4089
    %v4091 = vadd.f32 %v4081, %v4090
    %v4092 = vadd.f32 %v4085, %v4090
    %vm4093 = vcmp.ge.f32.partialorder %v4091, 0.0
    %vm4094 = vcmp.ge.f32.partialorder %v4092, 0.0
    %v4095 = vmul.f32 %v4091, 0.2
    %v4096 = vmul.f32 %v4092, 0.2
    %v4097 = vsel %vm4093, %v4091, %v4095
    %v4098 = vsel %vm4094, %v4092, %v4096
    %v4099 = vmul.f32 %v3130, %v4097
    %v4100 = vmul.f32 %v3130, %v4098
    %v4101 = vadd.f32 %v4077, %v4099
    %v4102 = vadd.f32 %v4078, %v4100
    %v4103 = vadd.f32 %v4101, %v231
    %v4104 = vadd.f32 %v4102, %v232
    %v4105 = vsel %vm1471, %v4103, -inf
    %v4106 = vsel %vm1471, %v4104, -inf
    %v4107 = vmax.f32 %v4105, %v4106
    %v4108 = vrot.slane %v4107, 4
    %v4109 = vmax.f32 %v4107, %v4108
    %v4110 = vrot.slane %v4109, 2
    %v4111 = vmax.f32 %v4109, %v4110
    %v4112 = vrot.slane %v4111, 1
    %v4113 = vmax.f32 %v4111, %v4112
    %v4114 = vsub.f32 %v4103, %v4113
    %v4115 = vsub.f32 %v4104, %v4113
    %v4116 = vmul.f32 %v4114, 1.442695
    %v4117 = vpow.pop %v4116
    %v4118 = vmul.f32 %v4115, 1.442695
    %v4119 = vpow.pop %v4118
    %v4120 = vsel %vm1471, %v4117, 0.0
    %v4121 = vsel %vm1471, %v4119, 0.0
    %v4122 = vadd.f32 %v4120, %v4121
    %v4123 = vrot.slane %v4122, 4
    %v4124 = vadd.f32 %v4122, %v4123
    %v4125 = vrot.slane %v4124, 2
    %v4126 = vadd.f32 %v4124, %v4125
    %v4127 = vrot.slane %v4126, 1
    %v4128 = vadd.f32 %v4126, %v4127
    %v4129 = vmax.f32 %v4128, 1e-20
    %v4130 = vrcp.pop %v4129
    %v4131 = vmul.f32 %v4129, %v4130
    %v4132 = vsub.f32 2.0, %v4131
    %v4133 = vmul.f32 %v4130, %v4132
    %v4134 = vmul.f32 %v4117, %v4133
    %v4135 = vmul.f32 %v4119, %v4133
    %v4137 = vsel %vm1471, %v577, 0
    %v4140 = vsel %vm1471, %v582, 0
    %v4143 = vsel %vm1471, %v587, 0
    %v4146 = vsel %vm1471, %v592, 0
    %4148 = vmatprep.subr.mxu0 0.0
    %4149 = vmatpush1.msra.mxu0 0.0
    %4150 = vmatprep.subr.mxu0 0.0
    %4151 = vmatpush1.msra.mxu0 0.0
    %4152 = vmatprep.subr.mxu0 0.0
    %4153 = vmatpush1.msra.mxu0 0.0
    %4154 = vmatprep.subr.mxu0 0.0
    %4155 = vmatpush1.msra.mxu0 0.0
    %4156 = vmatprep.subr.mxu0 0.0
    %4157 = vmatpush1.msra.mxu0 0.0
    %4158 = vmatprep.subr.mxu0 0.0
    %4159 = vmatpush1.msra.mxu0 0.0
    %4160 = vmatprep.subr.mxu0 0.0
    %4161 = vmatpush1.msra.mxu0 0.0
    %4162 = vmatprep.subr.mxu0 0.0
    %4163 = vmatpush1.msra.mxu0 0.0
    %4164 = vmatprep.subr.mxu0 0.0
    %4165 = vmatpush1.msra.mxu0 0.0
    %4166 = vmatprep.subr.mxu0 0.0
    %4167 = vmatpush1.msra.mxu0 0.0
    %4168 = vmatprep.subr.mxu0 0.0
    %4169 = vmatpush1.msra.mxu0 0.0
    %4170 = vmatprep.subr.mxu0 0.0
    %4171 = vmatpush1.msra.mxu0 0.0
    %4172 = vmatprep.subr.mxu0 0.0
    %4173 = vmatpush1.msra.mxu0 0.0
    %4174 = vmatprep.subr.mxu0 0.0
    %4175 = vmatpush1.msra.mxu0 0.0
    %4176 = vmatprep.subr.mxu0 0.0
    %4177 = vmatpush1.msra.mxu0 %v4135
    %4178 = vmatprep.subr.mxu0 0.0
    %4179 = vmatpush1.msra.mxu0 %v4134
    %4180 = vmatprep.subr.mxu0 0.0
    %4181 = vmatpush2.msra.mxu0 0.0
    %4182 = vmatprep.subr.mxu0 0.0
    %4183 = vmatpush2.msra.mxu0 0.0
    %4184 = vmatprep.subr.mxu0 0.0
    %4185 = vmatpush2.msra.mxu0 0.0
    %4186 = vmatprep.subr.mxu0 0.0
    %4187 = vmatpush2.msra.mxu0 0.0
    %4188 = vmatprep.subr.mxu0 0.0
    %4189 = vmatpush2.msra.mxu0 0.0
    %4190 = vmatprep.subr.mxu0 0.0
    %4191 = vmatpush2.msra.mxu0 0.0
    %4192 = vmatprep.subr.mxu0 0.0
    %4193 = vmatpush2.msra.mxu0 0.0
    %4194 = vmatprep.subr.mxu0 0.0
    %4195 = vmatpush2.msra.mxu0 0.0
    %4196 = vmatprep.subr.mxu0 0.0
    %4197 = vmatpush2.msra.mxu0 0.0
    %4198 = vmatprep.subr.mxu0 0.0
    %4199 = vmatpush2.msra.mxu0 0.0
    %4200 = vmatprep.subr.mxu0 0.0
    %4201 = vmatpush2.msra.mxu0 0.0
    %4202 = vmatprep.subr.mxu0 0.0
    %4203 = vmatpush2.msra.mxu0 0.0
    %4204 = vmatprep.subr.mxu0 0.0
    %4205 = vmatpush2.msra.mxu0 0.0
    %4206 = vmatprep.subr.mxu0 0.0
    %4207 = vmatpush2.msra.mxu0 0.0
    %4208 = vmatprep.subr.mxu0 0.0
    %4209 = vmatpush2.msra.mxu0 0.0
    %4210 = vmatprep.subr.mxu0 0.0
    %4211 = vmatpush2.msra.mxu0 0.0
    %4212 = vmatprep.mubr.f32.mxu0 0.0
    %4213 = vmatmul.mubr.f32.gmra.mxu0 %v4137
    %v4214 = vpop.f32.mrf.mxu0
    %v4215 = vadd.f32 0.0, %v4214
    %v4216 = vpop.f32.mrf.mxu0
    %4217 = vmatprep.mubr.f32.mxu0 0.0
    %4218 = vmatmul.mubr.f32.gmra.mxu0 %v4140
    %v4219 = vpop.f32.mrf.mxu0
    %v4220 = vadd.f32 0.0, %v4219
    %v4221 = vpop.f32.mrf.mxu0
    %4222 = vmatprep.mubr.f32.mxu0 0.0
    %4223 = vmatmul.mubr.f32.gmra.mxu0 %v4143
    %v4224 = vpop.f32.mrf.mxu0
    %v4225 = vadd.f32 0.0, %v4224
    %v4226 = vpop.f32.mrf.mxu0
    %4227 = vmatprep.mubr.f32.mxu0 0.0
    %4228 = vmatmul.mubr.f32.gmra.mxu0 %v4146
    %v4229 = vpop.f32.mrf.mxu0
    %v4230 = vadd.f32 0.0, %v4229
    %v4231 = vpop.f32.mrf.mxu0
    %4232 = vdwg.mxu0
    %v4234 = vsel %vm1471, %v557, 0
    %v4237 = vsel %vm1471, %v562, 0
    %v4240 = vsel %vm1471, %v567, 0
    %v4243 = vsel %vm1471, %v572, 0
    %4245 = vmatprep.subr.mxu0 0.0
    %4246 = vmatpush1.msra.mxu0 0.0
    %4247 = vmatprep.subr.mxu0 0.0
    %4248 = vmatpush1.msra.mxu0 0.0
    %4249 = vmatprep.subr.mxu0 0.0
    %4250 = vmatpush1.msra.mxu0 0.0
    %4251 = vmatprep.subr.mxu0 0.0
    %4252 = vmatpush1.msra.mxu0 0.0
    %4253 = vmatprep.subr.mxu0 0.0
    %4254 = vmatpush1.msra.mxu0 0.0
    %4255 = vmatprep.subr.mxu0 0.0
    %4256 = vmatpush1.msra.mxu0 0.0
    %4257 = vmatprep.subr.mxu0 0.0
    %4258 = vmatpush1.msra.mxu0 0.0
    %4259 = vmatprep.subr.mxu0 0.0
    %4260 = vmatpush1.msra.mxu0 0.0
    %4261 = vmatprep.subr.mxu0 0.0
    %4262 = vmatpush1.msra.mxu0 0.0
    %4263 = vmatprep.subr.mxu0 0.0
    %4264 = vmatpush1.msra.mxu0 0.0
    %4265 = vmatprep.subr.mxu0 0.0
    %4266 = vmatpush1.msra.mxu0 0.0
    %4267 = vmatprep.subr.mxu0 0.0
    %4268 = vmatpush1.msra.mxu0 0.0
    %4269 = vmatprep.subr.mxu0 0.0
    %4270 = vmatpush1.msra.mxu0 0.0
    %4271 = vmatprep.subr.mxu0 0.0
    %4272 = vmatpush1.msra.mxu0 0.0
    %4273 = vmatprep.subr.mxu0 0.0
    %4274 = vmatpush1.msra.mxu0 %v2302
    %4275 = vmatprep.subr.mxu0 0.0
    %4276 = vmatpush1.msra.mxu0 %v2301
    %4277 = vmatprep.subr.mxu0 0.0
    %4278 = vmatpush2.msra.mxu0 0.0
    %4279 = vmatprep.subr.mxu0 0.0
    %4280 = vmatpush2.msra.mxu0 0.0
    %4281 = vmatprep.subr.mxu0 0.0
    %4282 = vmatpush2.msra.mxu0 0.0
    %4283 = vmatprep.subr.mxu0 0.0
    %4284 = vmatpush2.msra.mxu0 0.0
    %4285 = vmatprep.subr.mxu0 0.0
    %4286 = vmatpush2.msra.mxu0 0.0
    %4287 = vmatprep.subr.mxu0 0.0
    %4288 = vmatpush2.msra.mxu0 0.0
    %4289 = vmatprep.subr.mxu0 0.0
    %4290 = vmatpush2.msra.mxu0 0.0
    %4291 = vmatprep.subr.mxu0 0.0
    %4292 = vmatpush2.msra.mxu0 0.0
    %4293 = vmatprep.subr.mxu0 0.0
    %4294 = vmatpush2.msra.mxu0 0.0
    %4295 = vmatprep.subr.mxu0 0.0
    %4296 = vmatpush2.msra.mxu0 0.0
    %4297 = vmatprep.subr.mxu0 0.0
    %4298 = vmatpush2.msra.mxu0 0.0
    %4299 = vmatprep.subr.mxu0 0.0
    %4300 = vmatpush2.msra.mxu0 0.0
    %4301 = vmatprep.subr.mxu0 0.0
    %4302 = vmatpush2.msra.mxu0 0.0
    %4303 = vmatprep.subr.mxu0 0.0
    %4304 = vmatpush2.msra.mxu0 0.0
    %4305 = vmatprep.subr.mxu0 0.0
    %4306 = vmatpush2.msra.mxu0 0.0
    %4307 = vmatprep.subr.mxu0 0.0
    %4308 = vmatpush2.msra.mxu0 0.0
    %4309 = vmatprep.mubr.f32.mxu0 0.0
    %4310 = vmatmul.mubr.f32.gmra.mxu0 %v4234
    %v4311 = vpop.f32.mrf.mxu0
    %v4312 = vadd.f32 %v4215, %v4311
    %v4313 = vpop.f32.mrf.mxu0
    %4314 = vmatprep.mubr.f32.mxu0 0.0
    %4315 = vmatmul.mubr.f32.gmra.mxu0 %v4237
    %v4316 = vpop.f32.mrf.mxu0
    %v4317 = vadd.f32 %v4220, %v4316
    %v4318 = vpop.f32.mrf.mxu0
    %4319 = vmatprep.mubr.f32.mxu0 0.0
    %4320 = vmatmul.mubr.f32.gmra.mxu0 %v4240
    %v4321 = vpop.f32.mrf.mxu0
    %v4322 = vadd.f32 %v4225, %v4321
    %v4323 = vpop.f32.mrf.mxu0
    %4324 = vmatprep.mubr.f32.mxu0 0.0
    %4325 = vmatmul.mubr.f32.gmra.mxu0 %v4243
    %v4326 = vpop.f32.mrf.mxu0
    %v4327 = vadd.f32 %v4230, %v4326
    %v4328 = vpop.f32.mrf.mxu0
    %4329 = vdwg.mxu0
    %v4330 = vmul.f32 %v3327, 0.5
    %v4331 = vmul.f32 %v3332, 0.5
    %v4332 = vld [vmem:[%s19] sm:$0x1]
    %v4334 = vlaneseq
    %v4335 = vshrl.u32 %v4334, 7
    %v4336 = vsub.s32 0, %v4335
    %v4337 = vrot.slane %v4332, %v4336
    %v4339 = vadd.f32 %v4330, %v4337
    %v4340 = vadd.f32 %v4331, %v4337
    %vm4341 = vcmask 261120
    %v4342 = vsel %vm4341, %v4339, 0.0
    %v4343 = vsel %vm4341, %v4340, 0.0
    %v4344 = vadd.f32 %v4342, %v4343
    %v4345 = vrot.slane %v4344, 4
    %v4346 = vadd.f32 %v4344, %v4345
    %v4347 = vrot.slane %v4346, 2
    %v4348 = vadd.f32 %v4346, %v4347
    %v4349 = vrot.slane %v4348, 1
    %v4350 = vadd.f32 %v4348, %v4349
    %v4351 = vrcp.pop 16.0
    %v4352 = vmul.f32 %v4350, %v4351
    %v4353 = vld [vmem:[%s27] sm:$0x1]
    %v4354 = vmul.f32 %v4352, %v4353
    %v4355 = vlaneseq
    %v4356 = vshrl.u32 %v4355, 7
    %v4357 = vsub.s32 0, %v4356
    %v4358 = vrot.slane %v4354, %v4357
    %v4359 = vsub.f32 %v4339, %v4358
    %v4360 = vsub.f32 %v4340, %v4358
    %v4361 = vmul.f32 %v4359, %v4359
    %v4362 = vmul.f32 %v4360, %v4360
    %v4363 = vsel %vm4341, %v4361, 0.0
    %v4364 = vsel %vm4341, %v4362, 0.0
    %v4365 = vadd.f32 %v4363, %v4364
    %v4366 = vrot.slane %v4365, 4
    %v4367 = vadd.f32 %v4365, %v4366
    %v4368 = vrot.slane %v4367, 2
    %v4369 = vadd.f32 %v4367, %v4368
    %v4370 = vrot.slane %v4369, 1
    %v4371 = vadd.f32 %v4369, %v4370
    %v4372 = vmul.f32 %v4371, %v4351
    %v4373 = vld [vmem:[%s23] sm:$0x1]
    %v4375 = vlaneseq
    %v4376 = vshrl.u32 %v4375, 7
    %v4377 = vsub.s32 0, %v4376
    %v4378 = vrot.slane %v4373, %v4377
    %v4380 = vmul.f32 %v4378, %v4359
    %v4381 = vmul.f32 %v4378, %v4360
    %v4382 = vadd.f32 %v4372, 1e-05
    %v4383 = vrsqrt.pop %v4382
    %v4384 = vmul.f32 %v4380, %v4383
    %v4385 = vmul.f32 %v4381, %v4383
    %v4386 = vld [vmem:[%s25] sm:$0x1]
    %v4388 = vlaneseq
    %v4389 = vshrl.u32 %v4388, 7
    %v4390 = vsub.s32 0, %v4389
    %v4391 = vrot.slane %v4386, %v4390
    %v4393 = vadd.f32 %v4384, %v4391
    %v4394 = vadd.f32 %v4385, %v4391
    %v4395 = vmax.f32 %v4393, 0.0
    %v4396 = vmax.f32 %v4394, 0.0
    %v4397 = vmul.f32 %v4312, 0.5
    %v4398 = vmul.f32 %v4317, 0.5
    %v4399 = vmul.f32 %v4322, 0.5
    %v4400 = vmul.f32 %v4327, 0.5
    %v4401 = vld [vmem:[%s21] sm:$0xff]
    %v4402 = vld [vmem:[%s21 + $0x8] sm:$0xff]
    %v4403 = vld [vmem:[%s21 + $0x10] sm:$0xff]
    %v4404 = vld [vmem:[%s21 + $0x18] sm:$0xff]
    %4406 = vset.pattern.permute.xlu0 0
    %4407 = vperm.xlu0 %4406, %v4401
    %v4408 = vpop.permute.xlu0 %4407
    %4411 = vset.pattern.permute.xlu0 0
    %4412 = vperm.xlu0 %4411, %v4402
    %v4413 = vpop.permute.xlu0 %4412
    %4416 = vset.pattern.permute.xlu0 0
    %4417 = vperm.xlu0 %4416, %v4403
    %v4418 = vpop.permute.xlu0 %4417
    %4421 = vset.pattern.permute.xlu0 0
    %4422 = vperm.xlu0 %4421, %v4404
    %v4423 = vpop.permute.xlu0 %4422
    %v4425 = vadd.f32 %v4397, %v4408
    %v4426 = vadd.f32 %v4398, %v4413
    %v4427 = vadd.f32 %v4399, %v4418
    %v4428 = vadd.f32 %v4400, %v4423
    %v4429 = vsel %vm1471, %v4425, 0.0
    %4430 = vadd.xlane.f32.xlu0 %v4429
    %v4431 = vpop.xlane.xlu0 %4430
    %v4432 = vsel %vm1471, %v4426, 0.0
    %4433 = vadd.xlane.f32.xlu0 %v4432
    %v4434 = vpop.xlane.xlu0 %4433
    %v4435 = vsel %vm1471, %v4427, 0.0
    %4436 = vadd.xlane.f32.xlu0 %v4435
    %v4437 = vpop.xlane.xlu0 %4436
    %v4438 = vsel %vm1471, %v4428, 0.0
    %4439 = vadd.xlane.f32.xlu0 %v4438
    %v4440 = vpop.xlane.xlu0 %4439
    %v4441 = vmul.f32 %v4431, %v4351
    %v4442 = vmul.f32 %v4434, %v4351
    %v4443 = vmul.f32 %v4437, %v4351
    %v4444 = vmul.f32 %v4440, %v4351
    %v4445 = vld [vmem:[%s33] sm:$0xff]
    %v4446 = vld [vmem:[%s33 + $0x8] sm:$0xff]
    %v4447 = vld [vmem:[%s33 + $0x10] sm:$0xff]
    %v4448 = vld [vmem:[%s33 + $0x18] sm:$0xff]
    %v4449 = vmul.f32 %v4441, %v4445
    %v4450 = vmul.f32 %v4442, %v4446
    %v4451 = vmul.f32 %v4443, %v4447
    %v4452 = vmul.f32 %v4444, %v4448
    %4454 = vset.pattern.permute.xlu0 0
    %4455 = vperm.xlu0 %4454, %v4449
    %v4456 = vpop.permute.xlu0 %4455
    %4459 = vset.pattern.permute.xlu0 0
    %4460 = vperm.xlu0 %4459, %v4450
    %v4461 = vpop.permute.xlu0 %4460
    %4464 = vset.pattern.permute.xlu0 0
    %4465 = vperm.xlu0 %4464, %v4451
    %v4466 = vpop.permute.xlu0 %4465
    %4469 = vset.pattern.permute.xlu0 0
    %4470 = vperm.xlu0 %4469, %v4452
    %v4471 = vpop.permute.xlu0 %4470
    %v4473 = vsub.f32 %v4425, %v4456
    %v4474 = vsub.f32 %v4426, %v4461
    %v4475 = vsub.f32 %v4427, %v4466
    %v4476 = vsub.f32 %v4428, %v4471
    %v4477 = vmul.f32 %v4473, %v4473
    %v4478 = vmul.f32 %v4474, %v4474
    %v4479 = vmul.f32 %v4475, %v4475
    %v4480 = vmul.f32 %v4476, %v4476
    %v4481 = vsel %vm1471, %v4477, 0.0
    %4482 = vadd.xlane.f32.xlu0 %v4481
    %v4483 = vpop.xlane.xlu0 %4482
    %v4484 = vsel %vm1471, %v4478, 0.0
    %4485 = vadd.xlane.f32.xlu0 %v4484
    %v4486 = vpop.xlane.xlu0 %4485
    %v4487 = vsel %vm1471, %v4479, 0.0
    %4488 = vadd.xlane.f32.xlu0 %v4487
    %v4489 = vpop.xlane.xlu0 %4488
    %v4490 = vsel %vm1471, %v4480, 0.0
    %4491 = vadd.xlane.f32.xlu0 %v4490
    %v4492 = vpop.xlane.xlu0 %4491
    %v4493 = vmul.f32 %v4483, %v4351
    %v4494 = vmul.f32 %v4486, %v4351
    %v4495 = vmul.f32 %v4489, %v4351
    %v4496 = vmul.f32 %v4492, %v4351
    %v4497 = vld [vmem:[%s29] sm:$0xff]
    %v4498 = vld [vmem:[%s29 + $0x8] sm:$0xff]
    %v4499 = vld [vmem:[%s29 + $0x10] sm:$0xff]
    %v4500 = vld [vmem:[%s29 + $0x18] sm:$0xff]
    %4502 = vset.pattern.permute.xlu0 0
    %4503 = vperm.xlu0 %4502, %v4497
    %v4504 = vpop.permute.xlu0 %4503
    %4507 = vset.pattern.permute.xlu0 0
    %4508 = vperm.xlu0 %4507, %v4498
    %v4509 = vpop.permute.xlu0 %4508
    %4512 = vset.pattern.permute.xlu0 0
    %4513 = vperm.xlu0 %4512, %v4499
    %v4514 = vpop.permute.xlu0 %4513
    %4517 = vset.pattern.permute.xlu0 0
    %4518 = vperm.xlu0 %4517, %v4500
    %v4519 = vpop.permute.xlu0 %4518
    %v4521 = vmul.f32 %v4504, %v4473
    %v4522 = vmul.f32 %v4509, %v4474
    %v4523 = vmul.f32 %v4514, %v4475
    %v4524 = vmul.f32 %v4519, %v4476
    %v4525 = vadd.f32 %v4493, 1e-05
    %v4526 = vadd.f32 %v4494, 1e-05
    %v4527 = vadd.f32 %v4495, 1e-05
    %v4528 = vadd.f32 %v4496, 1e-05
    %v4529 = vrsqrt.pop %v4525
    %v4530 = vrsqrt.pop %v4526
    %v4531 = vrsqrt.pop %v4527
    %v4532 = vrsqrt.pop %v4528
    %v4533 = vmul.f32 %v4521, %v4529
    %v4534 = vmul.f32 %v4522, %v4530
    %v4535 = vmul.f32 %v4523, %v4531
    %v4536 = vmul.f32 %v4524, %v4532
    %v4537 = vld [vmem:[%s31] sm:$0xff]
    %v4538 = vld [vmem:[%s31 + $0x8] sm:$0xff]
    %v4539 = vld [vmem:[%s31 + $0x10] sm:$0xff]
    %v4540 = vld [vmem:[%s31 + $0x18] sm:$0xff]
    %4542 = vset.pattern.permute.xlu0 0
    %4543 = vperm.xlu0 %4542, %v4537
    %v4544 = vpop.permute.xlu0 %4543
    %4547 = vset.pattern.permute.xlu0 0
    %4548 = vperm.xlu0 %4547, %v4538
    %v4549 = vpop.permute.xlu0 %4548
    %4552 = vset.pattern.permute.xlu0 0
    %4553 = vperm.xlu0 %4552, %v4539
    %v4554 = vpop.permute.xlu0 %4553
    %4557 = vset.pattern.permute.xlu0 0
    %4558 = vperm.xlu0 %4557, %v4540
    %v4559 = vpop.permute.xlu0 %4558
    %v4561 = vadd.f32 %v4533, %v4544
    %v4562 = vadd.f32 %v4534, %v4549
    %v4563 = vadd.f32 %v4535, %v4554
    %v4564 = vadd.f32 %v4536, %v4559
    %v4565 = vmax.f32 %v4561, 0.0
    %v4566 = vmax.f32 %v4562, 0.0
    %v4567 = vmax.f32 %v4563, 0.0
    %v4568 = vmax.f32 %v4564, 0.0
    %v4569 = vld [vmem:[#allocation11] sm:$0xff]
    %v4570 = vld [vmem:[#allocation11 + $0x8] sm:$0xff]
    %v4571 = vld [vmem:[#allocation11 + $0x10] sm:$0xff]
    %v4572 = vld [vmem:[#allocation11 + $0x18] sm:$0xff]
    %v4573 = vld [vmem:[%s37] sm:$0x1]
    %v4575 = vlaneseq
    %v4576 = vshrl.u32 %v4575, 7
    %v4577 = vsub.s32 0, %v4576
    %v4578 = vrot.slane %v4573, %v4577
    %v4581 = vsel %vm4341, %v4395, 0
    %v4584 = vsel %vm4341, %v4396, 0
    %4586 = vmatprep.subr.mxu0 0.0
    %4587 = vmatpush1.msra.mxu0 0.0
    %4588 = vmatprep.subr.mxu0 0.0
    %4589 = vmatpush1.msra.mxu0 0.0
    %4590 = vmatprep.subr.mxu0 0.0
    %4591 = vmatpush1.msra.mxu0 0.0
    %4592 = vmatprep.subr.mxu0 0.0
    %4593 = vmatpush1.msra.mxu0 0.0
    %4594 = vmatprep.subr.mxu0 0.0
    %4595 = vmatpush1.msra.mxu0 0.0
    %4596 = vmatprep.subr.mxu0 0.0
    %4597 = vmatpush1.msra.mxu0 0.0
    %4598 = vmatprep.subr.mxu0 0.0
    %4599 = vmatpush1.msra.mxu0 0.0
    %4600 = vmatprep.subr.mxu0 0.0
    %4601 = vmatpush1.msra.mxu0 0.0
    %4602 = vmatprep.subr.mxu0 0.0
    %4603 = vmatpush1.msra.mxu0 0.0
    %4604 = vmatprep.subr.mxu0 0.0
    %4605 = vmatpush1.msra.mxu0 0.0
    %4606 = vmatprep.subr.mxu0 0.0
    %4607 = vmatpush1.msra.mxu0 0.0
    %4608 = vmatprep.subr.mxu0 0.0
    %4609 = vmatpush1.msra.mxu0 0.0
    %4610 = vmatprep.subr.mxu0 0.0
    %4611 = vmatpush1.msra.mxu0 %v4572
    %4612 = vmatprep.subr.mxu0 0.0
    %4613 = vmatpush1.msra.mxu0 %v4571
    %4614 = vmatprep.subr.mxu0 0.0
    %4615 = vmatpush1.msra.mxu0 %v4570
    %4616 = vmatprep.subr.mxu0 0.0
    %4617 = vmatpush1.msra.mxu0 %v4569
    %4618 = vmatprep.subr.mxu0 0.0
    %4619 = vmatpush2.msra.mxu0 0.0
    %4620 = vmatprep.subr.mxu0 0.0
    %4621 = vmatpush2.msra.mxu0 0.0
    %4622 = vmatprep.subr.mxu0 0.0
    %4623 = vmatpush2.msra.mxu0 0.0
    %4624 = vmatprep.subr.mxu0 0.0
    %4625 = vmatpush2.msra.mxu0 0.0
    %4626 = vmatprep.subr.mxu0 0.0
    %4627 = vmatpush2.msra.mxu0 0.0
    %4628 = vmatprep.subr.mxu0 0.0
    %4629 = vmatpush2.msra.mxu0 0.0
    %4630 = vmatprep.subr.mxu0 0.0
    %4631 = vmatpush2.msra.mxu0 0.0
    %4632 = vmatprep.subr.mxu0 0.0
    %4633 = vmatpush2.msra.mxu0 0.0
    %4634 = vmatprep.subr.mxu0 0.0
    %4635 = vmatpush2.msra.mxu0 0.0
    %4636 = vmatprep.subr.mxu0 0.0
    %4637 = vmatpush2.msra.mxu0 0.0
    %4638 = vmatprep.subr.mxu0 0.0
    %4639 = vmatpush2.msra.mxu0 0.0
    %4640 = vmatprep.subr.mxu0 0.0
    %4641 = vmatpush2.msra.mxu0 0.0
    %4642 = vmatprep.subr.mxu0 0.0
    %4643 = vmatpush2.msra.mxu0 0.0
    %4644 = vmatprep.subr.mxu0 0.0
    %4645 = vmatpush2.msra.mxu0 0.0
    %4646 = vmatprep.subr.mxu0 0.0
    %4647 = vmatpush2.msra.mxu0 0.0
    %4648 = vmatprep.subr.mxu0 0.0
    %4649 = vmatpush2.msra.mxu0 0.0
    %4650 = vmatprep.mubr.f32.mxu0 0.0
    %4651 = vmatmul.mubr.f32.gmra.mxu0 %v4581
    %v4652 = vpop.f32.mrf.mxu0
    %v4653 = vadd.f32 %v4578, %v4652
    %v4654 = vpop.f32.mrf.mxu0
    %4655 = vmatprep.mubr.f32.mxu0 0.0
    %4656 = vmatmul.mubr.f32.gmra.mxu0 %v4584
    %v4657 = vpop.f32.mrf.mxu0
    %v4658 = vadd.f32 %v4578, %v4657
    %v4659 = vpop.f32.mrf.mxu0
    %4660 = vdwg.mxu0
    %v4661 = vld [vmem:[#allocation13] sm:$0xff]
    %v4662 = vld [vmem:[#allocation13 + $0x8] sm:$0xff]
    %v4663 = vld [vmem:[#allocation13 + $0x10] sm:$0xff]
    %v4664 = vld [vmem:[#allocation13 + $0x18] sm:$0xff]
    %v4665 = vld [vmem:[#allocation13 + $0x20] sm:$0xff]
    %v4666 = vld [vmem:[#allocation13 + $0x28] sm:$0xff]
    %v4667 = vld [vmem:[#allocation13 + $0x30] sm:$0xff]
    %v4668 = vld [vmem:[#allocation13 + $0x38] sm:$0xff]
    %v4669 = vld [vmem:[#allocation14] sm:$0xff]
    %v4670 = vld [vmem:[#allocation14 + $0x8] sm:$0xff]
    %v4671 = vld [vmem:[#allocation14 + $0x10] sm:$0xff]
    %v4672 = vld [vmem:[#allocation14 + $0x18] sm:$0xff]
    %v4673 = vld [vmem:[#allocation14 + $0x20] sm:$0xff]
    %v4674 = vld [vmem:[#allocation14 + $0x28] sm:$0xff]
    %v4675 = vld [vmem:[#allocation14 + $0x30] sm:$0xff]
    %v4676 = vld [vmem:[#allocation14 + $0x38] sm:$0xff]
    %4678 = vset.pattern.permute.xlu0 0
    %4679 = vperm.xlu0 %4678, %v4669
    %v4680 = vpop.permute.xlu0 %4679
    %4683 = vset.pattern.permute.xlu0 0
    %4684 = vperm.xlu0 %4683, %v4670
    %v4685 = vpop.permute.xlu0 %4684
    %4688 = vset.pattern.permute.xlu0 0
    %4689 = vperm.xlu0 %4688, %v4671
    %v4690 = vpop.permute.xlu0 %4689
    %4693 = vset.pattern.permute.xlu0 0
    %4694 = vperm.xlu0 %4693, %v4672
    %v4695 = vpop.permute.xlu0 %4694
    %4698 = vset.pattern.permute.xlu0 0
    %4699 = vperm.xlu0 %4698, %v4673
    %v4700 = vpop.permute.xlu0 %4699
    %4702 = vset.pattern.permute.xlu0 0
    %4703 = vperm.xlu0 %4702, %v4674
    %v4704 = vpop.permute.xlu0 %4703
    %4706 = vset.pattern.permute.xlu0 0
    %4707 = vperm.xlu0 %4706, %v4675
    %v4708 = vpop.permute.xlu0 %4707
    %4710 = vset.pattern.permute.xlu0 0
    %4711 = vperm.xlu0 %4710, %v4676
    %v4712 = vpop.permute.xlu0 %4711
    %v4714 = vsel %vm4341, %v4661, 0
    %v4717 = vsel %vm4341, %v4662, 0
    %v4720 = vsel %vm4341, %v4663, 0
    %v4723 = vsel %vm4341, %v4664, 0
    %v4726 = vsel %vm4341, %v4665, 0
    %v4729 = vsel %vm4341, %v4666, 0
    %v4732 = vsel %vm4341, %v4667, 0
    %v4735 = vsel %vm4341, %v4668, 0
    %4737 = vmatprep.subr.mxu0 0.0
    %4738 = vmatpush1.msra.mxu0 0.0
    %4739 = vmatprep.subr.mxu0 0.0
    %4740 = vmatpush1.msra.mxu0 0.0
    %4741 = vmatprep.subr.mxu0 0.0
    %4742 = vmatpush1.msra.mxu0 0.0
    %4743 = vmatprep.subr.mxu0 0.0
    %4744 = vmatpush1.msra.mxu0 0.0
    %4745 = vmatprep.subr.mxu0 0.0
    %4746 = vmatpush1.msra.mxu0 0.0
    %4747 = vmatprep.subr.mxu0 0.0
    %4748 = vmatpush1.msra.mxu0 0.0
    %4749 = vmatprep.subr.mxu0 0.0
    %4750 = vmatpush1.msra.mxu0 0.0
    %4751 = vmatprep.subr.mxu0 0.0
    %4752 = vmatpush1.msra.mxu0 0.0
    %4753 = vmatprep.subr.mxu0 0.0
    %4754 = vmatpush1.msra.mxu0 0.0
    %4755 = vmatprep.subr.mxu0 0.0
    %4756 = vmatpush1.msra.mxu0 0.0
    %4757 = vmatprep.subr.mxu0 0.0
    %4758 = vmatpush1.msra.mxu0 0.0
    %4759 = vmatprep.subr.mxu0 0.0
    %4760 = vmatpush1.msra.mxu0 0.0
    %4761 = vmatprep.subr.mxu0 0.0
    %4762 = vmatpush1.msra.mxu0 %v4568
    %4763 = vmatprep.subr.mxu0 0.0
    %4764 = vmatpush1.msra.mxu0 %v4567
    %4765 = vmatprep.subr.mxu0 0.0
    %4766 = vmatpush1.msra.mxu0 %v4566
    %4767 = vmatprep.subr.mxu0 0.0
    %4768 = vmatpush1.msra.mxu0 %v4565
    %4769 = vmatprep.subr.mxu0 0.0
    %4770 = vmatpush2.msra.mxu0 0.0
    %4771 = vmatprep.subr.mxu0 0.0
    %4772 = vmatpush2.msra.mxu0 0.0
    %4773 = vmatprep.subr.mxu0 0.0
    %4774 = vmatpush2.msra.mxu0 0.0
    %4775 = vmatprep.subr.mxu0 0.0
    %4776 = vmatpush2.msra.mxu0 0.0
    %4777 = vmatprep.subr.mxu0 0.0
    %4778 = vmatpush2.msra.mxu0 0.0
    %4779 = vmatprep.subr.mxu0 0.0
    %4780 = vmatpush2.msra.mxu0 0.0
    %4781 = vmatprep.subr.mxu0 0.0
    %4782 = vmatpush2.msra.mxu0 0.0
    %4783 = vmatprep.subr.mxu0 0.0
    %4784 = vmatpush2.msra.mxu0 0.0
    %4785 = vmatprep.subr.mxu0 0.0
    %4786 = vmatpush2.msra.mxu0 0.0
    %4787 = vmatprep.subr.mxu0 0.0
    %4788 = vmatpush2.msra.mxu0 0.0
    %4789 = vmatprep.subr.mxu0 0.0
    %4790 = vmatpush2.msra.mxu0 0.0
    %4791 = vmatprep.subr.mxu0 0.0
    %4792 = vmatpush2.msra.mxu0 0.0
    %4793 = vmatprep.subr.mxu0 0.0
    %4794 = vmatpush2.msra.mxu0 0.0
    %4795 = vmatprep.subr.mxu0 0.0
    %4796 = vmatpush2.msra.mxu0 0.0
    %4797 = vmatprep.subr.mxu0 0.0
    %4798 = vmatpush2.msra.mxu0 0.0
    %4799 = vmatprep.subr.mxu0 0.0
    %4800 = vmatpush2.msra.mxu0 0.0
    %4801 = vmatprep.mubr.f32.mxu0 0.0
    %4802 = vmatmul.mubr.f32.gmra.mxu0 %v4714
    %v4803 = vpop.f32.mrf.mxu0
    %v4804 = vadd.f32 %v4680, %v4803
    %v4805 = vpop.f32.mrf.mxu0
    %4806 = vmatprep.mubr.f32.mxu0 0.0
    %4807 = vmatmul.mubr.f32.gmra.mxu0 %v4717
    %v4808 = vpop.f32.mrf.mxu0
    %v4809 = vadd.f32 %v4685, %v4808
    %v4810 = vpop.f32.mrf.mxu0
    %4811 = vmatprep.mubr.f32.mxu0 0.0
    %4812 = vmatmul.mubr.f32.gmra.mxu0 %v4720
    %v4813 = vpop.f32.mrf.mxu0
    %v4814 = vadd.f32 %v4690, %v4813
    %v4815 = vpop.f32.mrf.mxu0
    %4816 = vmatprep.mubr.f32.mxu0 0.0
    %4817 = vmatmul.mubr.f32.gmra.mxu0 %v4723
    %v4818 = vpop.f32.mrf.mxu0
    %v4819 = vadd.f32 %v4695, %v4818
    %v4820 = vpop.f32.mrf.mxu0
    %4821 = vmatprep.mubr.f32.mxu0 0.0
    %4822 = vmatmul.mubr.f32.gmra.mxu0 %v4726
    %v4823 = vpop.f32.mrf.mxu0
    %v4824 = vpop.f32.mrf.mxu0
    %4825 = vmatprep.mubr.f32.mxu0 0.0
    %4826 = vmatmul.mubr.f32.gmra.mxu0 %v4729
    %v4827 = vpop.f32.mrf.mxu0
    %v4828 = vpop.f32.mrf.mxu0
    %4829 = vmatprep.mubr.f32.mxu0 0.0
    %4830 = vmatmul.mubr.f32.gmra.mxu0 %v4732
    %v4831 = vpop.f32.mrf.mxu0
    %v4832 = vpop.f32.mrf.mxu0
    %4833 = vmatprep.mubr.f32.mxu0 0.0
    %4834 = vmatmul.mubr.f32.gmra.mxu0 %v4735
    %v4835 = vpop.f32.mrf.mxu0
    %v4836 = vpop.f32.mrf.mxu0
    %4837 = vdwg.mxu0
    %4839 = vset.pattern.permute.xlu0 32
    %4840 = vperm.xlu0 %4839, %v4653
    %v4841 = vpop.permute.xlu0 %4840
    %4844 = vset.pattern.permute.xlu0 32
    %4845 = vperm.xlu0 %4844, %v4658
    %v4846 = vpop.permute.xlu0 %4845
    %v4848 = vlaneseq
    %v4849 = vshrl.u32 %v4848, 7
    %v4850 = vsub.s32 0, %v4849
    %v4851 = vrot.slane %v4804, %v4850
    %v4852 = vadd.f32 %v4841, %v4851
    %v4853 = vadd.f32 %v4846, %v4851
    %vm4854 = vcmp.ge.f32.partialorder %v4852, 0.0
    %vm4855 = vcmp.ge.f32.partialorder %v4853, 0.0
    %v4856 = vmul.f32 %v4852, 0.2
    %v4857 = vmul.f32 %v4853, 0.2
    %v4858 = vsel %vm4854, %v4852, %v4856
    %v4859 = vsel %vm4855, %v4853, %v4857
    %s4860 = sld [smem:[#allocation16]]
    %v4861 = vstv %s4860
    %v4862 = vmul.f32 %v4861, %v4858
    %v4863 = vmul.f32 %v4861, %v4859
    %v4864 = vadd.f32 %v4862, 0.0
    %v4865 = vadd.f32 %v4863, 0.0
    %4866 = vset.pattern.permute.xlu0 33
    %4867 = vperm.xlu0 %4866, %v4653
    %v4868 = vpop.permute.xlu0 %4867
    %4870 = vset.pattern.permute.xlu0 33
    %4871 = vperm.xlu0 %4870, %v4658
    %v4872 = vpop.permute.xlu0 %4871
    %v4874 = vlaneseq
    %v4875 = vshrl.u32 %v4874, 7
    %v4876 = vsub.s32 1, %v4875
    %v4877 = vrot.slane %v4804, %v4876
    %v4878 = vadd.f32 %v4868, %v4877
    %v4879 = vadd.f32 %v4872, %v4877
    %vm4880 = vcmp.ge.f32.partialorder %v4878, 0.0
    %vm4881 = vcmp.ge.f32.partialorder %v4879, 0.0
    %v4882 = vmul.f32 %v4878, 0.2
    %v4883 = vmul.f32 %v4879, 0.2
    %v4884 = vsel %vm4880, %v4878, %v4882
    %v4885 = vsel %vm4881, %v4879, %v4883
    %s4886 = sld [smem:[#allocation16 + $0x1]]
    %v4887 = vstv %s4886
    %v4888 = vmul.f32 %v4887, %v4884
    %v4889 = vmul.f32 %v4887, %v4885
    %v4890 = vadd.f32 %v4864, %v4888
    %v4891 = vadd.f32 %v4865, %v4889
    %4892 = vset.pattern.permute.xlu0 34
    %4893 = vperm.xlu0 %4892, %v4653
    %v4894 = vpop.permute.xlu0 %4893
    %4896 = vset.pattern.permute.xlu0 34
    %4897 = vperm.xlu0 %4896, %v4658
    %v4898 = vpop.permute.xlu0 %4897
    %v4900 = vlaneseq
    %v4901 = vshrl.u32 %v4900, 7
    %v4902 = vsub.s32 2, %v4901
    %v4903 = vrot.slane %v4804, %v4902
    %v4904 = vadd.f32 %v4894, %v4903
    %v4905 = vadd.f32 %v4898, %v4903
    %vm4906 = vcmp.ge.f32.partialorder %v4904, 0.0
    %vm4907 = vcmp.ge.f32.partialorder %v4905, 0.0
    %v4908 = vmul.f32 %v4904, 0.2
    %v4909 = vmul.f32 %v4905, 0.2
    %v4910 = vsel %vm4906, %v4904, %v4908
    %v4911 = vsel %vm4907, %v4905, %v4909
    %s4912 = sld [smem:[#allocation16 + $0x2]]
    %v4913 = vstv %s4912
    %v4914 = vmul.f32 %v4913, %v4910
    %v4915 = vmul.f32 %v4913, %v4911
    %v4916 = vadd.f32 %v4890, %v4914
    %v4917 = vadd.f32 %v4891, %v4915
    %4918 = vset.pattern.permute.xlu0 35
    %4919 = vperm.xlu0 %4918, %v4653
    %v4920 = vpop.permute.xlu0 %4919
    %4922 = vset.pattern.permute.xlu0 35
    %4923 = vperm.xlu0 %4922, %v4658
    %v4924 = vpop.permute.xlu0 %4923
    %v4926 = vlaneseq
    %v4927 = vshrl.u32 %v4926, 7
    %v4928 = vsub.s32 3, %v4927
    %v4929 = vrot.slane %v4804, %v4928
    %v4930 = vadd.f32 %v4920, %v4929
    %v4931 = vadd.f32 %v4924, %v4929
    %vm4932 = vcmp.ge.f32.partialorder %v4930, 0.0
    %vm4933 = vcmp.ge.f32.partialorder %v4931, 0.0
    %v4934 = vmul.f32 %v4930, 0.2
    %v4935 = vmul.f32 %v4931, 0.2
    %v4936 = vsel %vm4932, %v4930, %v4934
    %v4937 = vsel %vm4933, %v4931, %v4935
    %s4938 = sld [smem:[#allocation16 + $0x3]]
    %v4939 = vstv %s4938
    %v4940 = vmul.f32 %v4939, %v4936
    %v4941 = vmul.f32 %v4939, %v4937
    %v4942 = vadd.f32 %v4916, %v4940
    %v4943 = vadd.f32 %v4917, %v4941
    %4944 = vset.pattern.permute.xlu0 36
    %4945 = vperm.xlu0 %4944, %v4653
    %v4946 = vpop.permute.xlu0 %4945
    %4948 = vset.pattern.permute.xlu0 36
    %4949 = vperm.xlu0 %4948, %v4658
    %v4950 = vpop.permute.xlu0 %4949
    %v4952 = vlaneseq
    %v4953 = vshrl.u32 %v4952, 7
    %v4954 = vsub.s32 4, %v4953
    %v4955 = vrot.slane %v4804, %v4954
    %v4956 = vadd.f32 %v4946, %v4955
    %v4957 = vadd.f32 %v4950, %v4955
    %vm4958 = vcmp.ge.f32.partialorder %v4956, 0.0
    %vm4959 = vcmp.ge.f32.partialorder %v4957, 0.0
    %v4960 = vmul.f32 %v4956, 0.2
    %v4961 = vmul.f32 %v4957, 0.2
    %v4962 = vsel %vm4958, %v4956, %v4960
    %v4963 = vsel %vm4959, %v4957, %v4961
    %s4964 = sld [smem:[#allocation16 + $0x4]]
    %v4965 = vstv %s4964
    %v4966 = vmul.f32 %v4965, %v4962
    %v4967 = vmul.f32 %v4965, %v4963
    %v4968 = vadd.f32 %v4942, %v4966
    %v4969 = vadd.f32 %v4943, %v4967
    %4970 = vset.pattern.permute.xlu0 37
    %4971 = vperm.xlu0 %4970, %v4653
    %v4972 = vpop.permute.xlu0 %4971
    %4974 = vset.pattern.permute.xlu0 37
    %4975 = vperm.xlu0 %4974, %v4658
    %v4976 = vpop.permute.xlu0 %4975
    %v4978 = vlaneseq
    %v4979 = vshrl.u32 %v4978, 7
    %v4980 = vsub.s32 5, %v4979
    %v4981 = vrot.slane %v4804, %v4980
    %v4982 = vadd.f32 %v4972, %v4981
    %v4983 = vadd.f32 %v4976, %v4981
    %vm4984 = vcmp.ge.f32.partialorder %v4982, 0.0
    %vm4985 = vcmp.ge.f32.partialorder %v4983, 0.0
    %v4986 = vmul.f32 %v4982, 0.2
    %v4987 = vmul.f32 %v4983, 0.2
    %v4988 = vsel %vm4984, %v4982, %v4986
    %v4989 = vsel %vm4985, %v4983, %v4987
    %s4990 = sld [smem:[#allocation16 + $0x5]]
    %v4991 = vstv %s4990
    %v4992 = vmul.f32 %v4991, %v4988
    %v4993 = vmul.f32 %v4991, %v4989
    %v4994 = vadd.f32 %v4968, %v4992
    %v4995 = vadd.f32 %v4969, %v4993
    %4996 = vset.pattern.permute.xlu0 38
    %4997 = vperm.xlu0 %4996, %v4653
    %v4998 = vpop.permute.xlu0 %4997
    %5000 = vset.pattern.permute.xlu0 38
    %5001 = vperm.xlu0 %5000, %v4658
    %v5002 = vpop.permute.xlu0 %5001
    %v5004 = vlaneseq
    %v5005 = vshrl.u32 %v5004, 7
    %v5006 = vsub.s32 6, %v5005
    %v5007 = vrot.slane %v4804, %v5006
    %v5008 = vadd.f32 %v4998, %v5007
    %v5009 = vadd.f32 %v5002, %v5007
    %vm5010 = vcmp.ge.f32.partialorder %v5008, 0.0
    %vm5011 = vcmp.ge.f32.partialorder %v5009, 0.0
    %v5012 = vmul.f32 %v5008, 0.2
    %v5013 = vmul.f32 %v5009, 0.2
    %v5014 = vsel %vm5010, %v5008, %v5012
    %v5015 = vsel %vm5011, %v5009, %v5013
    %s5016 = sld [smem:[#allocation16 + $0x6]]
    %v5017 = vstv %s5016
    %v5018 = vmul.f32 %v5017, %v5014
    %v5019 = vmul.f32 %v5017, %v5015
    %v5020 = vadd.f32 %v4994, %v5018
    %v5021 = vadd.f32 %v4995, %v5019
    %5022 = vset.pattern.permute.xlu0 39
    %5023 = vperm.xlu0 %5022, %v4653
    %v5024 = vpop.permute.xlu0 %5023
    %5026 = vset.pattern.permute.xlu0 39
    %5027 = vperm.xlu0 %5026, %v4658
    %v5028 = vpop.permute.xlu0 %5027
    %v5030 = vlaneseq
    %v5031 = vshrl.u32 %v5030, 7
    %v5032 = vsub.s32 7, %v5031
    %v5033 = vrot.slane %v4804, %v5032
    %v5034 = vadd.f32 %v5024, %v5033
    %v5035 = vadd.f32 %v5028, %v5033
    %vm5036 = vcmp.ge.f32.partialorder %v5034, 0.0
    %vm5037 = vcmp.ge.f32.partialorder %v5035, 0.0
    %v5038 = vmul.f32 %v5034, 0.2
    %v5039 = vmul.f32 %v5035, 0.2
    %v5040 = vsel %vm5036, %v5034, %v5038
    %v5041 = vsel %vm5037, %v5035, %v5039
    %s5042 = sld [smem:[#allocation16 + $0x7]]
    %v5043 = vstv %s5042
    %v5044 = vmul.f32 %v5043, %v5040
    %v5045 = vmul.f32 %v5043, %v5041
    %v5046 = vadd.f32 %v5020, %v5044
    %v5047 = vadd.f32 %v5021, %v5045
    %5048 = vset.pattern.permute.xlu0 40
    %5049 = vperm.xlu0 %5048, %v4653
    %v5050 = vpop.permute.xlu0 %5049
    %5052 = vset.pattern.permute.xlu0 40
    %5053 = vperm.xlu0 %5052, %v4658
    %v5054 = vpop.permute.xlu0 %5053
    %v5056 = vlaneseq
    %v5057 = vshrl.u32 %v5056, 7
    %v5058 = vsub.s32 0, %v5057
    %v5059 = vrot.slane %v4809, %v5058
    %v5060 = vadd.f32 %v5050, %v5059
    %v5061 = vadd.f32 %v5054, %v5059
    %vm5062 = vcmp.ge.f32.partialorder %v5060, 0.0
    %vm5063 = vcmp.ge.f32.partialorder %v5061, 0.0
    %v5064 = vmul.f32 %v5060, 0.2
    %v5065 = vmul.f32 %v5061, 0.2
    %v5066 = vsel %vm5062, %v5060, %v5064
    %v5067 = vsel %vm5063, %v5061, %v5065
    %s5068 = sld [smem:[#allocation16 + $0x8]]
    %v5069 = vstv %s5068
    %v5070 = vmul.f32 %v5069, %v5066
    %v5071 = vmul.f32 %v5069, %v5067
    %v5072 = vadd.f32 %v5046, %v5070
    %v5073 = vadd.f32 %v5047, %v5071
    %5074 = vset.pattern.permute.xlu0 41
    %5075 = vperm.xlu0 %5074, %v4653
    %v5076 = vpop.permute.xlu0 %5075
    %5078 = vset.pattern.permute.xlu0 41
    %5079 = vperm.xlu0 %5078, %v4658
    %v5080 = vpop.permute.xlu0 %5079
    %v5082 = vlaneseq
    %v5083 = vshrl.u32 %v5082, 7
    %v5084 = vsub.s32 1, %v5083
    %v5085 = vrot.slane %v4809, %v5084
    %v5086 = vadd.f32 %v5076, %v5085
    %v5087 = vadd.f32 %v5080, %v5085
    %vm5088 = vcmp.ge.f32.partialorder %v5086, 0.0
    %vm5089 = vcmp.ge.f32.partialorder %v5087, 0.0
    %v5090 = vmul.f32 %v5086, 0.2
    %v5091 = vmul.f32 %v5087, 0.2
    %v5092 = vsel %vm5088, %v5086, %v5090
    %v5093 = vsel %vm5089, %v5087, %v5091
    %s5094 = sld [smem:[#allocation16 + $0x9]]
    %v5095 = vstv %s5094
    %v5096 = vmul.f32 %v5095, %v5092
    %v5097 = vmul.f32 %v5095, %v5093
    %v5098 = vadd.f32 %v5072, %v5096
    %v5099 = vadd.f32 %v5073, %v5097
    %5100 = vset.pattern.permute.xlu0 42
    %5101 = vperm.xlu0 %5100, %v4653
    %v5102 = vpop.permute.xlu0 %5101
    %5104 = vset.pattern.permute.xlu0 42
    %5105 = vperm.xlu0 %5104, %v4658
    %v5106 = vpop.permute.xlu0 %5105
    %v5108 = vlaneseq
    %v5109 = vshrl.u32 %v5108, 7
    %v5110 = vsub.s32 2, %v5109
    %v5111 = vrot.slane %v4809, %v5110
    %v5112 = vadd.f32 %v5102, %v5111
    %v5113 = vadd.f32 %v5106, %v5111
    %vm5114 = vcmp.ge.f32.partialorder %v5112, 0.0
    %vm5115 = vcmp.ge.f32.partialorder %v5113, 0.0
    %v5116 = vmul.f32 %v5112, 0.2
    %v5117 = vmul.f32 %v5113, 0.2
    %v5118 = vsel %vm5114, %v5112, %v5116
    %v5119 = vsel %vm5115, %v5113, %v5117
    %s5120 = sld [smem:[#allocation16 + $0xa]]
    %v5121 = vstv %s5120
    %v5122 = vmul.f32 %v5121, %v5118
    %v5123 = vmul.f32 %v5121, %v5119
    %v5124 = vadd.f32 %v5098, %v5122
    %v5125 = vadd.f32 %v5099, %v5123
    %5126 = vset.pattern.permute.xlu0 43
    %5127 = vperm.xlu0 %5126, %v4653
    %v5128 = vpop.permute.xlu0 %5127
    %5130 = vset.pattern.permute.xlu0 43
    %5131 = vperm.xlu0 %5130, %v4658
    %v5132 = vpop.permute.xlu0 %5131
    %v5134 = vlaneseq
    %v5135 = vshrl.u32 %v5134, 7
    %v5136 = vsub.s32 3, %v5135
    %v5137 = vrot.slane %v4809, %v5136
    %v5138 = vadd.f32 %v5128, %v5137
    %v5139 = vadd.f32 %v5132, %v5137
    %vm5140 = vcmp.ge.f32.partialorder %v5138, 0.0
    %vm5141 = vcmp.ge.f32.partialorder %v5139, 0.0
    %v5142 = vmul.f32 %v5138, 0.2
    %v5143 = vmul.f32 %v5139, 0.2
    %v5144 = vsel %vm5140, %v5138, %v5142
    %v5145 = vsel %vm5141, %v5139, %v5143
    %s5146 = sld [smem:[#allocation16 + $0xb]]
    %v5147 = vstv %s5146
    %v5148 = vmul.f32 %v5147, %v5144
    %v5149 = vmul.f32 %v5147, %v5145
    %v5150 = vadd.f32 %v5124, %v5148
    %v5151 = vadd.f32 %v5125, %v5149
    %5152 = vset.pattern.permute.xlu0 44
    %5153 = vperm.xlu0 %5152, %v4653
    %v5154 = vpop.permute.xlu0 %5153
    %5156 = vset.pattern.permute.xlu0 44
    %5157 = vperm.xlu0 %5156, %v4658
    %v5158 = vpop.permute.xlu0 %5157
    %v5160 = vlaneseq
    %v5161 = vshrl.u32 %v5160, 7
    %v5162 = vsub.s32 4, %v5161
    %v5163 = vrot.slane %v4809, %v5162
    %v5164 = vadd.f32 %v5154, %v5163
    %v5165 = vadd.f32 %v5158, %v5163
    %vm5166 = vcmp.ge.f32.partialorder %v5164, 0.0
    %vm5167 = vcmp.ge.f32.partialorder %v5165, 0.0
    %v5168 = vmul.f32 %v5164, 0.2
    %v5169 = vmul.f32 %v5165, 0.2
    %v5170 = vsel %vm5166, %v5164, %v5168
    %v5171 = vsel %vm5167, %v5165, %v5169
    %s5172 = sld [smem:[#allocation16 + $0xc]]
    %v5173 = vstv %s5172
    %v5174 = vmul.f32 %v5173, %v5170
    %v5175 = vmul.f32 %v5173, %v5171
    %v5176 = vadd.f32 %v5150, %v5174
    %v5177 = vadd.f32 %v5151, %v5175
    %5178 = vset.pattern.permute.xlu0 45
    %5179 = vperm.xlu0 %5178, %v4653
    %v5180 = vpop.permute.xlu0 %5179
    %5182 = vset.pattern.permute.xlu0 45
    %5183 = vperm.xlu0 %5182, %v4658
    %v5184 = vpop.permute.xlu0 %5183
    %v5186 = vlaneseq
    %v5187 = vshrl.u32 %v5186, 7
    %v5188 = vsub.s32 5, %v5187
    %v5189 = vrot.slane %v4809, %v5188
    %v5190 = vadd.f32 %v5180, %v5189
    %v5191 = vadd.f32 %v5184, %v5189
    %vm5192 = vcmp.ge.f32.partialorder %v5190, 0.0
    %vm5193 = vcmp.ge.f32.partialorder %v5191, 0.0
    %v5194 = vmul.f32 %v5190, 0.2
    %v5195 = vmul.f32 %v5191, 0.2
    %v5196 = vsel %vm5192, %v5190, %v5194
    %v5197 = vsel %vm5193, %v5191, %v5195
    %s5198 = sld [smem:[#allocation16 + $0xd]]
    %v5199 = vstv %s5198
    %v5200 = vmul.f32 %v5199, %v5196
    %v5201 = vmul.f32 %v5199, %v5197
    %v5202 = vadd.f32 %v5176, %v5200
    %v5203 = vadd.f32 %v5177, %v5201
    %5204 = vset.pattern.permute.xlu0 46
    %5205 = vperm.xlu0 %5204, %v4653
    %v5206 = vpop.permute.xlu0 %5205
    %5208 = vset.pattern.permute.xlu0 46
    %5209 = vperm.xlu0 %5208, %v4658
    %v5210 = vpop.permute.xlu0 %5209
    %v5212 = vlaneseq
    %v5213 = vshrl.u32 %v5212, 7
    %v5214 = vsub.s32 6, %v5213
    %v5215 = vrot.slane %v4809, %v5214
    %v5216 = vadd.f32 %v5206, %v5215
    %v5217 = vadd.f32 %v5210, %v5215
    %vm5218 = vcmp.ge.f32.partialorder %v5216, 0.0
    %vm5219 = vcmp.ge.f32.partialorder %v5217, 0.0
    %v5220 = vmul.f32 %v5216, 0.2
    %v5221 = vmul.f32 %v5217, 0.2
    %v5222 = vsel %vm5218, %v5216, %v5220
    %v5223 = vsel %vm5219, %v5217, %v5221
    %s5224 = sld [smem:[#allocation16 + $0xe]]
    %v5225 = vstv %s5224
    %v5226 = vmul.f32 %v5225, %v5222
    %v5227 = vmul.f32 %v5225, %v5223
    %v5228 = vadd.f32 %v5202, %v5226
    %v5229 = vadd.f32 %v5203, %v5227
    %5230 = vset.pattern.permute.xlu0 47
    %5231 = vperm.xlu0 %5230, %v4653
    %v5232 = vpop.permute.xlu0 %5231
    %5234 = vset.pattern.permute.xlu0 47
    %5235 = vperm.xlu0 %5234, %v4658
    %v5236 = vpop.permute.xlu0 %5235
    %v5238 = vlaneseq
    %v5239 = vshrl.u32 %v5238, 7
    %v5240 = vsub.s32 7, %v5239
    %v5241 = vrot.slane %v4809, %v5240
    %v5242 = vadd.f32 %v5232, %v5241
    %v5243 = vadd.f32 %v5236, %v5241
    %vm5244 = vcmp.ge.f32.partialorder %v5242, 0.0
    %vm5245 = vcmp.ge.f32.partialorder %v5243, 0.0
    %v5246 = vmul.f32 %v5242, 0.2
    %v5247 = vmul.f32 %v5243, 0.2
    %v5248 = vsel %vm5244, %v5242, %v5246
    %v5249 = vsel %vm5245, %v5243, %v5247
    %s5250 = sld [smem:[#allocation16 + $0xf]]
    %v5251 = vstv %s5250
    %v5252 = vmul.f32 %v5251, %v5248
    %v5253 = vmul.f32 %v5251, %v5249
    %v5254 = vadd.f32 %v5228, %v5252
    %v5255 = vadd.f32 %v5229, %v5253
    %v5256 = vadd.f32 %v5254, %v229
    %v5257 = vadd.f32 %v5255, %v230
    %v5258 = vsel %vm1471, %v5256, -inf
    %5259 = vmax.xlane.f32.xlu0 %v5258
    %v5260 = vpop.xlane.xlu0 %5259
    %v5261 = vsel %vm1471, %v5257, -inf
    %5262 = vmax.xlane.f32.xlu0 %v5261
    %v5263 = vpop.xlane.xlu0 %5262
    %v5264 = vsub.f32 %v5256, %v5260
    %v5265 = vsub.f32 %v5257, %v5263
    %v5266 = vmul.f32 %v5264, 1.442695
    %v5267 = vpow.pop %v5266
    %v5268 = vmul.f32 %v5265, 1.442695
    %v5269 = vpow.pop %v5268
    %v5270 = vsel %vm1471, %v5267, 0.0
    %5271 = vadd.xlane.f32.xlu0 %v5270
    %v5272 = vpop.xlane.xlu0 %5271
    %v5273 = vsel %vm1471, %v5269, 0.0
    %5274 = vadd.xlane.f32.xlu0 %v5273
    %v5275 = vpop.xlane.xlu0 %5274
    %v5276 = vmax.f32 %v5272, 1e-20
    %v5277 = vmax.f32 %v5275, 1e-20
    %v5278 = vrcp.pop %v5276
    %v5279 = vrcp.pop %v5277
    %v5280 = vmul.f32 %v5276, %v5278
    %v5281 = vmul.f32 %v5277, %v5279
    %v5282 = vsub.f32 2.0, %v5280
    %v5283 = vsub.f32 2.0, %v5281
    %v5284 = vmul.f32 %v5278, %v5282
    %v5285 = vmul.f32 %v5279, %v5283
    %v5286 = vmul.f32 %v5267, %v5284
    %v5287 = vmul.f32 %v5269, %v5285
    %5288 = vset.pattern.permute.xlu0 48
    %5289 = vperm.xlu0 %5288, %v4653
    %v5290 = vpop.permute.xlu0 %5289
    %5292 = vset.pattern.permute.xlu0 48
    %5293 = vperm.xlu0 %5292, %v4658
    %v5294 = vpop.permute.xlu0 %5293
    %v5296 = vlaneseq
    %v5297 = vshrl.u32 %v5296, 7
    %v5298 = vsub.s32 0, %v5297
    %v5299 = vrot.slane %v4814, %v5298
    %v5300 = vadd.f32 %v5290, %v5299
    %v5301 = vadd.f32 %v5294, %v5299
    %vm5302 = vcmp.ge.f32.partialorder %v5300, 0.0
    %vm5303 = vcmp.ge.f32.partialorder %v5301, 0.0
    %v5304 = vmul.f32 %v5300, 0.2
    %v5305 = vmul.f32 %v5301, 0.2
    %v5306 = vsel %vm5302, %v5300, %v5304
    %v5307 = vsel %vm5303, %v5301, %v5305
    %s5308 = sld [smem:[#allocation16 + $0x80]]
    %v5309 = vstv %s5308
    %v5310 = vmul.f32 %v5309, %v5306
    %v5311 = vmul.f32 %v5309, %v5307
    %v5312 = vadd.f32 %v5310, 0.0
    %v5313 = vadd.f32 %v5311, 0.0
    %5314 = vset.pattern.permute.xlu0 49
    %5315 = vperm.xlu0 %5314, %v4653
    %v5316 = vpop.permute.xlu0 %5315
    %5318 = vset.pattern.permute.xlu0 49
    %5319 = vperm.xlu0 %5318, %v4658
    %v5320 = vpop.permute.xlu0 %5319
    %v5322 = vlaneseq
    %v5323 = vshrl.u32 %v5322, 7
    %v5324 = vsub.s32 1, %v5323
    %v5325 = vrot.slane %v4814, %v5324
    %v5326 = vadd.f32 %v5316, %v5325
    %v5327 = vadd.f32 %v5320, %v5325
    %vm5328 = vcmp.ge.f32.partialorder %v5326, 0.0
    %vm5329 = vcmp.ge.f32.partialorder %v5327, 0.0
    %v5330 = vmul.f32 %v5326, 0.2
    %v5331 = vmul.f32 %v5327, 0.2
    %v5332 = vsel %vm5328, %v5326, %v5330
    %v5333 = vsel %vm5329, %v5327, %v5331
    %s5334 = sld [smem:[#allocation16 + $0x81]]
    %v5335 = vstv %s5334
    %v5336 = vmul.f32 %v5335, %v5332
    %v5337 = vmul.f32 %v5335, %v5333
    %v5338 = vadd.f32 %v5312, %v5336
    %v5339 = vadd.f32 %v5313, %v5337
    %5340 = vset.pattern.permute.xlu0 50
    %5341 = vperm.xlu0 %5340, %v4653
    %v5342 = vpop.permute.xlu0 %5341
    %5344 = vset.pattern.permute.xlu0 50
    %5345 = vperm.xlu0 %5344, %v4658
    %v5346 = vpop.permute.xlu0 %5345
    %v5348 = vlaneseq
    %v5349 = vshrl.u32 %v5348, 7
    %v5350 = vsub.s32 2, %v5349
    %v5351 = vrot.slane %v4814, %v5350
    %v5352 = vadd.f32 %v5342, %v5351
    %v5353 = vadd.f32 %v5346, %v5351
    %vm5354 = vcmp.ge.f32.partialorder %v5352, 0.0
    %vm5355 = vcmp.ge.f32.partialorder %v5353, 0.0
    %v5356 = vmul.f32 %v5352, 0.2
    %v5357 = vmul.f32 %v5353, 0.2
    %v5358 = vsel %vm5354, %v5352, %v5356
    %v5359 = vsel %vm5355, %v5353, %v5357
    %s5360 = sld [smem:[#allocation16 + $0x82]]
    %v5361 = vstv %s5360
    %v5362 = vmul.f32 %v5361, %v5358
    %v5363 = vmul.f32 %v5361, %v5359
    %v5364 = vadd.f32 %v5338, %v5362
    %v5365 = vadd.f32 %v5339, %v5363
    %5366 = vset.pattern.permute.xlu0 51
    %5367 = vperm.xlu0 %5366, %v4653
    %v5368 = vpop.permute.xlu0 %5367
    %5370 = vset.pattern.permute.xlu0 51
    %5371 = vperm.xlu0 %5370, %v4658
    %v5372 = vpop.permute.xlu0 %5371
    %v5374 = vlaneseq
    %v5375 = vshrl.u32 %v5374, 7
    %v5376 = vsub.s32 3, %v5375
    %v5377 = vrot.slane %v4814, %v5376
    %v5378 = vadd.f32 %v5368, %v5377
    %v5379 = vadd.f32 %v5372, %v5377
    %vm5380 = vcmp.ge.f32.partialorder %v5378, 0.0
    %vm5381 = vcmp.ge.f32.partialorder %v5379, 0.0
    %v5382 = vmul.f32 %v5378, 0.2
    %v5383 = vmul.f32 %v5379, 0.2
    %v5384 = vsel %vm5380, %v5378, %v5382
    %v5385 = vsel %vm5381, %v5379, %v5383
    %s5386 = sld [smem:[#allocation16 + $0x83]]
    %v5387 = vstv %s5386
    %v5388 = vmul.f32 %v5387, %v5384
    %v5389 = vmul.f32 %v5387, %v5385
    %v5390 = vadd.f32 %v5364, %v5388
    %v5391 = vadd.f32 %v5365, %v5389
    %5392 = vset.pattern.permute.xlu0 52
    %5393 = vperm.xlu0 %5392, %v4653
    %v5394 = vpop.permute.xlu0 %5393
    %5396 = vset.pattern.permute.xlu0 52
    %5397 = vperm.xlu0 %5396, %v4658
    %v5398 = vpop.permute.xlu0 %5397
    %v5400 = vlaneseq
    %v5401 = vshrl.u32 %v5400, 7
    %v5402 = vsub.s32 4, %v5401
    %v5403 = vrot.slane %v4814, %v5402
    %v5404 = vadd.f32 %v5394, %v5403
    %v5405 = vadd.f32 %v5398, %v5403
    %vm5406 = vcmp.ge.f32.partialorder %v5404, 0.0
    %vm5407 = vcmp.ge.f32.partialorder %v5405, 0.0
    %v5408 = vmul.f32 %v5404, 0.2
    %v5409 = vmul.f32 %v5405, 0.2
    %v5410 = vsel %vm5406, %v5404, %v5408
    %v5411 = vsel %vm5407, %v5405, %v5409
    %s5412 = sld [smem:[#allocation16 + $0x84]]
    %v5413 = vstv %s5412
    %v5414 = vmul.f32 %v5413, %v5410
    %v5415 = vmul.f32 %v5413, %v5411
    %v5416 = vadd.f32 %v5390, %v5414
    %v5417 = vadd.f32 %v5391, %v5415
    %5418 = vset.pattern.permute.xlu0 53
    %5419 = vperm.xlu0 %5418, %v4653
    %v5420 = vpop.permute.xlu0 %5419
    %5422 = vset.pattern.permute.xlu0 53
    %5423 = vperm.xlu0 %5422, %v4658
    %v5424 = vpop.permute.xlu0 %5423
    %v5426 = vlaneseq
    %v5427 = vshrl.u32 %v5426, 7
    %v5428 = vsub.s32 5, %v5427
    %v5429 = vrot.slane %v4814, %v5428
    %v5430 = vadd.f32 %v5420, %v5429
    %v5431 = vadd.f32 %v5424, %v5429
    %vm5432 = vcmp.ge.f32.partialorder %v5430, 0.0
    %vm5433 = vcmp.ge.f32.partialorder %v5431, 0.0
    %v5434 = vmul.f32 %v5430, 0.2
    %v5435 = vmul.f32 %v5431, 0.2
    %v5436 = vsel %vm5432, %v5430, %v5434
    %v5437 = vsel %vm5433, %v5431, %v5435
    %s5438 = sld [smem:[#allocation16 + $0x85]]
    %v5439 = vstv %s5438
    %v5440 = vmul.f32 %v5439, %v5436
    %v5441 = vmul.f32 %v5439, %v5437
    %v5442 = vadd.f32 %v5416, %v5440
    %v5443 = vadd.f32 %v5417, %v5441
    %5444 = vset.pattern.permute.xlu0 54
    %5445 = vperm.xlu0 %5444, %v4653
    %v5446 = vpop.permute.xlu0 %5445
    %5448 = vset.pattern.permute.xlu0 54
    %5449 = vperm.xlu0 %5448, %v4658
    %v5450 = vpop.permute.xlu0 %5449
    %v5452 = vlaneseq
    %v5453 = vshrl.u32 %v5452, 7
    %v5454 = vsub.s32 6, %v5453
    %v5455 = vrot.slane %v4814, %v5454
    %v5456 = vadd.f32 %v5446, %v5455
    %v5457 = vadd.f32 %v5450, %v5455
    %vm5458 = vcmp.ge.f32.partialorder %v5456, 0.0
    %vm5459 = vcmp.ge.f32.partialorder %v5457, 0.0
    %v5460 = vmul.f32 %v5456, 0.2
    %v5461 = vmul.f32 %v5457, 0.2
    %v5462 = vsel %vm5458, %v5456, %v5460
    %v5463 = vsel %vm5459, %v5457, %v5461
    %s5464 = sld [smem:[#allocation16 + $0x86]]
    %v5465 = vstv %s5464
    %v5466 = vmul.f32 %v5465, %v5462
    %v5467 = vmul.f32 %v5465, %v5463
    %v5468 = vadd.f32 %v5442, %v5466
    %v5469 = vadd.f32 %v5443, %v5467
    %5470 = vset.pattern.permute.xlu0 55
    %5471 = vperm.xlu0 %5470, %v4653
    %v5472 = vpop.permute.xlu0 %5471
    %5474 = vset.pattern.permute.xlu0 55
    %5475 = vperm.xlu0 %5474, %v4658
    %v5476 = vpop.permute.xlu0 %5475
    %v5478 = vlaneseq
    %v5479 = vshrl.u32 %v5478, 7
    %v5480 = vsub.s32 7, %v5479
    %v5481 = vrot.slane %v4814, %v5480
    %v5482 = vadd.f32 %v5472, %v5481
    %v5483 = vadd.f32 %v5476, %v5481
    %vm5484 = vcmp.ge.f32.partialorder %v5482, 0.0
    %vm5485 = vcmp.ge.f32.partialorder %v5483, 0.0
    %v5486 = vmul.f32 %v5482, 0.2
    %v5487 = vmul.f32 %v5483, 0.2
    %v5488 = vsel %vm5484, %v5482, %v5486
    %v5489 = vsel %vm5485, %v5483, %v5487
    %s5490 = sld [smem:[#allocation16 + $0x87]]
    %v5491 = vstv %s5490
    %v5492 = vmul.f32 %v5491, %v5488
    %v5493 = vmul.f32 %v5491, %v5489
    %v5494 = vadd.f32 %v5468, %v5492
    %v5495 = vadd.f32 %v5469, %v5493
    %5496 = vset.pattern.permute.xlu0 56
    %5497 = vperm.xlu0 %5496, %v4653
    %v5498 = vpop.permute.xlu0 %5497
    %5500 = vset.pattern.permute.xlu0 56
    %5501 = vperm.xlu0 %5500, %v4658
    %v5502 = vpop.permute.xlu0 %5501
    %v5504 = vlaneseq
    %v5505 = vshrl.u32 %v5504, 7
    %v5506 = vsub.s32 0, %v5505
    %v5507 = vrot.slane %v4819, %v5506
    %v5508 = vadd.f32 %v5498, %v5507
    %v5509 = vadd.f32 %v5502, %v5507
    %vm5510 = vcmp.ge.f32.partialorder %v5508, 0.0
    %vm5511 = vcmp.ge.f32.partialorder %v5509, 0.0
    %v5512 = vmul.f32 %v5508, 0.2
    %v5513 = vmul.f32 %v5509, 0.2
    %v5514 = vsel %vm5510, %v5508, %v5512
    %v5515 = vsel %vm5511, %v5509, %v5513
    %s5516 = sld [smem:[#allocation16 + $0x88]]
    %v5517 = vstv %s5516
    %v5518 = vmul.f32 %v5517, %v5514
    %v5519 = vmul.f32 %v5517, %v5515
    %v5520 = vadd.f32 %v5494, %v5518
    %v5521 = vadd.f32 %v5495, %v5519
    %5522 = vset.pattern.permute.xlu0 57
    %5523 = vperm.xlu0 %5522, %v4653
    %v5524 = vpop.permute.xlu0 %5523
    %5526 = vset.pattern.permute.xlu0 57
    %5527 = vperm.xlu0 %5526, %v4658
    %v5528 = vpop.permute.xlu0 %5527
    %v5530 = vlaneseq
    %v5531 = vshrl.u32 %v5530, 7
    %v5532 = vsub.s32 1, %v5531
    %v5533 = vrot.slane %v4819, %v5532
    %v5534 = vadd.f32 %v5524, %v5533
    %v5535 = vadd.f32 %v5528, %v5533
    %vm5536 = vcmp.ge.f32.partialorder %v5534, 0.0
    %vm5537 = vcmp.ge.f32.partialorder %v5535, 0.0
    %v5538 = vmul.f32 %v5534, 0.2
    %v5539 = vmul.f32 %v5535, 0.2
    %v5540 = vsel %vm5536, %v5534, %v5538
    %v5541 = vsel %vm5537, %v5535, %v5539
    %s5542 = sld [smem:[#allocation16 + $0x89]]
    %v5543 = vstv %s5542
    %v5544 = vmul.f32 %v5543, %v5540
    %v5545 = vmul.f32 %v5543, %v5541
    %v5546 = vadd.f32 %v5520, %v5544
    %v5547 = vadd.f32 %v5521, %v5545
    %5548 = vset.pattern.permute.xlu0 58
    %5549 = vperm.xlu0 %5548, %v4653
    %v5550 = vpop.permute.xlu0 %5549
    %5552 = vset.pattern.permute.xlu0 58
    %5553 = vperm.xlu0 %5552, %v4658
    %v5554 = vpop.permute.xlu0 %5553
    %v5556 = vlaneseq
    %v5557 = vshrl.u32 %v5556, 7
    %v5558 = vsub.s32 2, %v5557
    %v5559 = vrot.slane %v4819, %v5558
    %v5560 = vadd.f32 %v5550, %v5559
    %v5561 = vadd.f32 %v5554, %v5559
    %vm5562 = vcmp.ge.f32.partialorder %v5560, 0.0
    %vm5563 = vcmp.ge.f32.partialorder %v5561, 0.0
    %v5564 = vmul.f32 %v5560, 0.2
    %v5565 = vmul.f32 %v5561, 0.2
    %v5566 = vsel %vm5562, %v5560, %v5564
    %v5567 = vsel %vm5563, %v5561, %v5565
    %s5568 = sld [smem:[#allocation16 + $0x8a]]
    %v5569 = vstv %s5568
    %v5570 = vmul.f32 %v5569, %v5566
    %v5571 = vmul.f32 %v5569, %v5567
    %v5572 = vadd.f32 %v5546, %v5570
    %v5573 = vadd.f32 %v5547, %v5571
    %5574 = vset.pattern.permute.xlu0 59
    %5575 = vperm.xlu0 %5574, %v4653
    %v5576 = vpop.permute.xlu0 %5575
    %5578 = vset.pattern.permute.xlu0 59
    %5579 = vperm.xlu0 %5578, %v4658
    %v5580 = vpop.permute.xlu0 %5579
    %v5582 = vlaneseq
    %v5583 = vshrl.u32 %v5582, 7
    %v5584 = vsub.s32 3, %v5583
    %v5585 = vrot.slane %v4819, %v5584
    %v5586 = vadd.f32 %v5576, %v5585
    %v5587 = vadd.f32 %v5580, %v5585
    %vm5588 = vcmp.ge.f32.partialorder %v5586, 0.0
    %vm5589 = vcmp.ge.f32.partialorder %v5587, 0.0
    %v5590 = vmul.f32 %v5586, 0.2
    %v5591 = vmul.f32 %v5587, 0.2
    %v5592 = vsel %vm5588, %v5586, %v5590
    %v5593 = vsel %vm5589, %v5587, %v5591
    %s5594 = sld [smem:[#allocation16 + $0x8b]]
    %v5595 = vstv %s5594
    %v5596 = vmul.f32 %v5595, %v5592
    %v5597 = vmul.f32 %v5595, %v5593
    %v5598 = vadd.f32 %v5572, %v5596
    %v5599 = vadd.f32 %v5573, %v5597
    %5600 = vset.pattern.permute.xlu0 60
    %5601 = vperm.xlu0 %5600, %v4653
    %v5602 = vpop.permute.xlu0 %5601
    %5604 = vset.pattern.permute.xlu0 60
    %5605 = vperm.xlu0 %5604, %v4658
    %v5606 = vpop.permute.xlu0 %5605
    %v5608 = vlaneseq
    %v5609 = vshrl.u32 %v5608, 7
    %v5610 = vsub.s32 4, %v5609
    %v5611 = vrot.slane %v4819, %v5610
    %v5612 = vadd.f32 %v5602, %v5611
    %v5613 = vadd.f32 %v5606, %v5611
    %vm5614 = vcmp.ge.f32.partialorder %v5612, 0.0
    %vm5615 = vcmp.ge.f32.partialorder %v5613, 0.0
    %v5616 = vmul.f32 %v5612, 0.2
    %v5617 = vmul.f32 %v5613, 0.2
    %v5618 = vsel %vm5614, %v5612, %v5616
    %v5619 = vsel %vm5615, %v5613, %v5617
    %s5620 = sld [smem:[#allocation16 + $0x8c]]
    %v5621 = vstv %s5620
    %v5622 = vmul.f32 %v5621, %v5618
    %v5623 = vmul.f32 %v5621, %v5619
    %v5624 = vadd.f32 %v5598, %v5622
    %v5625 = vadd.f32 %v5599, %v5623
    %5626 = vset.pattern.permute.xlu0 61
    %5627 = vperm.xlu0 %5626, %v4653
    %v5628 = vpop.permute.xlu0 %5627
    %5630 = vset.pattern.permute.xlu0 61
    %5631 = vperm.xlu0 %5630, %v4658
    %v5632 = vpop.permute.xlu0 %5631
    %v5634 = vlaneseq
    %v5635 = vshrl.u32 %v5634, 7
    %v5636 = vsub.s32 5, %v5635
    %v5637 = vrot.slane %v4819, %v5636
    %v5638 = vadd.f32 %v5628, %v5637
    %v5639 = vadd.f32 %v5632, %v5637
    %vm5640 = vcmp.ge.f32.partialorder %v5638, 0.0
    %vm5641 = vcmp.ge.f32.partialorder %v5639, 0.0
    %v5642 = vmul.f32 %v5638, 0.2
    %v5643 = vmul.f32 %v5639, 0.2
    %v5644 = vsel %vm5640, %v5638, %v5642
    %v5645 = vsel %vm5641, %v5639, %v5643
    %s5646 = sld [smem:[#allocation16 + $0x8d]]
    %v5647 = vstv %s5646
    %v5648 = vmul.f32 %v5647, %v5644
    %v5649 = vmul.f32 %v5647, %v5645
    %v5650 = vadd.f32 %v5624, %v5648
    %v5651 = vadd.f32 %v5625, %v5649
    %5652 = vset.pattern.permute.xlu0 62
    %5653 = vperm.xlu0 %5652, %v4653
    %v5654 = vpop.permute.xlu0 %5653
    %5656 = vset.pattern.permute.xlu0 62
    %5657 = vperm.xlu0 %5656, %v4658
    %v5658 = vpop.permute.xlu0 %5657
    %v5660 = vlaneseq
    %v5661 = vshrl.u32 %v5660, 7
    %v5662 = vsub.s32 6, %v5661
    %v5663 = vrot.slane %v4819, %v5662
    %v5664 = vadd.f32 %v5654, %v5663
    %v5665 = vadd.f32 %v5658, %v5663
    %vm5666 = vcmp.ge.f32.partialorder %v5664, 0.0
    %vm5667 = vcmp.ge.f32.partialorder %v5665, 0.0
    %v5668 = vmul.f32 %v5664, 0.2
    %v5669 = vmul.f32 %v5665, 0.2
    %v5670 = vsel %vm5666, %v5664, %v5668
    %v5671 = vsel %vm5667, %v5665, %v5669
    %s5672 = sld [smem:[#allocation16 + $0x8e]]
    %v5673 = vstv %s5672
    %v5674 = vmul.f32 %v5673, %v5670
    %v5675 = vmul.f32 %v5673, %v5671
    %v5676 = vadd.f32 %v5650, %v5674
    %v5677 = vadd.f32 %v5651, %v5675
    %5678 = vset.pattern.permute.xlu0 63
    %5679 = vperm.xlu0 %5678, %v4653
    %v5680 = vpop.permute.xlu0 %5679
    %5682 = vset.pattern.permute.xlu0 63
    %5683 = vperm.xlu0 %5682, %v4658
    %v5684 = vpop.permute.xlu0 %5683
    %v5686 = vlaneseq
    %v5687 = vshrl.u32 %v5686, 7
    %v5688 = vsub.s32 7, %v5687
    %v5689 = vrot.slane %v4819, %v5688
    %v5690 = vadd.f32 %v5680, %v5689
    %v5691 = vadd.f32 %v5684, %v5689
    %vm5692 = vcmp.ge.f32.partialorder %v5690, 0.0
    %vm5693 = vcmp.ge.f32.partialorder %v5691, 0.0
    %v5694 = vmul.f32 %v5690, 0.2
    %v5695 = vmul.f32 %v5691, 0.2
    %v5696 = vsel %vm5692, %v5690, %v5694
    %v5697 = vsel %vm5693, %v5691, %v5695
    %s5698 = sld [smem:[#allocation16 + $0x8f]]
    %v5699 = vstv %s5698
    %v5700 = vmul.f32 %v5699, %v5696
    %v5701 = vmul.f32 %v5699, %v5697
    %v5702 = vadd.f32 %v5676, %v5700
    %v5703 = vadd.f32 %v5677, %v5701
    %v5704 = vadd.f32 %v5702, %v229
    %v5705 = vadd.f32 %v5703, %v230
    %v5706 = vsel %vm1471, %v5704, -inf
    %5707 = vmax.xlane.f32.xlu0 %v5706
    %v5708 = vpop.xlane.xlu0 %5707
    %v5709 = vsel %vm1471, %v5705, -inf
    %5710 = vmax.xlane.f32.xlu0 %v5709
    %v5711 = vpop.xlane.xlu0 %5710
    %v5712 = vsub.f32 %v5704, %v5708
    %v5713 = vsub.f32 %v5705, %v5711
    %v5714 = vmul.f32 %v5712, 1.442695
    %v5715 = vpow.pop %v5714
    %v5716 = vmul.f32 %v5713, 1.442695
    %v5717 = vpow.pop %v5716
    %v5718 = vsel %vm1471, %v5715, 0.0
    %5719 = vadd.xlane.f32.xlu0 %v5718
    %v5720 = vpop.xlane.xlu0 %5719
    %v5721 = vsel %vm1471, %v5717, 0.0
    %5722 = vadd.xlane.f32.xlu0 %v5721
    %v5723 = vpop.xlane.xlu0 %5722
    %v5724 = vmax.f32 %v5720, 1e-20
    %v5725 = vmax.f32 %v5723, 1e-20
    %v5726 = vrcp.pop %v5724
    %v5727 = vrcp.pop %v5725
    %v5728 = vmul.f32 %v5724, %v5726
    %v5729 = vmul.f32 %v5725, %v5727
    %v5730 = vsub.f32 2.0, %v5728
    %v5731 = vsub.f32 2.0, %v5729
    %v5732 = vmul.f32 %v5726, %v5730
    %v5733 = vmul.f32 %v5727, %v5731
    %v5734 = vmul.f32 %v5715, %v5732
    %v5735 = vmul.f32 %v5717, %v5733
    %5736 = vrot.lane.b32.xlu0 %v4653, 112
    %v5737 = vpop.permute.xlu0 %5736
    %5738 = vrot.lane.b32.xlu0 %v4658, 112
    %v5739 = vpop.permute.xlu0 %5738
    %v5743 = vsel %vm1471, %v5734, 0
    %v5746 = vsel %vm1471, %v5735, 0
    %5748 = vmatprep.subr.mxu0 0.0
    %5749 = vmatpush1.msra.mxu0 0.0
    %5750 = vmatprep.subr.mxu0 0.0
    %5751 = vmatpush1.msra.mxu0 0.0
    %5752 = vmatprep.subr.mxu0 0.0
    %5753 = vmatpush1.msra.mxu0 0.0
    %5754 = vmatprep.subr.mxu0 0.0
    %5755 = vmatpush1.msra.mxu0 0.0
    %5756 = vmatprep.subr.mxu0 0.0
    %5757 = vmatpush1.msra.mxu0 0.0
    %5758 = vmatprep.subr.mxu0 0.0
    %5759 = vmatpush1.msra.mxu0 0.0
    %5760 = vmatprep.subr.mxu0 0.0
    %5761 = vmatpush1.msra.mxu0 0.0
    %5762 = vmatprep.subr.mxu0 0.0
    %5763 = vmatpush1.msra.mxu0 0.0
    %5764 = vmatprep.subr.mxu0 0.0
    %5765 = vmatpush1.msra.mxu0 0.0
    %5766 = vmatprep.subr.mxu0 0.0
    %5767 = vmatpush1.msra.mxu0 0.0
    %5768 = vmatprep.subr.mxu0 0.0
    %5769 = vmatpush1.msra.mxu0 0.0
    %5770 = vmatprep.subr.mxu0 0.0
    %5771 = vmatpush1.msra.mxu0 0.0
    %5772 = vmatprep.subr.mxu0 0.0
    %5773 = vmatpush1.msra.mxu0 0.0
    %5774 = vmatprep.subr.mxu0 0.0
    %5775 = vmatpush1.msra.mxu0 0.0
    %5776 = vmatprep.subr.mxu0 0.0
    %5777 = vmatpush1.msra.mxu0 %v5739
    %5778 = vmatprep.subr.mxu0 0.0
    %5779 = vmatpush1.msra.mxu0 %v5737
    %5780 = vmatprep.subr.mxu0 0.0
    %5781 = vmatpush2.msra.mxu0 0.0
    %5782 = vmatprep.subr.mxu0 0.0
    %5783 = vmatpush2.msra.mxu0 0.0
    %5784 = vmatprep.subr.mxu0 0.0
    %5785 = vmatpush2.msra.mxu0 0.0
    %5786 = vmatprep.subr.mxu0 0.0
    %5787 = vmatpush2.msra.mxu0 0.0
    %5788 = vmatprep.subr.mxu0 0.0
    %5789 = vmatpush2.msra.mxu0 0.0
    %5790 = vmatprep.subr.mxu0 0.0
    %5791 = vmatpush2.msra.mxu0 0.0
    %5792 = vmatprep.subr.mxu0 0.0
    %5793 = vmatpush2.msra.mxu0 0.0
    %5794 = vmatprep.subr.mxu0 0.0
    %5795 = vmatpush2.msra.mxu0 0.0
    %5796 = vmatprep.subr.mxu0 0.0
    %5797 = vmatpush2.msra.mxu0 0.0
    %5798 = vmatprep.subr.mxu0 0.0
    %5799 = vmatpush2.msra.mxu0 0.0
    %5800 = vmatprep.subr.mxu0 0.0
    %5801 = vmatpush2.msra.mxu0 0.0
    %5802 = vmatprep.subr.mxu0 0.0
    %5803 = vmatpush2.msra.mxu0 0.0
    %5804 = vmatprep.subr.mxu0 0.0
    %5805 = vmatpush2.msra.mxu0 0.0
    %5806 = vmatprep.subr.mxu0 0.0
    %5807 = vmatpush2.msra.mxu0 0.0
    %5808 = vmatprep.subr.mxu0 0.0
    %5809 = vmatpush2.msra.mxu0 0.0
    %5810 = vmatprep.subr.mxu0 0.0
    %5811 = vmatpush2.msra.mxu0 0.0
    %5812 = vmatprep.mubr.f32.mxu0 0.0
    %5813 = vmatmul.mubr.f32.gmra.mxu0 %v5743
    %v5814 = vpop.f32.mrf.mxu0
    %v5815 = vadd.f32 0.0, %v5814
    %v5816 = vpop.f32.mrf.mxu0
    %5817 = vmatprep.mubr.f32.mxu0 0.0
    %5818 = vmatmul.mubr.f32.gmra.mxu0 %v5746
    %v5819 = vpop.f32.mrf.mxu0
    %v5820 = vadd.f32 0.0, %v5819
    %v5821 = vpop.f32.mrf.mxu0
    %5822 = vdwg.mxu0
    %v5824 = vsel %vm1471, %v5286, 0
    %v5827 = vsel %vm1471, %v5287, 0
    %5829 = vmatprep.subr.mxu0 0.0
    %5830 = vmatpush1.msra.mxu0 0.0
    %5831 = vmatprep.subr.mxu0 0.0
    %5832 = vmatpush1.msra.mxu0 0.0
    %5833 = vmatprep.subr.mxu0 0.0
    %5834 = vmatpush1.msra.mxu0 0.0
    %5835 = vmatprep.subr.mxu0 0.0
    %5836 = vmatpush1.msra.mxu0 0.0
    %5837 = vmatprep.subr.mxu0 0.0
    %5838 = vmatpush1.msra.mxu0 0.0
    %5839 = vmatprep.subr.mxu0 0.0
    %5840 = vmatpush1.msra.mxu0 0.0
    %5841 = vmatprep.subr.mxu0 0.0
    %5842 = vmatpush1.msra.mxu0 0.0
    %5843 = vmatprep.subr.mxu0 0.0
    %5844 = vmatpush1.msra.mxu0 0.0
    %5845 = vmatprep.subr.mxu0 0.0
    %5846 = vmatpush1.msra.mxu0 0.0
    %5847 = vmatprep.subr.mxu0 0.0
    %5848 = vmatpush1.msra.mxu0 0.0
    %5849 = vmatprep.subr.mxu0 0.0
    %5850 = vmatpush1.msra.mxu0 0.0
    %5851 = vmatprep.subr.mxu0 0.0
    %5852 = vmatpush1.msra.mxu0 0.0
    %5853 = vmatprep.subr.mxu0 0.0
    %5854 = vmatpush1.msra.mxu0 0.0
    %5855 = vmatprep.subr.mxu0 0.0
    %5856 = vmatpush1.msra.mxu0 0.0
    %5857 = vmatprep.subr.mxu0 0.0
    %5858 = vmatpush1.msra.mxu0 %v4658
    %5859 = vmatprep.subr.mxu0 0.0
    %5860 = vmatpush1.msra.mxu0 %v4653
    %5861 = vmatprep.subr.mxu0 0.0
    %5862 = vmatpush2.msra.mxu0 0.0
    %5863 = vmatprep.subr.mxu0 0.0
    %5864 = vmatpush2.msra.mxu0 0.0
    %5865 = vmatprep.subr.mxu0 0.0
    %5866 = vmatpush2.msra.mxu0 0.0
    %5867 = vmatprep.subr.mxu0 0.0
    %5868 = vmatpush2.msra.mxu0 0.0
    %5869 = vmatprep.subr.mxu0 0.0
    %5870 = vmatpush2.msra.mxu0 0.0
    %5871 = vmatprep.subr.mxu0 0.0
    %5872 = vmatpush2.msra.mxu0 0.0
    %5873 = vmatprep.subr.mxu0 0.0
    %5874 = vmatpush2.msra.mxu0 0.0
    %5875 = vmatprep.subr.mxu0 0.0
    %5876 = vmatpush2.msra.mxu0 0.0
    %5877 = vmatprep.subr.mxu0 0.0
    %5878 = vmatpush2.msra.mxu0 0.0
    %5879 = vmatprep.subr.mxu0 0.0
    %5880 = vmatpush2.msra.mxu0 0.0
    %5881 = vmatprep.subr.mxu0 0.0
    %5882 = vmatpush2.msra.mxu0 0.0
    %5883 = vmatprep.subr.mxu0 0.0
    %5884 = vmatpush2.msra.mxu0 0.0
    %5885 = vmatprep.subr.mxu0 0.0
    %5886 = vmatpush2.msra.mxu0 0.0
    %5887 = vmatprep.subr.mxu0 0.0
    %5888 = vmatpush2.msra.mxu0 0.0
    %5889 = vmatprep.subr.mxu0 0.0
    %5890 = vmatpush2.msra.mxu0 0.0
    %5891 = vmatprep.subr.mxu0 0.0
    %5892 = vmatpush2.msra.mxu0 0.0
    %5893 = vmatprep.mubr.f32.mxu0 0.0
    %5894 = vmatmul.mubr.f32.gmra.mxu0 %v5824
    %v5895 = vpop.f32.mrf.mxu0
    %v5896 = vadd.f32 %v5815, %v5895
    %v5897 = vpop.f32.mrf.mxu0
    %5898 = vmatprep.mubr.f32.mxu0 0.0
    %5899 = vmatmul.mubr.f32.gmra.mxu0 %v5827
    %v5900 = vpop.f32.mrf.mxu0
    %v5901 = vadd.f32 %v5820, %v5900
    %v5902 = vpop.f32.mrf.mxu0
    %5903 = vdwg.mxu0
    %v5904 = vmul.f32 %v5896, 0.5
    %v5905 = vmul.f32 %v5901, 0.5
    %v5906 = vld [vmem:[%s45] sm:$0x1]
    %v5908 = vlaneseq
    %v5909 = vshrl.u32 %v5908, 7
    %v5910 = vsub.s32 0, %v5909
    %v5911 = vrot.slane %v5906, %v5910
    %v5913 = vadd.f32 %v5904, %v5911
    %v5914 = vadd.f32 %v5905, %v5911
    %v5915 = vsel %vm1471, %v5913, 0.0
    %v5916 = vsel %vm1471, %v5914, 0.0
    %v5917 = vadd.f32 %v5915, %v5916
    %v5918 = vrot.slane %v5917, 4
    %v5919 = vadd.f32 %v5917, %v5918
    %v5920 = vrot.slane %v5919, 2
    %v5921 = vadd.f32 %v5919, %v5920
    %v5922 = vrot.slane %v5921, 1
    %v5923 = vadd.f32 %v5921, %v5922
    %v5924 = vmul.f32 %v5923, %v4351
    %v5925 = vld [vmem:[%s53] sm:$0x1]
    %v5926 = vmul.f32 %v5924, %v5925
    %v5927 = vlaneseq
    %v5928 = vshrl.u32 %v5927, 7
    %v5929 = vsub.s32 0, %v5928
    %v5930 = vrot.slane %v5926, %v5929
    %v5931 = vsub.f32 %v5913, %v5930
    %v5932 = vsub.f32 %v5914, %v5930
    %v5933 = vmul.f32 %v5931, %v5931
    %v5934 = vmul.f32 %v5932, %v5932
    %v5935 = vsel %vm1471, %v5933, 0.0
    %v5936 = vsel %vm1471, %v5934, 0.0
    %v5937 = vadd.f32 %v5935, %v5936
    %v5938 = vrot.slane %v5937, 4
    %v5939 = vadd.f32 %v5937, %v5938
    %v5940 = vrot.slane %v5939, 2
    %v5941 = vadd.f32 %v5939, %v5940
    %v5942 = vrot.slane %v5941, 1
    %v5943 = vadd.f32 %v5941, %v5942
    %v5944 = vmul.f32 %v5943, %v4351
    %v5945 = vld [vmem:[%s49] sm:$0x1]
    %v5947 = vlaneseq
    %v5948 = vshrl.u32 %v5947, 7
    %v5949 = vsub.s32 0, %v5948
    %v5950 = vrot.slane %v5945, %v5949
    %v5952 = vmul.f32 %v5950, %v5931
    %v5953 = vmul.f32 %v5950, %v5932
    %v5954 = vadd.f32 %v5944, 1e-05
    %v5955 = vrsqrt.pop %v5954
    %v5956 = vmul.f32 %v5952, %v5955
    %v5957 = vmul.f32 %v5953, %v5955
    %v5958 = vld [vmem:[%s51] sm:$0x1]
    %v5960 = vlaneseq
    %v5961 = vshrl.u32 %v5960, 7
    %v5962 = vsub.s32 0, %v5961
    %v5963 = vrot.slane %v5958, %v5962
    %v5965 = vadd.f32 %v5956, %v5963
    %v5966 = vadd.f32 %v5957, %v5963
    %v5967 = vmax.f32 %v5965, 0.0
    %v5968 = vmax.f32 %v5966, 0.0
    %5969 = vst.msk [vmem:[#allocation17] sm:$0xff] %vm1471, %v5967
    %5970 = vst.msk [vmem:[#allocation17 + $0x8] sm:$0xff] %vm1471, %v5968
    // Predicated region
    $region154: #{forward.1} parent=1 // pred_check
      _
    $region155: #{forward.1} parent=1 // pred_check_branch
      %5972 = sbr.rel (0) target = $region157
    $region156: #{forward.1} parent=1 // pred_region
      %s5974 = ssub.s32 256, 256
      %5975 = vsyncadd [#allocation4], %s5974
      %s5976 = sshll.u32 [#allocation17], 4
      %s5977 = int_to_ptr.vmem [resolvable:$true] %s5976
      %5982 = dma.vmem_to_hbm [thread:$0]  %s5977, 256, %s61, [#allocation4], 128, 128, 8
    $region157: #{forward.1} parent=1 // pred_fallthru
      _
    // Predicated region
    $region158: #{forward.1} parent=1 // pred_check
      _
    $region159: #{forward.1} parent=1 // pred_check_branch
      %5984 = sbr.rel (0) target = $region161
    $region160: #{forward.1} parent=1 // pred_region
      %5985 = dma.done [#allocation4], 256
    $region161: #{forward.1} parent=1 // pred_fallthru
      _
    %5986 = vsyncpa [#allocation3], 1
    %5987 = vsyncpa [#allocation8], 1
    %5988 = vsyncpa [#allocation12], 1
    %5989 = vsyncpa [#allocation15], 1
    %5990 = vsyncpa [#allocation4], 1
    %5991 = vsyncpa [#allocation5], 1
    %5992 = vsyncpa [#allocation6], 1

</llo_original>
